<compile_context>
chip_gen: v7x
topology: tpu7x:2x2x1
jax: 0.10.0
libtpu: 0.0.40
codegen_flags: <defaults>
</compile_context>

<pallas_src>
import jax
import jax.numpy as jnp
from jax import lax
from jax.experimental import pallas as pl
from jax.experimental.pallas import tpu as pltpu  # noqa: F401  (TPU backend assumed)


# ----------------------------------------------------------------------------
# GRU cell (hoisted-gx form).  gx_* already include b_ih.
# PyTorch gate order [r | z | n]:
#   r = sigmoid(gx_r + h@Whh_r + bhh_r)
#   z = sigmoid(gx_z + h@Whh_z + bhh_z)
#   n = tanh  (gx_n + r * (h@Whh_n + bhh_n))
#   h = (1-z)*n + z*h
# ----------------------------------------------------------------------------
def _gru_step(gx_r, gx_z, gx_n, h, whh, bhh):
    gh_r = jnp.dot(h, whh[0], preferred_element_type=jnp.float32) + bhh[0]
    gh_z = jnp.dot(h, whh[1], preferred_element_type=jnp.float32) + bhh[1]
    gh_n = jnp.dot(h, whh[2], preferred_element_type=jnp.float32) + bhh[2]
    r = jax.nn.sigmoid(gx_r + gh_r)
    z = jax.nn.sigmoid(gx_z + gh_z)
    n = jnp.tanh(gx_n + r * gh_n)
    return (1.0 - z) * n + z * h


# ----------------------------------------------------------------------------
# Pallas kernels
# ----------------------------------------------------------------------------
def bigru_layer_kernel(xa_ref, xb_ref, wiha_ref, wihb_ref, bih_ref,
                       whh_ref, bhh_ref, yf_ref, yb_ref):
    """Fused bidirectional GRU layer producing all per-step hidden states.

    xa_ref : (T, B, Da)      first half of the layer input features
    xb_ref : (T, B, Db)      second half of the layer input features
    wiha_ref: (2, 3, Da, H)  [dir, gate(r,z,n)] input->gate weights (top rows)
    wihb_ref: (2, 3, Db, H)  input->gate weights (bottom rows)
    bih_ref : (2, 3, 1, H)
    whh_ref : (2, 3, H, H)   hidden->gate weights, per gate
    bhh_ref : (2, 3, 1, H)
    yf_ref  : (T, B, H)      forward-direction hidden states (time order)
    yb_ref  : (T, B, H)      backward-direction hidden states (time order)
    """
    T, B, Da = xa_ref.shape
    Db = xb_ref.shape[-1]
    H = whh_ref.shape[-1]

    # Hoisted input->gate matmuls: one (T*B, D) @ (D, H) per gate/direction,
    # off the serial recurrence path.
    xa = xa_ref[...].reshape(T * B, Da)
    xb = xb_ref[...].reshape(T * B, Db)

    def hoisted_gates(d):
        gates = []
        for g in range(3):
            gx = (jnp.dot(xa, wiha_ref[d, g], preferred_element_type=jnp.float32)
                  + jnp.dot(xb, wihb_ref[d, g], preferred_element_type=jnp.float32)
                  + bih_ref[d, g])
            gates.append(gx.reshape(T, B, H))
        return gates

    gxf = hoisted_gates(0)   # forward direction
    gxb = hoisted_gates(1)   # backward direction

    wf = [whh_ref[0, g] for g in range(3)]
    wb = [whh_ref[1, g] for g in range(3)]
    bf = [bhh_ref[0, g] for g in range(3)]
    bb = [bhh_ref[1, g] for g in range(3)]

    h_f = jnp.zeros((B, H), jnp.float32)
    h_b = jnp.zeros((B, H), jnp.float32)

    # T is compile-time known: fully unrolled loop, both recurrences interleaved
    # (two independent MXU chains), all loads/stores have static indices.
    for t in range(T):
        tb = T - 1 - t
        h_f = _gru_step(gxf[0][t], gxf[1][t], gxf[2][t], h_f, wf, bf)
        h_b = _gru_step(gxb[0][tb], gxb[1][tb], gxb[2][tb], h_b, wb, bb)
        yf_ref[t] = h_f
        yb_ref[tb] = h_b


def bigru_last_fc_kernel(xa_ref, xb_ref, wiha_ref, wihb_ref, bih_ref,
                         whh_ref, bhh_ref, wfc_ref, bfc_ref, o_ref):
    """Last bidirectional GRU layer fused with the FC head.

    Only out[:, -1, :] is needed downstream, so:
      * forward direction: full recurrence, keep only the final hidden state,
      * backward direction: a single GRU step on x[T-1] (its state at t=T-1),
      * logits = [h_fwd | h_bwd] @ W_fc^T + b_fc, computed in-kernel with the
        FC weight split into a fwd half and a bwd half (no concatenation).

    wfc_ref: (2, H, C)  fc weight (transposed) split into [fwd half, bwd half]
    bfc_ref: (1, C)
    o_ref  : (B, C)
    """
    T, B, Da = xa_ref.shape
    Db = xb_ref.shape[-1]
    H = whh_ref.shape[-1]

    wf = [whh_ref[0, g] for g in range(3)]
    wb = [whh_ref[1, g] for g in range(3)]
    bf = [bhh_ref[0, g] for g in range(3)]
    bb = [bhh_ref[1, g] for g in range(3)]

    # Forward direction: hoisted gx for all timesteps, then unrolled recurrence.
    xa = xa_ref[...].reshape(T * B, Da)
    xb = xb_ref[...].reshape(T * B, Db)
    gxf = []
    for g in range(3):
        gx = (jnp.dot(xa, wiha_ref[0, g], preferred_element_type=jnp.float32)
              + jnp.dot(xb, wihb_ref[0, g], preferred_element_type=jnp.float32)
              + bih_ref[0, g])
        gxf.append(gx.reshape(T, B, H))

    h_f = jnp.zeros((B, H), jnp.float32)
    for t in range(T):
        h_f = _gru_step(gxf[0][t], gxf[1][t], gxf[2][t], h_f, wf, bf)

    # Backward direction: out[:, -1, H:] is the state right after consuming
    # x[T-1] starting from h0 = 0, i.e. exactly one GRU step.
    xa_last = xa_ref[T - 1]
    xb_last = xb_ref[T - 1]
    gxb = [
        jnp.dot(xa_last, wiha_ref[1, g], preferred_element_type=jnp.float32)
        + jnp.dot(xb_last, wihb_ref[1, g], preferred_element_type=jnp.float32)
        + bih_ref[1, g]
        for g in range(3)
    ]
    h_b = _gru_step(gxb[0], gxb[1], gxb[2],
                    jnp.zeros((B, H), jnp.float32), wb, bb)

    # Fused FC on [h_f | h_b]  (split-weight form avoids any concatenation).
    o_ref[...] = (
        jnp.dot(h_f, wfc_ref[0], preferred_element_type=jnp.float32)
        + jnp.dot(h_b, wfc_ref[1], preferred_element_type=jnp.float32)
        + bfc_ref[...]
    )


# ----------------------------------------------------------------------------
# Wrappers around pallas_call (whole arrays resident in VMEM; shapes are tiny,
# so no grid / BlockSpec tiling is needed — one invocation per layer).
# ----------------------------------------------------------------------------
def run_bigru_layer(xa, xb, p):
    T, B, _ = xa.shape
    H = p["whh"].shape[-1]
    out_shape = (jax.ShapeDtypeStruct((T, B, H), jnp.float32),
                 jax.ShapeDtypeStruct((T, B, H), jnp.float32))
    return pl.pallas_call(
        bigru_layer_kernel,
        out_shape=out_shape,
    )(xa, xb, p["wih_a"], p["wih_b"], p["bih"], p["whh"], p["bhh"])


def run_bigru_last_fc(xa, xb, p, fc):
    T, B, _ = xa.shape
    C = fc["w_split"].shape[-1]
    return pl.pallas_call(
        bigru_last_fc_kernel,
        out_shape=jax.ShapeDtypeStruct((B, C), jnp.float32),
    )(xa, xb, p["wih_a"], p["wih_b"], p["bih"], p["whh"], p["bhh"],
      fc["w_split"], fc["b"])


# ----------------------------------------------------------------------------
# Parameter construction (deterministic, PyTorch-shaped, then repacked)
# ----------------------------------------------------------------------------
def init_params(key, input_size, hidden_size, num_layers, num_classes):
    H = hidden_size
    k = 1.0 / jnp.sqrt(hidden_size)
    layers = []
    for layer in range(num_layers):
        d_in = 2 * input_size if layer == 0 else 2 * hidden_size
        half = d_in // 2
        wih_a, wih_b, whh_s, bih_s, bhh_s, raw = [], [], [], [], [], []
        for _ in range(2):  # forward / backward directions
            key, k1, k2, k3, k4 = jax.random.split(key, 5)
            w_ih = jax.random.uniform(k1, (3 * H, d_in), jnp.float32, -k, k)
            w_hh = jax.random.uniform(k2, (3 * H, H), jnp.float32, -k, k)
            b_ih = jax.random.uniform(k3, (3 * H,), jnp.float32, -k, k)
            b_hh = jax.random.uniform(k4, (3 * H,), jnp.float32, -k, k)
            # Repack into per-gate transposed blocks; PyTorch gate order [r|z|n].
            wih_t = jnp.stack([w_ih[g * H:(g + 1) * H].T for g in range(3)])   # (3, d_in, H)
            wih_a.append(wih_t[:, :half, :])
            wih_b.append(wih_t[:, half:, :])
            whh_s.append(jnp.stack([w_hh[g * H:(g + 1) * H].T for g in range(3)]))      # (3, H, H)
            bih_s.append(jnp.stack([b_ih[g * H:(g + 1) * H].reshape(1, H) for g in range(3)]))
            bhh_s.append(jnp.stack([b_hh[g * H:(g + 1) * H].reshape(1, H) for g in range(3)]))
            raw.append(dict(w_ih=w_ih, w_hh=w_hh, b_ih=b_ih, b_hh=b_hh))
        layers.append(dict(
            wih_a=jnp.stack(wih_a),   # (2, 3, half, H)
            wih_b=jnp.stack(wih_b),   # (2, 3, d_in - half, H)
            bih=jnp.stack(bih_s),     # (2, 3, 1, H)
            whh=jnp.stack(whh_s),     # (2, 3, H, H)
            bhh=jnp.stack(bhh_s),     # (2, 3, 1, H)
            raw=raw,                  # original PyTorch-shaped weights (reference)
        ))
    key, k1, k2 = jax.random.split(key, 3)
    kf = 1.0 / jnp.sqrt(2 * H)
    w_fc = jax.random.uniform(k1, (num_classes, 2 * H), jnp.float32, -kf, kf)
    b_fc = jax.random.uniform(k2, (num_classes,), jnp.float32, -kf, kf)
    w_fc_t = w_fc.T                                                   # (2H, C)
    fc = dict(w_split=jnp.stack([w_fc_t[:H], w_fc_t[H:]]),            # (2, H, C)
              b=b_fc.reshape(1, -1),
              w_t=w_fc_t)
    return dict(gru=layers, fc=fc)


# ----------------------------------------------------------------------------
# Full forward pass (hot path entirely in Pallas; only pad/transpose/split in JAX)
# ----------------------------------------------------------------------------
def rnn_forward(params, x, hidden_size, num_layers):
    B, T, D = x.shape
    # Pad batch up to a multiple of 8 (TPU sublane); padded rows carry zero
    # inputs, never interact with real rows, and are sliced away at the end.
    Bp = max(8, ((B + 7) // 8) * 8)
    x_p = jnp.pad(x, ((0, Bp - B), (0, 0), (0, 0)))
    x_tm = jnp.transpose(x_p, (1, 0, 2))           # time-major (T, Bp, D)
    half = D // 2
    xa, xb = x_tm[:, :, :half], x_tm[:, :, half:]  # matches wih row split

    for layer in range(num_layers - 1):
        xa, xb = run_bigru_layer(xa, xb, params["gru"][layer])

    logits = run_bigru_last_fc(xa, xb, params["gru"][num_layers - 1], params["fc"])
    return logits[:B]                              # (B, num_classes)


# ----------------------------------------------------------------------------
# Pure-JAX reference (PyTorch-equivalent math) for the correctness check
# ----------------------------------------------------------------------------
def gru_dir_ref(x_tbd, w_ih, w_hh, b_ih, b_hh):
    H = w_hh.shape[1]
    B = x_tbd.shape[1]

    def step(h, xt):
        gx = xt @ w_ih.T + b_ih
        gh = h @ w_hh.T + b_hh
        r = jax.nn.sigmoid(gx[:, :H] + gh[:, :H])
        z = jax.nn.sigmoid(gx[:, H:2 * H] + gh[:, H:2 * H])
        n = jnp.tanh(gx[:, 2 * H:] + r * gh[:, 2 * H:])
        h_new = (1.0 - z) * n + z * h
        return h_new, h_new

    _, ys = lax.scan(step, jnp.zeros((B, H), jnp.float32), x_tbd)
    return ys


def rnn_forward_ref(params, x, hidden_size, num_layers):
    B, T, _ = x.shape
    layer_in = jnp.transpose(x, (1, 0, 2))
    for layer in range(num_layers):
        raw = params["gru"][layer]["raw"]
        y_f = gru_dir_ref(layer_in, raw[0]["w_ih"], raw[0]["w_hh"],
                          raw[0]["b_ih"], raw[0]["b_hh"])
        y_b = jnp.flip(gru_dir_ref(jnp.flip(layer_in, 0),
                                   raw[1]["w_ih"], raw[1]["w_hh"],
                                   raw[1]["b_ih"], raw[1]["b_hh"]), 0)
        layer_in = jnp.concatenate([y_f, y_b], axis=-1)
    last = layer_in[T - 1]
    return last @ params["fc"]["w_t"] + params["fc"]["b"]


# ----------------------------------------------------------------------------
if __name__ == "__main__":
    input_size = 16       # GRU input dim = 2 * input_size = 32
    hidden_size = 32
    num_layers = 2
    num_classes = 2
    batch = 2
    seq = 8

    key = jax.random.PRNGKey(0)
    key, kx, kp = jax.random.split(key, 3)
    x = jax.random.normal(kx, (batch, seq, 2 * input_size), jnp.float32)
    params = init_params(kp, input_size, hidden_size, num_layers, num_classes)

    out = rnn_forward(params, x, hidden_size, num_layers)
    out = jax.block_until_ready(out)

    ref = rnn_forward_ref(params, x, hidden_size, num_layers)
    assert out.shape == (batch, num_classes)
    assert jnp.allclose(out, ref, atol=1e-4, rtol=1e-4), (out, ref)

    print("KERNEL_OK")
</pallas_src>

<mosaic_0001>
module attributes {stable_mosaic.version = 11 : i64} {
  func.func @bigru_layer_kernel(%arg0: memref<8x8x16xf32, #tpu.memory_space<vmem>>, %arg1: memref<8x8x16xf32, #tpu.memory_space<vmem>>, %arg2: memref<2x3x16x32xf32, #tpu.memory_space<vmem>>, %arg3: memref<2x3x16x32xf32, #tpu.memory_space<vmem>>, %arg4: memref<2x3x1x32xf32, #tpu.memory_space<vmem>>, %arg5: memref<2x3x32x32xf32, #tpu.memory_space<vmem>>, %arg6: memref<2x3x1x32xf32, #tpu.memory_space<vmem>>, %arg7: memref<8x8x32xf32, #tpu.memory_space<vmem>>, %arg8: memref<8x8x32xf32, #tpu.memory_space<vmem>>) attributes {dimension_semantics = [], scalar_prefetch = 0 : i64, scratch_operands = 0 : i64, tpu.core_type = #tpu.core_type<tc>} {
    %c0 = arith.constant 0 : index
    %c0_0 = arith.constant 0 : index
    %c0_1 = arith.constant 0 : index
    %0 = vector.load %arg0[%c0, %c0_0, %c0_1] : memref<8x8x16xf32, #tpu.memory_space<vmem>>, vector<8x8x16xf32>
    %1 = vector.shape_cast %0 : vector<8x8x16xf32> to vector<64x16xf32>
    %c0_2 = arith.constant 0 : index
    %c0_3 = arith.constant 0 : index
    %c0_4 = arith.constant 0 : index
    %2 = vector.load %arg1[%c0_2, %c0_3, %c0_4] : memref<8x8x16xf32, #tpu.memory_space<vmem>>, vector<8x8x16xf32>
    %3 = vector.shape_cast %2 : vector<8x8x16xf32> to vector<64x16xf32>
    %c0_5 = arith.constant 0 : index
    %c0_6 = arith.constant 0 : index
    %c0_7 = arith.constant 0 : index
    %c0_8 = arith.constant 0 : index
    %4 = vector.load %arg2[%c0_5, %c0_6, %c0_7, %c0_8] : memref<2x3x16x32xf32, #tpu.memory_space<vmem>>, vector<1x1x16x32xf32>
    %5 = vector.shape_cast %4 : vector<1x1x16x32xf32> to vector<16x32xf32>
    %cst = arith.constant dense<0.000000e+00> : vector<64x32xf32>
    %6 = tpu.matmul %1, %5, %cst {dimension_numbers = #tpu.dot_dimension_numbers<[1], [0], [0], [1], [0, 0, 1, 1], [], []>} : vector<64x16xf32>, vector<16x32xf32>, vector<64x32xf32> -> vector<64x32xf32>
    %c0_9 = arith.constant 0 : index
    %c0_10 = arith.constant 0 : index
    %c0_11 = arith.constant 0 : index
    %c0_12 = arith.constant 0 : index
    %7 = vector.load %arg3[%c0_9, %c0_10, %c0_11, %c0_12] : memref<2x3x16x32xf32, #tpu.memory_space<vmem>>, vector<1x1x16x32xf32>
    %8 = vector.shape_cast %7 : vector<1x1x16x32xf32> to vector<16x32xf32>
    %cst_13 = arith.constant dense<0.000000e+00> : vector<64x32xf32>
    %9 = tpu.matmul %3, %8, %cst_13 {dimension_numbers = #tpu.dot_dimension_numbers<[1], [0], [0], [1], [0, 0, 1, 1], [], []>} : vector<64x16xf32>, vector<16x32xf32>, vector<64x32xf32> -> vector<64x32xf32>
    %10 = arith.addf %6, %9 : vector<64x32xf32>
    %c0_14 = arith.constant 0 : index
    %c0_15 = arith.constant 0 : index
    %c0_16 = arith.constant 0 : index
    %c0_17 = arith.constant 0 : index
    %11 = vector.load %arg4[%c0_14, %c0_15, %c0_16, %c0_17] : memref<2x3x1x32xf32, #tpu.memory_space<vmem>>, vector<1x1x1x32xf32>
    %12 = vector.shape_cast %11 : vector<1x1x1x32xf32> to vector<1x32xf32>
    %13 = vector.broadcast %12 : vector<1x32xf32> to vector<64x32xf32>
    %14 = arith.addf %10, %13 : vector<64x32xf32>
    %15 = vector.shape_cast %14 : vector<64x32xf32> to vector<8x8x32xf32>
    %c0_18 = arith.constant 0 : index
    %c1 = arith.constant 1 : index
    %c0_19 = arith.constant 0 : index
    %c0_20 = arith.constant 0 : index
    %16 = vector.load %arg2[%c0_18, %c1, %c0_19, %c0_20] : memref<2x3x16x32xf32, #tpu.memory_space<vmem>>, vector<1x1x16x32xf32>
    %17 = vector.shape_cast %16 : vector<1x1x16x32xf32> to vector<16x32xf32>
    %cst_21 = arith.constant dense<0.000000e+00> : vector<64x32xf32>
    %18 = tpu.matmul %1, %17, %cst_21 {dimension_numbers = #tpu.dot_dimension_numbers<[1], [0], [0], [1], [0, 0, 1, 1], [], []>} : vector<64x16xf32>, vector<16x32xf32>, vector<64x32xf32> -> vector<64x32xf32>
    %c0_22 = arith.constant 0 : index
    %c1_23 = arith.constant 1 : index
    %c0_24 = arith.constant 0 : index
    %c0_25 = arith.constant 0 : index
    %19 = vector.load %arg3[%c0_22, %c1_23, %c0_24, %c0_25] : memref<2x3x16x32xf32, #tpu.memory_space<vmem>>, vector<1x1x16x32xf32>
    %20 = vector.shape_cast %19 : vector<1x1x16x32xf32> to vector<16x32xf32>
    %cst_26 = arith.constant dense<0.000000e+00> : vector<64x32xf32>
    %21 = tpu.matmul %3, %20, %cst_26 {dimension_numbers = #tpu.dot_dimension_numbers<[1], [0], [0], [1], [0, 0, 1, 1], [], []>} : vector<64x16xf32>, vector<16x32xf32>, vector<64x32xf32> -> vector<64x32xf32>
    %22 = arith.addf %18, %21 : vector<64x32xf32>
    %c0_27 = arith.constant 0 : index
    %c1_28 = arith.constant 1 : index
    %c0_29 = arith.constant 0 : index
    %c0_30 = arith.constant 0 : index
    %23 = vector.load %arg4[%c0_27, %c1_28, %c0_29, %c0_30] : memref<2x3x1x32xf32, #tpu.memory_space<vmem>>, vector<1x1x1x32xf32>
    %24 = vector.shape_cast %23 : vector<1x1x1x32xf32> to vector<1x32xf32>
    %25 = vector.broadcast %24 : vector<1x32xf32> to vector<64x32xf32>
    %26 = arith.addf %22, %25 : vector<64x32xf32>
    %27 = vector.shape_cast %26 : vector<64x32xf32> to vector<8x8x32xf32>
    %c0_31 = arith.constant 0 : index
    %c2 = arith.constant 2 : index
    %c0_32 = arith.constant 0 : index
    %c0_33 = arith.constant 0 : index
    %28 = vector.load %arg2[%c0_31, %c2, %c0_32, %c0_33] : memref<2x3x16x32xf32, #tpu.memory_space<vmem>>, vector<1x1x16x32xf32>
    %29 = vector.shape_cast %28 : vector<1x1x16x32xf32> to vector<16x32xf32>
    %cst_34 = arith.constant dense<0.000000e+00> : vector<64x32xf32>
    %30 = tpu.matmul %1, %29, %cst_34 {dimension_numbers = #tpu.dot_dimension_numbers<[1], [0], [0], [1], [0, 0, 1, 1], [], []>} : vector<64x16xf32>, vector<16x32xf32>, vector<64x32xf32> -> vector<64x32xf32>
    %c0_35 = arith.constant 0 : index
    %c2_36 = arith.constant 2 : index
    %c0_37 = arith.constant 0 : index
    %c0_38 = arith.constant 0 : index
    %31 = vector.load %arg3[%c0_35, %c2_36, %c0_37, %c0_38] : memref<2x3x16x32xf32, #tpu.memory_space<vmem>>, vector<1x1x16x32xf32>
    %32 = vector.shape_cast %31 : vector<1x1x16x32xf32> to vector<16x32xf32>
    %cst_39 = arith.constant dense<0.000000e+00> : vector<64x32xf32>
    %33 = tpu.matmul %3, %32, %cst_39 {dimension_numbers = #tpu.dot_dimension_numbers<[1], [0], [0], [1], [0, 0, 1, 1], [], []>} : vector<64x16xf32>, vector<16x32xf32>, vector<64x32xf32> -> vector<64x32xf32>
    %34 = arith.addf %30, %33 : vector<64x32xf32>
    %c0_40 = arith.constant 0 : index
    %c2_41 = arith.constant 2 : index
    %c0_42 = arith.constant 0 : index
    %c0_43 = arith.constant 0 : index
    %35 = vector.load %arg4[%c0_40, %c2_41, %c0_42, %c0_43] : memref<2x3x1x32xf32, #tpu.memory_space<vmem>>, vector<1x1x1x32xf32>
    %36 = vector.shape_cast %35 : vector<1x1x1x32xf32> to vector<1x32xf32>
    %37 = vector.broadcast %36 : vector<1x32xf32> to vector<64x32xf32>
    %38 = arith.addf %34, %37 : vector<64x32xf32>
    %39 = vector.shape_cast %38 : vector<64x32xf32> to vector<8x8x32xf32>
    %c1_44 = arith.constant 1 : index
    %c0_45 = arith.constant 0 : index
    %c0_46 = arith.constant 0 : index
    %c0_47 = arith.constant 0 : index
    %40 = vector.load %arg2[%c1_44, %c0_45, %c0_46, %c0_47] : memref<2x3x16x32xf32, #tpu.memory_space<vmem>>, vector<1x1x16x32xf32>
    %41 = vector.shape_cast %40 : vector<1x1x16x32xf32> to vector<16x32xf32>
    %cst_48 = arith.constant dense<0.000000e+00> : vector<64x32xf32>
    %42 = tpu.matmul %1, %41, %cst_48 {dimension_numbers = #tpu.dot_dimension_numbers<[1], [0], [0], [1], [0, 0, 1, 1], [], []>} : vector<64x16xf32>, vector<16x32xf32>, vector<64x32xf32> -> vector<64x32xf32>
    %c1_49 = arith.constant 1 : index
    %c0_50 = arith.constant 0 : index
    %c0_51 = arith.constant 0 : index
    %c0_52 = arith.constant 0 : index
    %43 = vector.load %arg3[%c1_49, %c0_50, %c0_51, %c0_52] : memref<2x3x16x32xf32, #tpu.memory_space<vmem>>, vector<1x1x16x32xf32>
    %44 = vector.shape_cast %43 : vector<1x1x16x32xf32> to vector<16x32xf32>
    %cst_53 = arith.constant dense<0.000000e+00> : vector<64x32xf32>
    %45 = tpu.matmul %3, %44, %cst_53 {dimension_numbers = #tpu.dot_dimension_numbers<[1], [0], [0], [1], [0, 0, 1, 1], [], []>} : vector<64x16xf32>, vector<16x32xf32>, vector<64x32xf32> -> vector<64x32xf32>
    %46 = arith.addf %42, %45 : vector<64x32xf32>
    %c1_54 = arith.constant 1 : index
    %c0_55 = arith.constant 0 : index
    %c0_56 = arith.constant 0 : index
    %c0_57 = arith.constant 0 : index
    %47 = vector.load %arg4[%c1_54, %c0_55, %c0_56, %c0_57] : memref<2x3x1x32xf32, #tpu.memory_space<vmem>>, vector<1x1x1x32xf32>
    %48 = vector.shape_cast %47 : vector<1x1x1x32xf32> to vector<1x32xf32>
    %49 = vector.broadcast %48 : vector<1x32xf32> to vector<64x32xf32>
    %50 = arith.addf %46, %49 : vector<64x32xf32>
    %51 = vector.shape_cast %50 : vector<64x32xf32> to vector<8x8x32xf32>
    %c1_58 = arith.constant 1 : index
    %c1_59 = arith.constant 1 : index
    %c0_60 = arith.constant 0 : index
    %c0_61 = arith.constant 0 : index
    %52 = vector.load %arg2[%c1_58, %c1_59, %c0_60, %c0_61] : memref<2x3x16x32xf32, #tpu.memory_space<vmem>>, vector<1x1x16x32xf32>
    %53 = vector.shape_cast %52 : vector<1x1x16x32xf32> to vector<16x32xf32>
    %cst_62 = arith.constant dense<0.000000e+00> : vector<64x32xf32>
    %54 = tpu.matmul %1, %53, %cst_62 {dimension_numbers = #tpu.dot_dimension_numbers<[1], [0], [0], [1], [0, 0, 1, 1], [], []>} : vector<64x16xf32>, vector<16x32xf32>, vector<64x32xf32> -> vector<64x32xf32>
    %c1_63 = arith.constant 1 : index
    %c1_64 = arith.constant 1 : index
    %c0_65 = arith.constant 0 : index
    %c0_66 = arith.constant 0 : index
    %55 = vector.load %arg3[%c1_63, %c1_64, %c0_65, %c0_66] : memref<2x3x16x32xf32, #tpu.memory_space<vmem>>, vector<1x1x16x32xf32>
    %56 = vector.shape_cast %55 : vector<1x1x16x32xf32> to vector<16x32xf32>
    %cst_67 = arith.constant dense<0.000000e+00> : vector<64x32xf32>
    %57 = tpu.matmul %3, %56, %cst_67 {dimension_numbers = #tpu.dot_dimension_numbers<[1], [0], [0], [1], [0, 0, 1, 1], [], []>} : vector<64x16xf32>, vector<16x32xf32>, vector<64x32xf32> -> vector<64x32xf32>
    %58 = arith.addf %54, %57 : vector<64x32xf32>
    %c1_68 = arith.constant 1 : index
    %c1_69 = arith.constant 1 : index
    %c0_70 = arith.constant 0 : index
    %c0_71 = arith.constant 0 : index
    %59 = vector.load %arg4[%c1_68, %c1_69, %c0_70, %c0_71] : memref<2x3x1x32xf32, #tpu.memory_space<vmem>>, vector<1x1x1x32xf32>
    %60 = vector.shape_cast %59 : vector<1x1x1x32xf32> to vector<1x32xf32>
    %61 = vector.broadcast %60 : vector<1x32xf32> to vector<64x32xf32>
    %62 = arith.addf %58, %61 : vector<64x32xf32>
    %63 = vector.shape_cast %62 : vector<64x32xf32> to vector<8x8x32xf32>
    %c1_72 = arith.constant 1 : index
    %c2_73 = arith.constant 2 : index
    %c0_74 = arith.constant 0 : index
    %c0_75 = arith.constant 0 : index
    %64 = vector.load %arg2[%c1_72, %c2_73, %c0_74, %c0_75] : memref<2x3x16x32xf32, #tpu.memory_space<vmem>>, vector<1x1x16x32xf32>
    %65 = vector.shape_cast %64 : vector<1x1x16x32xf32> to vector<16x32xf32>
    %cst_76 = arith.constant dense<0.000000e+00> : vector<64x32xf32>
    %66 = tpu.matmul %1, %65, %cst_76 {dimension_numbers = #tpu.dot_dimension_numbers<[1], [0], [0], [1], [0, 0, 1, 1], [], []>} : vector<64x16xf32>, vector<16x32xf32>, vector<64x32xf32> -> vector<64x32xf32>
    %c1_77 = arith.constant 1 : index
    %c2_78 = arith.constant 2 : index
    %c0_79 = arith.constant 0 : index
    %c0_80 = arith.constant 0 : index
    %67 = vector.load %arg3[%c1_77, %c2_78, %c0_79, %c0_80] : memref<2x3x16x32xf32, #tpu.memory_space<vmem>>, vector<1x1x16x32xf32>
    %68 = vector.shape_cast %67 : vector<1x1x16x32xf32> to vector<16x32xf32>
    %cst_81 = arith.constant dense<0.000000e+00> : vector<64x32xf32>
    %69 = tpu.matmul %3, %68, %cst_81 {dimension_numbers = #tpu.dot_dimension_numbers<[1], [0], [0], [1], [0, 0, 1, 1], [], []>} : vector<64x16xf32>, vector<16x32xf32>, vector<64x32xf32> -> vector<64x32xf32>
    %70 = arith.addf %66, %69 : vector<64x32xf32>
    %c1_82 = arith.constant 1 : index
    %c2_83 = arith.constant 2 : index
    %c0_84 = arith.constant 0 : index
    %c0_85 = arith.constant 0 : index
    %71 = vector.load %arg4[%c1_82, %c2_83, %c0_84, %c0_85] : memref<2x3x1x32xf32, #tpu.memory_space<vmem>>, vector<1x1x1x32xf32>
    %72 = vector.shape_cast %71 : vector<1x1x1x32xf32> to vector<1x32xf32>
    %73 = vector.broadcast %72 : vector<1x32xf32> to vector<64x32xf32>
    %74 = arith.addf %70, %73 : vector<64x32xf32>
    %75 = vector.shape_cast %74 : vector<64x32xf32> to vector<8x8x32xf32>
    %c0_86 = arith.constant 0 : index
    %c0_87 = arith.constant 0 : index
    %c0_88 = arith.constant 0 : index
    %c0_89 = arith.constant 0 : index
    %76 = vector.load %arg5[%c0_86, %c0_87, %c0_88, %c0_89] : memref<2x3x32x32xf32, #tpu.memory_space<vmem>>, vector<1x1x32x32xf32>
    %77 = vector.shape_cast %76 : vector<1x1x32x32xf32> to vector<32x32xf32>
    %c0_90 = arith.constant 0 : index
    %c1_91 = arith.constant 1 : index
    %c0_92 = arith.constant 0 : index
    %c0_93 = arith.constant 0 : index
    %78 = vector.load %arg5[%c0_90, %c1_91, %c0_92, %c0_93] : memref<2x3x32x32xf32, #tpu.memory_space<vmem>>, vector<1x1x32x32xf32>
    %79 = vector.shape_cast %78 : vector<1x1x32x32xf32> to vector<32x32xf32>
    %c0_94 = arith.constant 0 : index
    %c2_95 = arith.constant 2 : index
    %c0_96 = arith.constant 0 : index
    %c0_97 = arith.constant 0 : index
    %80 = vector.load %arg5[%c0_94, %c2_95, %c0_96, %c0_97] : memref<2x3x32x32xf32, #tpu.memory_space<vmem>>, vector<1x1x32x32xf32>
    %81 = vector.shape_cast %80 : vector<1x1x32x32xf32> to vector<32x32xf32>
    %c1_98 = arith.constant 1 : index
    %c0_99 = arith.constant 0 : index
    %c0_100 = arith.constant 0 : index
    %c0_101 = arith.constant 0 : index
    %82 = vector.load %arg5[%c1_98, %c0_99, %c0_100, %c0_101] : memref<2x3x32x32xf32, #tpu.memory_space<vmem>>, vector<1x1x32x32xf32>
    %83 = vector.shape_cast %82 : vector<1x1x32x32xf32> to vector<32x32xf32>
    %c1_102 = arith.constant 1 : index
    %c1_103 = arith.constant 1 : index
    %c0_104 = arith.constant 0 : index
    %c0_105 = arith.constant 0 : index
    %84 = vector.load %arg5[%c1_102, %c1_103, %c0_104, %c0_105] : memref<2x3x32x32xf32, #tpu.memory_space<vmem>>, vector<1x1x32x32xf32>
    %85 = vector.shape_cast %84 : vector<1x1x32x32xf32> to vector<32x32xf32>
    %c1_106 = arith.constant 1 : index
    %c2_107 = arith.constant 2 : index
    %c0_108 = arith.constant 0 : index
    %c0_109 = arith.constant 0 : index
    %86 = vector.load %arg5[%c1_106, %c2_107, %c0_108, %c0_109] : memref<2x3x32x32xf32, #tpu.memory_space<vmem>>, vector<1x1x32x32xf32>
    %87 = vector.shape_cast %86 : vector<1x1x32x32xf32> to vector<32x32xf32>
    %c0_110 = arith.constant 0 : index
    %c0_111 = arith.constant 0 : index
    %c0_112 = arith.constant 0 : index
    %c0_113 = arith.constant 0 : index
    %88 = vector.load %arg6[%c0_110, %c0_111, %c0_112, %c0_113] : memref<2x3x1x32xf32, #tpu.memory_space<vmem>>, vector<1x1x1x32xf32>
    %89 = vector.shape_cast %88 : vector<1x1x1x32xf32> to vector<1x32xf32>
    %c0_114 = arith.constant 0 : index
    %c1_115 = arith.constant 1 : index
    %c0_116 = arith.constant 0 : index
    %c0_117 = arith.constant 0 : index
    %90 = vector.load %arg6[%c0_114, %c1_115, %c0_116, %c0_117] : memref<2x3x1x32xf32, #tpu.memory_space<vmem>>, vector<1x1x1x32xf32>
    %91 = vector.shape_cast %90 : vector<1x1x1x32xf32> to vector<1x32xf32>
    %c0_118 = arith.constant 0 : index
    %c2_119 = arith.constant 2 : index
    %c0_120 = arith.constant 0 : index
    %c0_121 = arith.constant 0 : index
    %92 = vector.load %arg6[%c0_118, %c2_119, %c0_120, %c0_121] : memref<2x3x1x32xf32, #tpu.memory_space<vmem>>, vector<1x1x1x32xf32>
    %93 = vector.shape_cast %92 : vector<1x1x1x32xf32> to vector<1x32xf32>
    %c1_122 = arith.constant 1 : index
    %c0_123 = arith.constant 0 : index
    %c0_124 = arith.constant 0 : index
    %c0_125 = arith.constant 0 : index
    %94 = vector.load %arg6[%c1_122, %c0_123, %c0_124, %c0_125] : memref<2x3x1x32xf32, #tpu.memory_space<vmem>>, vector<1x1x1x32xf32>
    %95 = vector.shape_cast %94 : vector<1x1x1x32xf32> to vector<1x32xf32>
    %c1_126 = arith.constant 1 : index
    %c1_127 = arith.constant 1 : index
    %c0_128 = arith.constant 0 : index
    %c0_129 = arith.constant 0 : index
    %96 = vector.load %arg6[%c1_126, %c1_127, %c0_128, %c0_129] : memref<2x3x1x32xf32, #tpu.memory_space<vmem>>, vector<1x1x1x32xf32>
    %97 = vector.shape_cast %96 : vector<1x1x1x32xf32> to vector<1x32xf32>
    %c1_130 = arith.constant 1 : index
    %c2_131 = arith.constant 2 : index
    %c0_132 = arith.constant 0 : index
    %c0_133 = arith.constant 0 : index
    %98 = vector.load %arg6[%c1_130, %c2_131, %c0_132, %c0_133] : memref<2x3x1x32xf32, #tpu.memory_space<vmem>>, vector<1x1x1x32xf32>
    %99 = vector.shape_cast %98 : vector<1x1x1x32xf32> to vector<1x32xf32>
    %cst_134 = arith.constant 0.000000e+00 : f32
    %100 = vector.broadcast %cst_134 : f32 to vector<8x32xf32>
    %cst_135 = arith.constant 0.000000e+00 : f32
    %101 = vector.broadcast %cst_135 : f32 to vector<8x32xf32>
    %102 = vector.extract_strided_slice %15 {offsets = [0, 0, 0], sizes = [1, 8, 32], strides = [1, 1, 1]} : vector<8x8x32xf32> to vector<1x8x32xf32>
    %103 = vector.shape_cast %102 : vector<1x8x32xf32> to vector<8x32xf32>
    %104 = vector.extract_strided_slice %27 {offsets = [0, 0, 0], sizes = [1, 8, 32], strides = [1, 1, 1]} : vector<8x8x32xf32> to vector<1x8x32xf32>
    %105 = vector.shape_cast %104 : vector<1x8x32xf32> to vector<8x32xf32>
    %106 = vector.extract_strided_slice %39 {offsets = [0, 0, 0], sizes = [1, 8, 32], strides = [1, 1, 1]} : vector<8x8x32xf32> to vector<1x8x32xf32>
    %107 = vector.shape_cast %106 : vector<1x8x32xf32> to vector<8x32xf32>
    %cst_136 = arith.constant dense<0.000000e+00> : vector<8x32xf32>
    %108 = tpu.matmul %100, %77, %cst_136 {dimension_numbers = #tpu.dot_dimension_numbers<[1], [0], [0], [1], [0, 0, 1, 1], [], []>} : vector<8x32xf32>, vector<32x32xf32>, vector<8x32xf32> -> vector<8x32xf32>
    %109 = vector.broadcast %89 : vector<1x32xf32> to vector<8x32xf32>
    %110 = arith.addf %108, %109 : vector<8x32xf32>
    %cst_137 = arith.constant dense<0.000000e+00> : vector<8x32xf32>
    %111 = tpu.matmul %100, %79, %cst_137 {dimension_numbers = #tpu.dot_dimension_numbers<[1], [0], [0], [1], [0, 0, 1, 1], [], []>} : vector<8x32xf32>, vector<32x32xf32>, vector<8x32xf32> -> vector<8x32xf32>
    %112 = vector.broadcast %91 : vector<1x32xf32> to vector<8x32xf32>
    %113 = arith.addf %111, %112 : vector<8x32xf32>
    %cst_138 = arith.constant dense<0.000000e+00> : vector<8x32xf32>
    %114 = tpu.matmul %100, %81, %cst_138 {dimension_numbers = #tpu.dot_dimension_numbers<[1], [0], [0], [1], [0, 0, 1, 1], [], []>} : vector<8x32xf32>, vector<32x32xf32>, vector<8x32xf32> -> vector<8x32xf32>
    %115 = vector.broadcast %93 : vector<1x32xf32> to vector<8x32xf32>
    %116 = arith.addf %114, %115 : vector<8x32xf32>
    %117 = arith.addf %103, %110 : vector<8x32xf32>
    %118 = arith.negf %117 : vector<8x32xf32>
    %119 = math.exp %118 : vector<8x32xf32>
    %cst_139 = arith.constant 1.000000e+00 : f32
    %120 = vector.broadcast %cst_139 : f32 to vector<8x32xf32>
    %121 = arith.addf %120, %119 : vector<8x32xf32>
    %122 = arith.divf %120, %121 : vector<8x32xf32>
    %123 = arith.addf %105, %113 : vector<8x32xf32>
    %124 = arith.negf %123 : vector<8x32xf32>
    %125 = math.exp %124 : vector<8x32xf32>
    %cst_140 = arith.constant 1.000000e+00 : f32
    %126 = vector.broadcast %cst_140 : f32 to vector<8x32xf32>
    %127 = arith.addf %126, %125 : vector<8x32xf32>
    %128 = arith.divf %126, %127 : vector<8x32xf32>
    %129 = arith.mulf %122, %116 : vector<8x32xf32>
    %130 = arith.addf %107, %129 : vector<8x32xf32>
    %131 = math.tanh %130 : vector<8x32xf32>
    %cst_141 = arith.constant 1.000000e+00 : f32
    %132 = vector.broadcast %cst_141 : f32 to vector<8x32xf32>
    %133 = arith.subf %132, %128 : vector<8x32xf32>
    %134 = arith.mulf %133, %131 : vector<8x32xf32>
    %135 = arith.mulf %128, %100 : vector<8x32xf32>
    %136 = arith.addf %134, %135 : vector<8x32xf32>
    %137 = vector.extract_strided_slice %51 {offsets = [7, 0, 0], sizes = [1, 8, 32], strides = [1, 1, 1]} : vector<8x8x32xf32> to vector<1x8x32xf32>
    %138 = vector.shape_cast %137 : vector<1x8x32xf32> to vector<8x32xf32>
    %139 = vector.extract_strided_slice %63 {offsets = [7, 0, 0], sizes = [1, 8, 32], strides = [1, 1, 1]} : vector<8x8x32xf32> to vector<1x8x32xf32>
    %140 = vector.shape_cast %139 : vector<1x8x32xf32> to vector<8x32xf32>
    %141 = vector.extract_strided_slice %75 {offsets = [7, 0, 0], sizes = [1, 8, 32], strides = [1, 1, 1]} : vector<8x8x32xf32> to vector<1x8x32xf32>
    %142 = vector.shape_cast %141 : vector<1x8x32xf32> to vector<8x32xf32>
    %cst_142 = arith.constant dense<0.000000e+00> : vector<8x32xf32>
    %143 = tpu.matmul %101, %83, %cst_142 {dimension_numbers = #tpu.dot_dimension_numbers<[1], [0], [0], [1], [0, 0, 1, 1], [], []>} : vector<8x32xf32>, vector<32x32xf32>, vector<8x32xf32> -> vector<8x32xf32>
    %144 = vector.broadcast %95 : vector<1x32xf32> to vector<8x32xf32>
    %145 = arith.addf %143, %144 : vector<8x32xf32>
    %cst_143 = arith.constant dense<0.000000e+00> : vector<8x32xf32>
    %146 = tpu.matmul %101, %85, %cst_143 {dimension_numbers = #tpu.dot_dimension_numbers<[1], [0], [0], [1], [0, 0, 1, 1], [], []>} : vector<8x32xf32>, vector<32x32xf32>, vector<8x32xf32> -> vector<8x32xf32>
    %147 = vector.broadcast %97 : vector<1x32xf32> to vector<8x32xf32>
    %148 = arith.addf %146, %147 : vector<8x32xf32>
    %cst_144 = arith.constant dense<0.000000e+00> : vector<8x32xf32>
    %149 = tpu.matmul %101, %87, %cst_144 {dimension_numbers = #tpu.dot_dimension_numbers<[1], [0], [0], [1], [0, 0, 1, 1], [], []>} : vector<8x32xf32>, vector<32x32xf32>, vector<8x32xf32> -> vector<8x32xf32>
    %150 = vector.broadcast %99 : vector<1x32xf32> to vector<8x32xf32>
    %151 = arith.addf %149, %150 : vector<8x32xf32>
    %152 = arith.addf %138, %145 : vector<8x32xf32>
    %153 = arith.negf %152 : vector<8x32xf32>
    %154 = math.exp %153 : vector<8x32xf32>
    %cst_145 = arith.constant 1.000000e+00 : f32
    %155 = vector.broadcast %cst_145 : f32 to vector<8x32xf32>
    %156 = arith.addf %155, %154 : vector<8x32xf32>
    %157 = arith.divf %155, %156 : vector<8x32xf32>
    %158 = arith.addf %140, %148 : vector<8x32xf32>
    %159 = arith.negf %158 : vector<8x32xf32>
    %160 = math.exp %159 : vector<8x32xf32>
    %cst_146 = arith.constant 1.000000e+00 : f32
    %161 = vector.broadcast %cst_146 : f32 to vector<8x32xf32>
    %162 = arith.addf %161, %160 : vector<8x32xf32>
    %163 = arith.divf %161, %162 : vector<8x32xf32>
    %164 = arith.mulf %157, %151 : vector<8x32xf32>
    %165 = arith.addf %142, %164 : vector<8x32xf32>
    %166 = math.tanh %165 : vector<8x32xf32>
    %cst_147 = arith.constant 1.000000e+00 : f32
    %167 = vector.broadcast %cst_147 : f32 to vector<8x32xf32>
    %168 = arith.subf %167, %163 : vector<8x32xf32>
    %169 = arith.mulf %168, %166 : vector<8x32xf32>
    %170 = arith.mulf %163, %101 : vector<8x32xf32>
    %171 = arith.addf %169, %170 : vector<8x32xf32>
    %c0_148 = arith.constant 0 : index
    %c0_149 = arith.constant 0 : index
    %c0_150 = arith.constant 0 : index
    %172 = vector.load %arg7[%c0_148, %c0_149, %c0_150] : memref<8x8x32xf32, #tpu.memory_space<vmem>>, vector<1x8x32xf32>
    %173 = vector.shape_cast %172 : vector<1x8x32xf32> to vector<8x32xf32>
    %174 = vector.shape_cast %136 : vector<8x32xf32> to vector<1x8x32xf32>
    tpu.vector_store %arg7[%c0_148, %c0_149, %c0_150], %174 {strides = array<i32>} : memref<8x8x32xf32, #tpu.memory_space<vmem>>, vector<1x8x32xf32>,
    %c7 = arith.constant 7 : index
    %c0_151 = arith.constant 0 : index
    %c0_152 = arith.constant 0 : index
    %175 = vector.load %arg8[%c7, %c0_151, %c0_152] : memref<8x8x32xf32, #tpu.memory_space<vmem>>, vector<1x8x32xf32>
    %176 = vector.shape_cast %175 : vector<1x8x32xf32> to vector<8x32xf32>
    %177 = vector.shape_cast %171 : vector<8x32xf32> to vector<1x8x32xf32>
    tpu.vector_store %arg8[%c7, %c0_151, %c0_152], %177 {strides = array<i32>} : memref<8x8x32xf32, #tpu.memory_space<vmem>>, vector<1x8x32xf32>,
    %178 = vector.extract_strided_slice %15 {offsets = [1, 0, 0], sizes = [1, 8, 32], strides = [1, 1, 1]} : vector<8x8x32xf32> to vector<1x8x32xf32>
    %179 = vector.shape_cast %178 : vector<1x8x32xf32> to vector<8x32xf32>
    %180 = vector.extract_strided_slice %27 {offsets = [1, 0, 0], sizes = [1, 8, 32], strides = [1, 1, 1]} : vector<8x8x32xf32> to vector<1x8x32xf32>
    %181 = vector.shape_cast %180 : vector<1x8x32xf32> to vector<8x32xf32>
    %182 = vector.extract_strided_slice %39 {offsets = [1, 0, 0], sizes = [1, 8, 32], strides = [1, 1, 1]} : vector<8x8x32xf32> to vector<1x8x32xf32>
    %183 = vector.shape_cast %182 : vector<1x8x32xf32> to vector<8x32xf32>
    %cst_153 = arith.constant dense<0.000000e+00> : vector<8x32xf32>
    %184 = tpu.matmul %136, %77, %cst_153 {dimension_numbers = #tpu.dot_dimension_numbers<[1], [0], [0], [1], [0, 0, 1, 1], [], []>} : vector<8x32xf32>, vector<32x32xf32>, vector<8x32xf32> -> vector<8x32xf32>
    %185 = vector.broadcast %89 : vector<1x32xf32> to vector<8x32xf32>
    %186 = arith.addf %184, %185 : vector<8x32xf32>
    %cst_154 = arith.constant dense<0.000000e+00> : vector<8x32xf32>
    %187 = tpu.matmul %136, %79, %cst_154 {dimension_numbers = #tpu.dot_dimension_numbers<[1], [0], [0], [1], [0, 0, 1, 1], [], []>} : vector<8x32xf32>, vector<32x32xf32>, vector<8x32xf32> -> vector<8x32xf32>
    %188 = vector.broadcast %91 : vector<1x32xf32> to vector<8x32xf32>
    %189 = arith.addf %187, %188 : vector<8x32xf32>
    %cst_155 = arith.constant dense<0.000000e+00> : vector<8x32xf32>
    %190 = tpu.matmul %136, %81, %cst_155 {dimension_numbers = #tpu.dot_dimension_numbers<[1], [0], [0], [1], [0, 0, 1, 1], [], []>} : vector<8x32xf32>, vector<32x32xf32>, vector<8x32xf32> -> vector<8x32xf32>
    %191 = vector.broadcast %93 : vector<1x32xf32> to vector<8x32xf32>
    %192 = arith.addf %190, %191 : vector<8x32xf32>
    %193 = arith.addf %179, %186 : vector<8x32xf32>
    %194 = arith.negf %193 : vector<8x32xf32>
    %195 = math.exp %194 : vector<8x32xf32>
    %cst_156 = arith.constant 1.000000e+00 : f32
    %196 = vector.broadcast %cst_156 : f32 to vector<8x32xf32>
    %197 = arith.addf %196, %195 : vector<8x32xf32>
    %198 = arith.divf %196, %197 : vector<8x32xf32>
    %199 = arith.addf %181, %189 : vector<8x32xf32>
    %200 = arith.negf %199 : vector<8x32xf32>
    %201 = math.exp %200 : vector<8x32xf32>
    %cst_157 = arith.constant 1.000000e+00 : f32
    %202 = vector.broadcast %cst_157 : f32 to vector<8x32xf32>
    %203 = arith.addf %202, %201 : vector<8x32xf32>
    %204 = arith.divf %202, %203 : vector<8x32xf32>
    %205 = arith.mulf %198, %192 : vector<8x32xf32>
    %206 = arith.addf %183, %205 : vector<8x32xf32>
    %207 = math.tanh %206 : vector<8x32xf32>
    %cst_158 = arith.constant 1.000000e+00 : f32
    %208 = vector.broadcast %cst_158 : f32 to vector<8x32xf32>
    %209 = arith.subf %208, %204 : vector<8x32xf32>
    %210 = arith.mulf %209, %207 : vector<8x32xf32>
    %211 = arith.mulf %204, %136 : vector<8x32xf32>
    %212 = arith.addf %210, %211 : vector<8x32xf32>
    %213 = vector.extract_strided_slice %51 {offsets = [6, 0, 0], sizes = [1, 8, 32], strides = [1, 1, 1]} : vector<8x8x32xf32> to vector<1x8x32xf32>
    %214 = vector.shape_cast %213 : vector<1x8x32xf32> to vector<8x32xf32>
    %215 = vector.extract_strided_slice %63 {offsets = [6, 0, 0], sizes = [1, 8, 32], strides = [1, 1, 1]} : vector<8x8x32xf32> to vector<1x8x32xf32>
    %216 = vector.shape_cast %215 : vector<1x8x32xf32> to vector<8x32xf32>
    %217 = vector.extract_strided_slice %75 {offsets = [6, 0, 0], sizes = [1, 8, 32], strides = [1, 1, 1]} : vector<8x8x32xf32> to vector<1x8x32xf32>
    %218 = vector.shape_cast %217 : vector<1x8x32xf32> to vector<8x32xf32>
    %cst_159 = arith.constant dense<0.000000e+00> : vector<8x32xf32>
    %219 = tpu.matmul %171, %83, %cst_159 {dimension_numbers = #tpu.dot_dimension_numbers<[1], [0], [0], [1], [0, 0, 1, 1], [], []>} : vector<8x32xf32>, vector<32x32xf32>, vector<8x32xf32> -> vector<8x32xf32>
    %220 = vector.broadcast %95 : vector<1x32xf32> to vector<8x32xf32>
    %221 = arith.addf %219, %220 : vector<8x32xf32>
    %cst_160 = arith.constant dense<0.000000e+00> : vector<8x32xf32>
    %222 = tpu.matmul %171, %85, %cst_160 {dimension_numbers = #tpu.dot_dimension_numbers<[1], [0], [0], [1], [0, 0, 1, 1], [], []>} : vector<8x32xf32>, vector<32x32xf32>, vector<8x32xf32> -> vector<8x32xf32>
    %223 = vector.broadcast %97 : vector<1x32xf32> to vector<8x32xf32>
    %224 = arith.addf %222, %223 : vector<8x32xf32>
    %cst_161 = arith.constant dense<0.000000e+00> : vector<8x32xf32>
    %225 = tpu.matmul %171, %87, %cst_161 {dimension_numbers = #tpu.dot_dimension_numbers<[1], [0], [0], [1], [0, 0, 1, 1], [], []>} : vector<8x32xf32>, vector<32x32xf32>, vector<8x32xf32> -> vector<8x32xf32>
    %226 = vector.broadcast %99 : vector<1x32xf32> to vector<8x32xf32>
    %227 = arith.addf %225, %226 : vector<8x32xf32>
    %228 = arith.addf %214, %221 : vector<8x32xf32>
    %229 = arith.negf %228 : vector<8x32xf32>
    %230 = math.exp %229 : vector<8x32xf32>
    %cst_162 = arith.constant 1.000000e+00 : f32
    %231 = vector.broadcast %cst_162 : f32 to vector<8x32xf32>
    %232 = arith.addf %231, %230 : vector<8x32xf32>
    %233 = arith.divf %231, %232 : vector<8x32xf32>
    %234 = arith.addf %216, %224 : vector<8x32xf32>
    %235 = arith.negf %234 : vector<8x32xf32>
    %236 = math.exp %235 : vector<8x32xf32>
    %cst_163 = arith.constant 1.000000e+00 : f32
    %237 = vector.broadcast %cst_163 : f32 to vector<8x32xf32>
    %238 = arith.addf %237, %236 : vector<8x32xf32>
    %239 = arith.divf %237, %238 : vector<8x32xf32>
    %240 = arith.mulf %233, %227 : vector<8x32xf32>
    %241 = arith.addf %218, %240 : vector<8x32xf32>
    %242 = math.tanh %241 : vector<8x32xf32>
    %cst_164 = arith.constant 1.000000e+00 : f32
    %243 = vector.broadcast %cst_164 : f32 to vector<8x32xf32>
    %244 = arith.subf %243, %239 : vector<8x32xf32>
    %245 = arith.mulf %244, %242 : vector<8x32xf32>
    %246 = arith.mulf %239, %171 : vector<8x32xf32>
    %247 = arith.addf %245, %246 : vector<8x32xf32>
    %c1_165 = arith.constant 1 : index
    %c0_166 = arith.constant 0 : index
    %c0_167 = arith.constant 0 : index
    %248 = vector.load %arg7[%c1_165, %c0_166, %c0_167] : memref<8x8x32xf32, #tpu.memory_space<vmem>>, vector<1x8x32xf32>
    %249 = vector.shape_cast %248 : vector<1x8x32xf32> to vector<8x32xf32>
    %250 = vector.shape_cast %212 : vector<8x32xf32> to vector<1x8x32xf32>
    tpu.vector_store %arg7[%c1_165, %c0_166, %c0_167], %250 {strides = array<i32>} : memref<8x8x32xf32, #tpu.memory_space<vmem>>, vector<1x8x32xf32>,
    %c6 = arith.constant 6 : index
    %c0_168 = arith.constant 0 : index
    %c0_169 = arith.constant 0 : index
    %251 = vector.load %arg8[%c6, %c0_168, %c0_169] : memref<8x8x32xf32, #tpu.memory_space<vmem>>, vector<1x8x32xf32>
    %252 = vector.shape_cast %251 : vector<1x8x32xf32> to vector<8x32xf32>
    %253 = vector.shape_cast %247 : vector<8x32xf32> to vector<1x8x32xf32>
    tpu.vector_store %arg8[%c6, %c0_168, %c0_169], %253 {strides = array<i32>} : memref<8x8x32xf32, #tpu.memory_space<vmem>>, vector<1x8x32xf32>,
    %254 = vector.extract_strided_slice %15 {offsets = [2, 0, 0], sizes = [1, 8, 32], strides = [1, 1, 1]} : vector<8x8x32xf32> to vector<1x8x32xf32>
    %255 = vector.shape_cast %254 : vector<1x8x32xf32> to vector<8x32xf32>
    %256 = vector.extract_strided_slice %27 {offsets = [2, 0, 0], sizes = [1, 8, 32], strides = [1, 1, 1]} : vector<8x8x32xf32> to vector<1x8x32xf32>
    %257 = vector.shape_cast %256 : vector<1x8x32xf32> to vector<8x32xf32>
    %258 = vector.extract_strided_slice %39 {offsets = [2, 0, 0], sizes = [1, 8, 32], strides = [1, 1, 1]} : vector<8x8x32xf32> to vector<1x8x32xf32>
    %259 = vector.shape_cast %258 : vector<1x8x32xf32> to vector<8x32xf32>
    %cst_170 = arith.constant dense<0.000000e+00> : vector<8x32xf32>
    %260 = tpu.matmul %212, %77, %cst_170 {dimension_numbers = #tpu.dot_dimension_numbers<[1], [0], [0], [1], [0, 0, 1, 1], [], []>} : vector<8x32xf32>, vector<32x32xf32>, vector<8x32xf32> -> vector<8x32xf32>
    %261 = vector.broadcast %89 : vector<1x32xf32> to vector<8x32xf32>
    %262 = arith.addf %260, %261 : vector<8x32xf32>
    %cst_171 = arith.constant dense<0.000000e+00> : vector<8x32xf32>
    %263 = tpu.matmul %212, %79, %cst_171 {dimension_numbers = #tpu.dot_dimension_numbers<[1], [0], [0], [1], [0, 0, 1, 1], [], []>} : vector<8x32xf32>, vector<32x32xf32>, vector<8x32xf32> -> vector<8x32xf32>
    %264 = vector.broadcast %91 : vector<1x32xf32> to vector<8x32xf32>
    %265 = arith.addf %263, %264 : vector<8x32xf32>
    %cst_172 = arith.constant dense<0.000000e+00> : vector<8x32xf32>
    %266 = tpu.matmul %212, %81, %cst_172 {dimension_numbers = #tpu.dot_dimension_numbers<[1], [0], [0], [1], [0, 0, 1, 1], [], []>} : vector<8x32xf32>, vector<32x32xf32>, vector<8x32xf32> -> vector<8x32xf32>
    %267 = vector.broadcast %93 : vector<1x32xf32> to vector<8x32xf32>
    %268 = arith.addf %266, %267 : vector<8x32xf32>
    %269 = arith.addf %255, %262 : vector<8x32xf32>
    %270 = arith.negf %269 : vector<8x32xf32>
    %271 = math.exp %270 : vector<8x32xf32>
    %cst_173 = arith.constant 1.000000e+00 : f32
    %272 = vector.broadcast %cst_173 : f32 to vector<8x32xf32>
    %273 = arith.addf %272, %271 : vector<8x32xf32>
    %274 = arith.divf %272, %273 : vector<8x32xf32>
    %275 = arith.addf %257, %265 : vector<8x32xf32>
    %276 = arith.negf %275 : vector<8x32xf32>
    %277 = math.exp %276 : vector<8x32xf32>
    %cst_174 = arith.constant 1.000000e+00 : f32
    %278 = vector.broadcast %cst_174 : f32 to vector<8x32xf32>
    %279 = arith.addf %278, %277 : vector<8x32xf32>
    %280 = arith.divf %278, %279 : vector<8x32xf32>
    %281 = arith.mulf %274, %268 : vector<8x32xf32>
    %282 = arith.addf %259, %281 : vector<8x32xf32>
    %283 = math.tanh %282 : vector<8x32xf32>
    %cst_175 = arith.constant 1.000000e+00 : f32
    %284 = vector.broadcast %cst_175 : f32 to vector<8x32xf32>
    %285 = arith.subf %284, %280 : vector<8x32xf32>
    %286 = arith.mulf %285, %283 : vector<8x32xf32>
    %287 = arith.mulf %280, %212 : vector<8x32xf32>
    %288 = arith.addf %286, %287 : vector<8x32xf32>
    %289 = vector.extract_strided_slice %51 {offsets = [5, 0, 0], sizes = [1, 8, 32], strides = [1, 1, 1]} : vector<8x8x32xf32> to vector<1x8x32xf32>
    %290 = vector.shape_cast %289 : vector<1x8x32xf32> to vector<8x32xf32>
    %291 = vector.extract_strided_slice %63 {offsets = [5, 0, 0], sizes = [1, 8, 32], strides = [1, 1, 1]} : vector<8x8x32xf32> to vector<1x8x32xf32>
    %292 = vector.shape_cast %291 : vector<1x8x32xf32> to vector<8x32xf32>
    %293 = vector.extract_strided_slice %75 {offsets = [5, 0, 0], sizes = [1, 8, 32], strides = [1, 1, 1]} : vector<8x8x32xf32> to vector<1x8x32xf32>
    %294 = vector.shape_cast %293 : vector<1x8x32xf32> to vector<8x32xf32>
    %cst_176 = arith.constant dense<0.000000e+00> : vector<8x32xf32>
    %295 = tpu.matmul %247, %83, %cst_176 {dimension_numbers = #tpu.dot_dimension_numbers<[1], [0], [0], [1], [0, 0, 1, 1], [], []>} : vector<8x32xf32>, vector<32x32xf32>, vector<8x32xf32> -> vector<8x32xf32>
    %296 = vector.broadcast %95 : vector<1x32xf32> to vector<8x32xf32>
    %297 = arith.addf %295, %296 : vector<8x32xf32>
    %cst_177 = arith.constant dense<0.000000e+00> : vector<8x32xf32>
    %298 = tpu.matmul %247, %85, %cst_177 {dimension_numbers = #tpu.dot_dimension_numbers<[1], [0], [0], [1], [0, 0, 1, 1], [], []>} : vector<8x32xf32>, vector<32x32xf32>, vector<8x32xf32> -> vector<8x32xf32>
    %299 = vector.broadcast %97 : vector<1x32xf32> to vector<8x32xf32>
    %300 = arith.addf %298, %299 : vector<8x32xf32>
    %cst_178 = arith.constant dense<0.000000e+00> : vector<8x32xf32>
    %301 = tpu.matmul %247, %87, %cst_178 {dimension_numbers = #tpu.dot_dimension_numbers<[1], [0], [0], [1], [0, 0, 1, 1], [], []>} : vector<8x32xf32>, vector<32x32xf32>, vector<8x32xf32> -> vector<8x32xf32>
    %302 = vector.broadcast %99 : vector<1x32xf32> to vector<8x32xf32>
    %303 = arith.addf %301, %302 : vector<8x32xf32>
    %304 = arith.addf %290, %297 : vector<8x32xf32>
    %305 = arith.negf %304 : vector<8x32xf32>
    %306 = math.exp %305 : vector<8x32xf32>
    %cst_179 = arith.constant 1.000000e+00 : f32
    %307 = vector.broadcast %cst_179 : f32 to vector<8x32xf32>
    %308 = arith.addf %307, %306 : vector<8x32xf32>
    %309 = arith.divf %307, %308 : vector<8x32xf32>
    %310 = arith.addf %292, %300 : vector<8x32xf32>
    %311 = arith.negf %310 : vector<8x32xf32>
    %312 = math.exp %311 : vector<8x32xf32>
    %cst_180 = arith.constant 1.000000e+00 : f32
    %313 = vector.broadcast %cst_180 : f32 to vector<8x32xf32>
    %314 = arith.addf %313, %312 : vector<8x32xf32>
    %315 = arith.divf %313, %314 : vector<8x32xf32>
    %316 = arith.mulf %309, %303 : vector<8x32xf32>
    %317 = arith.addf %294, %316 : vector<8x32xf32>
    %318 = math.tanh %317 : vector<8x32xf32>
    %cst_181 = arith.constant 1.000000e+00 : f32
    %319 = vector.broadcast %cst_181 : f32 to vector<8x32xf32>
    %320 = arith.subf %319, %315 : vector<8x32xf32>
    %321 = arith.mulf %320, %318 : vector<8x32xf32>
    %322 = arith.mulf %315, %247 : vector<8x32xf32>
    %323 = arith.addf %321, %322 : vector<8x32xf32>
    %c2_182 = arith.constant 2 : index
    %c0_183 = arith.constant 0 : index
    %c0_184 = arith.constant 0 : index
    %324 = vector.load %arg7[%c2_182, %c0_183, %c0_184] : memref<8x8x32xf32, #tpu.memory_space<vmem>>, vector<1x8x32xf32>
    %325 = vector.shape_cast %324 : vector<1x8x32xf32> to vector<8x32xf32>
    %326 = vector.shape_cast %288 : vector<8x32xf32> to vector<1x8x32xf32>
    tpu.vector_store %arg7[%c2_182, %c0_183, %c0_184], %326 {strides = array<i32>} : memref<8x8x32xf32, #tpu.memory_space<vmem>>, vector<1x8x32xf32>,
    %c5 = arith.constant 5 : index
    %c0_185 = arith.constant 0 : index
    %c0_186 = arith.constant 0 : index
    %327 = vector.load %arg8[%c5, %c0_185, %c0_186] : memref<8x8x32xf32, #tpu.memory_space<vmem>>, vector<1x8x32xf32>
    %328 = vector.shape_cast %327 : vector<1x8x32xf32> to vector<8x32xf32>
    %329 = vector.shape_cast %323 : vector<8x32xf32> to vector<1x8x32xf32>
    tpu.vector_store %arg8[%c5, %c0_185, %c0_186], %329 {strides = array<i32>} : memref<8x8x32xf32, #tpu.memory_space<vmem>>, vector<1x8x32xf32>,
    %330 = vector.extract_strided_slice %15 {offsets = [3, 0, 0], sizes = [1, 8, 32], strides = [1, 1, 1]} : vector<8x8x32xf32> to vector<1x8x32xf32>
    %331 = vector.shape_cast %330 : vector<1x8x32xf32> to vector<8x32xf32>
    %332 = vector.extract_strided_slice %27 {offsets = [3, 0, 0], sizes = [1, 8, 32], strides = [1, 1, 1]} : vector<8x8x32xf32> to vector<1x8x32xf32>
    %333 = vector.shape_cast %332 : vector<1x8x32xf32> to vector<8x32xf32>
    %334 = vector.extract_strided_slice %39 {offsets = [3, 0, 0], sizes = [1, 8, 32], strides = [1, 1, 1]} : vector<8x8x32xf32> to vector<1x8x32xf32>
    %335 = vector.shape_cast %334 : vector<1x8x32xf32> to vector<8x32xf32>
    %cst_187 = arith.constant dense<0.000000e+00> : vector<8x32xf32>
    %336 = tpu.matmul %288, %77, %cst_187 {dimension_numbers = #tpu.dot_dimension_numbers<[1], [0], [0], [1], [0, 0, 1, 1], [], []>} : vector<8x32xf32>, vector<32x32xf32>, vector<8x32xf32> -> vector<8x32xf32>
    %337 = vector.broadcast %89 : vector<1x32xf32> to vector<8x32xf32>
    %338 = arith.addf %336, %337 : vector<8x32xf32>
    %cst_188 = arith.constant dense<0.000000e+00> : vector<8x32xf32>
    %339 = tpu.matmul %288, %79, %cst_188 {dimension_numbers = #tpu.dot_dimension_numbers<[1], [0], [0], [1], [0, 0, 1, 1], [], []>} : vector<8x32xf32>, vector<32x32xf32>, vector<8x32xf32> -> vector<8x32xf32>
    %340 = vector.broadcast %91 : vector<1x32xf32> to vector<8x32xf32>
    %341 = arith.addf %339, %340 : vector<8x32xf32>
    %cst_189 = arith.constant dense<0.000000e+00> : vector<8x32xf32>
    %342 = tpu.matmul %288, %81, %cst_189 {dimension_numbers = #tpu.dot_dimension_numbers<[1], [0], [0], [1], [0, 0, 1, 1], [], []>} : vector<8x32xf32>, vector<32x32xf32>, vector<8x32xf32> -> vector<8x32xf32>
    %343 = vector.broadcast %93 : vector<1x32xf32> to vector<8x32xf32>
    %344 = arith.addf %342, %343 : vector<8x32xf32>
    %345 = arith.addf %331, %338 : vector<8x32xf32>
    %346 = arith.negf %345 : vector<8x32xf32>
    %347 = math.exp %346 : vector<8x32xf32>
    %cst_190 = arith.constant 1.000000e+00 : f32
    %348 = vector.broadcast %cst_190 : f32 to vector<8x32xf32>
    %349 = arith.addf %348, %347 : vector<8x32xf32>
    %350 = arith.divf %348, %349 : vector<8x32xf32>
    %351 = arith.addf %333, %341 : vector<8x32xf32>
    %352 = arith.negf %351 : vector<8x32xf32>
    %353 = math.exp %352 : vector<8x32xf32>
    %cst_191 = arith.constant 1.000000e+00 : f32
    %354 = vector.broadcast %cst_191 : f32 to vector<8x32xf32>
    %355 = arith.addf %354, %353 : vector<8x32xf32>
    %356 = arith.divf %354, %355 : vector<8x32xf32>
    %357 = arith.mulf %350, %344 : vector<8x32xf32>
    %358 = arith.addf %335, %357 : vector<8x32xf32>
    %359 = math.tanh %358 : vector<8x32xf32>
    %cst_192 = arith.constant 1.000000e+00 : f32
    %360 = vector.broadcast %cst_192 : f32 to vector<8x32xf32>
    %361 = arith.subf %360, %356 : vector<8x32xf32>
    %362 = arith.mulf %361, %359 : vector<8x32xf32>
    %363 = arith.mulf %356, %288 : vector<8x32xf32>
    %364 = arith.addf %362, %363 : vector<8x32xf32>
    %365 = vector.extract_strided_slice %51 {offsets = [4, 0, 0], sizes = [1, 8, 32], strides = [1, 1, 1]} : vector<8x8x32xf32> to vector<1x8x32xf32>
    %366 = vector.shape_cast %365 : vector<1x8x32xf32> to vector<8x32xf32>
    %367 = vector.extract_strided_slice %63 {offsets = [4, 0, 0], sizes = [1, 8, 32], strides = [1, 1, 1]} : vector<8x8x32xf32> to vector<1x8x32xf32>
    %368 = vector.shape_cast %367 : vector<1x8x32xf32> to vector<8x32xf32>
    %369 = vector.extract_strided_slice %75 {offsets = [4, 0, 0], sizes = [1, 8, 32], strides = [1, 1, 1]} : vector<8x8x32xf32> to vector<1x8x32xf32>
    %370 = vector.shape_cast %369 : vector<1x8x32xf32> to vector<8x32xf32>
    %cst_193 = arith.constant dense<0.000000e+00> : vector<8x32xf32>
    %371 = tpu.matmul %323, %83, %cst_193 {dimension_numbers = #tpu.dot_dimension_numbers<[1], [0], [0], [1], [0, 0, 1, 1], [], []>} : vector<8x32xf32>, vector<32x32xf32>, vector<8x32xf32> -> vector<8x32xf32>
    %372 = vector.broadcast %95 : vector<1x32xf32> to vector<8x32xf32>
    %373 = arith.addf %371, %372 : vector<8x32xf32>
    %cst_194 = arith.constant dense<0.000000e+00> : vector<8x32xf32>
    %374 = tpu.matmul %323, %85, %cst_194 {dimension_numbers = #tpu.dot_dimension_numbers<[1], [0], [0], [1], [0, 0, 1, 1], [], []>} : vector<8x32xf32>, vector<32x32xf32>, vector<8x32xf32> -> vector<8x32xf32>
    %375 = vector.broadcast %97 : vector<1x32xf32> to vector<8x32xf32>
    %376 = arith.addf %374, %375 : vector<8x32xf32>
    %cst_195 = arith.constant dense<0.000000e+00> : vector<8x32xf32>
    %377 = tpu.matmul %323, %87, %cst_195 {dimension_numbers = #tpu.dot_dimension_numbers<[1], [0], [0], [1], [0, 0, 1, 1], [], []>} : vector<8x32xf32>, vector<32x32xf32>, vector<8x32xf32> -> vector<8x32xf32>
    %378 = vector.broadcast %99 : vector<1x32xf32> to vector<8x32xf32>
    %379 = arith.addf %377, %378 : vector<8x32xf32>
    %380 = arith.addf %366, %373 : vector<8x32xf32>
    %381 = arith.negf %380 : vector<8x32xf32>
    %382 = math.exp %381 : vector<8x32xf32>
    %cst_196 = arith.constant 1.000000e+00 : f32
    %383 = vector.broadcast %cst_196 : f32 to vector<8x32xf32>
    %384 = arith.addf %383, %382 : vector<8x32xf32>
    %385 = arith.divf %383, %384 : vector<8x32xf32>
    %386 = arith.addf %368, %376 : vector<8x32xf32>
    %387 = arith.negf %386 : vector<8x32xf32>
    %388 = math.exp %387 : vector<8x32xf32>
    %cst_197 = arith.constant 1.000000e+00 : f32
    %389 = vector.broadcast %cst_197 : f32 to vector<8x32xf32>
    %390 = arith.addf %389, %388 : vector<8x32xf32>
    %391 = arith.divf %389, %390 : vector<8x32xf32>
    %392 = arith.mulf %385, %379 : vector<8x32xf32>
    %393 = arith.addf %370, %392 : vector<8x32xf32>
    %394 = math.tanh %393 : vector<8x32xf32>
    %cst_198 = arith.constant 1.000000e+00 : f32
    %395 = vector.broadcast %cst_198 : f32 to vector<8x32xf32>
    %396 = arith.subf %395, %391 : vector<8x32xf32>
    %397 = arith.mulf %396, %394 : vector<8x32xf32>
    %398 = arith.mulf %391, %323 : vector<8x32xf32>
    %399 = arith.addf %397, %398 : vector<8x32xf32>
    %c3 = arith.constant 3 : index
    %c0_199 = arith.constant 0 : index
    %c0_200 = arith.constant 0 : index
    %400 = vector.load %arg7[%c3, %c0_199, %c0_200] : memref<8x8x32xf32, #tpu.memory_space<vmem>>, vector<1x8x32xf32>
    %401 = vector.shape_cast %400 : vector<1x8x32xf32> to vector<8x32xf32>
    %402 = vector.shape_cast %364 : vector<8x32xf32> to vector<1x8x32xf32>
    tpu.vector_store %arg7[%c3, %c0_199, %c0_200], %402 {strides = array<i32>} : memref<8x8x32xf32, #tpu.memory_space<vmem>>, vector<1x8x32xf32>,
    %c4 = arith.constant 4 : index
    %c0_201 = arith.constant 0 : index
    %c0_202 = arith.constant 0 : index
    %403 = vector.load %arg8[%c4, %c0_201, %c0_202] : memref<8x8x32xf32, #tpu.memory_space<vmem>>, vector<1x8x32xf32>
    %404 = vector.shape_cast %403 : vector<1x8x32xf32> to vector<8x32xf32>
    %405 = vector.shape_cast %399 : vector<8x32xf32> to vector<1x8x32xf32>
    tpu.vector_store %arg8[%c4, %c0_201, %c0_202], %405 {strides = array<i32>} : memref<8x8x32xf32, #tpu.memory_space<vmem>>, vector<1x8x32xf32>,
    %406 = vector.extract_strided_slice %15 {offsets = [4, 0, 0], sizes = [1, 8, 32], strides = [1, 1, 1]} : vector<8x8x32xf32> to vector<1x8x32xf32>
    %407 = vector.shape_cast %406 : vector<1x8x32xf32> to vector<8x32xf32>
    %408 = vector.extract_strided_slice %27 {offsets = [4, 0, 0], sizes = [1, 8, 32], strides = [1, 1, 1]} : vector<8x8x32xf32> to vector<1x8x32xf32>
    %409 = vector.shape_cast %408 : vector<1x8x32xf32> to vector<8x32xf32>
    %410 = vector.extract_strided_slice %39 {offsets = [4, 0, 0], sizes = [1, 8, 32], strides = [1, 1, 1]} : vector<8x8x32xf32> to vector<1x8x32xf32>
    %411 = vector.shape_cast %410 : vector<1x8x32xf32> to vector<8x32xf32>
    %cst_203 = arith.constant dense<0.000000e+00> : vector<8x32xf32>
    %412 = tpu.matmul %364, %77, %cst_203 {dimension_numbers = #tpu.dot_dimension_numbers<[1], [0], [0], [1], [0, 0, 1, 1], [], []>} : vector<8x32xf32>, vector<32x32xf32>, vector<8x32xf32> -> vector<8x32xf32>
    %413 = vector.broadcast %89 : vector<1x32xf32> to vector<8x32xf32>
    %414 = arith.addf %412, %413 : vector<8x32xf32>
    %cst_204 = arith.constant dense<0.000000e+00> : vector<8x32xf32>
    %415 = tpu.matmul %364, %79, %cst_204 {dimension_numbers = #tpu.dot_dimension_numbers<[1], [0], [0], [1], [0, 0, 1, 1], [], []>} : vector<8x32xf32>, vector<32x32xf32>, vector<8x32xf32> -> vector<8x32xf32>
    %416 = vector.broadcast %91 : vector<1x32xf32> to vector<8x32xf32>
    %417 = arith.addf %415, %416 : vector<8x32xf32>
    %cst_205 = arith.constant dense<0.000000e+00> : vector<8x32xf32>
    %418 = tpu.matmul %364, %81, %cst_205 {dimension_numbers = #tpu.dot_dimension_numbers<[1], [0], [0], [1], [0, 0, 1, 1], [], []>} : vector<8x32xf32>, vector<32x32xf32>, vector<8x32xf32> -> vector<8x32xf32>
    %419 = vector.broadcast %93 : vector<1x32xf32> to vector<8x32xf32>
    %420 = arith.addf %418, %419 : vector<8x32xf32>
    %421 = arith.addf %407, %414 : vector<8x32xf32>
    %422 = arith.negf %421 : vector<8x32xf32>
    %423 = math.exp %422 : vector<8x32xf32>
    %cst_206 = arith.constant 1.000000e+00 : f32
    %424 = vector.broadcast %cst_206 : f32 to vector<8x32xf32>
    %425 = arith.addf %424, %423 : vector<8x32xf32>
    %426 = arith.divf %424, %425 : vector<8x32xf32>
    %427 = arith.addf %409, %417 : vector<8x32xf32>
    %428 = arith.negf %427 : vector<8x32xf32>
    %429 = math.exp %428 : vector<8x32xf32>
    %cst_207 = arith.constant 1.000000e+00 : f32
    %430 = vector.broadcast %cst_207 : f32 to vector<8x32xf32>
    %431 = arith.addf %430, %429 : vector<8x32xf32>
    %432 = arith.divf %430, %431 : vector<8x32xf32>
    %433 = arith.mulf %426, %420 : vector<8x32xf32>
    %434 = arith.addf %411, %433 : vector<8x32xf32>
    %435 = math.tanh %434 : vector<8x32xf32>
    %cst_208 = arith.constant 1.000000e+00 : f32
    %436 = vector.broadcast %cst_208 : f32 to vector<8x32xf32>
    %437 = arith.subf %436, %432 : vector<8x32xf32>
    %438 = arith.mulf %437, %435 : vector<8x32xf32>
    %439 = arith.mulf %432, %364 : vector<8x32xf32>
    %440 = arith.addf %438, %439 : vector<8x32xf32>
    %441 = vector.extract_strided_slice %51 {offsets = [3, 0, 0], sizes = [1, 8, 32], strides = [1, 1, 1]} : vector<8x8x32xf32> to vector<1x8x32xf32>
    %442 = vector.shape_cast %441 : vector<1x8x32xf32> to vector<8x32xf32>
    %443 = vector.extract_strided_slice %63 {offsets = [3, 0, 0], sizes = [1, 8, 32], strides = [1, 1, 1]} : vector<8x8x32xf32> to vector<1x8x32xf32>
    %444 = vector.shape_cast %443 : vector<1x8x32xf32> to vector<8x32xf32>
    %445 = vector.extract_strided_slice %75 {offsets = [3, 0, 0], sizes = [1, 8, 32], strides = [1, 1, 1]} : vector<8x8x32xf32> to vector<1x8x32xf32>
    %446 = vector.shape_cast %445 : vector<1x8x32xf32> to vector<8x32xf32>
    %cst_209 = arith.constant dense<0.000000e+00> : vector<8x32xf32>
    %447 = tpu.matmul %399, %83, %cst_209 {dimension_numbers = #tpu.dot_dimension_numbers<[1], [0], [0], [1], [0, 0, 1, 1], [], []>} : vector<8x32xf32>, vector<32x32xf32>, vector<8x32xf32> -> vector<8x32xf32>
    %448 = vector.broadcast %95 : vector<1x32xf32> to vector<8x32xf32>
    %449 = arith.addf %447, %448 : vector<8x32xf32>
    %cst_210 = arith.constant dense<0.000000e+00> : vector<8x32xf32>
    %450 = tpu.matmul %399, %85, %cst_210 {dimension_numbers = #tpu.dot_dimension_numbers<[1], [0], [0], [1], [0, 0, 1, 1], [], []>} : vector<8x32xf32>, vector<32x32xf32>, vector<8x32xf32> -> vector<8x32xf32>
    %451 = vector.broadcast %97 : vector<1x32xf32> to vector<8x32xf32>
    %452 = arith.addf %450, %451 : vector<8x32xf32>
    %cst_211 = arith.constant dense<0.000000e+00> : vector<8x32xf32>
    %453 = tpu.matmul %399, %87, %cst_211 {dimension_numbers = #tpu.dot_dimension_numbers<[1], [0], [0], [1], [0, 0, 1, 1], [], []>} : vector<8x32xf32>, vector<32x32xf32>, vector<8x32xf32> -> vector<8x32xf32>
    %454 = vector.broadcast %99 : vector<1x32xf32> to vector<8x32xf32>
    %455 = arith.addf %453, %454 : vector<8x32xf32>
    %456 = arith.addf %442, %449 : vector<8x32xf32>
    %457 = arith.negf %456 : vector<8x32xf32>
    %458 = math.exp %457 : vector<8x32xf32>
    %cst_212 = arith.constant 1.000000e+00 : f32
    %459 = vector.broadcast %cst_212 : f32 to vector<8x32xf32>
    %460 = arith.addf %459, %458 : vector<8x32xf32>
    %461 = arith.divf %459, %460 : vector<8x32xf32>
    %462 = arith.addf %444, %452 : vector<8x32xf32>
    %463 = arith.negf %462 : vector<8x32xf32>
    %464 = math.exp %463 : vector<8x32xf32>
    %cst_213 = arith.constant 1.000000e+00 : f32
    %465 = vector.broadcast %cst_213 : f32 to vector<8x32xf32>
    %466 = arith.addf %465, %464 : vector<8x32xf32>
    %467 = arith.divf %465, %466 : vector<8x32xf32>
    %468 = arith.mulf %461, %455 : vector<8x32xf32>
    %469 = arith.addf %446, %468 : vector<8x32xf32>
    %470 = math.tanh %469 : vector<8x32xf32>
    %cst_214 = arith.constant 1.000000e+00 : f32
    %471 = vector.broadcast %cst_214 : f32 to vector<8x32xf32>
    %472 = arith.subf %471, %467 : vector<8x32xf32>
    %473 = arith.mulf %472, %470 : vector<8x32xf32>
    %474 = arith.mulf %467, %399 : vector<8x32xf32>
    %475 = arith.addf %473, %474 : vector<8x32xf32>
    %c4_215 = arith.constant 4 : index
    %c0_216 = arith.constant 0 : index
    %c0_217 = arith.constant 0 : index
    %476 = vector.load %arg7[%c4_215, %c0_216, %c0_217] : memref<8x8x32xf32, #tpu.memory_space<vmem>>, vector<1x8x32xf32>
    %477 = vector.shape_cast %476 : vector<1x8x32xf32> to vector<8x32xf32>
    %478 = vector.shape_cast %440 : vector<8x32xf32> to vector<1x8x32xf32>
    tpu.vector_store %arg7[%c4_215, %c0_216, %c0_217], %478 {strides = array<i32>} : memref<8x8x32xf32, #tpu.memory_space<vmem>>, vector<1x8x32xf32>,
    %c3_218 = arith.constant 3 : index
    %c0_219 = arith.constant 0 : index
    %c0_220 = arith.constant 0 : index
    %479 = vector.load %arg8[%c3_218, %c0_219, %c0_220] : memref<8x8x32xf32, #tpu.memory_space<vmem>>, vector<1x8x32xf32>
    %480 = vector.shape_cast %479 : vector<1x8x32xf32> to vector<8x32xf32>
    %481 = vector.shape_cast %475 : vector<8x32xf32> to vector<1x8x32xf32>
    tpu.vector_store %arg8[%c3_218, %c0_219, %c0_220], %481 {strides = array<i32>} : memref<8x8x32xf32, #tpu.memory_space<vmem>>, vector<1x8x32xf32>,
    %482 = vector.extract_strided_slice %15 {offsets = [5, 0, 0], sizes = [1, 8, 32], strides = [1, 1, 1]} : vector<8x8x32xf32> to vector<1x8x32xf32>
    %483 = vector.shape_cast %482 : vector<1x8x32xf32> to vector<8x32xf32>
    %484 = vector.extract_strided_slice %27 {offsets = [5, 0, 0], sizes = [1, 8, 32], strides = [1, 1, 1]} : vector<8x8x32xf32> to vector<1x8x32xf32>
    %485 = vector.shape_cast %484 : vector<1x8x32xf32> to vector<8x32xf32>
    %486 = vector.extract_strided_slice %39 {offsets = [5, 0, 0], sizes = [1, 8, 32], strides = [1, 1, 1]} : vector<8x8x32xf32> to vector<1x8x32xf32>
    %487 = vector.shape_cast %486 : vector<1x8x32xf32> to vector<8x32xf32>
    %cst_221 = arith.constant dense<0.000000e+00> : vector<8x32xf32>
    %488 = tpu.matmul %440, %77, %cst_221 {dimension_numbers = #tpu.dot_dimension_numbers<[1], [0], [0], [1], [0, 0, 1, 1], [], []>} : vector<8x32xf32>, vector<32x32xf32>, vector<8x32xf32> -> vector<8x32xf32>
    %489 = vector.broadcast %89 : vector<1x32xf32> to vector<8x32xf32>
    %490 = arith.addf %488, %489 : vector<8x32xf32>
    %cst_222 = arith.constant dense<0.000000e+00> : vector<8x32xf32>
    %491 = tpu.matmul %440, %79, %cst_222 {dimension_numbers = #tpu.dot_dimension_numbers<[1], [0], [0], [1], [0, 0, 1, 1], [], []>} : vector<8x32xf32>, vector<32x32xf32>, vector<8x32xf32> -> vector<8x32xf32>
    %492 = vector.broadcast %91 : vector<1x32xf32> to vector<8x32xf32>
    %493 = arith.addf %491, %492 : vector<8x32xf32>
    %cst_223 = arith.constant dense<0.000000e+00> : vector<8x32xf32>
    %494 = tpu.matmul %440, %81, %cst_223 {dimension_numbers = #tpu.dot_dimension_numbers<[1], [0], [0], [1], [0, 0, 1, 1], [], []>} : vector<8x32xf32>, vector<32x32xf32>, vector<8x32xf32> -> vector<8x32xf32>
    %495 = vector.broadcast %93 : vector<1x32xf32> to vector<8x32xf32>
    %496 = arith.addf %494, %495 : vector<8x32xf32>
    %497 = arith.addf %483, %490 : vector<8x32xf32>
    %498 = arith.negf %497 : vector<8x32xf32>
    %499 = math.exp %498 : vector<8x32xf32>
    %cst_224 = arith.constant 1.000000e+00 : f32
    %500 = vector.broadcast %cst_224 : f32 to vector<8x32xf32>
    %501 = arith.addf %500, %499 : vector<8x32xf32>
    %502 = arith.divf %500, %501 : vector<8x32xf32>
    %503 = arith.addf %485, %493 : vector<8x32xf32>
    %504 = arith.negf %503 : vector<8x32xf32>
    %505 = math.exp %504 : vector<8x32xf32>
    %cst_225 = arith.constant 1.000000e+00 : f32
    %506 = vector.broadcast %cst_225 : f32 to vector<8x32xf32>
    %507 = arith.addf %506, %505 : vector<8x32xf32>
    %508 = arith.divf %506, %507 : vector<8x32xf32>
    %509 = arith.mulf %502, %496 : vector<8x32xf32>
    %510 = arith.addf %487, %509 : vector<8x32xf32>
    %511 = math.tanh %510 : vector<8x32xf32>
    %cst_226 = arith.constant 1.000000e+00 : f32
    %512 = vector.broadcast %cst_226 : f32 to vector<8x32xf32>
    %513 = arith.subf %512, %508 : vector<8x32xf32>
    %514 = arith.mulf %513, %511 : vector<8x32xf32>
    %515 = arith.mulf %508, %440 : vector<8x32xf32>
    %516 = arith.addf %514, %515 : vector<8x32xf32>
    %517 = vector.extract_strided_slice %51 {offsets = [2, 0, 0], sizes = [1, 8, 32], strides = [1, 1, 1]} : vector<8x8x32xf32> to vector<1x8x32xf32>
    %518 = vector.shape_cast %517 : vector<1x8x32xf32> to vector<8x32xf32>
    %519 = vector.extract_strided_slice %63 {offsets = [2, 0, 0], sizes = [1, 8, 32], strides = [1, 1, 1]} : vector<8x8x32xf32> to vector<1x8x32xf32>
    %520 = vector.shape_cast %519 : vector<1x8x32xf32> to vector<8x32xf32>
    %521 = vector.extract_strided_slice %75 {offsets = [2, 0, 0], sizes = [1, 8, 32], strides = [1, 1, 1]} : vector<8x8x32xf32> to vector<1x8x32xf32>
    %522 = vector.shape_cast %521 : vector<1x8x32xf32> to vector<8x32xf32>
    %cst_227 = arith.constant dense<0.000000e+00> : vector<8x32xf32>
    %523 = tpu.matmul %475, %83, %cst_227 {dimension_numbers = #tpu.dot_dimension_numbers<[1], [0], [0], [1], [0, 0, 1, 1], [], []>} : vector<8x32xf32>, vector<32x32xf32>, vector<8x32xf32> -> vector<8x32xf32>
    %524 = vector.broadcast %95 : vector<1x32xf32> to vector<8x32xf32>
    %525 = arith.addf %523, %524 : vector<8x32xf32>
    %cst_228 = arith.constant dense<0.000000e+00> : vector<8x32xf32>
    %526 = tpu.matmul %475, %85, %cst_228 {dimension_numbers = #tpu.dot_dimension_numbers<[1], [0], [0], [1], [0, 0, 1, 1], [], []>} : vector<8x32xf32>, vector<32x32xf32>, vector<8x32xf32> -> vector<8x32xf32>
    %527 = vector.broadcast %97 : vector<1x32xf32> to vector<8x32xf32>
    %528 = arith.addf %526, %527 : vector<8x32xf32>
    %cst_229 = arith.constant dense<0.000000e+00> : vector<8x32xf32>
    %529 = tpu.matmul %475, %87, %cst_229 {dimension_numbers = #tpu.dot_dimension_numbers<[1], [0], [0], [1], [0, 0, 1, 1], [], []>} : vector<8x32xf32>, vector<32x32xf32>, vector<8x32xf32> -> vector<8x32xf32>
    %530 = vector.broadcast %99 : vector<1x32xf32> to vector<8x32xf32>
    %531 = arith.addf %529, %530 : vector<8x32xf32>
    %532 = arith.addf %518, %525 : vector<8x32xf32>
    %533 = arith.negf %532 : vector<8x32xf32>
    %534 = math.exp %533 : vector<8x32xf32>
    %cst_230 = arith.constant 1.000000e+00 : f32
    %535 = vector.broadcast %cst_230 : f32 to vector<8x32xf32>
    %536 = arith.addf %535, %534 : vector<8x32xf32>
    %537 = arith.divf %535, %536 : vector<8x32xf32>
    %538 = arith.addf %520, %528 : vector<8x32xf32>
    %539 = arith.negf %538 : vector<8x32xf32>
    %540 = math.exp %539 : vector<8x32xf32>
    %cst_231 = arith.constant 1.000000e+00 : f32
    %541 = vector.broadcast %cst_231 : f32 to vector<8x32xf32>
    %542 = arith.addf %541, %540 : vector<8x32xf32>
    %543 = arith.divf %541, %542 : vector<8x32xf32>
    %544 = arith.mulf %537, %531 : vector<8x32xf32>
    %545 = arith.addf %522, %544 : vector<8x32xf32>
    %546 = math.tanh %545 : vector<8x32xf32>
    %cst_232 = arith.constant 1.000000e+00 : f32
    %547 = vector.broadcast %cst_232 : f32 to vector<8x32xf32>
    %548 = arith.subf %547, %543 : vector<8x32xf32>
    %549 = arith.mulf %548, %546 : vector<8x32xf32>
    %550 = arith.mulf %543, %475 : vector<8x32xf32>
    %551 = arith.addf %549, %550 : vector<8x32xf32>
    %c5_233 = arith.constant 5 : index
    %c0_234 = arith.constant 0 : index
    %c0_235 = arith.constant 0 : index
    %552 = vector.load %arg7[%c5_233, %c0_234, %c0_235] : memref<8x8x32xf32, #tpu.memory_space<vmem>>, vector<1x8x32xf32>
    %553 = vector.shape_cast %552 : vector<1x8x32xf32> to vector<8x32xf32>
    %554 = vector.shape_cast %516 : vector<8x32xf32> to vector<1x8x32xf32>
    tpu.vector_store %arg7[%c5_233, %c0_234, %c0_235], %554 {strides = array<i32>} : memref<8x8x32xf32, #tpu.memory_space<vmem>>, vector<1x8x32xf32>,
    %c2_236 = arith.constant 2 : index
    %c0_237 = arith.constant 0 : index
    %c0_238 = arith.constant 0 : index
    %555 = vector.load %arg8[%c2_236, %c0_237, %c0_238] : memref<8x8x32xf32, #tpu.memory_space<vmem>>, vector<1x8x32xf32>
    %556 = vector.shape_cast %555 : vector<1x8x32xf32> to vector<8x32xf32>
    %557 = vector.shape_cast %551 : vector<8x32xf32> to vector<1x8x32xf32>
    tpu.vector_store %arg8[%c2_236, %c0_237, %c0_238], %557 {strides = array<i32>} : memref<8x8x32xf32, #tpu.memory_space<vmem>>, vector<1x8x32xf32>,
    %558 = vector.extract_strided_slice %15 {offsets = [6, 0, 0], sizes = [1, 8, 32], strides = [1, 1, 1]} : vector<8x8x32xf32> to vector<1x8x32xf32>
    %559 = vector.shape_cast %558 : vector<1x8x32xf32> to vector<8x32xf32>
    %560 = vector.extract_strided_slice %27 {offsets = [6, 0, 0], sizes = [1, 8, 32], strides = [1, 1, 1]} : vector<8x8x32xf32> to vector<1x8x32xf32>
    %561 = vector.shape_cast %560 : vector<1x8x32xf32> to vector<8x32xf32>
    %562 = vector.extract_strided_slice %39 {offsets = [6, 0, 0], sizes = [1, 8, 32], strides = [1, 1, 1]} : vector<8x8x32xf32> to vector<1x8x32xf32>
    %563 = vector.shape_cast %562 : vector<1x8x32xf32> to vector<8x32xf32>
    %cst_239 = arith.constant dense<0.000000e+00> : vector<8x32xf32>
    %564 = tpu.matmul %516, %77, %cst_239 {dimension_numbers = #tpu.dot_dimension_numbers<[1], [0], [0], [1], [0, 0, 1, 1], [], []>} : vector<8x32xf32>, vector<32x32xf32>, vector<8x32xf32> -> vector<8x32xf32>
    %565 = vector.broadcast %89 : vector<1x32xf32> to vector<8x32xf32>
    %566 = arith.addf %564, %565 : vector<8x32xf32>
    %cst_240 = arith.constant dense<0.000000e+00> : vector<8x32xf32>
    %567 = tpu.matmul %516, %79, %cst_240 {dimension_numbers = #tpu.dot_dimension_numbers<[1], [0], [0], [1], [0, 0, 1, 1], [], []>} : vector<8x32xf32>, vector<32x32xf32>, vector<8x32xf32> -> vector<8x32xf32>
    %568 = vector.broadcast %91 : vector<1x32xf32> to vector<8x32xf32>
    %569 = arith.addf %567, %568 : vector<8x32xf32>
    %cst_241 = arith.constant dense<0.000000e+00> : vector<8x32xf32>
    %570 = tpu.matmul %516, %81, %cst_241 {dimension_numbers = #tpu.dot_dimension_numbers<[1], [0], [0], [1], [0, 0, 1, 1], [], []>} : vector<8x32xf32>, vector<32x32xf32>, vector<8x32xf32> -> vector<8x32xf32>
    %571 = vector.broadcast %93 : vector<1x32xf32> to vector<8x32xf32>
    %572 = arith.addf %570, %571 : vector<8x32xf32>
    %573 = arith.addf %559, %566 : vector<8x32xf32>
    %574 = arith.negf %573 : vector<8x32xf32>
    %575 = math.exp %574 : vector<8x32xf32>
    %cst_242 = arith.constant 1.000000e+00 : f32
    %576 = vector.broadcast %cst_242 : f32 to vector<8x32xf32>
    %577 = arith.addf %576, %575 : vector<8x32xf32>
    %578 = arith.divf %576, %577 : vector<8x32xf32>
    %579 = arith.addf %561, %569 : vector<8x32xf32>
    %580 = arith.negf %579 : vector<8x32xf32>
    %581 = math.exp %580 : vector<8x32xf32>
    %cst_243 = arith.constant 1.000000e+00 : f32
    %582 = vector.broadcast %cst_243 : f32 to vector<8x32xf32>
    %583 = arith.addf %582, %581 : vector<8x32xf32>
    %584 = arith.divf %582, %583 : vector<8x32xf32>
    %585 = arith.mulf %578, %572 : vector<8x32xf32>
    %586 = arith.addf %563, %585 : vector<8x32xf32>
    %587 = math.tanh %586 : vector<8x32xf32>
    %cst_244 = arith.constant 1.000000e+00 : f32
    %588 = vector.broadcast %cst_244 : f32 to vector<8x32xf32>
    %589 = arith.subf %588, %584 : vector<8x32xf32>
    %590 = arith.mulf %589, %587 : vector<8x32xf32>
    %591 = arith.mulf %584, %516 : vector<8x32xf32>
    %592 = arith.addf %590, %591 : vector<8x32xf32>
    %593 = vector.extract_strided_slice %51 {offsets = [1, 0, 0], sizes = [1, 8, 32], strides = [1, 1, 1]} : vector<8x8x32xf32> to vector<1x8x32xf32>
    %594 = vector.shape_cast %593 : vector<1x8x32xf32> to vector<8x32xf32>
    %595 = vector.extract_strided_slice %63 {offsets = [1, 0, 0], sizes = [1, 8, 32], strides = [1, 1, 1]} : vector<8x8x32xf32> to vector<1x8x32xf32>
    %596 = vector.shape_cast %595 : vector<1x8x32xf32> to vector<8x32xf32>
    %597 = vector.extract_strided_slice %75 {offsets = [1, 0, 0], sizes = [1, 8, 32], strides = [1, 1, 1]} : vector<8x8x32xf32> to vector<1x8x32xf32>
    %598 = vector.shape_cast %597 : vector<1x8x32xf32> to vector<8x32xf32>
    %cst_245 = arith.constant dense<0.000000e+00> : vector<8x32xf32>
    %599 = tpu.matmul %551, %83, %cst_245 {dimension_numbers = #tpu.dot_dimension_numbers<[1], [0], [0], [1], [0, 0, 1, 1], [], []>} : vector<8x32xf32>, vector<32x32xf32>, vector<8x32xf32> -> vector<8x32xf32>
    %600 = vector.broadcast %95 : vector<1x32xf32> to vector<8x32xf32>
    %601 = arith.addf %599, %600 : vector<8x32xf32>
    %cst_246 = arith.constant dense<0.000000e+00> : vector<8x32xf32>
    %602 = tpu.matmul %551, %85, %cst_246 {dimension_numbers = #tpu.dot_dimension_numbers<[1], [0], [0], [1], [0, 0, 1, 1], [], []>} : vector<8x32xf32>, vector<32x32xf32>, vector<8x32xf32> -> vector<8x32xf32>
    %603 = vector.broadcast %97 : vector<1x32xf32> to vector<8x32xf32>
    %604 = arith.addf %602, %603 : vector<8x32xf32>
    %cst_247 = arith.constant dense<0.000000e+00> : vector<8x32xf32>
    %605 = tpu.matmul %551, %87, %cst_247 {dimension_numbers = #tpu.dot_dimension_numbers<[1], [0], [0], [1], [0, 0, 1, 1], [], []>} : vector<8x32xf32>, vector<32x32xf32>, vector<8x32xf32> -> vector<8x32xf32>
    %606 = vector.broadcast %99 : vector<1x32xf32> to vector<8x32xf32>
    %607 = arith.addf %605, %606 : vector<8x32xf32>
    %608 = arith.addf %594, %601 : vector<8x32xf32>
    %609 = arith.negf %608 : vector<8x32xf32>
    %610 = math.exp %609 : vector<8x32xf32>
    %cst_248 = arith.constant 1.000000e+00 : f32
    %611 = vector.broadcast %cst_248 : f32 to vector<8x32xf32>
    %612 = arith.addf %611, %610 : vector<8x32xf32>
    %613 = arith.divf %611, %612 : vector<8x32xf32>
    %614 = arith.addf %596, %604 : vector<8x32xf32>
    %615 = arith.negf %614 : vector<8x32xf32>
    %616 = math.exp %615 : vector<8x32xf32>
    %cst_249 = arith.constant 1.000000e+00 : f32
    %617 = vector.broadcast %cst_249 : f32 to vector<8x32xf32>
    %618 = arith.addf %617, %616 : vector<8x32xf32>
    %619 = arith.divf %617, %618 : vector<8x32xf32>
    %620 = arith.mulf %613, %607 : vector<8x32xf32>
    %621 = arith.addf %598, %620 : vector<8x32xf32>
    %622 = math.tanh %621 : vector<8x32xf32>
    %cst_250 = arith.constant 1.000000e+00 : f32
    %623 = vector.broadcast %cst_250 : f32 to vector<8x32xf32>
    %624 = arith.subf %623, %619 : vector<8x32xf32>
    %625 = arith.mulf %624, %622 : vector<8x32xf32>
    %626 = arith.mulf %619, %551 : vector<8x32xf32>
    %627 = arith.addf %625, %626 : vector<8x32xf32>
    %c6_251 = arith.constant 6 : index
    %c0_252 = arith.constant 0 : index
    %c0_253 = arith.constant 0 : index
    %628 = vector.load %arg7[%c6_251, %c0_252, %c0_253] : memref<8x8x32xf32, #tpu.memory_space<vmem>>, vector<1x8x32xf32>
    %629 = vector.shape_cast %628 : vector<1x8x32xf32> to vector<8x32xf32>
    %630 = vector.shape_cast %592 : vector<8x32xf32> to vector<1x8x32xf32>
    tpu.vector_store %arg7[%c6_251, %c0_252, %c0_253], %630 {strides = array<i32>} : memref<8x8x32xf32, #tpu.memory_space<vmem>>, vector<1x8x32xf32>,
    %c1_254 = arith.constant 1 : index
    %c0_255 = arith.constant 0 : index
    %c0_256 = arith.constant 0 : index
    %631 = vector.load %arg8[%c1_254, %c0_255, %c0_256] : memref<8x8x32xf32, #tpu.memory_space<vmem>>, vector<1x8x32xf32>
    %632 = vector.shape_cast %631 : vector<1x8x32xf32> to vector<8x32xf32>
    %633 = vector.shape_cast %627 : vector<8x32xf32> to vector<1x8x32xf32>
    tpu.vector_store %arg8[%c1_254, %c0_255, %c0_256], %633 {strides = array<i32>} : memref<8x8x32xf32, #tpu.memory_space<vmem>>, vector<1x8x32xf32>,
    %634 = vector.extract_strided_slice %15 {offsets = [7, 0, 0], sizes = [1, 8, 32], strides = [1, 1, 1]} : vector<8x8x32xf32> to vector<1x8x32xf32>
    %635 = vector.shape_cast %634 : vector<1x8x32xf32> to vector<8x32xf32>
    %636 = vector.extract_strided_slice %27 {offsets = [7, 0, 0], sizes = [1, 8, 32], strides = [1, 1, 1]} : vector<8x8x32xf32> to vector<1x8x32xf32>
    %637 = vector.shape_cast %636 : vector<1x8x32xf32> to vector<8x32xf32>
    %638 = vector.extract_strided_slice %39 {offsets = [7, 0, 0], sizes = [1, 8, 32], strides = [1, 1, 1]} : vector<8x8x32xf32> to vector<1x8x32xf32>
    %639 = vector.shape_cast %638 : vector<1x8x32xf32> to vector<8x32xf32>
    %cst_257 = arith.constant dense<0.000000e+00> : vector<8x32xf32>
    %640 = tpu.matmul %592, %77, %cst_257 {dimension_numbers = #tpu.dot_dimension_numbers<[1], [0], [0], [1], [0, 0, 1, 1], [], []>} : vector<8x32xf32>, vector<32x32xf32>, vector<8x32xf32> -> vector<8x32xf32>
    %641 = vector.broadcast %89 : vector<1x32xf32> to vector<8x32xf32>
    %642 = arith.addf %640, %641 : vector<8x32xf32>
    %cst_258 = arith.constant dense<0.000000e+00> : vector<8x32xf32>
    %643 = tpu.matmul %592, %79, %cst_258 {dimension_numbers = #tpu.dot_dimension_numbers<[1], [0], [0], [1], [0, 0, 1, 1], [], []>} : vector<8x32xf32>, vector<32x32xf32>, vector<8x32xf32> -> vector<8x32xf32>
    %644 = vector.broadcast %91 : vector<1x32xf32> to vector<8x32xf32>
    %645 = arith.addf %643, %644 : vector<8x32xf32>
    %cst_259 = arith.constant dense<0.000000e+00> : vector<8x32xf32>
    %646 = tpu.matmul %592, %81, %cst_259 {dimension_numbers = #tpu.dot_dimension_numbers<[1], [0], [0], [1], [0, 0, 1, 1], [], []>} : vector<8x32xf32>, vector<32x32xf32>, vector<8x32xf32> -> vector<8x32xf32>
    %647 = vector.broadcast %93 : vector<1x32xf32> to vector<8x32xf32>
    %648 = arith.addf %646, %647 : vector<8x32xf32>
    %649 = arith.addf %635, %642 : vector<8x32xf32>
    %650 = arith.negf %649 : vector<8x32xf32>
    %651 = math.exp %650 : vector<8x32xf32>
    %cst_260 = arith.constant 1.000000e+00 : f32
    %652 = vector.broadcast %cst_260 : f32 to vector<8x32xf32>
    %653 = arith.addf %652, %651 : vector<8x32xf32>
    %654 = arith.divf %652, %653 : vector<8x32xf32>
    %655 = arith.addf %637, %645 : vector<8x32xf32>
    %656 = arith.negf %655 : vector<8x32xf32>
    %657 = math.exp %656 : vector<8x32xf32>
    %cst_261 = arith.constant 1.000000e+00 : f32
    %658 = vector.broadcast %cst_261 : f32 to vector<8x32xf32>
    %659 = arith.addf %658, %657 : vector<8x32xf32>
    %660 = arith.divf %658, %659 : vector<8x32xf32>
    %661 = arith.mulf %654, %648 : vector<8x32xf32>
    %662 = arith.addf %639, %661 : vector<8x32xf32>
    %663 = math.tanh %662 : vector<8x32xf32>
    %cst_262 = arith.constant 1.000000e+00 : f32
    %664 = vector.broadcast %cst_262 : f32 to vector<8x32xf32>
    %665 = arith.subf %664, %660 : vector<8x32xf32>
    %666 = arith.mulf %665, %663 : vector<8x32xf32>
    %667 = arith.mulf %660, %592 : vector<8x32xf32>
    %668 = arith.addf %666, %667 : vector<8x32xf32>
    %669 = vector.extract_strided_slice %51 {offsets = [0, 0, 0], sizes = [1, 8, 32], strides = [1, 1, 1]} : vector<8x8x32xf32> to vector<1x8x32xf32>
    %670 = vector.shape_cast %669 : vector<1x8x32xf32> to vector<8x32xf32>
    %671 = vector.extract_strided_slice %63 {offsets = [0, 0, 0], sizes = [1, 8, 32], strides = [1, 1, 1]} : vector<8x8x32xf32> to vector<1x8x32xf32>
    %672 = vector.shape_cast %671 : vector<1x8x32xf32> to vector<8x32xf32>
    %673 = vector.extract_strided_slice %75 {offsets = [0, 0, 0], sizes = [1, 8, 32], strides = [1, 1, 1]} : vector<8x8x32xf32> to vector<1x8x32xf32>
    %674 = vector.shape_cast %673 : vector<1x8x32xf32> to vector<8x32xf32>
    %cst_263 = arith.constant dense<0.000000e+00> : vector<8x32xf32>
    %675 = tpu.matmul %627, %83, %cst_263 {dimension_numbers = #tpu.dot_dimension_numbers<[1], [0], [0], [1], [0, 0, 1, 1], [], []>} : vector<8x32xf32>, vector<32x32xf32>, vector<8x32xf32> -> vector<8x32xf32>
    %676 = vector.broadcast %95 : vector<1x32xf32> to vector<8x32xf32>
    %677 = arith.addf %675, %676 : vector<8x32xf32>
    %cst_264 = arith.constant dense<0.000000e+00> : vector<8x32xf32>
    %678 = tpu.matmul %627, %85, %cst_264 {dimension_numbers = #tpu.dot_dimension_numbers<[1], [0], [0], [1], [0, 0, 1, 1], [], []>} : vector<8x32xf32>, vector<32x32xf32>, vector<8x32xf32> -> vector<8x32xf32>
    %679 = vector.broadcast %97 : vector<1x32xf32> to vector<8x32xf32>
    %680 = arith.addf %678, %679 : vector<8x32xf32>
    %cst_265 = arith.constant dense<0.000000e+00> : vector<8x32xf32>
    %681 = tpu.matmul %627, %87, %cst_265 {dimension_numbers = #tpu.dot_dimension_numbers<[1], [0], [0], [1], [0, 0, 1, 1], [], []>} : vector<8x32xf32>, vector<32x32xf32>, vector<8x32xf32> -> vector<8x32xf32>
    %682 = vector.broadcast %99 : vector<1x32xf32> to vector<8x32xf32>
    %683 = arith.addf %681, %682 : vector<8x32xf32>
    %684 = arith.addf %670, %677 : vector<8x32xf32>
    %685 = arith.negf %684 : vector<8x32xf32>
    %686 = math.exp %685 : vector<8x32xf32>
    %cst_266 = arith.constant 1.000000e+00 : f32
    %687 = vector.broadcast %cst_266 : f32 to vector<8x32xf32>
    %688 = arith.addf %687, %686 : vector<8x32xf32>
    %689 = arith.divf %687, %688 : vector<8x32xf32>
    %690 = arith.addf %672, %680 : vector<8x32xf32>
    %691 = arith.negf %690 : vector<8x32xf32>
    %692 = math.exp %691 : vector<8x32xf32>
    %cst_267 = arith.constant 1.000000e+00 : f32
    %693 = vector.broadcast %cst_267 : f32 to vector<8x32xf32>
    %694 = arith.addf %693, %692 : vector<8x32xf32>
    %695 = arith.divf %693, %694 : vector<8x32xf32>
    %696 = arith.mulf %689, %683 : vector<8x32xf32>
    %697 = arith.addf %674, %696 : vector<8x32xf32>
    %698 = math.tanh %697 : vector<8x32xf32>
    %cst_268 = arith.constant 1.000000e+00 : f32
    %699 = vector.broadcast %cst_268 : f32 to vector<8x32xf32>
    %700 = arith.subf %699, %695 : vector<8x32xf32>
    %701 = arith.mulf %700, %698 : vector<8x32xf32>
    %702 = arith.mulf %695, %627 : vector<8x32xf32>
    %703 = arith.addf %701, %702 : vector<8x32xf32>
    %c7_269 = arith.constant 7 : index
    %c0_270 = arith.constant 0 : index
    %c0_271 = arith.constant 0 : index
    %704 = vector.load %arg7[%c7_269, %c0_270, %c0_271] : memref<8x8x32xf32, #tpu.memory_space<vmem>>, vector<1x8x32xf32>
    %705 = vector.shape_cast %704 : vector<1x8x32xf32> to vector<8x32xf32>
    %706 = vector.shape_cast %668 : vector<8x32xf32> to vector<1x8x32xf32>
    tpu.vector_store %arg7[%c7_269, %c0_270, %c0_271], %706 {strides = array<i32>} : memref<8x8x32xf32, #tpu.memory_space<vmem>>, vector<1x8x32xf32>,
    %c0_272 = arith.constant 0 : index
    %c0_273 = arith.constant 0 : index
    %c0_274 = arith.constant 0 : index
    %707 = vector.load %arg8[%c0_272, %c0_273, %c0_274] : memref<8x8x32xf32, #tpu.memory_space<vmem>>, vector<1x8x32xf32>
    %708 = vector.shape_cast %707 : vector<1x8x32xf32> to vector<8x32xf32>
    %709 = vector.shape_cast %703 : vector<8x32xf32> to vector<1x8x32xf32>
    tpu.vector_store %arg8[%c0_272, %c0_273, %c0_274], %709 {strides = array<i32>} : memref<8x8x32xf32, #tpu.memory_space<vmem>>, vector<1x8x32xf32>,
    return
  }
}

</mosaic_0001>

<llo_original>
// kernel: tpu_custom_call.1
$region0: #{tpu_custom_call.1}
  #allocation0 [shape = 'u32[]', space=smem, size = 0x4, offset = 0x4, fixed_abs, tag = 'smem constant byte address 0x4 - core index']
  #allocation1 [shape = 'u32[144,128]{1,0:T(1,128)}', space=vmem, size = 0x12000, scoped, tag = 'internal scratch']
  %s0 = inlined_call_operand.hbm [shape: f32[8,8,16], index: 0, kind: input, shape index: {}]
  %s1 = inlined_call_operand.hbm [shape: f32[8,8,16], index: 1, kind: input, shape index: {}]
  %s2 = inlined_call_operand.hbm [shape: f32[2,3,16,32], index: 2, kind: input, shape index: {}]
  %s3 = inlined_call_operand.hbm [shape: f32[2,3,16,32], index: 3, kind: input, shape index: {}]
  %s4 = inlined_call_operand.vmem [shape: f32[2,3,1,32], index: 4, kind: input, shape index: {}]
  %s5 = inlined_call_operand.hbm [shape: f32[2,3,32,32], index: 5, kind: input, shape index: {}]
  %s6 = inlined_call_operand.vmem [shape: f32[2,3,1,32], index: 6, kind: input, shape index: {}]
  %s7 = inlined_call_operand.hbm [shape: f32[8,8,32], index: 7, kind: output, shape index: {0}]
  %s8 = inlined_call_operand.hbm [shape: f32[8,8,32], index: 8, kind: output, shape index: {1}]
  %9 = xla_tuple %s7, %s8
  %s10 = sld [smem:[#allocation0]]
  $region66: #{tpu_custom_call.1} parent=0
    _
  %s12 = ssub.s32 1, %s10
  %s13 = scalar_select 0, %s12, %s10
  $region1: #{tpu_custom_call.1} parent=0
    #allocation2 [shape = 'u8[32768]{0}', space=vmem, size = 0x8000, scoped, tag = 'input window, operand 0, single buffered']
    #allocation3 [shape = 's32[1]{0}', space=sflag, size = 0x4, scoped, tag = 'scoped memory for tpu_custom_call.1']
    #allocation4 [shape = 's32[1]{0}', space=sflag, size = 0x4, scoped, tag = 'scoped memory for tpu_custom_call.1']
    #allocation5 [shape = 'u8[32768]{0}', space=vmem, size = 0x8000, scoped, tag = 'input window, operand 1, single buffered']
    #allocation6 [shape = 's32[1]{0}', space=sflag, size = 0x4, scoped, tag = 'scoped memory for tpu_custom_call.1']
    #allocation7 [shape = 'u8[49152]{0}', space=vmem, size = 0xc000, scoped, tag = 'input window, operand 2, single buffered']
    #allocation8 [shape = 'u8[49152]{0}', space=vmem, size = 0xc000, scoped, tag = 'input window, operand 3, single buffered']
    #allocation9 [shape = 's32[1]{0}', space=sflag, size = 0x4, scoped, tag = 'scoped memory for tpu_custom_call.1']
    #allocation10 [shape = 'u8[98304]{0}', space=vmem, size = 0x18000, scoped, tag = 'input window, operand 5, single buffered']
    #allocation11 [shape = 'u8[32768]{0}', space=vmem, size = 0x8000, scoped, tag = 'output window, operand 0, single buffered']
    #allocation12 [shape = 'u8[32768]{0}', space=vmem, size = 0x8000, scoped, tag = 'output window, operand 1, single buffered']
    #allocation13 [shape = 's32[1]{0}', space=sflag, size = 0x4, scoped, tag = 'scoped memory for tpu_custom_call.1']
    %14 = vsyncpa [#allocation3], 0
    %15 = vsyncpa [#allocation6], 0
    %16 = vsyncpa [#allocation9], 0
    %17 = vsyncpa [#allocation4], 0
    %18 = vsyncpa [#allocation13], 0
    // Predicated region
    $region2: #{tpu_custom_call.1} parent=1 // pred_check
      _
    $region3: #{tpu_custom_call.1} parent=1 // pred_check_branch
      %20 = sbr.rel (0) target = $region5
    $region4: #{tpu_custom_call.1} parent=1 // pred_region
      %s22 = ssub.s32 1024, 1024
      %23 = vsyncadd [#allocation3], %s22
      %s24 = sshll.u32 [#allocation2], 4
      %s25 = int_to_ptr.vmem [resolvable:$true] %s24
      %30 = dma.hbm_to_vmem [thread:$0]  %s0, 1024, %s25, [#allocation3], 128, 128, 8
    $region5: #{tpu_custom_call.1} parent=1 // pred_fallthru
      _
    // Predicated region
    $region6: #{tpu_custom_call.1} parent=1 // pred_check
      _
    $region7: #{tpu_custom_call.1} parent=1 // pred_check_branch
      %32 = sbr.rel (0) target = $region9
    $region8: #{tpu_custom_call.1} parent=1 // pred_region
      %s34 = ssub.s32 1024, 1024
      %35 = vsyncadd [#allocation6], %s34
      %s36 = sshll.u32 [#allocation5], 4
      %s37 = int_to_ptr.vmem [resolvable:$true] %s36
      %42 = dma.hbm_to_vmem [thread:$0]  %s1, 1024, %s37, [#allocation6], 128, 128, 8
    $region9: #{tpu_custom_call.1} parent=1 // pred_fallthru
      _
    // Predicated region
    $region10: #{tpu_custom_call.1} parent=1 // pred_check
      _
    $region11: #{tpu_custom_call.1} parent=1 // pred_check_branch
      %44 = sbr.rel (0) target = $region13
    $region12: #{tpu_custom_call.1} parent=1 // pred_region
      %s46 = ssub.s32 1536, 1536
      %47 = vsyncadd [#allocation6], %s46
      %s48 = sshll.u32 [#allocation7], 4
      %s49 = int_to_ptr.vmem [resolvable:$true] %s48
      %54 = dma.hbm_to_vmem [thread:$0]  %s2, 1536, %s49, [#allocation6], 128, 128, 8
    $region13: #{tpu_custom_call.1} parent=1 // pred_fallthru
      _
    // Predicated region
    $region14: #{tpu_custom_call.1} parent=1 // pred_check
      _
    $region15: #{tpu_custom_call.1} parent=1 // pred_check_branch
      %56 = sbr.rel (0) target = $region17
    $region16: #{tpu_custom_call.1} parent=1 // pred_region
      %s58 = ssub.s32 1536, 1536
      %59 = vsyncadd [#allocation9], %s58
      %s60 = sshll.u32 [#allocation8], 4
      %s61 = int_to_ptr.vmem [resolvable:$true] %s60
      %66 = dma.hbm_to_vmem [thread:$0]  %s3, 1536, %s61, [#allocation9], 128, 128, 8
    $region17: #{tpu_custom_call.1} parent=1 // pred_fallthru
      _
    // Predicated region
    $region18: #{tpu_custom_call.1} parent=1 // pred_check
      _
    $region19: #{tpu_custom_call.1} parent=1 // pred_check_branch
      %68 = sbr.rel (0) target = $region21
    $region20: #{tpu_custom_call.1} parent=1 // pred_region
      _
    $region21: #{tpu_custom_call.1} parent=1 // pred_fallthru
      _
    // Predicated region
    $region22: #{tpu_custom_call.1} parent=1 // pred_check
      _
    $region23: #{tpu_custom_call.1} parent=1 // pred_check_branch
      %70 = sbr.rel (0) target = $region25
    $region24: #{tpu_custom_call.1} parent=1 // pred_region
      %s72 = ssub.s32 3072, 3072
      %73 = vsyncadd [#allocation9], %s72
      %s74 = sshll.u32 [#allocation10], 4
      %s75 = int_to_ptr.vmem [resolvable:$true] %s74
      %80 = dma.hbm_to_vmem [thread:$0]  %s5, 3072, %s75, [#allocation9], 128, 128, 8
    $region25: #{tpu_custom_call.1} parent=1 // pred_fallthru
      _
    // Predicated region
    $region26: #{tpu_custom_call.1} parent=1 // pred_check
      _
    $region27: #{tpu_custom_call.1} parent=1 // pred_check_branch
      %82 = sbr.rel (0) target = $region29
    $region28: #{tpu_custom_call.1} parent=1 // pred_region
      _
    $region29: #{tpu_custom_call.1} parent=1 // pred_fallthru
      _
    // Predicated region
    $region30: #{tpu_custom_call.1} parent=1 // pred_check
      _
    $region31: #{tpu_custom_call.1} parent=1 // pred_check_branch
      %84 = sbr.rel (0) target = $region33
    $region32: #{tpu_custom_call.1} parent=1 // pred_region
      %85 = dma.done [#allocation3], 1024
    $region33: #{tpu_custom_call.1} parent=1 // pred_fallthru
      _
    // Predicated region
    $region34: #{tpu_custom_call.1} parent=1 // pred_check
      _
    $region35: #{tpu_custom_call.1} parent=1 // pred_check_branch
      %87 = sbr.rel (0) target = $region37
    $region36: #{tpu_custom_call.1} parent=1 // pred_region
      %88 = dma.done [#allocation6], 1024
    $region37: #{tpu_custom_call.1} parent=1 // pred_fallthru
      _
    // Predicated region
    $region38: #{tpu_custom_call.1} parent=1 // pred_check
      _
    $region39: #{tpu_custom_call.1} parent=1 // pred_check_branch
      %90 = sbr.rel (0) target = $region41
    $region40: #{tpu_custom_call.1} parent=1 // pred_region
      %91 = dma.done [#allocation6], 1536
    $region41: #{tpu_custom_call.1} parent=1 // pred_fallthru
      _
    // Predicated region
    $region42: #{tpu_custom_call.1} parent=1 // pred_check
      _
    $region43: #{tpu_custom_call.1} parent=1 // pred_check_branch
      %93 = sbr.rel (0) target = $region45
    $region44: #{tpu_custom_call.1} parent=1 // pred_region
      %94 = dma.done [#allocation9], 1536
    $region45: #{tpu_custom_call.1} parent=1 // pred_fallthru
      _
    // Predicated region
    $region46: #{tpu_custom_call.1} parent=1 // pred_check
      _
    $region47: #{tpu_custom_call.1} parent=1 // pred_check_branch
      %96 = sbr.rel (0) target = $region49
    $region48: #{tpu_custom_call.1} parent=1 // pred_region
      %97 = dma.done [#allocation9], 3072
    $region49: #{tpu_custom_call.1} parent=1 // pred_fallthru
      _
    %v98 = vld [vmem:[#allocation2] sm:$0xff]
    %v99 = vld [vmem:[#allocation2 + $0x8] sm:$0xff]
    %v100 = vld [vmem:[#allocation2 + $0x10] sm:$0xff]
    %v101 = vld [vmem:[#allocation2 + $0x18] sm:$0xff]
    %v102 = vld [vmem:[#allocation2 + $0x20] sm:$0xff]
    %v103 = vld [vmem:[#allocation2 + $0x28] sm:$0xff]
    %v104 = vld [vmem:[#allocation2 + $0x30] sm:$0xff]
    %v105 = vld [vmem:[#allocation2 + $0x38] sm:$0xff]
    %v106 = vld [vmem:[#allocation5] sm:$0xff]
    %v107 = vld [vmem:[#allocation5 + $0x8] sm:$0xff]
    %v108 = vld [vmem:[#allocation5 + $0x10] sm:$0xff]
    %v109 = vld [vmem:[#allocation5 + $0x18] sm:$0xff]
    %v110 = vld [vmem:[#allocation5 + $0x20] sm:$0xff]
    %v111 = vld [vmem:[#allocation5 + $0x28] sm:$0xff]
    %v112 = vld [vmem:[#allocation5 + $0x30] sm:$0xff]
    %v113 = vld [vmem:[#allocation5 + $0x38] sm:$0xff]
    %v114 = vld [vmem:[#allocation7] sm:$0xff]
    %v115 = vld [vmem:[#allocation7 + $0x8] sm:$0xff]
    %v116 = vld [vmem:[#allocation8] sm:$0xff]
    %v117 = vld [vmem:[#allocation8 + $0x8] sm:$0xff]
    %vm118 = vcmask 130048
    %v120 = vsel %vm118, %v106, 0
    %v123 = vsel %vm118, %v107, 0
    %v126 = vsel %vm118, %v108, 0
    %v129 = vsel %vm118, %v109, 0
    %v132 = vsel %vm118, %v110, 0
    %v135 = vsel %vm118, %v111, 0
    %v138 = vsel %vm118, %v112, 0
    %v141 = vsel %vm118, %v113, 0
    %143 = vmatprep.subr.mxu0 0.0
    %144 = vmatpush1.msra.mxu0 %v116
    %145 = vmatprep.subr.mxu0 0.0
    %146 = vmatpush1.msra.mxu0 %v117
    %147 = vmatprep.subr.mxu0 0.0
    %148 = vmatpush1.msra.mxu0 0.0
    %149 = vmatprep.subr.mxu0 0.0
    %150 = vmatpush1.msra.mxu0 0.0
    %151 = vmatprep.subr.mxu0 0.0
    %152 = vmatpush1.msra.mxu0 0.0
    %153 = vmatprep.subr.mxu0 0.0
    %154 = vmatpush1.msra.mxu0 0.0
    %155 = vmatprep.subr.mxu0 0.0
    %156 = vmatpush1.msra.mxu0 0.0
    %157 = vmatprep.subr.mxu0 0.0
    %158 = vmatpush1.msra.mxu0 0.0
    %159 = vmatprep.subr.mxu0 0.0
    %160 = vmatpush1.msra.mxu0 0.0
    %161 = vmatprep.subr.mxu0 0.0
    %162 = vmatpush1.msra.mxu0 0.0
    %163 = vmatprep.subr.mxu0 0.0
    %164 = vmatpush1.msra.mxu0 0.0
    %165 = vmatprep.subr.mxu0 0.0
    %166 = vmatpush1.msra.mxu0 0.0
    %167 = vmatprep.subr.mxu0 0.0
    %168 = vmatpush1.msra.mxu0 0.0
    %169 = vmatprep.subr.mxu0 0.0
    %170 = vmatpush1.msra.mxu0 0.0
    %171 = vmatprep.subr.mxu0 0.0
    %172 = vmatpush1.msra.mxu0 0.0
    %173 = vmatprep.subr.mxu0 0.0
    %174 = vmatpush1.msra.mxu0 0.0
    %175 = vmatprep.subr.mxu0 0.0
    %176 = vmatpush1.msra.mxu0 0.0
    %177 = vmatprep.subr.mxu0 0.0
    %178 = vmatpush1.msra.mxu0 0.0
    %179 = vmatprep.subr.mxu0 0.0
    %180 = vmatpush1.msra.mxu0 0.0
    %181 = vmatprep.subr.mxu0 0.0
    %182 = vmatpush1.msra.mxu0 0.0
    %183 = vmatprep.subr.mxu0 0.0
    %184 = vmatpush1.msra.mxu0 0.0
    %185 = vmatprep.subr.mxu0 0.0
    %186 = vmatpush1.msra.mxu0 0.0
    %187 = vmatprep.subr.mxu0 0.0
    %188 = vmatpush1.msra.mxu0 0.0
    %189 = vmatprep.subr.mxu0 0.0
    %190 = vmatpush1.msra.mxu0 0.0
    %191 = vmatprep.subr.mxu0 0.0
    %192 = vmatpush1.msra.mxu0 0.0
    %193 = vmatprep.subr.mxu0 0.0
    %194 = vmatpush1.msra.mxu0 0.0
    %195 = vmatprep.subr.mxu0 0.0
    %196 = vmatpush1.msra.mxu0 0.0
    %197 = vmatprep.subr.mxu0 0.0
    %198 = vmatpush1.msra.mxu0 0.0
    %199 = vmatprep.subr.mxu0 0.0
    %200 = vmatpush1.msra.mxu0 0.0
    %201 = vmatprep.subr.mxu0 0.0
    %202 = vmatpush1.msra.mxu0 0.0
    %203 = vmatprep.subr.mxu0 0.0
    %204 = vmatpush1.msra.mxu0 0.0
    %205 = vmatprep.subr.mxu0 0.0
    %206 = vmatpush1.msra.mxu0 0.0
    %207 = vmatprep.mubr.f32.mxu0 0.0
    %208 = vmatmul.mubr.f32.gmra.mrb[0].mxu0 %v120
    %v209 = vpop.f32.mrb[0].mxu0
    %v210 = vadd.f32 0.0, %v209
    %v211 = vpop.f32.mrb[0].mxu0
    %212 = vmatprep.mubr.f32.mxu0 0.0
    %213 = vmatmul.mubr.f32.gmra.mrb[0].mxu0 %v123
    %v214 = vpop.f32.mrb[0].mxu0
    %v215 = vadd.f32 0.0, %v214
    %v216 = vpop.f32.mrb[0].mxu0
    %217 = vmatprep.mubr.f32.mxu0 0.0
    %218 = vmatmul.mubr.f32.gmra.mrb[0].mxu0 %v126
    %v219 = vpop.f32.mrb[0].mxu0
    %v220 = vadd.f32 0.0, %v219
    %v221 = vpop.f32.mrb[0].mxu0
    %222 = vmatprep.mubr.f32.mxu0 0.0
    %223 = vmatmul.mubr.f32.gmra.mrb[0].mxu0 %v129
    %v224 = vpop.f32.mrb[0].mxu0
    %v225 = vadd.f32 0.0, %v224
    %v226 = vpop.f32.mrb[0].mxu0
    %227 = vmatprep.mubr.f32.mxu0 0.0
    %228 = vmatmul.mubr.f32.gmra.mrb[0].mxu0 %v132
    %v229 = vpop.f32.mrb[0].mxu0
    %v230 = vadd.f32 0.0, %v229
    %v231 = vpop.f32.mrb[0].mxu0
    %232 = vmatprep.mubr.f32.mxu0 0.0
    %233 = vmatmul.mubr.f32.gmra.mrb[0].mxu0 %v135
    %v234 = vpop.f32.mrb[0].mxu0
    %v235 = vadd.f32 0.0, %v234
    %v236 = vpop.f32.mrb[0].mxu0
    %237 = vmatprep.mubr.f32.mxu0 0.0
    %238 = vmatmul.mubr.f32.gmra.mrb[0].mxu0 %v138
    %v239 = vpop.f32.mrb[0].mxu0
    %v240 = vadd.f32 0.0, %v239
    %v241 = vpop.f32.mrb[0].mxu0
    %242 = vmatprep.mubr.f32.mxu0 0.0
    %243 = vmatmul.mubr.f32.gmra.mrb[0].mxu0 %v141
    %v244 = vpop.f32.mrb[0].mxu0
    %v245 = vadd.f32 0.0, %v244
    %v246 = vpop.f32.mrb[0].mxu0
    %247 = vdwg.mxu0
    %v249 = vsel %vm118, %v98, 0
    %v252 = vsel %vm118, %v99, 0
    %v255 = vsel %vm118, %v100, 0
    %v258 = vsel %vm118, %v101, 0
    %v261 = vsel %vm118, %v102, 0
    %v264 = vsel %vm118, %v103, 0
    %v267 = vsel %vm118, %v104, 0
    %v270 = vsel %vm118, %v105, 0
    %272 = vmatprep.subr.mxu0 0.0
    %273 = vmatpush1.msra.mxu0 %v114
    %274 = vmatprep.subr.mxu0 0.0
    %275 = vmatpush1.msra.mxu0 %v115
    %276 = vmatprep.subr.mxu0 0.0
    %277 = vmatpush1.msra.mxu0 0.0
    %278 = vmatprep.subr.mxu0 0.0
    %279 = vmatpush1.msra.mxu0 0.0
    %280 = vmatprep.subr.mxu0 0.0
    %281 = vmatpush1.msra.mxu0 0.0
    %282 = vmatprep.subr.mxu0 0.0
    %283 = vmatpush1.msra.mxu0 0.0
    %284 = vmatprep.subr.mxu0 0.0
    %285 = vmatpush1.msra.mxu0 0.0
    %286 = vmatprep.subr.mxu0 0.0
    %287 = vmatpush1.msra.mxu0 0.0
    %288 = vmatprep.subr.mxu0 0.0
    %289 = vmatpush1.msra.mxu0 0.0
    %290 = vmatprep.subr.mxu0 0.0
    %291 = vmatpush1.msra.mxu0 0.0
    %292 = vmatprep.subr.mxu0 0.0
    %293 = vmatpush1.msra.mxu0 0.0
    %294 = vmatprep.subr.mxu0 0.0
    %295 = vmatpush1.msra.mxu0 0.0
    %296 = vmatprep.subr.mxu0 0.0
    %297 = vmatpush1.msra.mxu0 0.0
    %298 = vmatprep.subr.mxu0 0.0
    %299 = vmatpush1.msra.mxu0 0.0
    %300 = vmatprep.subr.mxu0 0.0
    %301 = vmatpush1.msra.mxu0 0.0
    %302 = vmatprep.subr.mxu0 0.0
    %303 = vmatpush1.msra.mxu0 0.0
    %304 = vmatprep.subr.mxu0 0.0
    %305 = vmatpush1.msra.mxu0 0.0
    %306 = vmatprep.subr.mxu0 0.0
    %307 = vmatpush1.msra.mxu0 0.0
    %308 = vmatprep.subr.mxu0 0.0
    %309 = vmatpush1.msra.mxu0 0.0
    %310 = vmatprep.subr.mxu0 0.0
    %311 = vmatpush1.msra.mxu0 0.0
    %312 = vmatprep.subr.mxu0 0.0
    %313 = vmatpush1.msra.mxu0 0.0
    %314 = vmatprep.subr.mxu0 0.0
    %315 = vmatpush1.msra.mxu0 0.0
    %316 = vmatprep.subr.mxu0 0.0
    %317 = vmatpush1.msra.mxu0 0.0
    %318 = vmatprep.subr.mxu0 0.0
    %319 = vmatpush1.msra.mxu0 0.0
    %320 = vmatprep.subr.mxu0 0.0
    %321 = vmatpush1.msra.mxu0 0.0
    %322 = vmatprep.subr.mxu0 0.0
    %323 = vmatpush1.msra.mxu0 0.0
    %324 = vmatprep.subr.mxu0 0.0
    %325 = vmatpush1.msra.mxu0 0.0
    %326 = vmatprep.subr.mxu0 0.0
    %327 = vmatpush1.msra.mxu0 0.0
    %328 = vmatprep.subr.mxu0 0.0
    %329 = vmatpush1.msra.mxu0 0.0
    %330 = vmatprep.subr.mxu0 0.0
    %331 = vmatpush1.msra.mxu0 0.0
    %332 = vmatprep.subr.mxu0 0.0
    %333 = vmatpush1.msra.mxu0 0.0
    %334 = vmatprep.subr.mxu0 0.0
    %335 = vmatpush1.msra.mxu0 0.0
    %336 = vmatprep.mubr.f32.mxu0 0.0
    %337 = vmatmul.mubr.f32.gmra.mrb[0].mxu0 %v249
    %v338 = vpop.f32.mrb[0].mxu0
    %v339 = vadd.f32 %v210, %v338
    %v340 = vpop.f32.mrb[0].mxu0
    %341 = vmatprep.mubr.f32.mxu0 0.0
    %342 = vmatmul.mubr.f32.gmra.mrb[0].mxu0 %v252
    %v343 = vpop.f32.mrb[0].mxu0
    %v344 = vadd.f32 %v215, %v343
    %v345 = vpop.f32.mrb[0].mxu0
    %346 = vmatprep.mubr.f32.mxu0 0.0
    %347 = vmatmul.mubr.f32.gmra.mrb[0].mxu0 %v255
    %v348 = vpop.f32.mrb[0].mxu0
    %v349 = vadd.f32 %v220, %v348
    %v350 = vpop.f32.mrb[0].mxu0
    %351 = vmatprep.mubr.f32.mxu0 0.0
    %352 = vmatmul.mubr.f32.gmra.mrb[0].mxu0 %v258
    %v353 = vpop.f32.mrb[0].mxu0
    %v354 = vadd.f32 %v225, %v353
    %v355 = vpop.f32.mrb[0].mxu0
    %356 = vmatprep.mubr.f32.mxu0 0.0
    %357 = vmatmul.mubr.f32.gmra.mrb[0].mxu0 %v261
    %v358 = vpop.f32.mrb[0].mxu0
    %v359 = vadd.f32 %v230, %v358
    %v360 = vpop.f32.mrb[0].mxu0
    %361 = vmatprep.mubr.f32.mxu0 0.0
    %362 = vmatmul.mubr.f32.gmra.mrb[0].mxu0 %v264
    %v363 = vpop.f32.mrb[0].mxu0
    %v364 = vadd.f32 %v235, %v363
    %v365 = vpop.f32.mrb[0].mxu0
    %366 = vmatprep.mubr.f32.mxu0 0.0
    %367 = vmatmul.mubr.f32.gmra.mrb[0].mxu0 %v267
    %v368 = vpop.f32.mrb[0].mxu0
    %v369 = vadd.f32 %v240, %v368
    %v370 = vpop.f32.mrb[0].mxu0
    %371 = vmatprep.mubr.f32.mxu0 0.0
    %372 = vmatmul.mubr.f32.gmra.mrb[0].mxu0 %v270
    %v373 = vpop.f32.mrb[0].mxu0
    %v374 = vadd.f32 %v245, %v373
    %v375 = vpop.f32.mrb[0].mxu0
    %376 = vdwg.mxu0
    %v377 = vld [vmem:[%s4] sm:$0x1]
    %v379 = vlaneseq
    %v380 = vshrl.u32 %v379, 7
    %v381 = vsub.s32 0, %v380
    %v382 = vrot.slane %v377, %v381
    %v384 = vadd.f32 %v339, %v382
    %v385 = vadd.f32 %v344, %v382
    %v386 = vadd.f32 %v349, %v382
    %v387 = vadd.f32 %v354, %v382
    %v388 = vadd.f32 %v359, %v382
    %v389 = vadd.f32 %v364, %v382
    %v390 = vadd.f32 %v369, %v382
    %v391 = vadd.f32 %v374, %v382
    %s392 = scalar_lea.vmem [#allocation7], 16
    %v393 = vld [vmem:[%s392] sm:$0xff]
    %v394 = vld [vmem:[%s392 + $0x8] sm:$0xff]
    %s395 = scalar_lea.vmem [#allocation8], 16
    %v396 = vld [vmem:[%s395] sm:$0xff]
    %v397 = vld [vmem:[%s395 + $0x8] sm:$0xff]
    %398 = vmatprep.subr.mxu0 0.0
    %399 = vmatpush1.msra.mxu0 %v396
    %400 = vmatprep.subr.mxu0 0.0
    %401 = vmatpush1.msra.mxu0 %v397
    %402 = vmatprep.subr.mxu0 0.0
    %403 = vmatpush1.msra.mxu0 0.0
    %404 = vmatprep.subr.mxu0 0.0
    %405 = vmatpush1.msra.mxu0 0.0
    %406 = vmatprep.subr.mxu0 0.0
    %407 = vmatpush1.msra.mxu0 0.0
    %408 = vmatprep.subr.mxu0 0.0
    %409 = vmatpush1.msra.mxu0 0.0
    %410 = vmatprep.subr.mxu0 0.0
    %411 = vmatpush1.msra.mxu0 0.0
    %412 = vmatprep.subr.mxu0 0.0
    %413 = vmatpush1.msra.mxu0 0.0
    %414 = vmatprep.subr.mxu0 0.0
    %415 = vmatpush1.msra.mxu0 0.0
    %416 = vmatprep.subr.mxu0 0.0
    %417 = vmatpush1.msra.mxu0 0.0
    %418 = vmatprep.subr.mxu0 0.0
    %419 = vmatpush1.msra.mxu0 0.0
    %420 = vmatprep.subr.mxu0 0.0
    %421 = vmatpush1.msra.mxu0 0.0
    %422 = vmatprep.subr.mxu0 0.0
    %423 = vmatpush1.msra.mxu0 0.0
    %424 = vmatprep.subr.mxu0 0.0
    %425 = vmatpush1.msra.mxu0 0.0
    %426 = vmatprep.subr.mxu0 0.0
    %427 = vmatpush1.msra.mxu0 0.0
    %428 = vmatprep.subr.mxu0 0.0
    %429 = vmatpush1.msra.mxu0 0.0
    %430 = vmatprep.subr.mxu0 0.0
    %431 = vmatpush1.msra.mxu0 0.0
    %432 = vmatprep.subr.mxu0 0.0
    %433 = vmatpush1.msra.mxu0 0.0
    %434 = vmatprep.subr.mxu0 0.0
    %435 = vmatpush1.msra.mxu0 0.0
    %436 = vmatprep.subr.mxu0 0.0
    %437 = vmatpush1.msra.mxu0 0.0
    %438 = vmatprep.subr.mxu0 0.0
    %439 = vmatpush1.msra.mxu0 0.0
    %440 = vmatprep.subr.mxu0 0.0
    %441 = vmatpush1.msra.mxu0 0.0
    %442 = vmatprep.subr.mxu0 0.0
    %443 = vmatpush1.msra.mxu0 0.0
    %444 = vmatprep.subr.mxu0 0.0
    %445 = vmatpush1.msra.mxu0 0.0
    %446 = vmatprep.subr.mxu0 0.0
    %447 = vmatpush1.msra.mxu0 0.0
    %448 = vmatprep.subr.mxu0 0.0
    %449 = vmatpush1.msra.mxu0 0.0
    %450 = vmatprep.subr.mxu0 0.0
    %451 = vmatpush1.msra.mxu0 0.0
    %452 = vmatprep.subr.mxu0 0.0
    %453 = vmatpush1.msra.mxu0 0.0
    %454 = vmatprep.subr.mxu0 0.0
    %455 = vmatpush1.msra.mxu0 0.0
    %456 = vmatprep.subr.mxu0 0.0
    %457 = vmatpush1.msra.mxu0 0.0
    %458 = vmatprep.subr.mxu0 0.0
    %459 = vmatpush1.msra.mxu0 0.0
    %460 = vmatprep.subr.mxu0 0.0
    %461 = vmatpush1.msra.mxu0 0.0
    %462 = vmatprep.mubr.f32.mxu0 0.0
    %463 = vmatmul.mubr.f32.gmra.mrb[0].mxu0 %v120
    %v464 = vpop.f32.mrb[0].mxu0
    %v465 = vadd.f32 0.0, %v464
    %v466 = vpop.f32.mrb[0].mxu0
    %467 = vmatprep.mubr.f32.mxu0 0.0
    %468 = vmatmul.mubr.f32.gmra.mrb[0].mxu0 %v123
    %v469 = vpop.f32.mrb[0].mxu0
    %v470 = vadd.f32 0.0, %v469
    %v471 = vpop.f32.mrb[0].mxu0
    %472 = vmatprep.mubr.f32.mxu0 0.0
    %473 = vmatmul.mubr.f32.gmra.mrb[0].mxu0 %v126
    %v474 = vpop.f32.mrb[0].mxu0
    %v475 = vadd.f32 0.0, %v474
    %v476 = vpop.f32.mrb[0].mxu0
    %477 = vmatprep.mubr.f32.mxu0 0.0
    %478 = vmatmul.mubr.f32.gmra.mrb[0].mxu0 %v129
    %v479 = vpop.f32.mrb[0].mxu0
    %v480 = vadd.f32 0.0, %v479
    %v481 = vpop.f32.mrb[0].mxu0
    %482 = vmatprep.mubr.f32.mxu0 0.0
    %483 = vmatmul.mubr.f32.gmra.mrb[0].mxu0 %v132
    %v484 = vpop.f32.mrb[0].mxu0
    %v485 = vadd.f32 0.0, %v484
    %v486 = vpop.f32.mrb[0].mxu0
    %487 = vmatprep.mubr.f32.mxu0 0.0
    %488 = vmatmul.mubr.f32.gmra.mrb[0].mxu0 %v135
    %v489 = vpop.f32.mrb[0].mxu0
    %v490 = vadd.f32 0.0, %v489
    %v491 = vpop.f32.mrb[0].mxu0
    %492 = vmatprep.mubr.f32.mxu0 0.0
    %493 = vmatmul.mubr.f32.gmra.mrb[0].mxu0 %v138
    %v494 = vpop.f32.mrb[0].mxu0
    %v495 = vadd.f32 0.0, %v494
    %v496 = vpop.f32.mrb[0].mxu0
    %497 = vmatprep.mubr.f32.mxu0 0.0
    %498 = vmatmul.mubr.f32.gmra.mrb[0].mxu0 %v141
    %v499 = vpop.f32.mrb[0].mxu0
    %v500 = vadd.f32 0.0, %v499
    %v501 = vpop.f32.mrb[0].mxu0
    %502 = vdwg.mxu0
    %503 = vmatprep.subr.mxu0 0.0
    %504 = vmatpush1.msra.mxu0 %v393
    %505 = vmatprep.subr.mxu0 0.0
    %506 = vmatpush1.msra.mxu0 %v394
    %507 = vmatprep.subr.mxu0 0.0
    %508 = vmatpush1.msra.mxu0 0.0
    %509 = vmatprep.subr.mxu0 0.0
    %510 = vmatpush1.msra.mxu0 0.0
    %511 = vmatprep.subr.mxu0 0.0
    %512 = vmatpush1.msra.mxu0 0.0
    %513 = vmatprep.subr.mxu0 0.0
    %514 = vmatpush1.msra.mxu0 0.0
    %515 = vmatprep.subr.mxu0 0.0
    %516 = vmatpush1.msra.mxu0 0.0
    %517 = vmatprep.subr.mxu0 0.0
    %518 = vmatpush1.msra.mxu0 0.0
    %519 = vmatprep.subr.mxu0 0.0
    %520 = vmatpush1.msra.mxu0 0.0
    %521 = vmatprep.subr.mxu0 0.0
    %522 = vmatpush1.msra.mxu0 0.0
    %523 = vmatprep.subr.mxu0 0.0
    %524 = vmatpush1.msra.mxu0 0.0
    %525 = vmatprep.subr.mxu0 0.0
    %526 = vmatpush1.msra.mxu0 0.0
    %527 = vmatprep.subr.mxu0 0.0
    %528 = vmatpush1.msra.mxu0 0.0
    %529 = vmatprep.subr.mxu0 0.0
    %530 = vmatpush1.msra.mxu0 0.0
    %531 = vmatprep.subr.mxu0 0.0
    %532 = vmatpush1.msra.mxu0 0.0
    %533 = vmatprep.subr.mxu0 0.0
    %534 = vmatpush1.msra.mxu0 0.0
    %535 = vmatprep.subr.mxu0 0.0
    %536 = vmatpush1.msra.mxu0 0.0
    %537 = vmatprep.subr.mxu0 0.0
    %538 = vmatpush1.msra.mxu0 0.0
    %539 = vmatprep.subr.mxu0 0.0
    %540 = vmatpush1.msra.mxu0 0.0
    %541 = vmatprep.subr.mxu0 0.0
    %542 = vmatpush1.msra.mxu0 0.0
    %543 = vmatprep.subr.mxu0 0.0
    %544 = vmatpush1.msra.mxu0 0.0
    %545 = vmatprep.subr.mxu0 0.0
    %546 = vmatpush1.msra.mxu0 0.0
    %547 = vmatprep.subr.mxu0 0.0
    %548 = vmatpush1.msra.mxu0 0.0
    %549 = vmatprep.subr.mxu0 0.0
    %550 = vmatpush1.msra.mxu0 0.0
    %551 = vmatprep.subr.mxu0 0.0
    %552 = vmatpush1.msra.mxu0 0.0
    %553 = vmatprep.subr.mxu0 0.0
    %554 = vmatpush1.msra.mxu0 0.0
    %555 = vmatprep.subr.mxu0 0.0
    %556 = vmatpush1.msra.mxu0 0.0
    %557 = vmatprep.subr.mxu0 0.0
    %558 = vmatpush1.msra.mxu0 0.0
    %559 = vmatprep.subr.mxu0 0.0
    %560 = vmatpush1.msra.mxu0 0.0
    %561 = vmatprep.subr.mxu0 0.0
    %562 = vmatpush1.msra.mxu0 0.0
    %563 = vmatprep.subr.mxu0 0.0
    %564 = vmatpush1.msra.mxu0 0.0
    %565 = vmatprep.subr.mxu0 0.0
    %566 = vmatpush1.msra.mxu0 0.0
    %567 = vmatprep.mubr.f32.mxu0 0.0
    %568 = vmatmul.mubr.f32.gmra.mrb[0].mxu0 %v249
    %v569 = vpop.f32.mrb[0].mxu0
    %v570 = vadd.f32 %v465, %v569
    %v571 = vpop.f32.mrb[0].mxu0
    %572 = vmatprep.mubr.f32.mxu0 0.0
    %573 = vmatmul.mubr.f32.gmra.mrb[0].mxu0 %v252
    %v574 = vpop.f32.mrb[0].mxu0
    %v575 = vadd.f32 %v470, %v574
    %v576 = vpop.f32.mrb[0].mxu0
    %577 = vmatprep.mubr.f32.mxu0 0.0
    %578 = vmatmul.mubr.f32.gmra.mrb[0].mxu0 %v255
    %v579 = vpop.f32.mrb[0].mxu0
    %v580 = vadd.f32 %v475, %v579
    %v581 = vpop.f32.mrb[0].mxu0
    %582 = vmatprep.mubr.f32.mxu0 0.0
    %583 = vmatmul.mubr.f32.gmra.mrb[0].mxu0 %v258
    %v584 = vpop.f32.mrb[0].mxu0
    %v585 = vadd.f32 %v480, %v584
    %v586 = vpop.f32.mrb[0].mxu0
    %587 = vmatprep.mubr.f32.mxu0 0.0
    %588 = vmatmul.mubr.f32.gmra.mrb[0].mxu0 %v261
    %v589 = vpop.f32.mrb[0].mxu0
    %v590 = vadd.f32 %v485, %v589
    %v591 = vpop.f32.mrb[0].mxu0
    %592 = vmatprep.mubr.f32.mxu0 0.0
    %593 = vmatmul.mubr.f32.gmra.mrb[0].mxu0 %v264
    %v594 = vpop.f32.mrb[0].mxu0
    %v595 = vadd.f32 %v490, %v594
    %v596 = vpop.f32.mrb[0].mxu0
    %597 = vmatprep.mubr.f32.mxu0 0.0
    %598 = vmatmul.mubr.f32.gmra.mrb[0].mxu0 %v267
    %v599 = vpop.f32.mrb[0].mxu0
    %v600 = vadd.f32 %v495, %v599
    %v601 = vpop.f32.mrb[0].mxu0
    %602 = vmatprep.mubr.f32.mxu0 0.0
    %603 = vmatmul.mubr.f32.gmra.mrb[0].mxu0 %v270
    %v604 = vpop.f32.mrb[0].mxu0
    %v605 = vadd.f32 %v500, %v604
    %v606 = vpop.f32.mrb[0].mxu0
    %607 = vdwg.mxu0
    %s608 = scalar_lea.vmem %s4, 1
    %v609 = vld [vmem:[%s608] sm:$0x1]
    %v611 = vlaneseq
    %v612 = vshrl.u32 %v611, 7
    %v613 = vsub.s32 0, %v612
    %v614 = vrot.slane %v609, %v613
    %v616 = vadd.f32 %v570, %v614
    %v617 = vadd.f32 %v575, %v614
    %v618 = vadd.f32 %v580, %v614
    %v619 = vadd.f32 %v585, %v614
    %v620 = vadd.f32 %v590, %v614
    %v621 = vadd.f32 %v595, %v614
    %v622 = vadd.f32 %v600, %v614
    %v623 = vadd.f32 %v605, %v614
    %s624 = scalar_lea.vmem [#allocation7], 32
    %v625 = vld [vmem:[%s624] sm:$0xff]
    %v626 = vld [vmem:[%s624 + $0x8] sm:$0xff]
    %s627 = scalar_lea.vmem [#allocation8], 32
    %v628 = vld [vmem:[%s627] sm:$0xff]
    %v629 = vld [vmem:[%s627 + $0x8] sm:$0xff]
    %630 = vmatprep.subr.mxu0 0.0
    %631 = vmatpush1.msra.mxu0 %v628
    %632 = vmatprep.subr.mxu0 0.0
    %633 = vmatpush1.msra.mxu0 %v629
    %634 = vmatprep.subr.mxu0 0.0
    %635 = vmatpush1.msra.mxu0 0.0
    %636 = vmatprep.subr.mxu0 0.0
    %637 = vmatpush1.msra.mxu0 0.0
    %638 = vmatprep.subr.mxu0 0.0
    %639 = vmatpush1.msra.mxu0 0.0
    %640 = vmatprep.subr.mxu0 0.0
    %641 = vmatpush1.msra.mxu0 0.0
    %642 = vmatprep.subr.mxu0 0.0
    %643 = vmatpush1.msra.mxu0 0.0
    %644 = vmatprep.subr.mxu0 0.0
    %645 = vmatpush1.msra.mxu0 0.0
    %646 = vmatprep.subr.mxu0 0.0
    %647 = vmatpush1.msra.mxu0 0.0
    %648 = vmatprep.subr.mxu0 0.0
    %649 = vmatpush1.msra.mxu0 0.0
    %650 = vmatprep.subr.mxu0 0.0
    %651 = vmatpush1.msra.mxu0 0.0
    %652 = vmatprep.subr.mxu0 0.0
    %653 = vmatpush1.msra.mxu0 0.0
    %654 = vmatprep.subr.mxu0 0.0
    %655 = vmatpush1.msra.mxu0 0.0
    %656 = vmatprep.subr.mxu0 0.0
    %657 = vmatpush1.msra.mxu0 0.0
    %658 = vmatprep.subr.mxu0 0.0
    %659 = vmatpush1.msra.mxu0 0.0
    %660 = vmatprep.subr.mxu0 0.0
    %661 = vmatpush1.msra.mxu0 0.0
    %662 = vmatprep.subr.mxu0 0.0
    %663 = vmatpush1.msra.mxu0 0.0
    %664 = vmatprep.subr.mxu0 0.0
    %665 = vmatpush1.msra.mxu0 0.0
    %666 = vmatprep.subr.mxu0 0.0
    %667 = vmatpush1.msra.mxu0 0.0
    %668 = vmatprep.subr.mxu0 0.0
    %669 = vmatpush1.msra.mxu0 0.0
    %670 = vmatprep.subr.mxu0 0.0
    %671 = vmatpush1.msra.mxu0 0.0
    %672 = vmatprep.subr.mxu0 0.0
    %673 = vmatpush1.msra.mxu0 0.0
    %674 = vmatprep.subr.mxu0 0.0
    %675 = vmatpush1.msra.mxu0 0.0
    %676 = vmatprep.subr.mxu0 0.0
    %677 = vmatpush1.msra.mxu0 0.0
    %678 = vmatprep.subr.mxu0 0.0
    %679 = vmatpush1.msra.mxu0 0.0
    %680 = vmatprep.subr.mxu0 0.0
    %681 = vmatpush1.msra.mxu0 0.0
    %682 = vmatprep.subr.mxu0 0.0
    %683 = vmatpush1.msra.mxu0 0.0
    %684 = vmatprep.subr.mxu0 0.0
    %685 = vmatpush1.msra.mxu0 0.0
    %686 = vmatprep.subr.mxu0 0.0
    %687 = vmatpush1.msra.mxu0 0.0
    %688 = vmatprep.subr.mxu0 0.0
    %689 = vmatpush1.msra.mxu0 0.0
    %690 = vmatprep.subr.mxu0 0.0
    %691 = vmatpush1.msra.mxu0 0.0
    %692 = vmatprep.subr.mxu0 0.0
    %693 = vmatpush1.msra.mxu0 0.0
    %694 = vmatprep.mubr.f32.mxu0 0.0
    %695 = vmatmul.mubr.f32.gmra.mrb[0].mxu0 %v120
    %v696 = vpop.f32.mrb[0].mxu0
    %v697 = vadd.f32 0.0, %v696
    %v698 = vpop.f32.mrb[0].mxu0
    %699 = vmatprep.mubr.f32.mxu0 0.0
    %700 = vmatmul.mubr.f32.gmra.mrb[0].mxu0 %v123
    %v701 = vpop.f32.mrb[0].mxu0
    %v702 = vadd.f32 0.0, %v701
    %v703 = vpop.f32.mrb[0].mxu0
    %704 = vmatprep.mubr.f32.mxu0 0.0
    %705 = vmatmul.mubr.f32.gmra.mrb[0].mxu0 %v126
    %v706 = vpop.f32.mrb[0].mxu0
    %v707 = vadd.f32 0.0, %v706
    %v708 = vpop.f32.mrb[0].mxu0
    %709 = vmatprep.mubr.f32.mxu0 0.0
    %710 = vmatmul.mubr.f32.gmra.mrb[0].mxu0 %v129
    %v711 = vpop.f32.mrb[0].mxu0
    %v712 = vadd.f32 0.0, %v711
    %v713 = vpop.f32.mrb[0].mxu0
    %714 = vmatprep.mubr.f32.mxu0 0.0
    %715 = vmatmul.mubr.f32.gmra.mrb[0].mxu0 %v132
    %v716 = vpop.f32.mrb[0].mxu0
    %v717 = vadd.f32 0.0, %v716
    %v718 = vpop.f32.mrb[0].mxu0
    %719 = vmatprep.mubr.f32.mxu0 0.0
    %720 = vmatmul.mubr.f32.gmra.mrb[0].mxu0 %v135
    %v721 = vpop.f32.mrb[0].mxu0
    %v722 = vadd.f32 0.0, %v721
    %v723 = vpop.f32.mrb[0].mxu0
    %724 = vmatprep.mubr.f32.mxu0 0.0
    %725 = vmatmul.mubr.f32.gmra.mrb[0].mxu0 %v138
    %v726 = vpop.f32.mrb[0].mxu0
    %v727 = vadd.f32 0.0, %v726
    %v728 = vpop.f32.mrb[0].mxu0
    %729 = vmatprep.mubr.f32.mxu0 0.0
    %730 = vmatmul.mubr.f32.gmra.mrb[0].mxu0 %v141
    %v731 = vpop.f32.mrb[0].mxu0
    %v732 = vadd.f32 0.0, %v731
    %v733 = vpop.f32.mrb[0].mxu0
    %734 = vdwg.mxu0
    %735 = vmatprep.subr.mxu0 0.0
    %736 = vmatpush1.msra.mxu0 %v625
    %737 = vmatprep.subr.mxu0 0.0
    %738 = vmatpush1.msra.mxu0 %v626
    %739 = vmatprep.subr.mxu0 0.0
    %740 = vmatpush1.msra.mxu0 0.0
    %741 = vmatprep.subr.mxu0 0.0
    %742 = vmatpush1.msra.mxu0 0.0
    %743 = vmatprep.subr.mxu0 0.0
    %744 = vmatpush1.msra.mxu0 0.0
    %745 = vmatprep.subr.mxu0 0.0
    %746 = vmatpush1.msra.mxu0 0.0
    %747 = vmatprep.subr.mxu0 0.0
    %748 = vmatpush1.msra.mxu0 0.0
    %749 = vmatprep.subr.mxu0 0.0
    %750 = vmatpush1.msra.mxu0 0.0
    %751 = vmatprep.subr.mxu0 0.0
    %752 = vmatpush1.msra.mxu0 0.0
    %753 = vmatprep.subr.mxu0 0.0
    %754 = vmatpush1.msra.mxu0 0.0
    %755 = vmatprep.subr.mxu0 0.0
    %756 = vmatpush1.msra.mxu0 0.0
    %757 = vmatprep.subr.mxu0 0.0
    %758 = vmatpush1.msra.mxu0 0.0
    %759 = vmatprep.subr.mxu0 0.0
    %760 = vmatpush1.msra.mxu0 0.0
    %761 = vmatprep.subr.mxu0 0.0
    %762 = vmatpush1.msra.mxu0 0.0
    %763 = vmatprep.subr.mxu0 0.0
    %764 = vmatpush1.msra.mxu0 0.0
    %765 = vmatprep.subr.mxu0 0.0
    %766 = vmatpush1.msra.mxu0 0.0
    %767 = vmatprep.subr.mxu0 0.0
    %768 = vmatpush1.msra.mxu0 0.0
    %769 = vmatprep.subr.mxu0 0.0
    %770 = vmatpush1.msra.mxu0 0.0
    %771 = vmatprep.subr.mxu0 0.0
    %772 = vmatpush1.msra.mxu0 0.0
    %773 = vmatprep.subr.mxu0 0.0
    %774 = vmatpush1.msra.mxu0 0.0
    %775 = vmatprep.subr.mxu0 0.0
    %776 = vmatpush1.msra.mxu0 0.0
    %777 = vmatprep.subr.mxu0 0.0
    %778 = vmatpush1.msra.mxu0 0.0
    %779 = vmatprep.subr.mxu0 0.0
    %780 = vmatpush1.msra.mxu0 0.0
    %781 = vmatprep.subr.mxu0 0.0
    %782 = vmatpush1.msra.mxu0 0.0
    %783 = vmatprep.subr.mxu0 0.0
    %784 = vmatpush1.msra.mxu0 0.0
    %785 = vmatprep.subr.mxu0 0.0
    %786 = vmatpush1.msra.mxu0 0.0
    %787 = vmatprep.subr.mxu0 0.0
    %788 = vmatpush1.msra.mxu0 0.0
    %789 = vmatprep.subr.mxu0 0.0
    %790 = vmatpush1.msra.mxu0 0.0
    %791 = vmatprep.subr.mxu0 0.0
    %792 = vmatpush1.msra.mxu0 0.0
    %793 = vmatprep.subr.mxu0 0.0
    %794 = vmatpush1.msra.mxu0 0.0
    %795 = vmatprep.subr.mxu0 0.0
    %796 = vmatpush1.msra.mxu0 0.0
    %797 = vmatprep.subr.mxu0 0.0
    %798 = vmatpush1.msra.mxu0 0.0
    %799 = vmatprep.mubr.f32.mxu0 0.0
    %800 = vmatmul.mubr.f32.gmra.mrb[0].mxu0 %v249
    %v801 = vpop.f32.mrb[0].mxu0
    %v802 = vadd.f32 %v697, %v801
    %v803 = vpop.f32.mrb[0].mxu0
    %804 = vmatprep.mubr.f32.mxu0 0.0
    %805 = vmatmul.mubr.f32.gmra.mrb[0].mxu0 %v252
    %v806 = vpop.f32.mrb[0].mxu0
    %v807 = vadd.f32 %v702, %v806
    %v808 = vpop.f32.mrb[0].mxu0
    %809 = vmatprep.mubr.f32.mxu0 0.0
    %810 = vmatmul.mubr.f32.gmra.mrb[0].mxu0 %v255
    %v811 = vpop.f32.mrb[0].mxu0
    %v812 = vadd.f32 %v707, %v811
    %v813 = vpop.f32.mrb[0].mxu0
    %814 = vmatprep.mubr.f32.mxu0 0.0
    %815 = vmatmul.mubr.f32.gmra.mrb[0].mxu0 %v258
    %v816 = vpop.f32.mrb[0].mxu0
    %v817 = vadd.f32 %v712, %v816
    %v818 = vpop.f32.mrb[0].mxu0
    %819 = vmatprep.mubr.f32.mxu0 0.0
    %820 = vmatmul.mubr.f32.gmra.mrb[0].mxu0 %v261
    %v821 = vpop.f32.mrb[0].mxu0
    %v822 = vadd.f32 %v717, %v821
    %v823 = vpop.f32.mrb[0].mxu0
    %824 = vmatprep.mubr.f32.mxu0 0.0
    %825 = vmatmul.mubr.f32.gmra.mrb[0].mxu0 %v264
    %v826 = vpop.f32.mrb[0].mxu0
    %v827 = vadd.f32 %v722, %v826
    %v828 = vpop.f32.mrb[0].mxu0
    %829 = vmatprep.mubr.f32.mxu0 0.0
    %830 = vmatmul.mubr.f32.gmra.mrb[0].mxu0 %v267
    %v831 = vpop.f32.mrb[0].mxu0
    %v832 = vadd.f32 %v727, %v831
    %v833 = vpop.f32.mrb[0].mxu0
    %834 = vmatprep.mubr.f32.mxu0 0.0
    %835 = vmatmul.mubr.f32.gmra.mrb[0].mxu0 %v270
    %v836 = vpop.f32.mrb[0].mxu0
    %v837 = vadd.f32 %v732, %v836
    %v838 = vpop.f32.mrb[0].mxu0
    %839 = vdwg.mxu0
    %s840 = scalar_lea.vmem %s4, 2
    %v841 = vld [vmem:[%s840] sm:$0x1]
    %v843 = vlaneseq
    %v844 = vshrl.u32 %v843, 7
    %v845 = vsub.s32 0, %v844
    %v846 = vrot.slane %v841, %v845
    %v848 = vadd.f32 %v802, %v846
    %v849 = vadd.f32 %v807, %v846
    %v850 = vadd.f32 %v812, %v846
    %v851 = vadd.f32 %v817, %v846
    %v852 = vadd.f32 %v822, %v846
    %v853 = vadd.f32 %v827, %v846
    %v854 = vadd.f32 %v832, %v846
    %v855 = vadd.f32 %v837, %v846
    %s856 = scalar_lea.vmem [#allocation7], 48
    %v857 = vld [vmem:[%s856] sm:$0xff]
    %v858 = vld [vmem:[%s856 + $0x8] sm:$0xff]
    %s859 = scalar_lea.vmem [#allocation8], 48
    %v860 = vld [vmem:[%s859] sm:$0xff]
    %v861 = vld [vmem:[%s859 + $0x8] sm:$0xff]
    %862 = vmatprep.subr.mxu0 0.0
    %863 = vmatpush1.msra.mxu0 %v860
    %864 = vmatprep.subr.mxu0 0.0
    %865 = vmatpush1.msra.mxu0 %v861
    %866 = vmatprep.subr.mxu0 0.0
    %867 = vmatpush1.msra.mxu0 0.0
    %868 = vmatprep.subr.mxu0 0.0
    %869 = vmatpush1.msra.mxu0 0.0
    %870 = vmatprep.subr.mxu0 0.0
    %871 = vmatpush1.msra.mxu0 0.0
    %872 = vmatprep.subr.mxu0 0.0
    %873 = vmatpush1.msra.mxu0 0.0
    %874 = vmatprep.subr.mxu0 0.0
    %875 = vmatpush1.msra.mxu0 0.0
    %876 = vmatprep.subr.mxu0 0.0
    %877 = vmatpush1.msra.mxu0 0.0
    %878 = vmatprep.subr.mxu0 0.0
    %879 = vmatpush1.msra.mxu0 0.0
    %880 = vmatprep.subr.mxu0 0.0
    %881 = vmatpush1.msra.mxu0 0.0
    %882 = vmatprep.subr.mxu0 0.0
    %883 = vmatpush1.msra.mxu0 0.0
    %884 = vmatprep.subr.mxu0 0.0
    %885 = vmatpush1.msra.mxu0 0.0
    %886 = vmatprep.subr.mxu0 0.0
    %887 = vmatpush1.msra.mxu0 0.0
    %888 = vmatprep.subr.mxu0 0.0
    %889 = vmatpush1.msra.mxu0 0.0
    %890 = vmatprep.subr.mxu0 0.0
    %891 = vmatpush1.msra.mxu0 0.0
    %892 = vmatprep.subr.mxu0 0.0
    %893 = vmatpush1.msra.mxu0 0.0
    %894 = vmatprep.subr.mxu0 0.0
    %895 = vmatpush1.msra.mxu0 0.0
    %896 = vmatprep.subr.mxu0 0.0
    %897 = vmatpush1.msra.mxu0 0.0
    %898 = vmatprep.subr.mxu0 0.0
    %899 = vmatpush1.msra.mxu0 0.0
    %900 = vmatprep.subr.mxu0 0.0
    %901 = vmatpush1.msra.mxu0 0.0
    %902 = vmatprep.subr.mxu0 0.0
    %903 = vmatpush1.msra.mxu0 0.0
    %904 = vmatprep.subr.mxu0 0.0
    %905 = vmatpush1.msra.mxu0 0.0
    %906 = vmatprep.subr.mxu0 0.0
    %907 = vmatpush1.msra.mxu0 0.0
    %908 = vmatprep.subr.mxu0 0.0
    %909 = vmatpush1.msra.mxu0 0.0
    %910 = vmatprep.subr.mxu0 0.0
    %911 = vmatpush1.msra.mxu0 0.0
    %912 = vmatprep.subr.mxu0 0.0
    %913 = vmatpush1.msra.mxu0 0.0
    %914 = vmatprep.subr.mxu0 0.0
    %915 = vmatpush1.msra.mxu0 0.0
    %916 = vmatprep.subr.mxu0 0.0
    %917 = vmatpush1.msra.mxu0 0.0
    %918 = vmatprep.subr.mxu0 0.0
    %919 = vmatpush1.msra.mxu0 0.0
    %920 = vmatprep.subr.mxu0 0.0
    %921 = vmatpush1.msra.mxu0 0.0
    %922 = vmatprep.subr.mxu0 0.0
    %923 = vmatpush1.msra.mxu0 0.0
    %924 = vmatprep.subr.mxu0 0.0
    %925 = vmatpush1.msra.mxu0 0.0
    %926 = vmatprep.mubr.f32.mxu0 0.0
    %927 = vmatmul.mubr.f32.gmra.mrb[0].mxu0 %v120
    %v928 = vpop.f32.mrb[0].mxu0
    %v929 = vadd.f32 0.0, %v928
    %v930 = vpop.f32.mrb[0].mxu0
    %931 = vmatprep.mubr.f32.mxu0 0.0
    %932 = vmatmul.mubr.f32.gmra.mrb[0].mxu0 %v123
    %v933 = vpop.f32.mrb[0].mxu0
    %v934 = vadd.f32 0.0, %v933
    %v935 = vpop.f32.mrb[0].mxu0
    %936 = vmatprep.mubr.f32.mxu0 0.0
    %937 = vmatmul.mubr.f32.gmra.mrb[0].mxu0 %v126
    %v938 = vpop.f32.mrb[0].mxu0
    %v939 = vadd.f32 0.0, %v938
    %v940 = vpop.f32.mrb[0].mxu0
    %941 = vmatprep.mubr.f32.mxu0 0.0
    %942 = vmatmul.mubr.f32.gmra.mrb[0].mxu0 %v129
    %v943 = vpop.f32.mrb[0].mxu0
    %v944 = vadd.f32 0.0, %v943
    %v945 = vpop.f32.mrb[0].mxu0
    %946 = vmatprep.mubr.f32.mxu0 0.0
    %947 = vmatmul.mubr.f32.gmra.mrb[0].mxu0 %v132
    %v948 = vpop.f32.mrb[0].mxu0
    %v949 = vadd.f32 0.0, %v948
    %v950 = vpop.f32.mrb[0].mxu0
    %951 = vmatprep.mubr.f32.mxu0 0.0
    %952 = vmatmul.mubr.f32.gmra.mrb[0].mxu0 %v135
    %v953 = vpop.f32.mrb[0].mxu0
    %v954 = vadd.f32 0.0, %v953
    %v955 = vpop.f32.mrb[0].mxu0
    %956 = vmatprep.mubr.f32.mxu0 0.0
    %957 = vmatmul.mubr.f32.gmra.mrb[0].mxu0 %v138
    %v958 = vpop.f32.mrb[0].mxu0
    %v959 = vadd.f32 0.0, %v958
    %v960 = vpop.f32.mrb[0].mxu0
    %961 = vmatprep.mubr.f32.mxu0 0.0
    %962 = vmatmul.mubr.f32.gmra.mrb[0].mxu0 %v141
    %v963 = vpop.f32.mrb[0].mxu0
    %v964 = vadd.f32 0.0, %v963
    %v965 = vpop.f32.mrb[0].mxu0
    %966 = vdwg.mxu0
    %967 = vmatprep.subr.mxu0 0.0
    %968 = vmatpush1.msra.mxu0 %v857
    %969 = vmatprep.subr.mxu0 0.0
    %970 = vmatpush1.msra.mxu0 %v858
    %971 = vmatprep.subr.mxu0 0.0
    %972 = vmatpush1.msra.mxu0 0.0
    %973 = vmatprep.subr.mxu0 0.0
    %974 = vmatpush1.msra.mxu0 0.0
    %975 = vmatprep.subr.mxu0 0.0
    %976 = vmatpush1.msra.mxu0 0.0
    %977 = vmatprep.subr.mxu0 0.0
    %978 = vmatpush1.msra.mxu0 0.0
    %979 = vmatprep.subr.mxu0 0.0
    %980 = vmatpush1.msra.mxu0 0.0
    %981 = vmatprep.subr.mxu0 0.0
    %982 = vmatpush1.msra.mxu0 0.0
    %983 = vmatprep.subr.mxu0 0.0
    %984 = vmatpush1.msra.mxu0 0.0
    %985 = vmatprep.subr.mxu0 0.0
    %986 = vmatpush1.msra.mxu0 0.0
    %987 = vmatprep.subr.mxu0 0.0
    %988 = vmatpush1.msra.mxu0 0.0
    %989 = vmatprep.subr.mxu0 0.0
    %990 = vmatpush1.msra.mxu0 0.0
    %991 = vmatprep.subr.mxu0 0.0
    %992 = vmatpush1.msra.mxu0 0.0
    %993 = vmatprep.subr.mxu0 0.0
    %994 = vmatpush1.msra.mxu0 0.0
    %995 = vmatprep.subr.mxu0 0.0
    %996 = vmatpush1.msra.mxu0 0.0
    %997 = vmatprep.subr.mxu0 0.0
    %998 = vmatpush1.msra.mxu0 0.0
    %999 = vmatprep.subr.mxu0 0.0
    %1000 = vmatpush1.msra.mxu0 0.0
    %1001 = vmatprep.subr.mxu0 0.0
    %1002 = vmatpush1.msra.mxu0 0.0
    %1003 = vmatprep.subr.mxu0 0.0
    %1004 = vmatpush1.msra.mxu0 0.0
    %1005 = vmatprep.subr.mxu0 0.0
    %1006 = vmatpush1.msra.mxu0 0.0
    %1007 = vmatprep.subr.mxu0 0.0
    %1008 = vmatpush1.msra.mxu0 0.0
    %1009 = vmatprep.subr.mxu0 0.0
    %1010 = vmatpush1.msra.mxu0 0.0
    %1011 = vmatprep.subr.mxu0 0.0
    %1012 = vmatpush1.msra.mxu0 0.0
    %1013 = vmatprep.subr.mxu0 0.0
    %1014 = vmatpush1.msra.mxu0 0.0
    %1015 = vmatprep.subr.mxu0 0.0
    %1016 = vmatpush1.msra.mxu0 0.0
    %1017 = vmatprep.subr.mxu0 0.0
    %1018 = vmatpush1.msra.mxu0 0.0
    %1019 = vmatprep.subr.mxu0 0.0
    %1020 = vmatpush1.msra.mxu0 0.0
    %1021 = vmatprep.subr.mxu0 0.0
    %1022 = vmatpush1.msra.mxu0 0.0
    %1023 = vmatprep.subr.mxu0 0.0
    %1024 = vmatpush1.msra.mxu0 0.0
    %1025 = vmatprep.subr.mxu0 0.0
    %1026 = vmatpush1.msra.mxu0 0.0
    %1027 = vmatprep.subr.mxu0 0.0
    %1028 = vmatpush1.msra.mxu0 0.0
    %1029 = vmatprep.subr.mxu0 0.0
    %1030 = vmatpush1.msra.mxu0 0.0
    %1031 = vmatprep.mubr.f32.mxu0 0.0
    %1032 = vmatmul.mubr.f32.gmra.mrb[0].mxu0 %v249
    %v1033 = vpop.f32.mrb[0].mxu0
    %v1034 = vadd.f32 %v929, %v1033
    %v1035 = vpop.f32.mrb[0].mxu0
    %1036 = vmatprep.mubr.f32.mxu0 0.0
    %1037 = vmatmul.mubr.f32.gmra.mrb[0].mxu0 %v252
    %v1038 = vpop.f32.mrb[0].mxu0
    %v1039 = vadd.f32 %v934, %v1038
    %v1040 = vpop.f32.mrb[0].mxu0
    %1041 = vmatprep.mubr.f32.mxu0 0.0
    %1042 = vmatmul.mubr.f32.gmra.mrb[0].mxu0 %v255
    %v1043 = vpop.f32.mrb[0].mxu0
    %v1044 = vadd.f32 %v939, %v1043
    %v1045 = vpop.f32.mrb[0].mxu0
    %1046 = vmatprep.mubr.f32.mxu0 0.0
    %1047 = vmatmul.mubr.f32.gmra.mrb[0].mxu0 %v258
    %v1048 = vpop.f32.mrb[0].mxu0
    %v1049 = vadd.f32 %v944, %v1048
    %v1050 = vpop.f32.mrb[0].mxu0
    %1051 = vmatprep.mubr.f32.mxu0 0.0
    %1052 = vmatmul.mubr.f32.gmra.mrb[0].mxu0 %v261
    %v1053 = vpop.f32.mrb[0].mxu0
    %v1054 = vadd.f32 %v949, %v1053
    %v1055 = vpop.f32.mrb[0].mxu0
    %1056 = vmatprep.mubr.f32.mxu0 0.0
    %1057 = vmatmul.mubr.f32.gmra.mrb[0].mxu0 %v264
    %v1058 = vpop.f32.mrb[0].mxu0
    %v1059 = vadd.f32 %v954, %v1058
    %v1060 = vpop.f32.mrb[0].mxu0
    %1061 = vmatprep.mubr.f32.mxu0 0.0
    %1062 = vmatmul.mubr.f32.gmra.mrb[0].mxu0 %v267
    %v1063 = vpop.f32.mrb[0].mxu0
    %v1064 = vadd.f32 %v959, %v1063
    %v1065 = vpop.f32.mrb[0].mxu0
    %1066 = vmatprep.mubr.f32.mxu0 0.0
    %1067 = vmatmul.mubr.f32.gmra.mrb[0].mxu0 %v270
    %v1068 = vpop.f32.mrb[0].mxu0
    %v1069 = vadd.f32 %v964, %v1068
    %v1070 = vpop.f32.mrb[0].mxu0
    %1071 = vdwg.mxu0
    %s1072 = scalar_lea.vmem %s4, 3
    %v1073 = vld [vmem:[%s1072] sm:$0x1]
    %v1075 = vlaneseq
    %v1076 = vshrl.u32 %v1075, 7
    %v1077 = vsub.s32 0, %v1076
    %v1078 = vrot.slane %v1073, %v1077
    %v1080 = vadd.f32 %v1034, %v1078
    %v1081 = vadd.f32 %v1039, %v1078
    %v1082 = vadd.f32 %v1044, %v1078
    %v1083 = vadd.f32 %v1049, %v1078
    %v1084 = vadd.f32 %v1054, %v1078
    %v1085 = vadd.f32 %v1059, %v1078
    %v1086 = vadd.f32 %v1064, %v1078
    %v1087 = vadd.f32 %v1069, %v1078
    %s1088 = scalar_lea.vmem [#allocation7], 64
    %v1089 = vld [vmem:[%s1088] sm:$0xff]
    %v1090 = vld [vmem:[%s1088 + $0x8] sm:$0xff]
    %s1091 = scalar_lea.vmem [#allocation8], 64
    %v1092 = vld [vmem:[%s1091] sm:$0xff]
    %v1093 = vld [vmem:[%s1091 + $0x8] sm:$0xff]
    %1094 = vmatprep.subr.mxu0 0.0
    %1095 = vmatpush1.msra.mxu0 %v1092
    %1096 = vmatprep.subr.mxu0 0.0
    %1097 = vmatpush1.msra.mxu0 %v1093
    %1098 = vmatprep.subr.mxu0 0.0
    %1099 = vmatpush1.msra.mxu0 0.0
    %1100 = vmatprep.subr.mxu0 0.0
    %1101 = vmatpush1.msra.mxu0 0.0
    %1102 = vmatprep.subr.mxu0 0.0
    %1103 = vmatpush1.msra.mxu0 0.0
    %1104 = vmatprep.subr.mxu0 0.0
    %1105 = vmatpush1.msra.mxu0 0.0
    %1106 = vmatprep.subr.mxu0 0.0
    %1107 = vmatpush1.msra.mxu0 0.0
    %1108 = vmatprep.subr.mxu0 0.0
    %1109 = vmatpush1.msra.mxu0 0.0
    %1110 = vmatprep.subr.mxu0 0.0
    %1111 = vmatpush1.msra.mxu0 0.0
    %1112 = vmatprep.subr.mxu0 0.0
    %1113 = vmatpush1.msra.mxu0 0.0
    %1114 = vmatprep.subr.mxu0 0.0
    %1115 = vmatpush1.msra.mxu0 0.0
    %1116 = vmatprep.subr.mxu0 0.0
    %1117 = vmatpush1.msra.mxu0 0.0
    %1118 = vmatprep.subr.mxu0 0.0
    %1119 = vmatpush1.msra.mxu0 0.0
    %1120 = vmatprep.subr.mxu0 0.0
    %1121 = vmatpush1.msra.mxu0 0.0
    %1122 = vmatprep.subr.mxu0 0.0
    %1123 = vmatpush1.msra.mxu0 0.0
    %1124 = vmatprep.subr.mxu0 0.0
    %1125 = vmatpush1.msra.mxu0 0.0
    %1126 = vmatprep.subr.mxu0 0.0
    %1127 = vmatpush1.msra.mxu0 0.0
    %1128 = vmatprep.subr.mxu0 0.0
    %1129 = vmatpush1.msra.mxu0 0.0
    %1130 = vmatprep.subr.mxu0 0.0
    %1131 = vmatpush1.msra.mxu0 0.0
    %1132 = vmatprep.subr.mxu0 0.0
    %1133 = vmatpush1.msra.mxu0 0.0
    %1134 = vmatprep.subr.mxu0 0.0
    %1135 = vmatpush1.msra.mxu0 0.0
    %1136 = vmatprep.subr.mxu0 0.0
    %1137 = vmatpush1.msra.mxu0 0.0
    %1138 = vmatprep.subr.mxu0 0.0
    %1139 = vmatpush1.msra.mxu0 0.0
    %1140 = vmatprep.subr.mxu0 0.0
    %1141 = vmatpush1.msra.mxu0 0.0
    %1142 = vmatprep.subr.mxu0 0.0
    %1143 = vmatpush1.msra.mxu0 0.0
    %1144 = vmatprep.subr.mxu0 0.0
    %1145 = vmatpush1.msra.mxu0 0.0
    %1146 = vmatprep.subr.mxu0 0.0
    %1147 = vmatpush1.msra.mxu0 0.0
    %1148 = vmatprep.subr.mxu0 0.0
    %1149 = vmatpush1.msra.mxu0 0.0
    %1150 = vmatprep.subr.mxu0 0.0
    %1151 = vmatpush1.msra.mxu0 0.0
    %1152 = vmatprep.subr.mxu0 0.0
    %1153 = vmatpush1.msra.mxu0 0.0
    %1154 = vmatprep.subr.mxu0 0.0
    %1155 = vmatpush1.msra.mxu0 0.0
    %1156 = vmatprep.subr.mxu0 0.0
    %1157 = vmatpush1.msra.mxu0 0.0
    %1158 = vmatprep.mubr.f32.mxu0 0.0
    %1159 = vmatmul.mubr.f32.gmra.mrb[0].mxu0 %v120
    %v1160 = vpop.f32.mrb[0].mxu0
    %v1161 = vadd.f32 0.0, %v1160
    %v1162 = vpop.f32.mrb[0].mxu0
    %1163 = vmatprep.mubr.f32.mxu0 0.0
    %1164 = vmatmul.mubr.f32.gmra.mrb[0].mxu0 %v123
    %v1165 = vpop.f32.mrb[0].mxu0
    %v1166 = vadd.f32 0.0, %v1165
    %v1167 = vpop.f32.mrb[0].mxu0
    %1168 = vmatprep.mubr.f32.mxu0 0.0
    %1169 = vmatmul.mubr.f32.gmra.mrb[0].mxu0 %v126
    %v1170 = vpop.f32.mrb[0].mxu0
    %v1171 = vadd.f32 0.0, %v1170
    %v1172 = vpop.f32.mrb[0].mxu0
    %1173 = vmatprep.mubr.f32.mxu0 0.0
    %1174 = vmatmul.mubr.f32.gmra.mrb[0].mxu0 %v129
    %v1175 = vpop.f32.mrb[0].mxu0
    %v1176 = vadd.f32 0.0, %v1175
    %v1177 = vpop.f32.mrb[0].mxu0
    %1178 = vmatprep.mubr.f32.mxu0 0.0
    %1179 = vmatmul.mubr.f32.gmra.mrb[0].mxu0 %v132
    %v1180 = vpop.f32.mrb[0].mxu0
    %v1181 = vadd.f32 0.0, %v1180
    %v1182 = vpop.f32.mrb[0].mxu0
    %1183 = vmatprep.mubr.f32.mxu0 0.0
    %1184 = vmatmul.mubr.f32.gmra.mrb[0].mxu0 %v135
    %v1185 = vpop.f32.mrb[0].mxu0
    %v1186 = vadd.f32 0.0, %v1185
    %v1187 = vpop.f32.mrb[0].mxu0
    %1188 = vmatprep.mubr.f32.mxu0 0.0
    %1189 = vmatmul.mubr.f32.gmra.mrb[0].mxu0 %v138
    %v1190 = vpop.f32.mrb[0].mxu0
    %v1191 = vadd.f32 0.0, %v1190
    %v1192 = vpop.f32.mrb[0].mxu0
    %1193 = vmatprep.mubr.f32.mxu0 0.0
    %1194 = vmatmul.mubr.f32.gmra.mrb[0].mxu0 %v141
    %v1195 = vpop.f32.mrb[0].mxu0
    %v1196 = vadd.f32 0.0, %v1195
    %v1197 = vpop.f32.mrb[0].mxu0
    %1198 = vdwg.mxu0
    %1199 = vmatprep.subr.mxu0 0.0
    %1200 = vmatpush1.msra.mxu0 %v1089
    %1201 = vmatprep.subr.mxu0 0.0
    %1202 = vmatpush1.msra.mxu0 %v1090
    %1203 = vmatprep.subr.mxu0 0.0
    %1204 = vmatpush1.msra.mxu0 0.0
    %1205 = vmatprep.subr.mxu0 0.0
    %1206 = vmatpush1.msra.mxu0 0.0
    %1207 = vmatprep.subr.mxu0 0.0
    %1208 = vmatpush1.msra.mxu0 0.0
    %1209 = vmatprep.subr.mxu0 0.0
    %1210 = vmatpush1.msra.mxu0 0.0
    %1211 = vmatprep.subr.mxu0 0.0
    %1212 = vmatpush1.msra.mxu0 0.0
    %1213 = vmatprep.subr.mxu0 0.0
    %1214 = vmatpush1.msra.mxu0 0.0
    %1215 = vmatprep.subr.mxu0 0.0
    %1216 = vmatpush1.msra.mxu0 0.0
    %1217 = vmatprep.subr.mxu0 0.0
    %1218 = vmatpush1.msra.mxu0 0.0
    %1219 = vmatprep.subr.mxu0 0.0
    %1220 = vmatpush1.msra.mxu0 0.0
    %1221 = vmatprep.subr.mxu0 0.0
    %1222 = vmatpush1.msra.mxu0 0.0
    %1223 = vmatprep.subr.mxu0 0.0
    %1224 = vmatpush1.msra.mxu0 0.0
    %1225 = vmatprep.subr.mxu0 0.0
    %1226 = vmatpush1.msra.mxu0 0.0
    %1227 = vmatprep.subr.mxu0 0.0
    %1228 = vmatpush1.msra.mxu0 0.0
    %1229 = vmatprep.subr.mxu0 0.0
    %1230 = vmatpush1.msra.mxu0 0.0
    %1231 = vmatprep.subr.mxu0 0.0
    %1232 = vmatpush1.msra.mxu0 0.0
    %1233 = vmatprep.subr.mxu0 0.0
    %1234 = vmatpush1.msra.mxu0 0.0
    %1235 = vmatprep.subr.mxu0 0.0
    %1236 = vmatpush1.msra.mxu0 0.0
    %1237 = vmatprep.subr.mxu0 0.0
    %1238 = vmatpush1.msra.mxu0 0.0
    %1239 = vmatprep.subr.mxu0 0.0
    %1240 = vmatpush1.msra.mxu0 0.0
    %1241 = vmatprep.subr.mxu0 0.0
    %1242 = vmatpush1.msra.mxu0 0.0
    %1243 = vmatprep.subr.mxu0 0.0
    %1244 = vmatpush1.msra.mxu0 0.0
    %1245 = vmatprep.subr.mxu0 0.0
    %1246 = vmatpush1.msra.mxu0 0.0
    %1247 = vmatprep.subr.mxu0 0.0
    %1248 = vmatpush1.msra.mxu0 0.0
    %1249 = vmatprep.subr.mxu0 0.0
    %1250 = vmatpush1.msra.mxu0 0.0
    %1251 = vmatprep.subr.mxu0 0.0
    %1252 = vmatpush1.msra.mxu0 0.0
    %1253 = vmatprep.subr.mxu0 0.0
    %1254 = vmatpush1.msra.mxu0 0.0
    %1255 = vmatprep.subr.mxu0 0.0
    %1256 = vmatpush1.msra.mxu0 0.0
    %1257 = vmatprep.subr.mxu0 0.0
    %1258 = vmatpush1.msra.mxu0 0.0
    %1259 = vmatprep.subr.mxu0 0.0
    %1260 = vmatpush1.msra.mxu0 0.0
    %1261 = vmatprep.subr.mxu0 0.0
    %1262 = vmatpush1.msra.mxu0 0.0
    %1263 = vmatprep.mubr.f32.mxu0 0.0
    %1264 = vmatmul.mubr.f32.gmra.mrb[0].mxu0 %v249
    %v1265 = vpop.f32.mrb[0].mxu0
    %v1266 = vadd.f32 %v1161, %v1265
    %v1267 = vpop.f32.mrb[0].mxu0
    %1268 = vmatprep.mubr.f32.mxu0 0.0
    %1269 = vmatmul.mubr.f32.gmra.mrb[0].mxu0 %v252
    %v1270 = vpop.f32.mrb[0].mxu0
    %v1271 = vadd.f32 %v1166, %v1270
    %v1272 = vpop.f32.mrb[0].mxu0
    %1273 = vmatprep.mubr.f32.mxu0 0.0
    %1274 = vmatmul.mubr.f32.gmra.mrb[0].mxu0 %v255
    %v1275 = vpop.f32.mrb[0].mxu0
    %v1276 = vadd.f32 %v1171, %v1275
    %v1277 = vpop.f32.mrb[0].mxu0
    %1278 = vmatprep.mubr.f32.mxu0 0.0
    %1279 = vmatmul.mubr.f32.gmra.mrb[0].mxu0 %v258
    %v1280 = vpop.f32.mrb[0].mxu0
    %v1281 = vadd.f32 %v1176, %v1280
    %v1282 = vpop.f32.mrb[0].mxu0
    %1283 = vmatprep.mubr.f32.mxu0 0.0
    %1284 = vmatmul.mubr.f32.gmra.mrb[0].mxu0 %v261
    %v1285 = vpop.f32.mrb[0].mxu0
    %v1286 = vadd.f32 %v1181, %v1285
    %v1287 = vpop.f32.mrb[0].mxu0
    %1288 = vmatprep.mubr.f32.mxu0 0.0
    %1289 = vmatmul.mubr.f32.gmra.mrb[0].mxu0 %v264
    %v1290 = vpop.f32.mrb[0].mxu0
    %v1291 = vadd.f32 %v1186, %v1290
    %v1292 = vpop.f32.mrb[0].mxu0
    %1293 = vmatprep.mubr.f32.mxu0 0.0
    %1294 = vmatmul.mubr.f32.gmra.mrb[0].mxu0 %v267
    %v1295 = vpop.f32.mrb[0].mxu0
    %v1296 = vadd.f32 %v1191, %v1295
    %v1297 = vpop.f32.mrb[0].mxu0
    %1298 = vmatprep.mubr.f32.mxu0 0.0
    %1299 = vmatmul.mubr.f32.gmra.mrb[0].mxu0 %v270
    %v1300 = vpop.f32.mrb[0].mxu0
    %v1301 = vadd.f32 %v1196, %v1300
    %v1302 = vpop.f32.mrb[0].mxu0
    %1303 = vdwg.mxu0
    %s1304 = scalar_lea.vmem %s4, 4
    %v1305 = vld [vmem:[%s1304] sm:$0x1]
    %v1307 = vlaneseq
    %v1308 = vshrl.u32 %v1307, 7
    %v1309 = vsub.s32 0, %v1308
    %v1310 = vrot.slane %v1305, %v1309
    %v1312 = vadd.f32 %v1266, %v1310
    %v1313 = vadd.f32 %v1271, %v1310
    %v1314 = vadd.f32 %v1276, %v1310
    %v1315 = vadd.f32 %v1281, %v1310
    %v1316 = vadd.f32 %v1286, %v1310
    %v1317 = vadd.f32 %v1291, %v1310
    %v1318 = vadd.f32 %v1296, %v1310
    %v1319 = vadd.f32 %v1301, %v1310
    %s1320 = scalar_lea.vmem [#allocation7], 80
    %v1321 = vld [vmem:[%s1320] sm:$0xff]
    %v1322 = vld [vmem:[%s1320 + $0x8] sm:$0xff]
    %s1323 = scalar_lea.vmem [#allocation8], 80
    %v1324 = vld [vmem:[%s1323] sm:$0xff]
    %v1325 = vld [vmem:[%s1323 + $0x8] sm:$0xff]
    %1326 = vmatprep.subr.mxu0 0.0
    %1327 = vmatpush1.msra.mxu0 %v1324
    %1328 = vmatprep.subr.mxu0 0.0
    %1329 = vmatpush1.msra.mxu0 %v1325
    %1330 = vmatprep.subr.mxu0 0.0
    %1331 = vmatpush1.msra.mxu0 0.0
    %1332 = vmatprep.subr.mxu0 0.0
    %1333 = vmatpush1.msra.mxu0 0.0
    %1334 = vmatprep.subr.mxu0 0.0
    %1335 = vmatpush1.msra.mxu0 0.0
    %1336 = vmatprep.subr.mxu0 0.0
    %1337 = vmatpush1.msra.mxu0 0.0
    %1338 = vmatprep.subr.mxu0 0.0
    %1339 = vmatpush1.msra.mxu0 0.0
    %1340 = vmatprep.subr.mxu0 0.0
    %1341 = vmatpush1.msra.mxu0 0.0
    %1342 = vmatprep.subr.mxu0 0.0
    %1343 = vmatpush1.msra.mxu0 0.0
    %1344 = vmatprep.subr.mxu0 0.0
    %1345 = vmatpush1.msra.mxu0 0.0
    %1346 = vmatprep.subr.mxu0 0.0
    %1347 = vmatpush1.msra.mxu0 0.0
    %1348 = vmatprep.subr.mxu0 0.0
    %1349 = vmatpush1.msra.mxu0 0.0
    %1350 = vmatprep.subr.mxu0 0.0
    %1351 = vmatpush1.msra.mxu0 0.0
    %1352 = vmatprep.subr.mxu0 0.0
    %1353 = vmatpush1.msra.mxu0 0.0
    %1354 = vmatprep.subr.mxu0 0.0
    %1355 = vmatpush1.msra.mxu0 0.0
    %1356 = vmatprep.subr.mxu0 0.0
    %1357 = vmatpush1.msra.mxu0 0.0
    %1358 = vmatprep.subr.mxu0 0.0
    %1359 = vmatpush1.msra.mxu0 0.0
    %1360 = vmatprep.subr.mxu0 0.0
    %1361 = vmatpush1.msra.mxu0 0.0
    %1362 = vmatprep.subr.mxu0 0.0
    %1363 = vmatpush1.msra.mxu0 0.0
    %1364 = vmatprep.subr.mxu0 0.0
    %1365 = vmatpush1.msra.mxu0 0.0
    %1366 = vmatprep.subr.mxu0 0.0
    %1367 = vmatpush1.msra.mxu0 0.0
    %1368 = vmatprep.subr.mxu0 0.0
    %1369 = vmatpush1.msra.mxu0 0.0
    %1370 = vmatprep.subr.mxu0 0.0
    %1371 = vmatpush1.msra.mxu0 0.0
    %1372 = vmatprep.subr.mxu0 0.0
    %1373 = vmatpush1.msra.mxu0 0.0
    %1374 = vmatprep.subr.mxu0 0.0
    %1375 = vmatpush1.msra.mxu0 0.0
    %1376 = vmatprep.subr.mxu0 0.0
    %1377 = vmatpush1.msra.mxu0 0.0
    %1378 = vmatprep.subr.mxu0 0.0
    %1379 = vmatpush1.msra.mxu0 0.0
    %1380 = vmatprep.subr.mxu0 0.0
    %1381 = vmatpush1.msra.mxu0 0.0
    %1382 = vmatprep.subr.mxu0 0.0
    %1383 = vmatpush1.msra.mxu0 0.0
    %1384 = vmatprep.subr.mxu0 0.0
    %1385 = vmatpush1.msra.mxu0 0.0
    %1386 = vmatprep.subr.mxu0 0.0
    %1387 = vmatpush1.msra.mxu0 0.0
    %1388 = vmatprep.subr.mxu0 0.0
    %1389 = vmatpush1.msra.mxu0 0.0
    %1390 = vmatprep.mubr.f32.mxu0 0.0
    %1391 = vmatmul.mubr.f32.gmra.mrb[0].mxu0 %v120
    %v1392 = vpop.f32.mrb[0].mxu0
    %v1393 = vadd.f32 0.0, %v1392
    %v1394 = vpop.f32.mrb[0].mxu0
    %1395 = vmatprep.mubr.f32.mxu0 0.0
    %1396 = vmatmul.mubr.f32.gmra.mrb[0].mxu0 %v123
    %v1397 = vpop.f32.mrb[0].mxu0
    %v1398 = vadd.f32 0.0, %v1397
    %v1399 = vpop.f32.mrb[0].mxu0
    %1400 = vmatprep.mubr.f32.mxu0 0.0
    %1401 = vmatmul.mubr.f32.gmra.mrb[0].mxu0 %v126
    %v1402 = vpop.f32.mrb[0].mxu0
    %v1403 = vadd.f32 0.0, %v1402
    %v1404 = vpop.f32.mrb[0].mxu0
    %1405 = vmatprep.mubr.f32.mxu0 0.0
    %1406 = vmatmul.mubr.f32.gmra.mrb[0].mxu0 %v129
    %v1407 = vpop.f32.mrb[0].mxu0
    %v1408 = vadd.f32 0.0, %v1407
    %v1409 = vpop.f32.mrb[0].mxu0
    %1410 = vmatprep.mubr.f32.mxu0 0.0
    %1411 = vmatmul.mubr.f32.gmra.mrb[0].mxu0 %v132
    %v1412 = vpop.f32.mrb[0].mxu0
    %v1413 = vadd.f32 0.0, %v1412
    %v1414 = vpop.f32.mrb[0].mxu0
    %1415 = vmatprep.mubr.f32.mxu0 0.0
    %1416 = vmatmul.mubr.f32.gmra.mrb[0].mxu0 %v135
    %v1417 = vpop.f32.mrb[0].mxu0
    %v1418 = vadd.f32 0.0, %v1417
    %v1419 = vpop.f32.mrb[0].mxu0
    %1420 = vmatprep.mubr.f32.mxu0 0.0
    %1421 = vmatmul.mubr.f32.gmra.mrb[0].mxu0 %v138
    %v1422 = vpop.f32.mrb[0].mxu0
    %v1423 = vadd.f32 0.0, %v1422
    %v1424 = vpop.f32.mrb[0].mxu0
    %1425 = vmatprep.mubr.f32.mxu0 0.0
    %1426 = vmatmul.mubr.f32.gmra.mrb[0].mxu0 %v141
    %v1427 = vpop.f32.mrb[0].mxu0
    %v1428 = vadd.f32 0.0, %v1427
    %v1429 = vpop.f32.mrb[0].mxu0
    %1430 = vdwg.mxu0
    %1431 = vmatprep.subr.mxu0 0.0
    %1432 = vmatpush1.msra.mxu0 %v1321
    %1433 = vmatprep.subr.mxu0 0.0
    %1434 = vmatpush1.msra.mxu0 %v1322
    %1435 = vmatprep.subr.mxu0 0.0
    %1436 = vmatpush1.msra.mxu0 0.0
    %1437 = vmatprep.subr.mxu0 0.0
    %1438 = vmatpush1.msra.mxu0 0.0
    %1439 = vmatprep.subr.mxu0 0.0
    %1440 = vmatpush1.msra.mxu0 0.0
    %1441 = vmatprep.subr.mxu0 0.0
    %1442 = vmatpush1.msra.mxu0 0.0
    %1443 = vmatprep.subr.mxu0 0.0
    %1444 = vmatpush1.msra.mxu0 0.0
    %1445 = vmatprep.subr.mxu0 0.0
    %1446 = vmatpush1.msra.mxu0 0.0
    %1447 = vmatprep.subr.mxu0 0.0
    %1448 = vmatpush1.msra.mxu0 0.0
    %1449 = vmatprep.subr.mxu0 0.0
    %1450 = vmatpush1.msra.mxu0 0.0
    %1451 = vmatprep.subr.mxu0 0.0
    %1452 = vmatpush1.msra.mxu0 0.0
    %1453 = vmatprep.subr.mxu0 0.0
    %1454 = vmatpush1.msra.mxu0 0.0
    %1455 = vmatprep.subr.mxu0 0.0
    %1456 = vmatpush1.msra.mxu0 0.0
    %1457 = vmatprep.subr.mxu0 0.0
    %1458 = vmatpush1.msra.mxu0 0.0
    %1459 = vmatprep.subr.mxu0 0.0
    %1460 = vmatpush1.msra.mxu0 0.0
    %1461 = vmatprep.subr.mxu0 0.0
    %1462 = vmatpush1.msra.mxu0 0.0
    %1463 = vmatprep.subr.mxu0 0.0
    %1464 = vmatpush1.msra.mxu0 0.0
    %1465 = vmatprep.subr.mxu0 0.0
    %1466 = vmatpush1.msra.mxu0 0.0
    %1467 = vmatprep.subr.mxu0 0.0
    %1468 = vmatpush1.msra.mxu0 0.0
    %1469 = vmatprep.subr.mxu0 0.0
    %1470 = vmatpush1.msra.mxu0 0.0
    %1471 = vmatprep.subr.mxu0 0.0
    %1472 = vmatpush1.msra.mxu0 0.0
    %1473 = vmatprep.subr.mxu0 0.0
    %1474 = vmatpush1.msra.mxu0 0.0
    %1475 = vmatprep.subr.mxu0 0.0
    %1476 = vmatpush1.msra.mxu0 0.0
    %1477 = vmatprep.subr.mxu0 0.0
    %1478 = vmatpush1.msra.mxu0 0.0
    %1479 = vmatprep.subr.mxu0 0.0
    %1480 = vmatpush1.msra.mxu0 0.0
    %1481 = vmatprep.subr.mxu0 0.0
    %1482 = vmatpush1.msra.mxu0 0.0
    %1483 = vmatprep.subr.mxu0 0.0
    %1484 = vmatpush1.msra.mxu0 0.0
    %1485 = vmatprep.subr.mxu0 0.0
    %1486 = vmatpush1.msra.mxu0 0.0
    %1487 = vmatprep.subr.mxu0 0.0
    %1488 = vmatpush1.msra.mxu0 0.0
    %1489 = vmatprep.subr.mxu0 0.0
    %1490 = vmatpush1.msra.mxu0 0.0
    %1491 = vmatprep.subr.mxu0 0.0
    %1492 = vmatpush1.msra.mxu0 0.0
    %1493 = vmatprep.subr.mxu0 0.0
    %1494 = vmatpush1.msra.mxu0 0.0
    %1495 = vmatprep.mubr.f32.mxu0 0.0
    %1496 = vmatmul.mubr.f32.gmra.mrb[0].mxu0 %v249
    %v1497 = vpop.f32.mrb[0].mxu0
    %v1498 = vadd.f32 %v1393, %v1497
    %v1499 = vpop.f32.mrb[0].mxu0
    %1500 = vmatprep.mubr.f32.mxu0 0.0
    %1501 = vmatmul.mubr.f32.gmra.mrb[0].mxu0 %v252
    %v1502 = vpop.f32.mrb[0].mxu0
    %v1503 = vadd.f32 %v1398, %v1502
    %v1504 = vpop.f32.mrb[0].mxu0
    %1505 = vmatprep.mubr.f32.mxu0 0.0
    %1506 = vmatmul.mubr.f32.gmra.mrb[0].mxu0 %v255
    %v1507 = vpop.f32.mrb[0].mxu0
    %v1508 = vadd.f32 %v1403, %v1507
    %v1509 = vpop.f32.mrb[0].mxu0
    %1510 = vmatprep.mubr.f32.mxu0 0.0
    %1511 = vmatmul.mubr.f32.gmra.mrb[0].mxu0 %v258
    %v1512 = vpop.f32.mrb[0].mxu0
    %v1513 = vadd.f32 %v1408, %v1512
    %v1514 = vpop.f32.mrb[0].mxu0
    %1515 = vmatprep.mubr.f32.mxu0 0.0
    %1516 = vmatmul.mubr.f32.gmra.mrb[0].mxu0 %v261
    %v1517 = vpop.f32.mrb[0].mxu0
    %v1518 = vadd.f32 %v1413, %v1517
    %v1519 = vpop.f32.mrb[0].mxu0
    %1520 = vmatprep.mubr.f32.mxu0 0.0
    %1521 = vmatmul.mubr.f32.gmra.mrb[0].mxu0 %v264
    %v1522 = vpop.f32.mrb[0].mxu0
    %v1523 = vadd.f32 %v1418, %v1522
    %v1524 = vpop.f32.mrb[0].mxu0
    %1525 = vmatprep.mubr.f32.mxu0 0.0
    %1526 = vmatmul.mubr.f32.gmra.mrb[0].mxu0 %v267
    %v1527 = vpop.f32.mrb[0].mxu0
    %v1528 = vadd.f32 %v1423, %v1527
    %v1529 = vpop.f32.mrb[0].mxu0
    %1530 = vmatprep.mubr.f32.mxu0 0.0
    %1531 = vmatmul.mubr.f32.gmra.mrb[0].mxu0 %v270
    %v1532 = vpop.f32.mrb[0].mxu0
    %v1533 = vadd.f32 %v1428, %v1532
    %v1534 = vpop.f32.mrb[0].mxu0
    %1535 = vdwg.mxu0
    %s1536 = scalar_lea.vmem %s4, 5
    %v1537 = vld [vmem:[%s1536] sm:$0x1]
    %v1539 = vlaneseq
    %v1540 = vshrl.u32 %v1539, 7
    %v1541 = vsub.s32 0, %v1540
    %v1542 = vrot.slane %v1537, %v1541
    %v1544 = vadd.f32 %v1498, %v1542
    %v1545 = vadd.f32 %v1503, %v1542
    %v1546 = vadd.f32 %v1508, %v1542
    %v1547 = vadd.f32 %v1513, %v1542
    %v1548 = vadd.f32 %v1518, %v1542
    %v1549 = vadd.f32 %v1523, %v1542
    %v1550 = vadd.f32 %v1528, %v1542
    %v1551 = vadd.f32 %v1533, %v1542
    %v1552 = vld [vmem:[#allocation10] sm:$0xff]
    %v1553 = vld [vmem:[#allocation10 + $0x8] sm:$0xff]
    %v1554 = vld [vmem:[#allocation10 + $0x10] sm:$0xff]
    %v1555 = vld [vmem:[#allocation10 + $0x18] sm:$0xff]
    %s1556 = scalar_lea.vmem [#allocation10], 32
    %v1557 = vld [vmem:[%s1556] sm:$0xff]
    %v1558 = vld [vmem:[%s1556 + $0x8] sm:$0xff]
    %v1559 = vld [vmem:[%s1556 + $0x10] sm:$0xff]
    %v1560 = vld [vmem:[%s1556 + $0x18] sm:$0xff]
    %s1561 = scalar_lea.vmem [#allocation10], 64
    %v1562 = vld [vmem:[%s1561] sm:$0xff]
    %v1563 = vld [vmem:[%s1561 + $0x8] sm:$0xff]
    %v1564 = vld [vmem:[%s1561 + $0x10] sm:$0xff]
    %v1565 = vld [vmem:[%s1561 + $0x18] sm:$0xff]
    %s1566 = scalar_lea.vmem [#allocation10], 96
    %v1567 = vld [vmem:[%s1566] sm:$0xff]
    %v1568 = vld [vmem:[%s1566 + $0x8] sm:$0xff]
    %v1569 = vld [vmem:[%s1566 + $0x10] sm:$0xff]
    %v1570 = vld [vmem:[%s1566 + $0x18] sm:$0xff]
    %s1571 = scalar_lea.vmem [#allocation10], 128
    %v1572 = vld [vmem:[%s1571] sm:$0xff]
    %v1573 = vld [vmem:[%s1571 + $0x8] sm:$0xff]
    %v1574 = vld [vmem:[%s1571 + $0x10] sm:$0xff]
    %v1575 = vld [vmem:[%s1571 + $0x18] sm:$0xff]
    %s1576 = scalar_lea.vmem [#allocation10], 160
    %v1577 = vld [vmem:[%s1576] sm:$0xff]
    %v1578 = vld [vmem:[%s1576 + $0x8] sm:$0xff]
    %v1579 = vld [vmem:[%s1576 + $0x10] sm:$0xff]
    %v1580 = vld [vmem:[%s1576 + $0x18] sm:$0xff]
    %v1581 = vld [vmem:[%s6] sm:$0x1]
    %s1582 = scalar_lea.vmem %s6, 1
    %v1583 = vld [vmem:[%s1582] sm:$0x1]
    %s1584 = scalar_lea.vmem %s6, 2
    %v1585 = vld [vmem:[%s1584] sm:$0x1]
    %s1586 = scalar_lea.vmem %s6, 3
    %v1587 = vld [vmem:[%s1586] sm:$0x1]
    %s1588 = scalar_lea.vmem %s6, 4
    %v1589 = vld [vmem:[%s1588] sm:$0x1]
    %s1590 = scalar_lea.vmem %s6, 5
    %v1591 = vld [vmem:[%s1590] sm:$0x1]
    %v1593 = vlaneseq
    %v1594 = vshrl.u32 %v1593, 7
    %v1595 = vsub.s32 0, %v1594
    %v1596 = vrot.slane %v1581, %v1595
    %vm1598 = vcmask 261120
    %v1600 = vsel %vm1598, 0.0, 0
    %1602 = vmatprep.subr.mxu0 0.0
    %1603 = vmatpush1.msra.mxu0 %v1552
    %1604 = vmatprep.subr.mxu0 0.0
    %1605 = vmatpush1.msra.mxu0 %v1553
    %1606 = vmatprep.subr.mxu0 0.0
    %1607 = vmatpush1.msra.mxu0 %v1554
    %1608 = vmatprep.subr.mxu0 0.0
    %1609 = vmatpush1.msra.mxu0 %v1555
    %1610 = vmatprep.subr.mxu0 0.0
    %1611 = vmatpush1.msra.mxu0 0.0
    %1612 = vmatprep.subr.mxu0 0.0
    %1613 = vmatpush1.msra.mxu0 0.0
    %1614 = vmatprep.subr.mxu0 0.0
    %1615 = vmatpush1.msra.mxu0 0.0
    %1616 = vmatprep.subr.mxu0 0.0
    %1617 = vmatpush1.msra.mxu0 0.0
    %1618 = vmatprep.subr.mxu0 0.0
    %1619 = vmatpush1.msra.mxu0 0.0
    %1620 = vmatprep.subr.mxu0 0.0
    %1621 = vmatpush1.msra.mxu0 0.0
    %1622 = vmatprep.subr.mxu0 0.0
    %1623 = vmatpush1.msra.mxu0 0.0
    %1624 = vmatprep.subr.mxu0 0.0
    %1625 = vmatpush1.msra.mxu0 0.0
    %1626 = vmatprep.subr.mxu0 0.0
    %1627 = vmatpush1.msra.mxu0 0.0
    %1628 = vmatprep.subr.mxu0 0.0
    %1629 = vmatpush1.msra.mxu0 0.0
    %1630 = vmatprep.subr.mxu0 0.0
    %1631 = vmatpush1.msra.mxu0 0.0
    %1632 = vmatprep.subr.mxu0 0.0
    %1633 = vmatpush1.msra.mxu0 0.0
    %1634 = vmatprep.subr.mxu0 0.0
    %1635 = vmatpush1.msra.mxu0 0.0
    %1636 = vmatprep.subr.mxu0 0.0
    %1637 = vmatpush1.msra.mxu0 0.0
    %1638 = vmatprep.subr.mxu0 0.0
    %1639 = vmatpush1.msra.mxu0 0.0
    %1640 = vmatprep.subr.mxu0 0.0
    %1641 = vmatpush1.msra.mxu0 0.0
    %1642 = vmatprep.subr.mxu0 0.0
    %1643 = vmatpush1.msra.mxu0 0.0
    %1644 = vmatprep.subr.mxu0 0.0
    %1645 = vmatpush1.msra.mxu0 0.0
    %1646 = vmatprep.subr.mxu0 0.0
    %1647 = vmatpush1.msra.mxu0 0.0
    %1648 = vmatprep.subr.mxu0 0.0
    %1649 = vmatpush1.msra.mxu0 0.0
    %1650 = vmatprep.subr.mxu0 0.0
    %1651 = vmatpush1.msra.mxu0 0.0
    %1652 = vmatprep.subr.mxu0 0.0
    %1653 = vmatpush1.msra.mxu0 0.0
    %1654 = vmatprep.subr.mxu0 0.0
    %1655 = vmatpush1.msra.mxu0 0.0
    %1656 = vmatprep.subr.mxu0 0.0
    %1657 = vmatpush1.msra.mxu0 0.0
    %1658 = vmatprep.subr.mxu0 0.0
    %1659 = vmatpush1.msra.mxu0 0.0
    %1660 = vmatprep.subr.mxu0 0.0
    %1661 = vmatpush1.msra.mxu0 0.0
    %1662 = vmatprep.subr.mxu0 0.0
    %1663 = vmatpush1.msra.mxu0 0.0
    %1664 = vmatprep.subr.mxu0 0.0
    %1665 = vmatpush1.msra.mxu0 0.0
    %1666 = vmatprep.mubr.f32.mxu0 0.0
    %1667 = vmatmul.mubr.f32.gmra.mrb[0].mxu0 %v1600
    %v1668 = vpop.f32.mrb[0].mxu0
    %v1669 = vadd.f32 %v1596, %v1668
    %v1670 = vpop.f32.mrb[0].mxu0
    %1671 = vdwg.mxu0
    %v1673 = vlaneseq
    %v1674 = vshrl.u32 %v1673, 7
    %v1675 = vsub.s32 0, %v1674
    %v1676 = vrot.slane %v1583, %v1675
    %1678 = vmatprep.subr.mxu0 0.0
    %1679 = vmatpush1.msra.mxu0 %v1557
    %1680 = vmatprep.subr.mxu0 0.0
    %1681 = vmatpush1.msra.mxu0 %v1558
    %1682 = vmatprep.subr.mxu0 0.0
    %1683 = vmatpush1.msra.mxu0 %v1559
    %1684 = vmatprep.subr.mxu0 0.0
    %1685 = vmatpush1.msra.mxu0 %v1560
    %1686 = vmatprep.subr.mxu0 0.0
    %1687 = vmatpush1.msra.mxu0 0.0
    %1688 = vmatprep.subr.mxu0 0.0
    %1689 = vmatpush1.msra.mxu0 0.0
    %1690 = vmatprep.subr.mxu0 0.0
    %1691 = vmatpush1.msra.mxu0 0.0
    %1692 = vmatprep.subr.mxu0 0.0
    %1693 = vmatpush1.msra.mxu0 0.0
    %1694 = vmatprep.subr.mxu0 0.0
    %1695 = vmatpush1.msra.mxu0 0.0
    %1696 = vmatprep.subr.mxu0 0.0
    %1697 = vmatpush1.msra.mxu0 0.0
    %1698 = vmatprep.subr.mxu0 0.0
    %1699 = vmatpush1.msra.mxu0 0.0
    %1700 = vmatprep.subr.mxu0 0.0
    %1701 = vmatpush1.msra.mxu0 0.0
    %1702 = vmatprep.subr.mxu0 0.0
    %1703 = vmatpush1.msra.mxu0 0.0
    %1704 = vmatprep.subr.mxu0 0.0
    %1705 = vmatpush1.msra.mxu0 0.0
    %1706 = vmatprep.subr.mxu0 0.0
    %1707 = vmatpush1.msra.mxu0 0.0
    %1708 = vmatprep.subr.mxu0 0.0
    %1709 = vmatpush1.msra.mxu0 0.0
    %1710 = vmatprep.subr.mxu0 0.0
    %1711 = vmatpush1.msra.mxu0 0.0
    %1712 = vmatprep.subr.mxu0 0.0
    %1713 = vmatpush1.msra.mxu0 0.0
    %1714 = vmatprep.subr.mxu0 0.0
    %1715 = vmatpush1.msra.mxu0 0.0
    %1716 = vmatprep.subr.mxu0 0.0
    %1717 = vmatpush1.msra.mxu0 0.0
    %1718 = vmatprep.subr.mxu0 0.0
    %1719 = vmatpush1.msra.mxu0 0.0
    %1720 = vmatprep.subr.mxu0 0.0
    %1721 = vmatpush1.msra.mxu0 0.0
    %1722 = vmatprep.subr.mxu0 0.0
    %1723 = vmatpush1.msra.mxu0 0.0
    %1724 = vmatprep.subr.mxu0 0.0
    %1725 = vmatpush1.msra.mxu0 0.0
    %1726 = vmatprep.subr.mxu0 0.0
    %1727 = vmatpush1.msra.mxu0 0.0
    %1728 = vmatprep.subr.mxu0 0.0
    %1729 = vmatpush1.msra.mxu0 0.0
    %1730 = vmatprep.subr.mxu0 0.0
    %1731 = vmatpush1.msra.mxu0 0.0
    %1732 = vmatprep.subr.mxu0 0.0
    %1733 = vmatpush1.msra.mxu0 0.0
    %1734 = vmatprep.subr.mxu0 0.0
    %1735 = vmatpush1.msra.mxu0 0.0
    %1736 = vmatprep.subr.mxu0 0.0
    %1737 = vmatpush1.msra.mxu0 0.0
    %1738 = vmatprep.subr.mxu0 0.0
    %1739 = vmatpush1.msra.mxu0 0.0
    %1740 = vmatprep.subr.mxu0 0.0
    %1741 = vmatpush1.msra.mxu0 0.0
    %1742 = vmatprep.mubr.f32.mxu0 0.0
    %1743 = vmatmul.mubr.f32.gmra.mrb[0].mxu0 %v1600
    %v1744 = vpop.f32.mrb[0].mxu0
    %v1745 = vadd.f32 %v1676, %v1744
    %v1746 = vpop.f32.mrb[0].mxu0
    %1747 = vdwg.mxu0
    %v1749 = vlaneseq
    %v1750 = vshrl.u32 %v1749, 7
    %v1751 = vsub.s32 0, %v1750
    %v1752 = vrot.slane %v1585, %v1751
    %1754 = vmatprep.subr.mxu0 0.0
    %1755 = vmatpush1.msra.mxu0 %v1562
    %1756 = vmatprep.subr.mxu0 0.0
    %1757 = vmatpush1.msra.mxu0 %v1563
    %1758 = vmatprep.subr.mxu0 0.0
    %1759 = vmatpush1.msra.mxu0 %v1564
    %1760 = vmatprep.subr.mxu0 0.0
    %1761 = vmatpush1.msra.mxu0 %v1565
    %1762 = vmatprep.subr.mxu0 0.0
    %1763 = vmatpush1.msra.mxu0 0.0
    %1764 = vmatprep.subr.mxu0 0.0
    %1765 = vmatpush1.msra.mxu0 0.0
    %1766 = vmatprep.subr.mxu0 0.0
    %1767 = vmatpush1.msra.mxu0 0.0
    %1768 = vmatprep.subr.mxu0 0.0
    %1769 = vmatpush1.msra.mxu0 0.0
    %1770 = vmatprep.subr.mxu0 0.0
    %1771 = vmatpush1.msra.mxu0 0.0
    %1772 = vmatprep.subr.mxu0 0.0
    %1773 = vmatpush1.msra.mxu0 0.0
    %1774 = vmatprep.subr.mxu0 0.0
    %1775 = vmatpush1.msra.mxu0 0.0
    %1776 = vmatprep.subr.mxu0 0.0
    %1777 = vmatpush1.msra.mxu0 0.0
    %1778 = vmatprep.subr.mxu0 0.0
    %1779 = vmatpush1.msra.mxu0 0.0
    %1780 = vmatprep.subr.mxu0 0.0
    %1781 = vmatpush1.msra.mxu0 0.0
    %1782 = vmatprep.subr.mxu0 0.0
    %1783 = vmatpush1.msra.mxu0 0.0
    %1784 = vmatprep.subr.mxu0 0.0
    %1785 = vmatpush1.msra.mxu0 0.0
    %1786 = vmatprep.subr.mxu0 0.0
    %1787 = vmatpush1.msra.mxu0 0.0
    %1788 = vmatprep.subr.mxu0 0.0
    %1789 = vmatpush1.msra.mxu0 0.0
    %1790 = vmatprep.subr.mxu0 0.0
    %1791 = vmatpush1.msra.mxu0 0.0
    %1792 = vmatprep.subr.mxu0 0.0
    %1793 = vmatpush1.msra.mxu0 0.0
    %1794 = vmatprep.subr.mxu0 0.0
    %1795 = vmatpush1.msra.mxu0 0.0
    %1796 = vmatprep.subr.mxu0 0.0
    %1797 = vmatpush1.msra.mxu0 0.0
    %1798 = vmatprep.subr.mxu0 0.0
    %1799 = vmatpush1.msra.mxu0 0.0
    %1800 = vmatprep.subr.mxu0 0.0
    %1801 = vmatpush1.msra.mxu0 0.0
    %1802 = vmatprep.subr.mxu0 0.0
    %1803 = vmatpush1.msra.mxu0 0.0
    %1804 = vmatprep.subr.mxu0 0.0
    %1805 = vmatpush1.msra.mxu0 0.0
    %1806 = vmatprep.subr.mxu0 0.0
    %1807 = vmatpush1.msra.mxu0 0.0
    %1808 = vmatprep.subr.mxu0 0.0
    %1809 = vmatpush1.msra.mxu0 0.0
    %1810 = vmatprep.subr.mxu0 0.0
    %1811 = vmatpush1.msra.mxu0 0.0
    %1812 = vmatprep.subr.mxu0 0.0
    %1813 = vmatpush1.msra.mxu0 0.0
    %1814 = vmatprep.subr.mxu0 0.0
    %1815 = vmatpush1.msra.mxu0 0.0
    %1816 = vmatprep.subr.mxu0 0.0
    %1817 = vmatpush1.msra.mxu0 0.0
    %1818 = vmatprep.mubr.f32.mxu0 0.0
    %1819 = vmatmul.mubr.f32.gmra.mrb[0].mxu0 %v1600
    %v1820 = vpop.f32.mrb[0].mxu0
    %v1821 = vadd.f32 %v1752, %v1820
    %v1822 = vpop.f32.mrb[0].mxu0
    %1823 = vdwg.mxu0
    %v1824 = vadd.f32 %v384, %v1669
    %v1825 = vxor.u32 %v1824, 2147483648
    %v1826 = vmul.f32 %v1825, 1.442695
    %v1827 = vpow.pop %v1826
    %v1828 = vadd.f32 %v1827, 1.0
    %v1829 = vrcp.pop %v1828
    %v1830 = vmul.f32 1.0, %v1829
    %v1831 = vadd.f32 %v616, %v1745
    %v1832 = vxor.u32 %v1831, 2147483648
    %v1833 = vmul.f32 %v1832, 1.442695
    %v1834 = vpow.pop %v1833
    %v1835 = vadd.f32 %v1834, 1.0
    %v1836 = vrcp.pop %v1835
    %v1837 = vmul.f32 1.0, %v1836
    %v1838 = vmul.f32 %v1830, %v1821
    %v1839 = vadd.f32 %v848, %v1838
    %v1840 = vtanh.pop %v1839
    %v1841 = vsub.f32 1.0, %v1837
    %v1842 = vmul.f32 %v1841, %v1840
    %v1843 = vmul.f32 %v1837, 0.0
    %v1844 = vadd.f32 %v1842, %v1843
    %v1846 = vlaneseq
    %v1847 = vshrl.u32 %v1846, 7
    %v1848 = vsub.s32 0, %v1847
    %v1849 = vrot.slane %v1587, %v1848
    %1851 = vmatprep.subr.mxu0 0.0
    %1852 = vmatpush1.msra.mxu0 %v1567
    %1853 = vmatprep.subr.mxu0 0.0
    %1854 = vmatpush1.msra.mxu0 %v1568
    %1855 = vmatprep.subr.mxu0 0.0
    %1856 = vmatpush1.msra.mxu0 %v1569
    %1857 = vmatprep.subr.mxu0 0.0
    %1858 = vmatpush1.msra.mxu0 %v1570
    %1859 = vmatprep.subr.mxu0 0.0
    %1860 = vmatpush1.msra.mxu0 0.0
    %1861 = vmatprep.subr.mxu0 0.0
    %1862 = vmatpush1.msra.mxu0 0.0
    %1863 = vmatprep.subr.mxu0 0.0
    %1864 = vmatpush1.msra.mxu0 0.0
    %1865 = vmatprep.subr.mxu0 0.0
    %1866 = vmatpush1.msra.mxu0 0.0
    %1867 = vmatprep.subr.mxu0 0.0
    %1868 = vmatpush1.msra.mxu0 0.0
    %1869 = vmatprep.subr.mxu0 0.0
    %1870 = vmatpush1.msra.mxu0 0.0
    %1871 = vmatprep.subr.mxu0 0.0
    %1872 = vmatpush1.msra.mxu0 0.0
    %1873 = vmatprep.subr.mxu0 0.0
    %1874 = vmatpush1.msra.mxu0 0.0
    %1875 = vmatprep.subr.mxu0 0.0
    %1876 = vmatpush1.msra.mxu0 0.0
    %1877 = vmatprep.subr.mxu0 0.0
    %1878 = vmatpush1.msra.mxu0 0.0
    %1879 = vmatprep.subr.mxu0 0.0
    %1880 = vmatpush1.msra.mxu0 0.0
    %1881 = vmatprep.subr.mxu0 0.0
    %1882 = vmatpush1.msra.mxu0 0.0
    %1883 = vmatprep.subr.mxu0 0.0
    %1884 = vmatpush1.msra.mxu0 0.0
    %1885 = vmatprep.subr.mxu0 0.0
    %1886 = vmatpush1.msra.mxu0 0.0
    %1887 = vmatprep.subr.mxu0 0.0
    %1888 = vmatpush1.msra.mxu0 0.0
    %1889 = vmatprep.subr.mxu0 0.0
    %1890 = vmatpush1.msra.mxu0 0.0
    %1891 = vmatprep.subr.mxu0 0.0
    %1892 = vmatpush1.msra.mxu0 0.0
    %1893 = vmatprep.subr.mxu0 0.0
    %1894 = vmatpush1.msra.mxu0 0.0
    %1895 = vmatprep.subr.mxu0 0.0
    %1896 = vmatpush1.msra.mxu0 0.0
    %1897 = vmatprep.subr.mxu0 0.0
    %1898 = vmatpush1.msra.mxu0 0.0
    %1899 = vmatprep.subr.mxu0 0.0
    %1900 = vmatpush1.msra.mxu0 0.0
    %1901 = vmatprep.subr.mxu0 0.0
    %1902 = vmatpush1.msra.mxu0 0.0
    %1903 = vmatprep.subr.mxu0 0.0
    %1904 = vmatpush1.msra.mxu0 0.0
    %1905 = vmatprep.subr.mxu0 0.0
    %1906 = vmatpush1.msra.mxu0 0.0
    %1907 = vmatprep.subr.mxu0 0.0
    %1908 = vmatpush1.msra.mxu0 0.0
    %1909 = vmatprep.subr.mxu0 0.0
    %1910 = vmatpush1.msra.mxu0 0.0
    %1911 = vmatprep.subr.mxu0 0.0
    %1912 = vmatpush1.msra.mxu0 0.0
    %1913 = vmatprep.subr.mxu0 0.0
    %1914 = vmatpush1.msra.mxu0 0.0
    %1915 = vmatprep.mubr.f32.mxu0 0.0
    %1916 = vmatmul.mubr.f32.gmra.mrb[0].mxu0 %v1600
    %v1917 = vpop.f32.mrb[0].mxu0
    %v1918 = vadd.f32 %v1849, %v1917
    %v1919 = vpop.f32.mrb[0].mxu0
    %1920 = vdwg.mxu0
    %v1922 = vlaneseq
    %v1923 = vshrl.u32 %v1922, 7
    %v1924 = vsub.s32 0, %v1923
    %v1925 = vrot.slane %v1589, %v1924
    %1927 = vmatprep.subr.mxu0 0.0
    %1928 = vmatpush1.msra.mxu0 %v1572
    %1929 = vmatprep.subr.mxu0 0.0
    %1930 = vmatpush1.msra.mxu0 %v1573
    %1931 = vmatprep.subr.mxu0 0.0
    %1932 = vmatpush1.msra.mxu0 %v1574
    %1933 = vmatprep.subr.mxu0 0.0
    %1934 = vmatpush1.msra.mxu0 %v1575
    %1935 = vmatprep.subr.mxu0 0.0
    %1936 = vmatpush1.msra.mxu0 0.0
    %1937 = vmatprep.subr.mxu0 0.0
    %1938 = vmatpush1.msra.mxu0 0.0
    %1939 = vmatprep.subr.mxu0 0.0
    %1940 = vmatpush1.msra.mxu0 0.0
    %1941 = vmatprep.subr.mxu0 0.0
    %1942 = vmatpush1.msra.mxu0 0.0
    %1943 = vmatprep.subr.mxu0 0.0
    %1944 = vmatpush1.msra.mxu0 0.0
    %1945 = vmatprep.subr.mxu0 0.0
    %1946 = vmatpush1.msra.mxu0 0.0
    %1947 = vmatprep.subr.mxu0 0.0
    %1948 = vmatpush1.msra.mxu0 0.0
    %1949 = vmatprep.subr.mxu0 0.0
    %1950 = vmatpush1.msra.mxu0 0.0
    %1951 = vmatprep.subr.mxu0 0.0
    %1952 = vmatpush1.msra.mxu0 0.0
    %1953 = vmatprep.subr.mxu0 0.0
    %1954 = vmatpush1.msra.mxu0 0.0
    %1955 = vmatprep.subr.mxu0 0.0
    %1956 = vmatpush1.msra.mxu0 0.0
    %1957 = vmatprep.subr.mxu0 0.0
    %1958 = vmatpush1.msra.mxu0 0.0
    %1959 = vmatprep.subr.mxu0 0.0
    %1960 = vmatpush1.msra.mxu0 0.0
    %1961 = vmatprep.subr.mxu0 0.0
    %1962 = vmatpush1.msra.mxu0 0.0
    %1963 = vmatprep.subr.mxu0 0.0
    %1964 = vmatpush1.msra.mxu0 0.0
    %1965 = vmatprep.subr.mxu0 0.0
    %1966 = vmatpush1.msra.mxu0 0.0
    %1967 = vmatprep.subr.mxu0 0.0
    %1968 = vmatpush1.msra.mxu0 0.0
    %1969 = vmatprep.subr.mxu0 0.0
    %1970 = vmatpush1.msra.mxu0 0.0
    %1971 = vmatprep.subr.mxu0 0.0
    %1972 = vmatpush1.msra.mxu0 0.0
    %1973 = vmatprep.subr.mxu0 0.0
    %1974 = vmatpush1.msra.mxu0 0.0
    %1975 = vmatprep.subr.mxu0 0.0
    %1976 = vmatpush1.msra.mxu0 0.0
    %1977 = vmatprep.subr.mxu0 0.0
    %1978 = vmatpush1.msra.mxu0 0.0
    %1979 = vmatprep.subr.mxu0 0.0
    %1980 = vmatpush1.msra.mxu0 0.0
    %1981 = vmatprep.subr.mxu0 0.0
    %1982 = vmatpush1.msra.mxu0 0.0
    %1983 = vmatprep.subr.mxu0 0.0
    %1984 = vmatpush1.msra.mxu0 0.0
    %1985 = vmatprep.subr.mxu0 0.0
    %1986 = vmatpush1.msra.mxu0 0.0
    %1987 = vmatprep.subr.mxu0 0.0
    %1988 = vmatpush1.msra.mxu0 0.0
    %1989 = vmatprep.subr.mxu0 0.0
    %1990 = vmatpush1.msra.mxu0 0.0
    %1991 = vmatprep.mubr.f32.mxu0 0.0
    %1992 = vmatmul.mubr.f32.gmra.mrb[0].mxu0 %v1600
    %v1993 = vpop.f32.mrb[0].mxu0
    %v1994 = vadd.f32 %v1925, %v1993
    %v1995 = vpop.f32.mrb[0].mxu0
    %1996 = vdwg.mxu0
    %v1998 = vlaneseq
    %v1999 = vshrl.u32 %v1998, 7
    %v2000 = vsub.s32 0, %v1999
    %v2001 = vrot.slane %v1591, %v2000
    %2003 = vmatprep.subr.mxu0 0.0
    %2004 = vmatpush1.msra.mxu0 %v1577
    %2005 = vmatprep.subr.mxu0 0.0
    %2006 = vmatpush1.msra.mxu0 %v1578
    %2007 = vmatprep.subr.mxu0 0.0
    %2008 = vmatpush1.msra.mxu0 %v1579
    %2009 = vmatprep.subr.mxu0 0.0
    %2010 = vmatpush1.msra.mxu0 %v1580
    %2011 = vmatprep.subr.mxu0 0.0
    %2012 = vmatpush1.msra.mxu0 0.0
    %2013 = vmatprep.subr.mxu0 0.0
    %2014 = vmatpush1.msra.mxu0 0.0
    %2015 = vmatprep.subr.mxu0 0.0
    %2016 = vmatpush1.msra.mxu0 0.0
    %2017 = vmatprep.subr.mxu0 0.0
    %2018 = vmatpush1.msra.mxu0 0.0
    %2019 = vmatprep.subr.mxu0 0.0
    %2020 = vmatpush1.msra.mxu0 0.0
    %2021 = vmatprep.subr.mxu0 0.0
    %2022 = vmatpush1.msra.mxu0 0.0
    %2023 = vmatprep.subr.mxu0 0.0
    %2024 = vmatpush1.msra.mxu0 0.0
    %2025 = vmatprep.subr.mxu0 0.0
    %2026 = vmatpush1.msra.mxu0 0.0
    %2027 = vmatprep.subr.mxu0 0.0
    %2028 = vmatpush1.msra.mxu0 0.0
    %2029 = vmatprep.subr.mxu0 0.0
    %2030 = vmatpush1.msra.mxu0 0.0
    %2031 = vmatprep.subr.mxu0 0.0
    %2032 = vmatpush1.msra.mxu0 0.0
    %2033 = vmatprep.subr.mxu0 0.0
    %2034 = vmatpush1.msra.mxu0 0.0
    %2035 = vmatprep.subr.mxu0 0.0
    %2036 = vmatpush1.msra.mxu0 0.0
    %2037 = vmatprep.subr.mxu0 0.0
    %2038 = vmatpush1.msra.mxu0 0.0
    %2039 = vmatprep.subr.mxu0 0.0
    %2040 = vmatpush1.msra.mxu0 0.0
    %2041 = vmatprep.subr.mxu0 0.0
    %2042 = vmatpush1.msra.mxu0 0.0
    %2043 = vmatprep.subr.mxu0 0.0
    %2044 = vmatpush1.msra.mxu0 0.0
    %2045 = vmatprep.subr.mxu0 0.0
    %2046 = vmatpush1.msra.mxu0 0.0
    %2047 = vmatprep.subr.mxu0 0.0
    %2048 = vmatpush1.msra.mxu0 0.0
    %2049 = vmatprep.subr.mxu0 0.0
    %2050 = vmatpush1.msra.mxu0 0.0
    %2051 = vmatprep.subr.mxu0 0.0
    %2052 = vmatpush1.msra.mxu0 0.0
    %2053 = vmatprep.subr.mxu0 0.0
    %2054 = vmatpush1.msra.mxu0 0.0
    %2055 = vmatprep.subr.mxu0 0.0
    %2056 = vmatpush1.msra.mxu0 0.0
    %2057 = vmatprep.subr.mxu0 0.0
    %2058 = vmatpush1.msra.mxu0 0.0
    %2059 = vmatprep.subr.mxu0 0.0
    %2060 = vmatpush1.msra.mxu0 0.0
    %2061 = vmatprep.subr.mxu0 0.0
    %2062 = vmatpush1.msra.mxu0 0.0
    %2063 = vmatprep.subr.mxu0 0.0
    %2064 = vmatpush1.msra.mxu0 0.0
    %2065 = vmatprep.subr.mxu0 0.0
    %2066 = vmatpush1.msra.mxu0 0.0
    %2067 = vmatprep.mubr.f32.mxu0 0.0
    %2068 = vmatmul.mubr.f32.gmra.mrb[0].mxu0 %v1600
    %v2069 = vpop.f32.mrb[0].mxu0
    %v2070 = vadd.f32 %v2001, %v2069
    %v2071 = vpop.f32.mrb[0].mxu0
    %2072 = vdwg.mxu0
    %v2073 = vadd.f32 %v1087, %v1918
    %v2074 = vxor.u32 %v2073, 2147483648
    %v2075 = vmul.f32 %v2074, 1.442695
    %v2076 = vpow.pop %v2075
    %v2077 = vadd.f32 %v2076, 1.0
    %v2078 = vrcp.pop %v2077
    %v2079 = vmul.f32 1.0, %v2078
    %v2080 = vadd.f32 %v1319, %v1994
    %v2081 = vxor.u32 %v2080, 2147483648
    %v2082 = vmul.f32 %v2081, 1.442695
    %v2083 = vpow.pop %v2082
    %v2084 = vadd.f32 %v2083, 1.0
    %v2085 = vrcp.pop %v2084
    %v2086 = vmul.f32 1.0, %v2085
    %v2087 = vmul.f32 %v2079, %v2070
    %v2088 = vadd.f32 %v1551, %v2087
    %v2089 = vtanh.pop %v2088
    %v2090 = vsub.f32 1.0, %v2086
    %v2091 = vmul.f32 %v2090, %v2089
    %v2092 = vmul.f32 %v2086, 0.0
    %v2093 = vadd.f32 %v2091, %v2092
    %2094 = vst.msk [vmem:[#allocation11] sm:$0xff] %vm1598, %v1844
    %s2095 = scalar_lea.vmem [#allocation12], 56
    %2096 = vst.msk [vmem:[%s2095] sm:$0xff] %vm1598, %v2093
    %v2098 = vsel %vm1598, %v1844, 0
    %2100 = vmatprep.subr.mxu0 0.0
    %2101 = vmatpush1.msra.mxu0 %v1552
    %2102 = vmatprep.subr.mxu0 0.0
    %2103 = vmatpush1.msra.mxu0 %v1553
    %2104 = vmatprep.subr.mxu0 0.0
    %2105 = vmatpush1.msra.mxu0 %v1554
    %2106 = vmatprep.subr.mxu0 0.0
    %2107 = vmatpush1.msra.mxu0 %v1555
    %2108 = vmatprep.subr.mxu0 0.0
    %2109 = vmatpush1.msra.mxu0 0.0
    %2110 = vmatprep.subr.mxu0 0.0
    %2111 = vmatpush1.msra.mxu0 0.0
    %2112 = vmatprep.subr.mxu0 0.0
    %2113 = vmatpush1.msra.mxu0 0.0
    %2114 = vmatprep.subr.mxu0 0.0
    %2115 = vmatpush1.msra.mxu0 0.0
    %2116 = vmatprep.subr.mxu0 0.0
    %2117 = vmatpush1.msra.mxu0 0.0
    %2118 = vmatprep.subr.mxu0 0.0
    %2119 = vmatpush1.msra.mxu0 0.0
    %2120 = vmatprep.subr.mxu0 0.0
    %2121 = vmatpush1.msra.mxu0 0.0
    %2122 = vmatprep.subr.mxu0 0.0
    %2123 = vmatpush1.msra.mxu0 0.0
    %2124 = vmatprep.subr.mxu0 0.0
    %2125 = vmatpush1.msra.mxu0 0.0
    %2126 = vmatprep.subr.mxu0 0.0
    %2127 = vmatpush1.msra.mxu0 0.0
    %2128 = vmatprep.subr.mxu0 0.0
    %2129 = vmatpush1.msra.mxu0 0.0
    %2130 = vmatprep.subr.mxu0 0.0
    %2131 = vmatpush1.msra.mxu0 0.0
    %2132 = vmatprep.subr.mxu0 0.0
    %2133 = vmatpush1.msra.mxu0 0.0
    %2134 = vmatprep.subr.mxu0 0.0
    %2135 = vmatpush1.msra.mxu0 0.0
    %2136 = vmatprep.subr.mxu0 0.0
    %2137 = vmatpush1.msra.mxu0 0.0
    %2138 = vmatprep.subr.mxu0 0.0
    %2139 = vmatpush1.msra.mxu0 0.0
    %2140 = vmatprep.subr.mxu0 0.0
    %2141 = vmatpush1.msra.mxu0 0.0
    %2142 = vmatprep.subr.mxu0 0.0
    %2143 = vmatpush1.msra.mxu0 0.0
    %2144 = vmatprep.subr.mxu0 0.0
    %2145 = vmatpush1.msra.mxu0 0.0
    %2146 = vmatprep.subr.mxu0 0.0
    %2147 = vmatpush1.msra.mxu0 0.0
    %2148 = vmatprep.subr.mxu0 0.0
    %2149 = vmatpush1.msra.mxu0 0.0
    %2150 = vmatprep.subr.mxu0 0.0
    %2151 = vmatpush1.msra.mxu0 0.0
    %2152 = vmatprep.subr.mxu0 0.0
    %2153 = vmatpush1.msra.mxu0 0.0
    %2154 = vmatprep.subr.mxu0 0.0
    %2155 = vmatpush1.msra.mxu0 0.0
    %2156 = vmatprep.subr.mxu0 0.0
    %2157 = vmatpush1.msra.mxu0 0.0
    %2158 = vmatprep.subr.mxu0 0.0
    %2159 = vmatpush1.msra.mxu0 0.0
    %2160 = vmatprep.subr.mxu0 0.0
    %2161 = vmatpush1.msra.mxu0 0.0
    %2162 = vmatprep.subr.mxu0 0.0
    %2163 = vmatpush1.msra.mxu0 0.0
    %2164 = vmatprep.mubr.f32.mxu0 0.0
    %2165 = vmatmul.mubr.f32.gmra.mrb[0].mxu0 %v2098
    %v2166 = vpop.f32.mrb[0].mxu0
    %v2167 = vadd.f32 %v1596, %v2166
    %v2168 = vpop.f32.mrb[0].mxu0
    %2169 = vdwg.mxu0
    %2170 = vmatprep.subr.mxu0 0.0
    %2171 = vmatpush1.msra.mxu0 %v1557
    %2172 = vmatprep.subr.mxu0 0.0
    %2173 = vmatpush1.msra.mxu0 %v1558
    %2174 = vmatprep.subr.mxu0 0.0
    %2175 = vmatpush1.msra.mxu0 %v1559
    %2176 = vmatprep.subr.mxu0 0.0
    %2177 = vmatpush1.msra.mxu0 %v1560
    %2178 = vmatprep.subr.mxu0 0.0
    %2179 = vmatpush1.msra.mxu0 0.0
    %2180 = vmatprep.subr.mxu0 0.0
    %2181 = vmatpush1.msra.mxu0 0.0
    %2182 = vmatprep.subr.mxu0 0.0
    %2183 = vmatpush1.msra.mxu0 0.0
    %2184 = vmatprep.subr.mxu0 0.0
    %2185 = vmatpush1.msra.mxu0 0.0
    %2186 = vmatprep.subr.mxu0 0.0
    %2187 = vmatpush1.msra.mxu0 0.0
    %2188 = vmatprep.subr.mxu0 0.0
    %2189 = vmatpush1.msra.mxu0 0.0
    %2190 = vmatprep.subr.mxu0 0.0
    %2191 = vmatpush1.msra.mxu0 0.0
    %2192 = vmatprep.subr.mxu0 0.0
    %2193 = vmatpush1.msra.mxu0 0.0
    %2194 = vmatprep.subr.mxu0 0.0
    %2195 = vmatpush1.msra.mxu0 0.0
    %2196 = vmatprep.subr.mxu0 0.0
    %2197 = vmatpush1.msra.mxu0 0.0
    %2198 = vmatprep.subr.mxu0 0.0
    %2199 = vmatpush1.msra.mxu0 0.0
    %2200 = vmatprep.subr.mxu0 0.0
    %2201 = vmatpush1.msra.mxu0 0.0
    %2202 = vmatprep.subr.mxu0 0.0
    %2203 = vmatpush1.msra.mxu0 0.0
    %2204 = vmatprep.subr.mxu0 0.0
    %2205 = vmatpush1.msra.mxu0 0.0
    %2206 = vmatprep.subr.mxu0 0.0
    %2207 = vmatpush1.msra.mxu0 0.0
    %2208 = vmatprep.subr.mxu0 0.0
    %2209 = vmatpush1.msra.mxu0 0.0
    %2210 = vmatprep.subr.mxu0 0.0
    %2211 = vmatpush1.msra.mxu0 0.0
    %2212 = vmatprep.subr.mxu0 0.0
    %2213 = vmatpush1.msra.mxu0 0.0
    %2214 = vmatprep.subr.mxu0 0.0
    %2215 = vmatpush1.msra.mxu0 0.0
    %2216 = vmatprep.subr.mxu0 0.0
    %2217 = vmatpush1.msra.mxu0 0.0
    %2218 = vmatprep.subr.mxu0 0.0
    %2219 = vmatpush1.msra.mxu0 0.0
    %2220 = vmatprep.subr.mxu0 0.0
    %2221 = vmatpush1.msra.mxu0 0.0
    %2222 = vmatprep.subr.mxu0 0.0
    %2223 = vmatpush1.msra.mxu0 0.0
    %2224 = vmatprep.subr.mxu0 0.0
    %2225 = vmatpush1.msra.mxu0 0.0
    %2226 = vmatprep.subr.mxu0 0.0
    %2227 = vmatpush1.msra.mxu0 0.0
    %2228 = vmatprep.subr.mxu0 0.0
    %2229 = vmatpush1.msra.mxu0 0.0
    %2230 = vmatprep.subr.mxu0 0.0
    %2231 = vmatpush1.msra.mxu0 0.0
    %2232 = vmatprep.subr.mxu0 0.0
    %2233 = vmatpush1.msra.mxu0 0.0
    %2234 = vmatprep.mubr.f32.mxu0 0.0
    %2235 = vmatmul.mubr.f32.gmra.mrb[0].mxu0 %v2098
    %v2236 = vpop.f32.mrb[0].mxu0
    %v2237 = vadd.f32 %v1676, %v2236
    %v2238 = vpop.f32.mrb[0].mxu0
    %2239 = vdwg.mxu0
    %2240 = vmatprep.subr.mxu0 0.0
    %2241 = vmatpush1.msra.mxu0 %v1562
    %2242 = vmatprep.subr.mxu0 0.0
    %2243 = vmatpush1.msra.mxu0 %v1563
    %2244 = vmatprep.subr.mxu0 0.0
    %2245 = vmatpush1.msra.mxu0 %v1564
    %2246 = vmatprep.subr.mxu0 0.0
    %2247 = vmatpush1.msra.mxu0 %v1565
    %2248 = vmatprep.subr.mxu0 0.0
    %2249 = vmatpush1.msra.mxu0 0.0
    %2250 = vmatprep.subr.mxu0 0.0
    %2251 = vmatpush1.msra.mxu0 0.0
    %2252 = vmatprep.subr.mxu0 0.0
    %2253 = vmatpush1.msra.mxu0 0.0
    %2254 = vmatprep.subr.mxu0 0.0
    %2255 = vmatpush1.msra.mxu0 0.0
    %2256 = vmatprep.subr.mxu0 0.0
    %2257 = vmatpush1.msra.mxu0 0.0
    %2258 = vmatprep.subr.mxu0 0.0
    %2259 = vmatpush1.msra.mxu0 0.0
    %2260 = vmatprep.subr.mxu0 0.0
    %2261 = vmatpush1.msra.mxu0 0.0
    %2262 = vmatprep.subr.mxu0 0.0
    %2263 = vmatpush1.msra.mxu0 0.0
    %2264 = vmatprep.subr.mxu0 0.0
    %2265 = vmatpush1.msra.mxu0 0.0
    %2266 = vmatprep.subr.mxu0 0.0
    %2267 = vmatpush1.msra.mxu0 0.0
    %2268 = vmatprep.subr.mxu0 0.0
    %2269 = vmatpush1.msra.mxu0 0.0
    %2270 = vmatprep.subr.mxu0 0.0
    %2271 = vmatpush1.msra.mxu0 0.0
    %2272 = vmatprep.subr.mxu0 0.0
    %2273 = vmatpush1.msra.mxu0 0.0
    %2274 = vmatprep.subr.mxu0 0.0
    %2275 = vmatpush1.msra.mxu0 0.0
    %2276 = vmatprep.subr.mxu0 0.0
    %2277 = vmatpush1.msra.mxu0 0.0
    %2278 = vmatprep.subr.mxu0 0.0
    %2279 = vmatpush1.msra.mxu0 0.0
    %2280 = vmatprep.subr.mxu0 0.0
    %2281 = vmatpush1.msra.mxu0 0.0
    %2282 = vmatprep.subr.mxu0 0.0
    %2283 = vmatpush1.msra.mxu0 0.0
    %2284 = vmatprep.subr.mxu0 0.0
    %2285 = vmatpush1.msra.mxu0 0.0
    %2286 = vmatprep.subr.mxu0 0.0
    %2287 = vmatpush1.msra.mxu0 0.0
    %2288 = vmatprep.subr.mxu0 0.0
    %2289 = vmatpush1.msra.mxu0 0.0
    %2290 = vmatprep.subr.mxu0 0.0
    %2291 = vmatpush1.msra.mxu0 0.0
    %2292 = vmatprep.subr.mxu0 0.0
    %2293 = vmatpush1.msra.mxu0 0.0
    %2294 = vmatprep.subr.mxu0 0.0
    %2295 = vmatpush1.msra.mxu0 0.0
    %2296 = vmatprep.subr.mxu0 0.0
    %2297 = vmatpush1.msra.mxu0 0.0
    %2298 = vmatprep.subr.mxu0 0.0
    %2299 = vmatpush1.msra.mxu0 0.0
    %2300 = vmatprep.subr.mxu0 0.0
    %2301 = vmatpush1.msra.mxu0 0.0
    %2302 = vmatprep.subr.mxu0 0.0
    %2303 = vmatpush1.msra.mxu0 0.0
    %2304 = vmatprep.mubr.f32.mxu0 0.0
    %2305 = vmatmul.mubr.f32.gmra.mrb[0].mxu0 %v2098
    %v2306 = vpop.f32.mrb[0].mxu0
    %v2307 = vadd.f32 %v1752, %v2306
    %v2308 = vpop.f32.mrb[0].mxu0
    %2309 = vdwg.mxu0
    %v2310 = vadd.f32 %v385, %v2167
    %v2311 = vxor.u32 %v2310, 2147483648
    %v2312 = vmul.f32 %v2311, 1.442695
    %v2313 = vpow.pop %v2312
    %v2314 = vadd.f32 %v2313, 1.0
    %v2315 = vrcp.pop %v2314
    %v2316 = vmul.f32 1.0, %v2315
    %v2317 = vadd.f32 %v617, %v2237
    %v2318 = vxor.u32 %v2317, 2147483648
    %v2319 = vmul.f32 %v2318, 1.442695
    %v2320 = vpow.pop %v2319
    %v2321 = vadd.f32 %v2320, 1.0
    %v2322 = vrcp.pop %v2321
    %v2323 = vmul.f32 1.0, %v2322
    %v2324 = vmul.f32 %v2316, %v2307
    %v2325 = vadd.f32 %v849, %v2324
    %v2326 = vtanh.pop %v2325
    %v2327 = vsub.f32 1.0, %v2323
    %v2328 = vmul.f32 %v2327, %v2326
    %v2329 = vmul.f32 %v2323, %v1844
    %v2330 = vadd.f32 %v2328, %v2329
    %v2332 = vsel %vm1598, %v2093, 0
    %2334 = vmatprep.subr.mxu0 0.0
    %2335 = vmatpush1.msra.mxu0 %v1567
    %2336 = vmatprep.subr.mxu0 0.0
    %2337 = vmatpush1.msra.mxu0 %v1568
    %2338 = vmatprep.subr.mxu0 0.0
    %2339 = vmatpush1.msra.mxu0 %v1569
    %2340 = vmatprep.subr.mxu0 0.0
    %2341 = vmatpush1.msra.mxu0 %v1570
    %2342 = vmatprep.subr.mxu0 0.0
    %2343 = vmatpush1.msra.mxu0 0.0
    %2344 = vmatprep.subr.mxu0 0.0
    %2345 = vmatpush1.msra.mxu0 0.0
    %2346 = vmatprep.subr.mxu0 0.0
    %2347 = vmatpush1.msra.mxu0 0.0
    %2348 = vmatprep.subr.mxu0 0.0
    %2349 = vmatpush1.msra.mxu0 0.0
    %2350 = vmatprep.subr.mxu0 0.0
    %2351 = vmatpush1.msra.mxu0 0.0
    %2352 = vmatprep.subr.mxu0 0.0
    %2353 = vmatpush1.msra.mxu0 0.0
    %2354 = vmatprep.subr.mxu0 0.0
    %2355 = vmatpush1.msra.mxu0 0.0
    %2356 = vmatprep.subr.mxu0 0.0
    %2357 = vmatpush1.msra.mxu0 0.0
    %2358 = vmatprep.subr.mxu0 0.0
    %2359 = vmatpush1.msra.mxu0 0.0
    %2360 = vmatprep.subr.mxu0 0.0
    %2361 = vmatpush1.msra.mxu0 0.0
    %2362 = vmatprep.subr.mxu0 0.0
    %2363 = vmatpush1.msra.mxu0 0.0
    %2364 = vmatprep.subr.mxu0 0.0
    %2365 = vmatpush1.msra.mxu0 0.0
    %2366 = vmatprep.subr.mxu0 0.0
    %2367 = vmatpush1.msra.mxu0 0.0
    %2368 = vmatprep.subr.mxu0 0.0
    %2369 = vmatpush1.msra.mxu0 0.0
    %2370 = vmatprep.subr.mxu0 0.0
    %2371 = vmatpush1.msra.mxu0 0.0
    %2372 = vmatprep.subr.mxu0 0.0
    %2373 = vmatpush1.msra.mxu0 0.0
    %2374 = vmatprep.subr.mxu0 0.0
    %2375 = vmatpush1.msra.mxu0 0.0
    %2376 = vmatprep.subr.mxu0 0.0
    %2377 = vmatpush1.msra.mxu0 0.0
    %2378 = vmatprep.subr.mxu0 0.0
    %2379 = vmatpush1.msra.mxu0 0.0
    %2380 = vmatprep.subr.mxu0 0.0
    %2381 = vmatpush1.msra.mxu0 0.0
    %2382 = vmatprep.subr.mxu0 0.0
    %2383 = vmatpush1.msra.mxu0 0.0
    %2384 = vmatprep.subr.mxu0 0.0
    %2385 = vmatpush1.msra.mxu0 0.0
    %2386 = vmatprep.subr.mxu0 0.0
    %2387 = vmatpush1.msra.mxu0 0.0
    %2388 = vmatprep.subr.mxu0 0.0
    %2389 = vmatpush1.msra.mxu0 0.0
    %2390 = vmatprep.subr.mxu0 0.0
    %2391 = vmatpush1.msra.mxu0 0.0
    %2392 = vmatprep.subr.mxu0 0.0
    %2393 = vmatpush1.msra.mxu0 0.0
    %2394 = vmatprep.subr.mxu0 0.0
    %2395 = vmatpush1.msra.mxu0 0.0
    %2396 = vmatprep.subr.mxu0 0.0
    %2397 = vmatpush1.msra.mxu0 0.0
    %2398 = vmatprep.mubr.f32.mxu0 0.0
    %2399 = vmatmul.mubr.f32.gmra.mrb[0].mxu0 %v2332
    %v2400 = vpop.f32.mrb[0].mxu0
    %v2401 = vadd.f32 %v1849, %v2400
    %v2402 = vpop.f32.mrb[0].mxu0
    %2403 = vdwg.mxu0
    %2404 = vmatprep.subr.mxu0 0.0
    %2405 = vmatpush1.msra.mxu0 %v1572
    %2406 = vmatprep.subr.mxu0 0.0
    %2407 = vmatpush1.msra.mxu0 %v1573
    %2408 = vmatprep.subr.mxu0 0.0
    %2409 = vmatpush1.msra.mxu0 %v1574
    %2410 = vmatprep.subr.mxu0 0.0
    %2411 = vmatpush1.msra.mxu0 %v1575
    %2412 = vmatprep.subr.mxu0 0.0
    %2413 = vmatpush1.msra.mxu0 0.0
    %2414 = vmatprep.subr.mxu0 0.0
    %2415 = vmatpush1.msra.mxu0 0.0
    %2416 = vmatprep.subr.mxu0 0.0
    %2417 = vmatpush1.msra.mxu0 0.0
    %2418 = vmatprep.subr.mxu0 0.0
    %2419 = vmatpush1.msra.mxu0 0.0
    %2420 = vmatprep.subr.mxu0 0.0
    %2421 = vmatpush1.msra.mxu0 0.0
    %2422 = vmatprep.subr.mxu0 0.0
    %2423 = vmatpush1.msra.mxu0 0.0
    %2424 = vmatprep.subr.mxu0 0.0
    %2425 = vmatpush1.msra.mxu0 0.0
    %2426 = vmatprep.subr.mxu0 0.0
    %2427 = vmatpush1.msra.mxu0 0.0
    %2428 = vmatprep.subr.mxu0 0.0
    %2429 = vmatpush1.msra.mxu0 0.0
    %2430 = vmatprep.subr.mxu0 0.0
    %2431 = vmatpush1.msra.mxu0 0.0
    %2432 = vmatprep.subr.mxu0 0.0
    %2433 = vmatpush1.msra.mxu0 0.0
    %2434 = vmatprep.subr.mxu0 0.0
    %2435 = vmatpush1.msra.mxu0 0.0
    %2436 = vmatprep.subr.mxu0 0.0
    %2437 = vmatpush1.msra.mxu0 0.0
    %2438 = vmatprep.subr.mxu0 0.0
    %2439 = vmatpush1.msra.mxu0 0.0
    %2440 = vmatprep.subr.mxu0 0.0
    %2441 = vmatpush1.msra.mxu0 0.0
    %2442 = vmatprep.subr.mxu0 0.0
    %2443 = vmatpush1.msra.mxu0 0.0
    %2444 = vmatprep.subr.mxu0 0.0
    %2445 = vmatpush1.msra.mxu0 0.0
    %2446 = vmatprep.subr.mxu0 0.0
    %2447 = vmatpush1.msra.mxu0 0.0
    %2448 = vmatprep.subr.mxu0 0.0
    %2449 = vmatpush1.msra.mxu0 0.0
    %2450 = vmatprep.subr.mxu0 0.0
    %2451 = vmatpush1.msra.mxu0 0.0
    %2452 = vmatprep.subr.mxu0 0.0
    %2453 = vmatpush1.msra.mxu0 0.0
    %2454 = vmatprep.subr.mxu0 0.0
    %2455 = vmatpush1.msra.mxu0 0.0
    %2456 = vmatprep.subr.mxu0 0.0
    %2457 = vmatpush1.msra.mxu0 0.0
    %2458 = vmatprep.subr.mxu0 0.0
    %2459 = vmatpush1.msra.mxu0 0.0
    %2460 = vmatprep.subr.mxu0 0.0
    %2461 = vmatpush1.msra.mxu0 0.0
    %2462 = vmatprep.subr.mxu0 0.0
    %2463 = vmatpush1.msra.mxu0 0.0
    %2464 = vmatprep.subr.mxu0 0.0
    %2465 = vmatpush1.msra.mxu0 0.0
    %2466 = vmatprep.subr.mxu0 0.0
    %2467 = vmatpush1.msra.mxu0 0.0
    %2468 = vmatprep.mubr.f32.mxu0 0.0
    %2469 = vmatmul.mubr.f32.gmra.mrb[0].mxu0 %v2332
    %v2470 = vpop.f32.mrb[0].mxu0
    %v2471 = vadd.f32 %v1925, %v2470
    %v2472 = vpop.f32.mrb[0].mxu0
    %2473 = vdwg.mxu0
    %2474 = vmatprep.subr.mxu0 0.0
    %2475 = vmatpush1.msra.mxu0 %v1577
    %2476 = vmatprep.subr.mxu0 0.0
    %2477 = vmatpush1.msra.mxu0 %v1578
    %2478 = vmatprep.subr.mxu0 0.0
    %2479 = vmatpush1.msra.mxu0 %v1579
    %2480 = vmatprep.subr.mxu0 0.0
    %2481 = vmatpush1.msra.mxu0 %v1580
    %2482 = vmatprep.subr.mxu0 0.0
    %2483 = vmatpush1.msra.mxu0 0.0
    %2484 = vmatprep.subr.mxu0 0.0
    %2485 = vmatpush1.msra.mxu0 0.0
    %2486 = vmatprep.subr.mxu0 0.0
    %2487 = vmatpush1.msra.mxu0 0.0
    %2488 = vmatprep.subr.mxu0 0.0
    %2489 = vmatpush1.msra.mxu0 0.0
    %2490 = vmatprep.subr.mxu0 0.0
    %2491 = vmatpush1.msra.mxu0 0.0
    %2492 = vmatprep.subr.mxu0 0.0
    %2493 = vmatpush1.msra.mxu0 0.0
    %2494 = vmatprep.subr.mxu0 0.0
    %2495 = vmatpush1.msra.mxu0 0.0
    %2496 = vmatprep.subr.mxu0 0.0
    %2497 = vmatpush1.msra.mxu0 0.0
    %2498 = vmatprep.subr.mxu0 0.0
    %2499 = vmatpush1.msra.mxu0 0.0
    %2500 = vmatprep.subr.mxu0 0.0
    %2501 = vmatpush1.msra.mxu0 0.0
    %2502 = vmatprep.subr.mxu0 0.0
    %2503 = vmatpush1.msra.mxu0 0.0
    %2504 = vmatprep.subr.mxu0 0.0
    %2505 = vmatpush1.msra.mxu0 0.0
    %2506 = vmatprep.subr.mxu0 0.0
    %2507 = vmatpush1.msra.mxu0 0.0
    %2508 = vmatprep.subr.mxu0 0.0
    %2509 = vmatpush1.msra.mxu0 0.0
    %2510 = vmatprep.subr.mxu0 0.0
    %2511 = vmatpush1.msra.mxu0 0.0
    %2512 = vmatprep.subr.mxu0 0.0
    %2513 = vmatpush1.msra.mxu0 0.0
    %2514 = vmatprep.subr.mxu0 0.0
    %2515 = vmatpush1.msra.mxu0 0.0
    %2516 = vmatprep.subr.mxu0 0.0
    %2517 = vmatpush1.msra.mxu0 0.0
    %2518 = vmatprep.subr.mxu0 0.0
    %2519 = vmatpush1.msra.mxu0 0.0
    %2520 = vmatprep.subr.mxu0 0.0
    %2521 = vmatpush1.msra.mxu0 0.0
    %2522 = vmatprep.subr.mxu0 0.0
    %2523 = vmatpush1.msra.mxu0 0.0
    %2524 = vmatprep.subr.mxu0 0.0
    %2525 = vmatpush1.msra.mxu0 0.0
    %2526 = vmatprep.subr.mxu0 0.0
    %2527 = vmatpush1.msra.mxu0 0.0
    %2528 = vmatprep.subr.mxu0 0.0
    %2529 = vmatpush1.msra.mxu0 0.0
    %2530 = vmatprep.subr.mxu0 0.0
    %2531 = vmatpush1.msra.mxu0 0.0
    %2532 = vmatprep.subr.mxu0 0.0
    %2533 = vmatpush1.msra.mxu0 0.0
    %2534 = vmatprep.subr.mxu0 0.0
    %2535 = vmatpush1.msra.mxu0 0.0
    %2536 = vmatprep.subr.mxu0 0.0
    %2537 = vmatpush1.msra.mxu0 0.0
    %2538 = vmatprep.mubr.f32.mxu0 0.0
    %2539 = vmatmul.mubr.f32.gmra.mrb[0].mxu0 %v2332
    %v2540 = vpop.f32.mrb[0].mxu0
    %v2541 = vadd.f32 %v2001, %v2540
    %v2542 = vpop.f32.mrb[0].mxu0
    %2543 = vdwg.mxu0
    %v2544 = vadd.f32 %v1086, %v2401
    %v2545 = vxor.u32 %v2544, 2147483648
    %v2546 = vmul.f32 %v2545, 1.442695
    %v2547 = vpow.pop %v2546
    %v2548 = vadd.f32 %v2547, 1.0
    %v2549 = vrcp.pop %v2548
    %v2550 = vmul.f32 1.0, %v2549
    %v2551 = vadd.f32 %v1318, %v2471
    %v2552 = vxor.u32 %v2551, 2147483648
    %v2553 = vmul.f32 %v2552, 1.442695
    %v2554 = vpow.pop %v2553
    %v2555 = vadd.f32 %v2554, 1.0
    %v2556 = vrcp.pop %v2555
    %v2557 = vmul.f32 1.0, %v2556
    %v2558 = vmul.f32 %v2550, %v2541
    %v2559 = vadd.f32 %v1550, %v2558
    %v2560 = vtanh.pop %v2559
    %v2561 = vsub.f32 1.0, %v2557
    %v2562 = vmul.f32 %v2561, %v2560
    %v2563 = vmul.f32 %v2557, %v2093
    %v2564 = vadd.f32 %v2562, %v2563
    %s2565 = scalar_lea.vmem [#allocation11], 8
    %2566 = vst.msk [vmem:[%s2565] sm:$0xff] %vm1598, %v2330
    %s2567 = scalar_lea.vmem [#allocation12], 48
    %2568 = vst.msk [vmem:[%s2567] sm:$0xff] %vm1598, %v2564
    %v2570 = vsel %vm1598, %v2330, 0
    %2572 = vmatprep.subr.mxu0 0.0
    %2573 = vmatpush1.msra.mxu0 %v1552
    %2574 = vmatprep.subr.mxu0 0.0
    %2575 = vmatpush1.msra.mxu0 %v1553
    %2576 = vmatprep.subr.mxu0 0.0
    %2577 = vmatpush1.msra.mxu0 %v1554
    %2578 = vmatprep.subr.mxu0 0.0
    %2579 = vmatpush1.msra.mxu0 %v1555
    %2580 = vmatprep.subr.mxu0 0.0
    %2581 = vmatpush1.msra.mxu0 0.0
    %2582 = vmatprep.subr.mxu0 0.0
    %2583 = vmatpush1.msra.mxu0 0.0
    %2584 = vmatprep.subr.mxu0 0.0
    %2585 = vmatpush1.msra.mxu0 0.0
    %2586 = vmatprep.subr.mxu0 0.0
    %2587 = vmatpush1.msra.mxu0 0.0
    %2588 = vmatprep.subr.mxu0 0.0
    %2589 = vmatpush1.msra.mxu0 0.0
    %2590 = vmatprep.subr.mxu0 0.0
    %2591 = vmatpush1.msra.mxu0 0.0
    %2592 = vmatprep.subr.mxu0 0.0
    %2593 = vmatpush1.msra.mxu0 0.0
    %2594 = vmatprep.subr.mxu0 0.0
    %2595 = vmatpush1.msra.mxu0 0.0
    %2596 = vmatprep.subr.mxu0 0.0
    %2597 = vmatpush1.msra.mxu0 0.0
    %2598 = vmatprep.subr.mxu0 0.0
    %2599 = vmatpush1.msra.mxu0 0.0
    %2600 = vmatprep.subr.mxu0 0.0
    %2601 = vmatpush1.msra.mxu0 0.0
    %2602 = vmatprep.subr.mxu0 0.0
    %2603 = vmatpush1.msra.mxu0 0.0
    %2604 = vmatprep.subr.mxu0 0.0
    %2605 = vmatpush1.msra.mxu0 0.0
    %2606 = vmatprep.subr.mxu0 0.0
    %2607 = vmatpush1.msra.mxu0 0.0
    %2608 = vmatprep.subr.mxu0 0.0
    %2609 = vmatpush1.msra.mxu0 0.0
    %2610 = vmatprep.subr.mxu0 0.0
    %2611 = vmatpush1.msra.mxu0 0.0
    %2612 = vmatprep.subr.mxu0 0.0
    %2613 = vmatpush1.msra.mxu0 0.0
    %2614 = vmatprep.subr.mxu0 0.0
    %2615 = vmatpush1.msra.mxu0 0.0
    %2616 = vmatprep.subr.mxu0 0.0
    %2617 = vmatpush1.msra.mxu0 0.0
    %2618 = vmatprep.subr.mxu0 0.0
    %2619 = vmatpush1.msra.mxu0 0.0
    %2620 = vmatprep.subr.mxu0 0.0
    %2621 = vmatpush1.msra.mxu0 0.0
    %2622 = vmatprep.subr.mxu0 0.0
    %2623 = vmatpush1.msra.mxu0 0.0
    %2624 = vmatprep.subr.mxu0 0.0
    %2625 = vmatpush1.msra.mxu0 0.0
    %2626 = vmatprep.subr.mxu0 0.0
    %2627 = vmatpush1.msra.mxu0 0.0
    %2628 = vmatprep.subr.mxu0 0.0
    %2629 = vmatpush1.msra.mxu0 0.0
    %2630 = vmatprep.subr.mxu0 0.0
    %2631 = vmatpush1.msra.mxu0 0.0
    %2632 = vmatprep.subr.mxu0 0.0
    %2633 = vmatpush1.msra.mxu0 0.0
    %2634 = vmatprep.subr.mxu0 0.0
    %2635 = vmatpush1.msra.mxu0 0.0
    %2636 = vmatprep.mubr.f32.mxu0 0.0
    %2637 = vmatmul.mubr.f32.gmra.mrb[0].mxu0 %v2570
    %v2638 = vpop.f32.mrb[0].mxu0
    %v2639 = vadd.f32 %v1596, %v2638
    %v2640 = vpop.f32.mrb[0].mxu0
    %2641 = vdwg.mxu0
    %2642 = vmatprep.subr.mxu0 0.0
    %2643 = vmatpush1.msra.mxu0 %v1557
    %2644 = vmatprep.subr.mxu0 0.0
    %2645 = vmatpush1.msra.mxu0 %v1558
    %2646 = vmatprep.subr.mxu0 0.0
    %2647 = vmatpush1.msra.mxu0 %v1559
    %2648 = vmatprep.subr.mxu0 0.0
    %2649 = vmatpush1.msra.mxu0 %v1560
    %2650 = vmatprep.subr.mxu0 0.0
    %2651 = vmatpush1.msra.mxu0 0.0
    %2652 = vmatprep.subr.mxu0 0.0
    %2653 = vmatpush1.msra.mxu0 0.0
    %2654 = vmatprep.subr.mxu0 0.0
    %2655 = vmatpush1.msra.mxu0 0.0
    %2656 = vmatprep.subr.mxu0 0.0
    %2657 = vmatpush1.msra.mxu0 0.0
    %2658 = vmatprep.subr.mxu0 0.0
    %2659 = vmatpush1.msra.mxu0 0.0
    %2660 = vmatprep.subr.mxu0 0.0
    %2661 = vmatpush1.msra.mxu0 0.0
    %2662 = vmatprep.subr.mxu0 0.0
    %2663 = vmatpush1.msra.mxu0 0.0
    %2664 = vmatprep.subr.mxu0 0.0
    %2665 = vmatpush1.msra.mxu0 0.0
    %2666 = vmatprep.subr.mxu0 0.0
    %2667 = vmatpush1.msra.mxu0 0.0
    %2668 = vmatprep.subr.mxu0 0.0
    %2669 = vmatpush1.msra.mxu0 0.0
    %2670 = vmatprep.subr.mxu0 0.0
    %2671 = vmatpush1.msra.mxu0 0.0
    %2672 = vmatprep.subr.mxu0 0.0
    %2673 = vmatpush1.msra.mxu0 0.0
    %2674 = vmatprep.subr.mxu0 0.0
    %2675 = vmatpush1.msra.mxu0 0.0
    %2676 = vmatprep.subr.mxu0 0.0
    %2677 = vmatpush1.msra.mxu0 0.0
    %2678 = vmatprep.subr.mxu0 0.0
    %2679 = vmatpush1.msra.mxu0 0.0
    %2680 = vmatprep.subr.mxu0 0.0
    %2681 = vmatpush1.msra.mxu0 0.0
    %2682 = vmatprep.subr.mxu0 0.0
    %2683 = vmatpush1.msra.mxu0 0.0
    %2684 = vmatprep.subr.mxu0 0.0
    %2685 = vmatpush1.msra.mxu0 0.0
    %2686 = vmatprep.subr.mxu0 0.0
    %2687 = vmatpush1.msra.mxu0 0.0
    %2688 = vmatprep.subr.mxu0 0.0
    %2689 = vmatpush1.msra.mxu0 0.0
    %2690 = vmatprep.subr.mxu0 0.0
    %2691 = vmatpush1.msra.mxu0 0.0
    %2692 = vmatprep.subr.mxu0 0.0
    %2693 = vmatpush1.msra.mxu0 0.0
    %2694 = vmatprep.subr.mxu0 0.0
    %2695 = vmatpush1.msra.mxu0 0.0
    %2696 = vmatprep.subr.mxu0 0.0
    %2697 = vmatpush1.msra.mxu0 0.0
    %2698 = vmatprep.subr.mxu0 0.0
    %2699 = vmatpush1.msra.mxu0 0.0
    %2700 = vmatprep.subr.mxu0 0.0
    %2701 = vmatpush1.msra.mxu0 0.0
    %2702 = vmatprep.subr.mxu0 0.0
    %2703 = vmatpush1.msra.mxu0 0.0
    %2704 = vmatprep.subr.mxu0 0.0
    %2705 = vmatpush1.msra.mxu0 0.0
    %2706 = vmatprep.mubr.f32.mxu0 0.0
    %2707 = vmatmul.mubr.f32.gmra.mrb[0].mxu0 %v2570
    %v2708 = vpop.f32.mrb[0].mxu0
    %v2709 = vadd.f32 %v1676, %v2708
    %v2710 = vpop.f32.mrb[0].mxu0
    %2711 = vdwg.mxu0
    %2712 = vmatprep.subr.mxu0 0.0
    %2713 = vmatpush1.msra.mxu0 %v1562
    %2714 = vmatprep.subr.mxu0 0.0
    %2715 = vmatpush1.msra.mxu0 %v1563
    %2716 = vmatprep.subr.mxu0 0.0
    %2717 = vmatpush1.msra.mxu0 %v1564
    %2718 = vmatprep.subr.mxu0 0.0
    %2719 = vmatpush1.msra.mxu0 %v1565
    %2720 = vmatprep.subr.mxu0 0.0
    %2721 = vmatpush1.msra.mxu0 0.0
    %2722 = vmatprep.subr.mxu0 0.0
    %2723 = vmatpush1.msra.mxu0 0.0
    %2724 = vmatprep.subr.mxu0 0.0
    %2725 = vmatpush1.msra.mxu0 0.0
    %2726 = vmatprep.subr.mxu0 0.0
    %2727 = vmatpush1.msra.mxu0 0.0
    %2728 = vmatprep.subr.mxu0 0.0
    %2729 = vmatpush1.msra.mxu0 0.0
    %2730 = vmatprep.subr.mxu0 0.0
    %2731 = vmatpush1.msra.mxu0 0.0
    %2732 = vmatprep.subr.mxu0 0.0
    %2733 = vmatpush1.msra.mxu0 0.0
    %2734 = vmatprep.subr.mxu0 0.0
    %2735 = vmatpush1.msra.mxu0 0.0
    %2736 = vmatprep.subr.mxu0 0.0
    %2737 = vmatpush1.msra.mxu0 0.0
    %2738 = vmatprep.subr.mxu0 0.0
    %2739 = vmatpush1.msra.mxu0 0.0
    %2740 = vmatprep.subr.mxu0 0.0
    %2741 = vmatpush1.msra.mxu0 0.0
    %2742 = vmatprep.subr.mxu0 0.0
    %2743 = vmatpush1.msra.mxu0 0.0
    %2744 = vmatprep.subr.mxu0 0.0
    %2745 = vmatpush1.msra.mxu0 0.0
    %2746 = vmatprep.subr.mxu0 0.0
    %2747 = vmatpush1.msra.mxu0 0.0
    %2748 = vmatprep.subr.mxu0 0.0
    %2749 = vmatpush1.msra.mxu0 0.0
    %2750 = vmatprep.subr.mxu0 0.0
    %2751 = vmatpush1.msra.mxu0 0.0
    %2752 = vmatprep.subr.mxu0 0.0
    %2753 = vmatpush1.msra.mxu0 0.0
    %2754 = vmatprep.subr.mxu0 0.0
    %2755 = vmatpush1.msra.mxu0 0.0
    %2756 = vmatprep.subr.mxu0 0.0
    %2757 = vmatpush1.msra.mxu0 0.0
    %2758 = vmatprep.subr.mxu0 0.0
    %2759 = vmatpush1.msra.mxu0 0.0
    %2760 = vmatprep.subr.mxu0 0.0
    %2761 = vmatpush1.msra.mxu0 0.0
    %2762 = vmatprep.subr.mxu0 0.0
    %2763 = vmatpush1.msra.mxu0 0.0
    %2764 = vmatprep.subr.mxu0 0.0
    %2765 = vmatpush1.msra.mxu0 0.0
    %2766 = vmatprep.subr.mxu0 0.0
    %2767 = vmatpush1.msra.mxu0 0.0
    %2768 = vmatprep.subr.mxu0 0.0
    %2769 = vmatpush1.msra.mxu0 0.0
    %2770 = vmatprep.subr.mxu0 0.0
    %2771 = vmatpush1.msra.mxu0 0.0
    %2772 = vmatprep.subr.mxu0 0.0
    %2773 = vmatpush1.msra.mxu0 0.0
    %2774 = vmatprep.subr.mxu0 0.0
    %2775 = vmatpush1.msra.mxu0 0.0
    %2776 = vmatprep.mubr.f32.mxu0 0.0
    %2777 = vmatmul.mubr.f32.gmra.mrb[0].mxu0 %v2570
    %v2778 = vpop.f32.mrb[0].mxu0
    %v2779 = vadd.f32 %v1752, %v2778
    %v2780 = vpop.f32.mrb[0].mxu0
    %2781 = vdwg.mxu0
    %v2782 = vadd.f32 %v386, %v2639
    %v2783 = vxor.u32 %v2782, 2147483648
    %v2784 = vmul.f32 %v2783, 1.442695
    %v2785 = vpow.pop %v2784
    %v2786 = vadd.f32 %v2785, 1.0
    %v2787 = vrcp.pop %v2786
    %v2788 = vmul.f32 1.0, %v2787
    %v2789 = vadd.f32 %v618, %v2709
    %v2790 = vxor.u32 %v2789, 2147483648
    %v2791 = vmul.f32 %v2790, 1.442695
    %v2792 = vpow.pop %v2791
    %v2793 = vadd.f32 %v2792, 1.0
    %v2794 = vrcp.pop %v2793
    %v2795 = vmul.f32 1.0, %v2794
    %v2796 = vmul.f32 %v2788, %v2779
    %v2797 = vadd.f32 %v850, %v2796
    %v2798 = vtanh.pop %v2797
    %v2799 = vsub.f32 1.0, %v2795
    %v2800 = vmul.f32 %v2799, %v2798
    %v2801 = vmul.f32 %v2795, %v2330
    %v2802 = vadd.f32 %v2800, %v2801
    %v2804 = vsel %vm1598, %v2564, 0
    %2806 = vmatprep.subr.mxu0 0.0
    %2807 = vmatpush1.msra.mxu0 %v1567
    %2808 = vmatprep.subr.mxu0 0.0
    %2809 = vmatpush1.msra.mxu0 %v1568
    %2810 = vmatprep.subr.mxu0 0.0
    %2811 = vmatpush1.msra.mxu0 %v1569
    %2812 = vmatprep.subr.mxu0 0.0
    %2813 = vmatpush1.msra.mxu0 %v1570
    %2814 = vmatprep.subr.mxu0 0.0
    %2815 = vmatpush1.msra.mxu0 0.0
    %2816 = vmatprep.subr.mxu0 0.0
    %2817 = vmatpush1.msra.mxu0 0.0
    %2818 = vmatprep.subr.mxu0 0.0
    %2819 = vmatpush1.msra.mxu0 0.0
    %2820 = vmatprep.subr.mxu0 0.0
    %2821 = vmatpush1.msra.mxu0 0.0
    %2822 = vmatprep.subr.mxu0 0.0
    %2823 = vmatpush1.msra.mxu0 0.0
    %2824 = vmatprep.subr.mxu0 0.0
    %2825 = vmatpush1.msra.mxu0 0.0
    %2826 = vmatprep.subr.mxu0 0.0
    %2827 = vmatpush1.msra.mxu0 0.0
    %2828 = vmatprep.subr.mxu0 0.0
    %2829 = vmatpush1.msra.mxu0 0.0
    %2830 = vmatprep.subr.mxu0 0.0
    %2831 = vmatpush1.msra.mxu0 0.0
    %2832 = vmatprep.subr.mxu0 0.0
    %2833 = vmatpush1.msra.mxu0 0.0
    %2834 = vmatprep.subr.mxu0 0.0
    %2835 = vmatpush1.msra.mxu0 0.0
    %2836 = vmatprep.subr.mxu0 0.0
    %2837 = vmatpush1.msra.mxu0 0.0
    %2838 = vmatprep.subr.mxu0 0.0
    %2839 = vmatpush1.msra.mxu0 0.0
    %2840 = vmatprep.subr.mxu0 0.0
    %2841 = vmatpush1.msra.mxu0 0.0
    %2842 = vmatprep.subr.mxu0 0.0
    %2843 = vmatpush1.msra.mxu0 0.0
    %2844 = vmatprep.subr.mxu0 0.0
    %2845 = vmatpush1.msra.mxu0 0.0
    %2846 = vmatprep.subr.mxu0 0.0
    %2847 = vmatpush1.msra.mxu0 0.0
    %2848 = vmatprep.subr.mxu0 0.0
    %2849 = vmatpush1.msra.mxu0 0.0
    %2850 = vmatprep.subr.mxu0 0.0
    %2851 = vmatpush1.msra.mxu0 0.0
    %2852 = vmatprep.subr.mxu0 0.0
    %2853 = vmatpush1.msra.mxu0 0.0
    %2854 = vmatprep.subr.mxu0 0.0
    %2855 = vmatpush1.msra.mxu0 0.0
    %2856 = vmatprep.subr.mxu0 0.0
    %2857 = vmatpush1.msra.mxu0 0.0
    %2858 = vmatprep.subr.mxu0 0.0
    %2859 = vmatpush1.msra.mxu0 0.0
    %2860 = vmatprep.subr.mxu0 0.0
    %2861 = vmatpush1.msra.mxu0 0.0
    %2862 = vmatprep.subr.mxu0 0.0
    %2863 = vmatpush1.msra.mxu0 0.0
    %2864 = vmatprep.subr.mxu0 0.0
    %2865 = vmatpush1.msra.mxu0 0.0
    %2866 = vmatprep.subr.mxu0 0.0
    %2867 = vmatpush1.msra.mxu0 0.0
    %2868 = vmatprep.subr.mxu0 0.0
    %2869 = vmatpush1.msra.mxu0 0.0
    %2870 = vmatprep.mubr.f32.mxu0 0.0
    %2871 = vmatmul.mubr.f32.gmra.mrb[0].mxu0 %v2804
    %v2872 = vpop.f32.mrb[0].mxu0
    %v2873 = vadd.f32 %v1849, %v2872
    %v2874 = vpop.f32.mrb[0].mxu0
    %2875 = vdwg.mxu0
    %2876 = vmatprep.subr.mxu0 0.0
    %2877 = vmatpush1.msra.mxu0 %v1572
    %2878 = vmatprep.subr.mxu0 0.0
    %2879 = vmatpush1.msra.mxu0 %v1573
    %2880 = vmatprep.subr.mxu0 0.0
    %2881 = vmatpush1.msra.mxu0 %v1574
    %2882 = vmatprep.subr.mxu0 0.0
    %2883 = vmatpush1.msra.mxu0 %v1575
    %2884 = vmatprep.subr.mxu0 0.0
    %2885 = vmatpush1.msra.mxu0 0.0
    %2886 = vmatprep.subr.mxu0 0.0
    %2887 = vmatpush1.msra.mxu0 0.0
    %2888 = vmatprep.subr.mxu0 0.0
    %2889 = vmatpush1.msra.mxu0 0.0
    %2890 = vmatprep.subr.mxu0 0.0
    %2891 = vmatpush1.msra.mxu0 0.0
    %2892 = vmatprep.subr.mxu0 0.0
    %2893 = vmatpush1.msra.mxu0 0.0
    %2894 = vmatprep.subr.mxu0 0.0
    %2895 = vmatpush1.msra.mxu0 0.0
    %2896 = vmatprep.subr.mxu0 0.0
    %2897 = vmatpush1.msra.mxu0 0.0
    %2898 = vmatprep.subr.mxu0 0.0
    %2899 = vmatpush1.msra.mxu0 0.0
    %2900 = vmatprep.subr.mxu0 0.0
    %2901 = vmatpush1.msra.mxu0 0.0
    %2902 = vmatprep.subr.mxu0 0.0
    %2903 = vmatpush1.msra.mxu0 0.0
    %2904 = vmatprep.subr.mxu0 0.0
    %2905 = vmatpush1.msra.mxu0 0.0
    %2906 = vmatprep.subr.mxu0 0.0
    %2907 = vmatpush1.msra.mxu0 0.0
    %2908 = vmatprep.subr.mxu0 0.0
    %2909 = vmatpush1.msra.mxu0 0.0
    %2910 = vmatprep.subr.mxu0 0.0
    %2911 = vmatpush1.msra.mxu0 0.0
    %2912 = vmatprep.subr.mxu0 0.0
    %2913 = vmatpush1.msra.mxu0 0.0
    %2914 = vmatprep.subr.mxu0 0.0
    %2915 = vmatpush1.msra.mxu0 0.0
    %2916 = vmatprep.subr.mxu0 0.0
    %2917 = vmatpush1.msra.mxu0 0.0
    %2918 = vmatprep.subr.mxu0 0.0
    %2919 = vmatpush1.msra.mxu0 0.0
    %2920 = vmatprep.subr.mxu0 0.0
    %2921 = vmatpush1.msra.mxu0 0.0
    %2922 = vmatprep.subr.mxu0 0.0
    %2923 = vmatpush1.msra.mxu0 0.0
    %2924 = vmatprep.subr.mxu0 0.0
    %2925 = vmatpush1.msra.mxu0 0.0
    %2926 = vmatprep.subr.mxu0 0.0
    %2927 = vmatpush1.msra.mxu0 0.0
    %2928 = vmatprep.subr.mxu0 0.0
    %2929 = vmatpush1.msra.mxu0 0.0
    %2930 = vmatprep.subr.mxu0 0.0
    %2931 = vmatpush1.msra.mxu0 0.0
    %2932 = vmatprep.subr.mxu0 0.0
    %2933 = vmatpush1.msra.mxu0 0.0
    %2934 = vmatprep.subr.mxu0 0.0
    %2935 = vmatpush1.msra.mxu0 0.0
    %2936 = vmatprep.subr.mxu0 0.0
    %2937 = vmatpush1.msra.mxu0 0.0
    %2938 = vmatprep.subr.mxu0 0.0
    %2939 = vmatpush1.msra.mxu0 0.0
    %2940 = vmatprep.mubr.f32.mxu0 0.0
    %2941 = vmatmul.mubr.f32.gmra.mrb[0].mxu0 %v2804
    %v2942 = vpop.f32.mrb[0].mxu0
    %v2943 = vadd.f32 %v1925, %v2942
    %v2944 = vpop.f32.mrb[0].mxu0
    %2945 = vdwg.mxu0
    %2946 = vmatprep.subr.mxu0 0.0
    %2947 = vmatpush1.msra.mxu0 %v1577
    %2948 = vmatprep.subr.mxu0 0.0
    %2949 = vmatpush1.msra.mxu0 %v1578
    %2950 = vmatprep.subr.mxu0 0.0
    %2951 = vmatpush1.msra.mxu0 %v1579
    %2952 = vmatprep.subr.mxu0 0.0
    %2953 = vmatpush1.msra.mxu0 %v1580
    %2954 = vmatprep.subr.mxu0 0.0
    %2955 = vmatpush1.msra.mxu0 0.0
    %2956 = vmatprep.subr.mxu0 0.0
    %2957 = vmatpush1.msra.mxu0 0.0
    %2958 = vmatprep.subr.mxu0 0.0
    %2959 = vmatpush1.msra.mxu0 0.0
    %2960 = vmatprep.subr.mxu0 0.0
    %2961 = vmatpush1.msra.mxu0 0.0
    %2962 = vmatprep.subr.mxu0 0.0
    %2963 = vmatpush1.msra.mxu0 0.0
    %2964 = vmatprep.subr.mxu0 0.0
    %2965 = vmatpush1.msra.mxu0 0.0
    %2966 = vmatprep.subr.mxu0 0.0
    %2967 = vmatpush1.msra.mxu0 0.0
    %2968 = vmatprep.subr.mxu0 0.0
    %2969 = vmatpush1.msra.mxu0 0.0
    %2970 = vmatprep.subr.mxu0 0.0
    %2971 = vmatpush1.msra.mxu0 0.0
    %2972 = vmatprep.subr.mxu0 0.0
    %2973 = vmatpush1.msra.mxu0 0.0
    %2974 = vmatprep.subr.mxu0 0.0
    %2975 = vmatpush1.msra.mxu0 0.0
    %2976 = vmatprep.subr.mxu0 0.0
    %2977 = vmatpush1.msra.mxu0 0.0
    %2978 = vmatprep.subr.mxu0 0.0
    %2979 = vmatpush1.msra.mxu0 0.0
    %2980 = vmatprep.subr.mxu0 0.0
    %2981 = vmatpush1.msra.mxu0 0.0
    %2982 = vmatprep.subr.mxu0 0.0
    %2983 = vmatpush1.msra.mxu0 0.0
    %2984 = vmatprep.subr.mxu0 0.0
    %2985 = vmatpush1.msra.mxu0 0.0
    %2986 = vmatprep.subr.mxu0 0.0
    %2987 = vmatpush1.msra.mxu0 0.0
    %2988 = vmatprep.subr.mxu0 0.0
    %2989 = vmatpush1.msra.mxu0 0.0
    %2990 = vmatprep.subr.mxu0 0.0
    %2991 = vmatpush1.msra.mxu0 0.0
    %2992 = vmatprep.subr.mxu0 0.0
    %2993 = vmatpush1.msra.mxu0 0.0
    %2994 = vmatprep.subr.mxu0 0.0
    %2995 = vmatpush1.msra.mxu0 0.0
    %2996 = vmatprep.subr.mxu0 0.0
    %2997 = vmatpush1.msra.mxu0 0.0
    %2998 = vmatprep.subr.mxu0 0.0
    %2999 = vmatpush1.msra.mxu0 0.0
    %3000 = vmatprep.subr.mxu0 0.0
    %3001 = vmatpush1.msra.mxu0 0.0
    %3002 = vmatprep.subr.mxu0 0.0
    %3003 = vmatpush1.msra.mxu0 0.0
    %3004 = vmatprep.subr.mxu0 0.0
    %3005 = vmatpush1.msra.mxu0 0.0
    %3006 = vmatprep.subr.mxu0 0.0
    %3007 = vmatpush1.msra.mxu0 0.0
    %3008 = vmatprep.subr.mxu0 0.0
    %3009 = vmatpush1.msra.mxu0 0.0
    %3010 = vmatprep.mubr.f32.mxu0 0.0
    %3011 = vmatmul.mubr.f32.gmra.mrb[0].mxu0 %v2804
    %v3012 = vpop.f32.mrb[0].mxu0
    %v3013 = vadd.f32 %v2001, %v3012
    %v3014 = vpop.f32.mrb[0].mxu0
    %3015 = vdwg.mxu0
    %v3016 = vadd.f32 %v1085, %v2873
    %v3017 = vxor.u32 %v3016, 2147483648
    %v3018 = vmul.f32 %v3017, 1.442695
    %v3019 = vpow.pop %v3018
    %v3020 = vadd.f32 %v3019, 1.0
    %v3021 = vrcp.pop %v3020
    %v3022 = vmul.f32 1.0, %v3021
    %v3023 = vadd.f32 %v1317, %v2943
    %v3024 = vxor.u32 %v3023, 2147483648
    %v3025 = vmul.f32 %v3024, 1.442695
    %v3026 = vpow.pop %v3025
    %v3027 = vadd.f32 %v3026, 1.0
    %v3028 = vrcp.pop %v3027
    %v3029 = vmul.f32 1.0, %v3028
    %v3030 = vmul.f32 %v3022, %v3013
    %v3031 = vadd.f32 %v1549, %v3030
    %v3032 = vtanh.pop %v3031
    %v3033 = vsub.f32 1.0, %v3029
    %v3034 = vmul.f32 %v3033, %v3032
    %v3035 = vmul.f32 %v3029, %v2564
    %v3036 = vadd.f32 %v3034, %v3035
    %s3037 = scalar_lea.vmem [#allocation11], 16
    %3038 = vst.msk [vmem:[%s3037] sm:$0xff] %vm1598, %v2802
    %s3039 = scalar_lea.vmem [#allocation12], 40
    %3040 = vst.msk [vmem:[%s3039] sm:$0xff] %vm1598, %v3036
    %v3042 = vsel %vm1598, %v2802, 0
    %3044 = vmatprep.subr.mxu0 0.0
    %3045 = vmatpush1.msra.mxu0 %v1552
    %3046 = vmatprep.subr.mxu0 0.0
    %3047 = vmatpush1.msra.mxu0 %v1553
    %3048 = vmatprep.subr.mxu0 0.0
    %3049 = vmatpush1.msra.mxu0 %v1554
    %3050 = vmatprep.subr.mxu0 0.0
    %3051 = vmatpush1.msra.mxu0 %v1555
    %3052 = vmatprep.subr.mxu0 0.0
    %3053 = vmatpush1.msra.mxu0 0.0
    %3054 = vmatprep.subr.mxu0 0.0
    %3055 = vmatpush1.msra.mxu0 0.0
    %3056 = vmatprep.subr.mxu0 0.0
    %3057 = vmatpush1.msra.mxu0 0.0
    %3058 = vmatprep.subr.mxu0 0.0
    %3059 = vmatpush1.msra.mxu0 0.0
    %3060 = vmatprep.subr.mxu0 0.0
    %3061 = vmatpush1.msra.mxu0 0.0
    %3062 = vmatprep.subr.mxu0 0.0
    %3063 = vmatpush1.msra.mxu0 0.0
    %3064 = vmatprep.subr.mxu0 0.0
    %3065 = vmatpush1.msra.mxu0 0.0
    %3066 = vmatprep.subr.mxu0 0.0
    %3067 = vmatpush1.msra.mxu0 0.0
    %3068 = vmatprep.subr.mxu0 0.0
    %3069 = vmatpush1.msra.mxu0 0.0
    %3070 = vmatprep.subr.mxu0 0.0
    %3071 = vmatpush1.msra.mxu0 0.0
    %3072 = vmatprep.subr.mxu0 0.0
    %3073 = vmatpush1.msra.mxu0 0.0
    %3074 = vmatprep.subr.mxu0 0.0
    %3075 = vmatpush1.msra.mxu0 0.0
    %3076 = vmatprep.subr.mxu0 0.0
    %3077 = vmatpush1.msra.mxu0 0.0
    %3078 = vmatprep.subr.mxu0 0.0
    %3079 = vmatpush1.msra.mxu0 0.0
    %3080 = vmatprep.subr.mxu0 0.0
    %3081 = vmatpush1.msra.mxu0 0.0
    %3082 = vmatprep.subr.mxu0 0.0
    %3083 = vmatpush1.msra.mxu0 0.0
    %3084 = vmatprep.subr.mxu0 0.0
    %3085 = vmatpush1.msra.mxu0 0.0
    %3086 = vmatprep.subr.mxu0 0.0
    %3087 = vmatpush1.msra.mxu0 0.0
    %3088 = vmatprep.subr.mxu0 0.0
    %3089 = vmatpush1.msra.mxu0 0.0
    %3090 = vmatprep.subr.mxu0 0.0
    %3091 = vmatpush1.msra.mxu0 0.0
    %3092 = vmatprep.subr.mxu0 0.0
    %3093 = vmatpush1.msra.mxu0 0.0
    %3094 = vmatprep.subr.mxu0 0.0
    %3095 = vmatpush1.msra.mxu0 0.0
    %3096 = vmatprep.subr.mxu0 0.0
    %3097 = vmatpush1.msra.mxu0 0.0
    %3098 = vmatprep.subr.mxu0 0.0
    %3099 = vmatpush1.msra.mxu0 0.0
    %3100 = vmatprep.subr.mxu0 0.0
    %3101 = vmatpush1.msra.mxu0 0.0
    %3102 = vmatprep.subr.mxu0 0.0
    %3103 = vmatpush1.msra.mxu0 0.0
    %3104 = vmatprep.subr.mxu0 0.0
    %3105 = vmatpush1.msra.mxu0 0.0
    %3106 = vmatprep.subr.mxu0 0.0
    %3107 = vmatpush1.msra.mxu0 0.0
    %3108 = vmatprep.mubr.f32.mxu0 0.0
    %3109 = vmatmul.mubr.f32.gmra.mrb[0].mxu0 %v3042
    %v3110 = vpop.f32.mrb[0].mxu0
    %v3111 = vadd.f32 %v1596, %v3110
    %v3112 = vpop.f32.mrb[0].mxu0
    %3113 = vdwg.mxu0
    %3114 = vmatprep.subr.mxu0 0.0
    %3115 = vmatpush1.msra.mxu0 %v1557
    %3116 = vmatprep.subr.mxu0 0.0
    %3117 = vmatpush1.msra.mxu0 %v1558
    %3118 = vmatprep.subr.mxu0 0.0
    %3119 = vmatpush1.msra.mxu0 %v1559
    %3120 = vmatprep.subr.mxu0 0.0
    %3121 = vmatpush1.msra.mxu0 %v1560
    %3122 = vmatprep.subr.mxu0 0.0
    %3123 = vmatpush1.msra.mxu0 0.0
    %3124 = vmatprep.subr.mxu0 0.0
    %3125 = vmatpush1.msra.mxu0 0.0
    %3126 = vmatprep.subr.mxu0 0.0
    %3127 = vmatpush1.msra.mxu0 0.0
    %3128 = vmatprep.subr.mxu0 0.0
    %3129 = vmatpush1.msra.mxu0 0.0
    %3130 = vmatprep.subr.mxu0 0.0
    %3131 = vmatpush1.msra.mxu0 0.0
    %3132 = vmatprep.subr.mxu0 0.0
    %3133 = vmatpush1.msra.mxu0 0.0
    %3134 = vmatprep.subr.mxu0 0.0
    %3135 = vmatpush1.msra.mxu0 0.0
    %3136 = vmatprep.subr.mxu0 0.0
    %3137 = vmatpush1.msra.mxu0 0.0
    %3138 = vmatprep.subr.mxu0 0.0
    %3139 = vmatpush1.msra.mxu0 0.0
    %3140 = vmatprep.subr.mxu0 0.0
    %3141 = vmatpush1.msra.mxu0 0.0
    %3142 = vmatprep.subr.mxu0 0.0
    %3143 = vmatpush1.msra.mxu0 0.0
    %3144 = vmatprep.subr.mxu0 0.0
    %3145 = vmatpush1.msra.mxu0 0.0
    %3146 = vmatprep.subr.mxu0 0.0
    %3147 = vmatpush1.msra.mxu0 0.0
    %3148 = vmatprep.subr.mxu0 0.0
    %3149 = vmatpush1.msra.mxu0 0.0
    %3150 = vmatprep.subr.mxu0 0.0
    %3151 = vmatpush1.msra.mxu0 0.0
    %3152 = vmatprep.subr.mxu0 0.0
    %3153 = vmatpush1.msra.mxu0 0.0
    %3154 = vmatprep.subr.mxu0 0.0
    %3155 = vmatpush1.msra.mxu0 0.0
    %3156 = vmatprep.subr.mxu0 0.0
    %3157 = vmatpush1.msra.mxu0 0.0
    %3158 = vmatprep.subr.mxu0 0.0
    %3159 = vmatpush1.msra.mxu0 0.0
    %3160 = vmatprep.subr.mxu0 0.0
    %3161 = vmatpush1.msra.mxu0 0.0
    %3162 = vmatprep.subr.mxu0 0.0
    %3163 = vmatpush1.msra.mxu0 0.0
    %3164 = vmatprep.subr.mxu0 0.0
    %3165 = vmatpush1.msra.mxu0 0.0
    %3166 = vmatprep.subr.mxu0 0.0
    %3167 = vmatpush1.msra.mxu0 0.0
    %3168 = vmatprep.subr.mxu0 0.0
    %3169 = vmatpush1.msra.mxu0 0.0
    %3170 = vmatprep.subr.mxu0 0.0
    %3171 = vmatpush1.msra.mxu0 0.0
    %3172 = vmatprep.subr.mxu0 0.0
    %3173 = vmatpush1.msra.mxu0 0.0
    %3174 = vmatprep.subr.mxu0 0.0
    %3175 = vmatpush1.msra.mxu0 0.0
    %3176 = vmatprep.subr.mxu0 0.0
    %3177 = vmatpush1.msra.mxu0 0.0
    %3178 = vmatprep.mubr.f32.mxu0 0.0
    %3179 = vmatmul.mubr.f32.gmra.mrb[0].mxu0 %v3042
    %v3180 = vpop.f32.mrb[0].mxu0
    %v3181 = vadd.f32 %v1676, %v3180
    %v3182 = vpop.f32.mrb[0].mxu0
    %3183 = vdwg.mxu0
    %3184 = vmatprep.subr.mxu0 0.0
    %3185 = vmatpush1.msra.mxu0 %v1562
    %3186 = vmatprep.subr.mxu0 0.0
    %3187 = vmatpush1.msra.mxu0 %v1563
    %3188 = vmatprep.subr.mxu0 0.0
    %3189 = vmatpush1.msra.mxu0 %v1564
    %3190 = vmatprep.subr.mxu0 0.0
    %3191 = vmatpush1.msra.mxu0 %v1565
    %3192 = vmatprep.subr.mxu0 0.0
    %3193 = vmatpush1.msra.mxu0 0.0
    %3194 = vmatprep.subr.mxu0 0.0
    %3195 = vmatpush1.msra.mxu0 0.0
    %3196 = vmatprep.subr.mxu0 0.0
    %3197 = vmatpush1.msra.mxu0 0.0
    %3198 = vmatprep.subr.mxu0 0.0
    %3199 = vmatpush1.msra.mxu0 0.0
    %3200 = vmatprep.subr.mxu0 0.0
    %3201 = vmatpush1.msra.mxu0 0.0
    %3202 = vmatprep.subr.mxu0 0.0
    %3203 = vmatpush1.msra.mxu0 0.0
    %3204 = vmatprep.subr.mxu0 0.0
    %3205 = vmatpush1.msra.mxu0 0.0
    %3206 = vmatprep.subr.mxu0 0.0
    %3207 = vmatpush1.msra.mxu0 0.0
    %3208 = vmatprep.subr.mxu0 0.0
    %3209 = vmatpush1.msra.mxu0 0.0
    %3210 = vmatprep.subr.mxu0 0.0
    %3211 = vmatpush1.msra.mxu0 0.0
    %3212 = vmatprep.subr.mxu0 0.0
    %3213 = vmatpush1.msra.mxu0 0.0
    %3214 = vmatprep.subr.mxu0 0.0
    %3215 = vmatpush1.msra.mxu0 0.0
    %3216 = vmatprep.subr.mxu0 0.0
    %3217 = vmatpush1.msra.mxu0 0.0
    %3218 = vmatprep.subr.mxu0 0.0
    %3219 = vmatpush1.msra.mxu0 0.0
    %3220 = vmatprep.subr.mxu0 0.0
    %3221 = vmatpush1.msra.mxu0 0.0
    %3222 = vmatprep.subr.mxu0 0.0
    %3223 = vmatpush1.msra.mxu0 0.0
    %3224 = vmatprep.subr.mxu0 0.0
    %3225 = vmatpush1.msra.mxu0 0.0
    %3226 = vmatprep.subr.mxu0 0.0
    %3227 = vmatpush1.msra.mxu0 0.0
    %3228 = vmatprep.subr.mxu0 0.0
    %3229 = vmatpush1.msra.mxu0 0.0
    %3230 = vmatprep.subr.mxu0 0.0
    %3231 = vmatpush1.msra.mxu0 0.0
    %3232 = vmatprep.subr.mxu0 0.0
    %3233 = vmatpush1.msra.mxu0 0.0
    %3234 = vmatprep.subr.mxu0 0.0
    %3235 = vmatpush1.msra.mxu0 0.0
    %3236 = vmatprep.subr.mxu0 0.0
    %3237 = vmatpush1.msra.mxu0 0.0
    %3238 = vmatprep.subr.mxu0 0.0
    %3239 = vmatpush1.msra.mxu0 0.0
    %3240 = vmatprep.subr.mxu0 0.0
    %3241 = vmatpush1.msra.mxu0 0.0
    %3242 = vmatprep.subr.mxu0 0.0
    %3243 = vmatpush1.msra.mxu0 0.0
    %3244 = vmatprep.subr.mxu0 0.0
    %3245 = vmatpush1.msra.mxu0 0.0
    %3246 = vmatprep.subr.mxu0 0.0
    %3247 = vmatpush1.msra.mxu0 0.0
    %3248 = vmatprep.mubr.f32.mxu0 0.0
    %3249 = vmatmul.mubr.f32.gmra.mrb[0].mxu0 %v3042
    %v3250 = vpop.f32.mrb[0].mxu0
    %v3251 = vadd.f32 %v1752, %v3250
    %v3252 = vpop.f32.mrb[0].mxu0
    %3253 = vdwg.mxu0
    %v3254 = vadd.f32 %v387, %v3111
    %v3255 = vxor.u32 %v3254, 2147483648
    %v3256 = vmul.f32 %v3255, 1.442695
    %v3257 = vpow.pop %v3256
    %v3258 = vadd.f32 %v3257, 1.0
    %v3259 = vrcp.pop %v3258
    %v3260 = vmul.f32 1.0, %v3259
    %v3261 = vadd.f32 %v619, %v3181
    %v3262 = vxor.u32 %v3261, 2147483648
    %v3263 = vmul.f32 %v3262, 1.442695
    %v3264 = vpow.pop %v3263
    %v3265 = vadd.f32 %v3264, 1.0
    %v3266 = vrcp.pop %v3265
    %v3267 = vmul.f32 1.0, %v3266
    %v3268 = vmul.f32 %v3260, %v3251
    %v3269 = vadd.f32 %v851, %v3268
    %v3270 = vtanh.pop %v3269
    %v3271 = vsub.f32 1.0, %v3267
    %v3272 = vmul.f32 %v3271, %v3270
    %v3273 = vmul.f32 %v3267, %v2802
    %v3274 = vadd.f32 %v3272, %v3273
    %v3276 = vsel %vm1598, %v3036, 0
    %3278 = vmatprep.subr.mxu0 0.0
    %3279 = vmatpush1.msra.mxu0 %v1567
    %3280 = vmatprep.subr.mxu0 0.0
    %3281 = vmatpush1.msra.mxu0 %v1568
    %3282 = vmatprep.subr.mxu0 0.0
    %3283 = vmatpush1.msra.mxu0 %v1569
    %3284 = vmatprep.subr.mxu0 0.0
    %3285 = vmatpush1.msra.mxu0 %v1570
    %3286 = vmatprep.subr.mxu0 0.0
    %3287 = vmatpush1.msra.mxu0 0.0
    %3288 = vmatprep.subr.mxu0 0.0
    %3289 = vmatpush1.msra.mxu0 0.0
    %3290 = vmatprep.subr.mxu0 0.0
    %3291 = vmatpush1.msra.mxu0 0.0
    %3292 = vmatprep.subr.mxu0 0.0
    %3293 = vmatpush1.msra.mxu0 0.0
    %3294 = vmatprep.subr.mxu0 0.0
    %3295 = vmatpush1.msra.mxu0 0.0
    %3296 = vmatprep.subr.mxu0 0.0
    %3297 = vmatpush1.msra.mxu0 0.0
    %3298 = vmatprep.subr.mxu0 0.0
    %3299 = vmatpush1.msra.mxu0 0.0
    %3300 = vmatprep.subr.mxu0 0.0
    %3301 = vmatpush1.msra.mxu0 0.0
    %3302 = vmatprep.subr.mxu0 0.0
    %3303 = vmatpush1.msra.mxu0 0.0
    %3304 = vmatprep.subr.mxu0 0.0
    %3305 = vmatpush1.msra.mxu0 0.0
    %3306 = vmatprep.subr.mxu0 0.0
    %3307 = vmatpush1.msra.mxu0 0.0
    %3308 = vmatprep.subr.mxu0 0.0
    %3309 = vmatpush1.msra.mxu0 0.0
    %3310 = vmatprep.subr.mxu0 0.0
    %3311 = vmatpush1.msra.mxu0 0.0
    %3312 = vmatprep.subr.mxu0 0.0
    %3313 = vmatpush1.msra.mxu0 0.0
    %3314 = vmatprep.subr.mxu0 0.0
    %3315 = vmatpush1.msra.mxu0 0.0
    %3316 = vmatprep.subr.mxu0 0.0
    %3317 = vmatpush1.msra.mxu0 0.0
    %3318 = vmatprep.subr.mxu0 0.0
    %3319 = vmatpush1.msra.mxu0 0.0
    %3320 = vmatprep.subr.mxu0 0.0
    %3321 = vmatpush1.msra.mxu0 0.0
    %3322 = vmatprep.subr.mxu0 0.0
    %3323 = vmatpush1.msra.mxu0 0.0
    %3324 = vmatprep.subr.mxu0 0.0
    %3325 = vmatpush1.msra.mxu0 0.0
    %3326 = vmatprep.subr.mxu0 0.0
    %3327 = vmatpush1.msra.mxu0 0.0
    %3328 = vmatprep.subr.mxu0 0.0
    %3329 = vmatpush1.msra.mxu0 0.0
    %3330 = vmatprep.subr.mxu0 0.0
    %3331 = vmatpush1.msra.mxu0 0.0
    %3332 = vmatprep.subr.mxu0 0.0
    %3333 = vmatpush1.msra.mxu0 0.0
    %3334 = vmatprep.subr.mxu0 0.0
    %3335 = vmatpush1.msra.mxu0 0.0
    %3336 = vmatprep.subr.mxu0 0.0
    %3337 = vmatpush1.msra.mxu0 0.0
    %3338 = vmatprep.subr.mxu0 0.0
    %3339 = vmatpush1.msra.mxu0 0.0
    %3340 = vmatprep.subr.mxu0 0.0
    %3341 = vmatpush1.msra.mxu0 0.0
    %3342 = vmatprep.mubr.f32.mxu0 0.0
    %3343 = vmatmul.mubr.f32.gmra.mrb[0].mxu0 %v3276
    %v3344 = vpop.f32.mrb[0].mxu0
    %v3345 = vadd.f32 %v1849, %v3344
    %v3346 = vpop.f32.mrb[0].mxu0
    %3347 = vdwg.mxu0
    %3348 = vmatprep.subr.mxu0 0.0
    %3349 = vmatpush1.msra.mxu0 %v1572
    %3350 = vmatprep.subr.mxu0 0.0
    %3351 = vmatpush1.msra.mxu0 %v1573
    %3352 = vmatprep.subr.mxu0 0.0
    %3353 = vmatpush1.msra.mxu0 %v1574
    %3354 = vmatprep.subr.mxu0 0.0
    %3355 = vmatpush1.msra.mxu0 %v1575
    %3356 = vmatprep.subr.mxu0 0.0
    %3357 = vmatpush1.msra.mxu0 0.0
    %3358 = vmatprep.subr.mxu0 0.0
    %3359 = vmatpush1.msra.mxu0 0.0
    %3360 = vmatprep.subr.mxu0 0.0
    %3361 = vmatpush1.msra.mxu0 0.0
    %3362 = vmatprep.subr.mxu0 0.0
    %3363 = vmatpush1.msra.mxu0 0.0
    %3364 = vmatprep.subr.mxu0 0.0
    %3365 = vmatpush1.msra.mxu0 0.0
    %3366 = vmatprep.subr.mxu0 0.0
    %3367 = vmatpush1.msra.mxu0 0.0
    %3368 = vmatprep.subr.mxu0 0.0
    %3369 = vmatpush1.msra.mxu0 0.0
    %3370 = vmatprep.subr.mxu0 0.0
    %3371 = vmatpush1.msra.mxu0 0.0
    %3372 = vmatprep.subr.mxu0 0.0
    %3373 = vmatpush1.msra.mxu0 0.0
    %3374 = vmatprep.subr.mxu0 0.0
    %3375 = vmatpush1.msra.mxu0 0.0
    %3376 = vmatprep.subr.mxu0 0.0
    %3377 = vmatpush1.msra.mxu0 0.0
    %3378 = vmatprep.subr.mxu0 0.0
    %3379 = vmatpush1.msra.mxu0 0.0
    %3380 = vmatprep.subr.mxu0 0.0
    %3381 = vmatpush1.msra.mxu0 0.0
    %3382 = vmatprep.subr.mxu0 0.0
    %3383 = vmatpush1.msra.mxu0 0.0
    %3384 = vmatprep.subr.mxu0 0.0
    %3385 = vmatpush1.msra.mxu0 0.0
    %3386 = vmatprep.subr.mxu0 0.0
    %3387 = vmatpush1.msra.mxu0 0.0
    %3388 = vmatprep.subr.mxu0 0.0
    %3389 = vmatpush1.msra.mxu0 0.0
    %3390 = vmatprep.subr.mxu0 0.0
    %3391 = vmatpush1.msra.mxu0 0.0
    %3392 = vmatprep.subr.mxu0 0.0
    %3393 = vmatpush1.msra.mxu0 0.0
    %3394 = vmatprep.subr.mxu0 0.0
    %3395 = vmatpush1.msra.mxu0 0.0
    %3396 = vmatprep.subr.mxu0 0.0
    %3397 = vmatpush1.msra.mxu0 0.0
    %3398 = vmatprep.subr.mxu0 0.0
    %3399 = vmatpush1.msra.mxu0 0.0
    %3400 = vmatprep.subr.mxu0 0.0
    %3401 = vmatpush1.msra.mxu0 0.0
    %3402 = vmatprep.subr.mxu0 0.0
    %3403 = vmatpush1.msra.mxu0 0.0
    %3404 = vmatprep.subr.mxu0 0.0
    %3405 = vmatpush1.msra.mxu0 0.0
    %3406 = vmatprep.subr.mxu0 0.0
    %3407 = vmatpush1.msra.mxu0 0.0
    %3408 = vmatprep.subr.mxu0 0.0
    %3409 = vmatpush1.msra.mxu0 0.0
    %3410 = vmatprep.subr.mxu0 0.0
    %3411 = vmatpush1.msra.mxu0 0.0
    %3412 = vmatprep.mubr.f32.mxu0 0.0
    %3413 = vmatmul.mubr.f32.gmra.mrb[0].mxu0 %v3276
    %v3414 = vpop.f32.mrb[0].mxu0
    %v3415 = vadd.f32 %v1925, %v3414
    %v3416 = vpop.f32.mrb[0].mxu0
    %3417 = vdwg.mxu0
    %3418 = vmatprep.subr.mxu0 0.0
    %3419 = vmatpush1.msra.mxu0 %v1577
    %3420 = vmatprep.subr.mxu0 0.0
    %3421 = vmatpush1.msra.mxu0 %v1578
    %3422 = vmatprep.subr.mxu0 0.0
    %3423 = vmatpush1.msra.mxu0 %v1579
    %3424 = vmatprep.subr.mxu0 0.0
    %3425 = vmatpush1.msra.mxu0 %v1580
    %3426 = vmatprep.subr.mxu0 0.0
    %3427 = vmatpush1.msra.mxu0 0.0
    %3428 = vmatprep.subr.mxu0 0.0
    %3429 = vmatpush1.msra.mxu0 0.0
    %3430 = vmatprep.subr.mxu0 0.0
    %3431 = vmatpush1.msra.mxu0 0.0
    %3432 = vmatprep.subr.mxu0 0.0
    %3433 = vmatpush1.msra.mxu0 0.0
    %3434 = vmatprep.subr.mxu0 0.0
    %3435 = vmatpush1.msra.mxu0 0.0
    %3436 = vmatprep.subr.mxu0 0.0
    %3437 = vmatpush1.msra.mxu0 0.0
    %3438 = vmatprep.subr.mxu0 0.0
    %3439 = vmatpush1.msra.mxu0 0.0
    %3440 = vmatprep.subr.mxu0 0.0
    %3441 = vmatpush1.msra.mxu0 0.0
    %3442 = vmatprep.subr.mxu0 0.0
    %3443 = vmatpush1.msra.mxu0 0.0
    %3444 = vmatprep.subr.mxu0 0.0
    %3445 = vmatpush1.msra.mxu0 0.0
    %3446 = vmatprep.subr.mxu0 0.0
    %3447 = vmatpush1.msra.mxu0 0.0
    %3448 = vmatprep.subr.mxu0 0.0
    %3449 = vmatpush1.msra.mxu0 0.0
    %3450 = vmatprep.subr.mxu0 0.0
    %3451 = vmatpush1.msra.mxu0 0.0
    %3452 = vmatprep.subr.mxu0 0.0
    %3453 = vmatpush1.msra.mxu0 0.0
    %3454 = vmatprep.subr.mxu0 0.0
    %3455 = vmatpush1.msra.mxu0 0.0
    %3456 = vmatprep.subr.mxu0 0.0
    %3457 = vmatpush1.msra.mxu0 0.0
    %3458 = vmatprep.subr.mxu0 0.0
    %3459 = vmatpush1.msra.mxu0 0.0
    %3460 = vmatprep.subr.mxu0 0.0
    %3461 = vmatpush1.msra.mxu0 0.0
    %3462 = vmatprep.subr.mxu0 0.0
    %3463 = vmatpush1.msra.mxu0 0.0
    %3464 = vmatprep.subr.mxu0 0.0
    %3465 = vmatpush1.msra.mxu0 0.0
    %3466 = vmatprep.subr.mxu0 0.0
    %3467 = vmatpush1.msra.mxu0 0.0
    %3468 = vmatprep.subr.mxu0 0.0
    %3469 = vmatpush1.msra.mxu0 0.0
    %3470 = vmatprep.subr.mxu0 0.0
    %3471 = vmatpush1.msra.mxu0 0.0
    %3472 = vmatprep.subr.mxu0 0.0
    %3473 = vmatpush1.msra.mxu0 0.0
    %3474 = vmatprep.subr.mxu0 0.0
    %3475 = vmatpush1.msra.mxu0 0.0
    %3476 = vmatprep.subr.mxu0 0.0
    %3477 = vmatpush1.msra.mxu0 0.0
    %3478 = vmatprep.subr.mxu0 0.0
    %3479 = vmatpush1.msra.mxu0 0.0
    %3480 = vmatprep.subr.mxu0 0.0
    %3481 = vmatpush1.msra.mxu0 0.0
    %3482 = vmatprep.mubr.f32.mxu0 0.0
    %3483 = vmatmul.mubr.f32.gmra.mrb[0].mxu0 %v3276
    %v3484 = vpop.f32.mrb[0].mxu0
    %v3485 = vadd.f32 %v2001, %v3484
    %v3486 = vpop.f32.mrb[0].mxu0
    %3487 = vdwg.mxu0
    %v3488 = vadd.f32 %v1084, %v3345
    %v3489 = vxor.u32 %v3488, 2147483648
    %v3490 = vmul.f32 %v3489, 1.442695
    %v3491 = vpow.pop %v3490
    %v3492 = vadd.f32 %v3491, 1.0
    %v3493 = vrcp.pop %v3492
    %v3494 = vmul.f32 1.0, %v3493
    %v3495 = vadd.f32 %v1316, %v3415
    %v3496 = vxor.u32 %v3495, 2147483648
    %v3497 = vmul.f32 %v3496, 1.442695
    %v3498 = vpow.pop %v3497
    %v3499 = vadd.f32 %v3498, 1.0
    %v3500 = vrcp.pop %v3499
    %v3501 = vmul.f32 1.0, %v3500
    %v3502 = vmul.f32 %v3494, %v3485
    %v3503 = vadd.f32 %v1548, %v3502
    %v3504 = vtanh.pop %v3503
    %v3505 = vsub.f32 1.0, %v3501
    %v3506 = vmul.f32 %v3505, %v3504
    %v3507 = vmul.f32 %v3501, %v3036
    %v3508 = vadd.f32 %v3506, %v3507
    %s3509 = scalar_lea.vmem [#allocation11], 24
    %3510 = vst.msk [vmem:[%s3509] sm:$0xff] %vm1598, %v3274
    %s3511 = scalar_lea.vmem [#allocation12], 32
    %3512 = vst.msk [vmem:[%s3511] sm:$0xff] %vm1598, %v3508
    %v3514 = vsel %vm1598, %v3274, 0
    %3516 = vmatprep.subr.mxu0 0.0
    %3517 = vmatpush1.msra.mxu0 %v1552
    %3518 = vmatprep.subr.mxu0 0.0
    %3519 = vmatpush1.msra.mxu0 %v1553
    %3520 = vmatprep.subr.mxu0 0.0
    %3521 = vmatpush1.msra.mxu0 %v1554
    %3522 = vmatprep.subr.mxu0 0.0
    %3523 = vmatpush1.msra.mxu0 %v1555
    %3524 = vmatprep.subr.mxu0 0.0
    %3525 = vmatpush1.msra.mxu0 0.0
    %3526 = vmatprep.subr.mxu0 0.0
    %3527 = vmatpush1.msra.mxu0 0.0
    %3528 = vmatprep.subr.mxu0 0.0
    %3529 = vmatpush1.msra.mxu0 0.0
    %3530 = vmatprep.subr.mxu0 0.0
    %3531 = vmatpush1.msra.mxu0 0.0
    %3532 = vmatprep.subr.mxu0 0.0
    %3533 = vmatpush1.msra.mxu0 0.0
    %3534 = vmatprep.subr.mxu0 0.0
    %3535 = vmatpush1.msra.mxu0 0.0
    %3536 = vmatprep.subr.mxu0 0.0
    %3537 = vmatpush1.msra.mxu0 0.0
    %3538 = vmatprep.subr.mxu0 0.0
    %3539 = vmatpush1.msra.mxu0 0.0
    %3540 = vmatprep.subr.mxu0 0.0
    %3541 = vmatpush1.msra.mxu0 0.0
    %3542 = vmatprep.subr.mxu0 0.0
    %3543 = vmatpush1.msra.mxu0 0.0
    %3544 = vmatprep.subr.mxu0 0.0
    %3545 = vmatpush1.msra.mxu0 0.0
    %3546 = vmatprep.subr.mxu0 0.0
    %3547 = vmatpush1.msra.mxu0 0.0
    %3548 = vmatprep.subr.mxu0 0.0
    %3549 = vmatpush1.msra.mxu0 0.0
    %3550 = vmatprep.subr.mxu0 0.0
    %3551 = vmatpush1.msra.mxu0 0.0
    %3552 = vmatprep.subr.mxu0 0.0
    %3553 = vmatpush1.msra.mxu0 0.0
    %3554 = vmatprep.subr.mxu0 0.0
    %3555 = vmatpush1.msra.mxu0 0.0
    %3556 = vmatprep.subr.mxu0 0.0
    %3557 = vmatpush1.msra.mxu0 0.0
    %3558 = vmatprep.subr.mxu0 0.0
    %3559 = vmatpush1.msra.mxu0 0.0
    %3560 = vmatprep.subr.mxu0 0.0
    %3561 = vmatpush1.msra.mxu0 0.0
    %3562 = vmatprep.subr.mxu0 0.0
    %3563 = vmatpush1.msra.mxu0 0.0
    %3564 = vmatprep.subr.mxu0 0.0
    %3565 = vmatpush1.msra.mxu0 0.0
    %3566 = vmatprep.subr.mxu0 0.0
    %3567 = vmatpush1.msra.mxu0 0.0
    %3568 = vmatprep.subr.mxu0 0.0
    %3569 = vmatpush1.msra.mxu0 0.0
    %3570 = vmatprep.subr.mxu0 0.0
    %3571 = vmatpush1.msra.mxu0 0.0
    %3572 = vmatprep.subr.mxu0 0.0
    %3573 = vmatpush1.msra.mxu0 0.0
    %3574 = vmatprep.subr.mxu0 0.0
    %3575 = vmatpush1.msra.mxu0 0.0
    %3576 = vmatprep.subr.mxu0 0.0
    %3577 = vmatpush1.msra.mxu0 0.0
    %3578 = vmatprep.subr.mxu0 0.0
    %3579 = vmatpush1.msra.mxu0 0.0
    %3580 = vmatprep.mubr.f32.mxu0 0.0
    %3581 = vmatmul.mubr.f32.gmra.mrb[0].mxu0 %v3514
    %v3582 = vpop.f32.mrb[0].mxu0
    %v3583 = vadd.f32 %v1596, %v3582
    %v3584 = vpop.f32.mrb[0].mxu0
    %3585 = vdwg.mxu0
    %3586 = vmatprep.subr.mxu0 0.0
    %3587 = vmatpush1.msra.mxu0 %v1557
    %3588 = vmatprep.subr.mxu0 0.0
    %3589 = vmatpush1.msra.mxu0 %v1558
    %3590 = vmatprep.subr.mxu0 0.0
    %3591 = vmatpush1.msra.mxu0 %v1559
    %3592 = vmatprep.subr.mxu0 0.0
    %3593 = vmatpush1.msra.mxu0 %v1560
    %3594 = vmatprep.subr.mxu0 0.0
    %3595 = vmatpush1.msra.mxu0 0.0
    %3596 = vmatprep.subr.mxu0 0.0
    %3597 = vmatpush1.msra.mxu0 0.0
    %3598 = vmatprep.subr.mxu0 0.0
    %3599 = vmatpush1.msra.mxu0 0.0
    %3600 = vmatprep.subr.mxu0 0.0
    %3601 = vmatpush1.msra.mxu0 0.0
    %3602 = vmatprep.subr.mxu0 0.0
    %3603 = vmatpush1.msra.mxu0 0.0
    %3604 = vmatprep.subr.mxu0 0.0
    %3605 = vmatpush1.msra.mxu0 0.0
    %3606 = vmatprep.subr.mxu0 0.0
    %3607 = vmatpush1.msra.mxu0 0.0
    %3608 = vmatprep.subr.mxu0 0.0
    %3609 = vmatpush1.msra.mxu0 0.0
    %3610 = vmatprep.subr.mxu0 0.0
    %3611 = vmatpush1.msra.mxu0 0.0
    %3612 = vmatprep.subr.mxu0 0.0
    %3613 = vmatpush1.msra.mxu0 0.0
    %3614 = vmatprep.subr.mxu0 0.0
    %3615 = vmatpush1.msra.mxu0 0.0
    %3616 = vmatprep.subr.mxu0 0.0
    %3617 = vmatpush1.msra.mxu0 0.0
    %3618 = vmatprep.subr.mxu0 0.0
    %3619 = vmatpush1.msra.mxu0 0.0
    %3620 = vmatprep.subr.mxu0 0.0
    %3621 = vmatpush1.msra.mxu0 0.0
    %3622 = vmatprep.subr.mxu0 0.0
    %3623 = vmatpush1.msra.mxu0 0.0
    %3624 = vmatprep.subr.mxu0 0.0
    %3625 = vmatpush1.msra.mxu0 0.0
    %3626 = vmatprep.subr.mxu0 0.0
    %3627 = vmatpush1.msra.mxu0 0.0
    %3628 = vmatprep.subr.mxu0 0.0
    %3629 = vmatpush1.msra.mxu0 0.0
    %3630 = vmatprep.subr.mxu0 0.0
    %3631 = vmatpush1.msra.mxu0 0.0
    %3632 = vmatprep.subr.mxu0 0.0
    %3633 = vmatpush1.msra.mxu0 0.0
    %3634 = vmatprep.subr.mxu0 0.0
    %3635 = vmatpush1.msra.mxu0 0.0
    %3636 = vmatprep.subr.mxu0 0.0
    %3637 = vmatpush1.msra.mxu0 0.0
    %3638 = vmatprep.subr.mxu0 0.0
    %3639 = vmatpush1.msra.mxu0 0.0
    %3640 = vmatprep.subr.mxu0 0.0
    %3641 = vmatpush1.msra.mxu0 0.0
    %3642 = vmatprep.subr.mxu0 0.0
    %3643 = vmatpush1.msra.mxu0 0.0
    %3644 = vmatprep.subr.mxu0 0.0
    %3645 = vmatpush1.msra.mxu0 0.0
    %3646 = vmatprep.subr.mxu0 0.0
    %3647 = vmatpush1.msra.mxu0 0.0
    %3648 = vmatprep.subr.mxu0 0.0
    %3649 = vmatpush1.msra.mxu0 0.0
    %3650 = vmatprep.mubr.f32.mxu0 0.0
    %3651 = vmatmul.mubr.f32.gmra.mrb[0].mxu0 %v3514
    %v3652 = vpop.f32.mrb[0].mxu0
    %v3653 = vadd.f32 %v1676, %v3652
    %v3654 = vpop.f32.mrb[0].mxu0
    %3655 = vdwg.mxu0
    %3656 = vmatprep.subr.mxu0 0.0
    %3657 = vmatpush1.msra.mxu0 %v1562
    %3658 = vmatprep.subr.mxu0 0.0
    %3659 = vmatpush1.msra.mxu0 %v1563
    %3660 = vmatprep.subr.mxu0 0.0
    %3661 = vmatpush1.msra.mxu0 %v1564
    %3662 = vmatprep.subr.mxu0 0.0
    %3663 = vmatpush1.msra.mxu0 %v1565
    %3664 = vmatprep.subr.mxu0 0.0
    %3665 = vmatpush1.msra.mxu0 0.0
    %3666 = vmatprep.subr.mxu0 0.0
    %3667 = vmatpush1.msra.mxu0 0.0
    %3668 = vmatprep.subr.mxu0 0.0
    %3669 = vmatpush1.msra.mxu0 0.0
    %3670 = vmatprep.subr.mxu0 0.0
    %3671 = vmatpush1.msra.mxu0 0.0
    %3672 = vmatprep.subr.mxu0 0.0
    %3673 = vmatpush1.msra.mxu0 0.0
    %3674 = vmatprep.subr.mxu0 0.0
    %3675 = vmatpush1.msra.mxu0 0.0
    %3676 = vmatprep.subr.mxu0 0.0
    %3677 = vmatpush1.msra.mxu0 0.0
    %3678 = vmatprep.subr.mxu0 0.0
    %3679 = vmatpush1.msra.mxu0 0.0
    %3680 = vmatprep.subr.mxu0 0.0
    %3681 = vmatpush1.msra.mxu0 0.0
    %3682 = vmatprep.subr.mxu0 0.0
    %3683 = vmatpush1.msra.mxu0 0.0
    %3684 = vmatprep.subr.mxu0 0.0
    %3685 = vmatpush1.msra.mxu0 0.0
    %3686 = vmatprep.subr.mxu0 0.0
    %3687 = vmatpush1.msra.mxu0 0.0
    %3688 = vmatprep.subr.mxu0 0.0
    %3689 = vmatpush1.msra.mxu0 0.0
    %3690 = vmatprep.subr.mxu0 0.0
    %3691 = vmatpush1.msra.mxu0 0.0
    %3692 = vmatprep.subr.mxu0 0.0
    %3693 = vmatpush1.msra.mxu0 0.0
    %3694 = vmatprep.subr.mxu0 0.0
    %3695 = vmatpush1.msra.mxu0 0.0
    %3696 = vmatprep.subr.mxu0 0.0
    %3697 = vmatpush1.msra.mxu0 0.0
    %3698 = vmatprep.subr.mxu0 0.0
    %3699 = vmatpush1.msra.mxu0 0.0
    %3700 = vmatprep.subr.mxu0 0.0
    %3701 = vmatpush1.msra.mxu0 0.0
    %3702 = vmatprep.subr.mxu0 0.0
    %3703 = vmatpush1.msra.mxu0 0.0
    %3704 = vmatprep.subr.mxu0 0.0
    %3705 = vmatpush1.msra.mxu0 0.0
    %3706 = vmatprep.subr.mxu0 0.0
    %3707 = vmatpush1.msra.mxu0 0.0
    %3708 = vmatprep.subr.mxu0 0.0
    %3709 = vmatpush1.msra.mxu0 0.0
    %3710 = vmatprep.subr.mxu0 0.0
    %3711 = vmatpush1.msra.mxu0 0.0
    %3712 = vmatprep.subr.mxu0 0.0
    %3713 = vmatpush1.msra.mxu0 0.0
    %3714 = vmatprep.subr.mxu0 0.0
    %3715 = vmatpush1.msra.mxu0 0.0
    %3716 = vmatprep.subr.mxu0 0.0
    %3717 = vmatpush1.msra.mxu0 0.0
    %3718 = vmatprep.subr.mxu0 0.0
    %3719 = vmatpush1.msra.mxu0 0.0
    %3720 = vmatprep.mubr.f32.mxu0 0.0
    %3721 = vmatmul.mubr.f32.gmra.mrb[0].mxu0 %v3514
    %v3722 = vpop.f32.mrb[0].mxu0
    %v3723 = vadd.f32 %v1752, %v3722
    %v3724 = vpop.f32.mrb[0].mxu0
    %3725 = vdwg.mxu0
    %v3726 = vadd.f32 %v388, %v3583
    %v3727 = vxor.u32 %v3726, 2147483648
    %v3728 = vmul.f32 %v3727, 1.442695
    %v3729 = vpow.pop %v3728
    %v3730 = vadd.f32 %v3729, 1.0
    %v3731 = vrcp.pop %v3730
    %v3732 = vmul.f32 1.0, %v3731
    %v3733 = vadd.f32 %v620, %v3653
    %v3734 = vxor.u32 %v3733, 2147483648
    %v3735 = vmul.f32 %v3734, 1.442695
    %v3736 = vpow.pop %v3735
    %v3737 = vadd.f32 %v3736, 1.0
    %v3738 = vrcp.pop %v3737
    %v3739 = vmul.f32 1.0, %v3738
    %v3740 = vmul.f32 %v3732, %v3723
    %v3741 = vadd.f32 %v852, %v3740
    %v3742 = vtanh.pop %v3741
    %v3743 = vsub.f32 1.0, %v3739
    %v3744 = vmul.f32 %v3743, %v3742
    %v3745 = vmul.f32 %v3739, %v3274
    %v3746 = vadd.f32 %v3744, %v3745
    %v3748 = vsel %vm1598, %v3508, 0
    %3750 = vmatprep.subr.mxu0 0.0
    %3751 = vmatpush1.msra.mxu0 %v1567
    %3752 = vmatprep.subr.mxu0 0.0
    %3753 = vmatpush1.msra.mxu0 %v1568
    %3754 = vmatprep.subr.mxu0 0.0
    %3755 = vmatpush1.msra.mxu0 %v1569
    %3756 = vmatprep.subr.mxu0 0.0
    %3757 = vmatpush1.msra.mxu0 %v1570
    %3758 = vmatprep.subr.mxu0 0.0
    %3759 = vmatpush1.msra.mxu0 0.0
    %3760 = vmatprep.subr.mxu0 0.0
    %3761 = vmatpush1.msra.mxu0 0.0
    %3762 = vmatprep.subr.mxu0 0.0
    %3763 = vmatpush1.msra.mxu0 0.0
    %3764 = vmatprep.subr.mxu0 0.0
    %3765 = vmatpush1.msra.mxu0 0.0
    %3766 = vmatprep.subr.mxu0 0.0
    %3767 = vmatpush1.msra.mxu0 0.0
    %3768 = vmatprep.subr.mxu0 0.0
    %3769 = vmatpush1.msra.mxu0 0.0
    %3770 = vmatprep.subr.mxu0 0.0
    %3771 = vmatpush1.msra.mxu0 0.0
    %3772 = vmatprep.subr.mxu0 0.0
    %3773 = vmatpush1.msra.mxu0 0.0
    %3774 = vmatprep.subr.mxu0 0.0
    %3775 = vmatpush1.msra.mxu0 0.0
    %3776 = vmatprep.subr.mxu0 0.0
    %3777 = vmatpush1.msra.mxu0 0.0
    %3778 = vmatprep.subr.mxu0 0.0
    %3779 = vmatpush1.msra.mxu0 0.0
    %3780 = vmatprep.subr.mxu0 0.0
    %3781 = vmatpush1.msra.mxu0 0.0
    %3782 = vmatprep.subr.mxu0 0.0
    %3783 = vmatpush1.msra.mxu0 0.0
    %3784 = vmatprep.subr.mxu0 0.0
    %3785 = vmatpush1.msra.mxu0 0.0
    %3786 = vmatprep.subr.mxu0 0.0
    %3787 = vmatpush1.msra.mxu0 0.0
    %3788 = vmatprep.subr.mxu0 0.0
    %3789 = vmatpush1.msra.mxu0 0.0
    %3790 = vmatprep.subr.mxu0 0.0
    %3791 = vmatpush1.msra.mxu0 0.0
    %3792 = vmatprep.subr.mxu0 0.0
    %3793 = vmatpush1.msra.mxu0 0.0
    %3794 = vmatprep.subr.mxu0 0.0
    %3795 = vmatpush1.msra.mxu0 0.0
    %3796 = vmatprep.subr.mxu0 0.0
    %3797 = vmatpush1.msra.mxu0 0.0
    %3798 = vmatprep.subr.mxu0 0.0
    %3799 = vmatpush1.msra.mxu0 0.0
    %3800 = vmatprep.subr.mxu0 0.0
    %3801 = vmatpush1.msra.mxu0 0.0
    %3802 = vmatprep.subr.mxu0 0.0
    %3803 = vmatpush1.msra.mxu0 0.0
    %3804 = vmatprep.subr.mxu0 0.0
    %3805 = vmatpush1.msra.mxu0 0.0
    %3806 = vmatprep.subr.mxu0 0.0
    %3807 = vmatpush1.msra.mxu0 0.0
    %3808 = vmatprep.subr.mxu0 0.0
    %3809 = vmatpush1.msra.mxu0 0.0
    %3810 = vmatprep.subr.mxu0 0.0
    %3811 = vmatpush1.msra.mxu0 0.0
    %3812 = vmatprep.subr.mxu0 0.0
    %3813 = vmatpush1.msra.mxu0 0.0
    %3814 = vmatprep.mubr.f32.mxu0 0.0
    %3815 = vmatmul.mubr.f32.gmra.mrb[0].mxu0 %v3748
    %v3816 = vpop.f32.mrb[0].mxu0
    %v3817 = vadd.f32 %v1849, %v3816
    %v3818 = vpop.f32.mrb[0].mxu0
    %3819 = vdwg.mxu0
    %3820 = vmatprep.subr.mxu0 0.0
    %3821 = vmatpush1.msra.mxu0 %v1572
    %3822 = vmatprep.subr.mxu0 0.0
    %3823 = vmatpush1.msra.mxu0 %v1573
    %3824 = vmatprep.subr.mxu0 0.0
    %3825 = vmatpush1.msra.mxu0 %v1574
    %3826 = vmatprep.subr.mxu0 0.0
    %3827 = vmatpush1.msra.mxu0 %v1575
    %3828 = vmatprep.subr.mxu0 0.0
    %3829 = vmatpush1.msra.mxu0 0.0
    %3830 = vmatprep.subr.mxu0 0.0
    %3831 = vmatpush1.msra.mxu0 0.0
    %3832 = vmatprep.subr.mxu0 0.0
    %3833 = vmatpush1.msra.mxu0 0.0
    %3834 = vmatprep.subr.mxu0 0.0
    %3835 = vmatpush1.msra.mxu0 0.0
    %3836 = vmatprep.subr.mxu0 0.0
    %3837 = vmatpush1.msra.mxu0 0.0
    %3838 = vmatprep.subr.mxu0 0.0
    %3839 = vmatpush1.msra.mxu0 0.0
    %3840 = vmatprep.subr.mxu0 0.0
    %3841 = vmatpush1.msra.mxu0 0.0
    %3842 = vmatprep.subr.mxu0 0.0
    %3843 = vmatpush1.msra.mxu0 0.0
    %3844 = vmatprep.subr.mxu0 0.0
    %3845 = vmatpush1.msra.mxu0 0.0
    %3846 = vmatprep.subr.mxu0 0.0
    %3847 = vmatpush1.msra.mxu0 0.0
    %3848 = vmatprep.subr.mxu0 0.0
    %3849 = vmatpush1.msra.mxu0 0.0
    %3850 = vmatprep.subr.mxu0 0.0
    %3851 = vmatpush1.msra.mxu0 0.0
    %3852 = vmatprep.subr.mxu0 0.0
    %3853 = vmatpush1.msra.mxu0 0.0
    %3854 = vmatprep.subr.mxu0 0.0
    %3855 = vmatpush1.msra.mxu0 0.0
    %3856 = vmatprep.subr.mxu0 0.0
    %3857 = vmatpush1.msra.mxu0 0.0
    %3858 = vmatprep.subr.mxu0 0.0
    %3859 = vmatpush1.msra.mxu0 0.0
    %3860 = vmatprep.subr.mxu0 0.0
    %3861 = vmatpush1.msra.mxu0 0.0
    %3862 = vmatprep.subr.mxu0 0.0
    %3863 = vmatpush1.msra.mxu0 0.0
    %3864 = vmatprep.subr.mxu0 0.0
    %3865 = vmatpush1.msra.mxu0 0.0
    %3866 = vmatprep.subr.mxu0 0.0
    %3867 = vmatpush1.msra.mxu0 0.0
    %3868 = vmatprep.subr.mxu0 0.0
    %3869 = vmatpush1.msra.mxu0 0.0
    %3870 = vmatprep.subr.mxu0 0.0
    %3871 = vmatpush1.msra.mxu0 0.0
    %3872 = vmatprep.subr.mxu0 0.0
    %3873 = vmatpush1.msra.mxu0 0.0
    %3874 = vmatprep.subr.mxu0 0.0
    %3875 = vmatpush1.msra.mxu0 0.0
    %3876 = vmatprep.subr.mxu0 0.0
    %3877 = vmatpush1.msra.mxu0 0.0
    %3878 = vmatprep.subr.mxu0 0.0
    %3879 = vmatpush1.msra.mxu0 0.0
    %3880 = vmatprep.subr.mxu0 0.0
    %3881 = vmatpush1.msra.mxu0 0.0
    %3882 = vmatprep.subr.mxu0 0.0
    %3883 = vmatpush1.msra.mxu0 0.0
    %3884 = vmatprep.mubr.f32.mxu0 0.0
    %3885 = vmatmul.mubr.f32.gmra.mrb[0].mxu0 %v3748
    %v3886 = vpop.f32.mrb[0].mxu0
    %v3887 = vadd.f32 %v1925, %v3886
    %v3888 = vpop.f32.mrb[0].mxu0
    %3889 = vdwg.mxu0
    %3890 = vmatprep.subr.mxu0 0.0
    %3891 = vmatpush1.msra.mxu0 %v1577
    %3892 = vmatprep.subr.mxu0 0.0
    %3893 = vmatpush1.msra.mxu0 %v1578
    %3894 = vmatprep.subr.mxu0 0.0
    %3895 = vmatpush1.msra.mxu0 %v1579
    %3896 = vmatprep.subr.mxu0 0.0
    %3897 = vmatpush1.msra.mxu0 %v1580
    %3898 = vmatprep.subr.mxu0 0.0
    %3899 = vmatpush1.msra.mxu0 0.0
    %3900 = vmatprep.subr.mxu0 0.0
    %3901 = vmatpush1.msra.mxu0 0.0
    %3902 = vmatprep.subr.mxu0 0.0
    %3903 = vmatpush1.msra.mxu0 0.0
    %3904 = vmatprep.subr.mxu0 0.0
    %3905 = vmatpush1.msra.mxu0 0.0
    %3906 = vmatprep.subr.mxu0 0.0
    %3907 = vmatpush1.msra.mxu0 0.0
    %3908 = vmatprep.subr.mxu0 0.0
    %3909 = vmatpush1.msra.mxu0 0.0
    %3910 = vmatprep.subr.mxu0 0.0
    %3911 = vmatpush1.msra.mxu0 0.0
    %3912 = vmatprep.subr.mxu0 0.0
    %3913 = vmatpush1.msra.mxu0 0.0
    %3914 = vmatprep.subr.mxu0 0.0
    %3915 = vmatpush1.msra.mxu0 0.0
    %3916 = vmatprep.subr.mxu0 0.0
    %3917 = vmatpush1.msra.mxu0 0.0
    %3918 = vmatprep.subr.mxu0 0.0
    %3919 = vmatpush1.msra.mxu0 0.0
    %3920 = vmatprep.subr.mxu0 0.0
    %3921 = vmatpush1.msra.mxu0 0.0
    %3922 = vmatprep.subr.mxu0 0.0
    %3923 = vmatpush1.msra.mxu0 0.0
    %3924 = vmatprep.subr.mxu0 0.0
    %3925 = vmatpush1.msra.mxu0 0.0
    %3926 = vmatprep.subr.mxu0 0.0
    %3927 = vmatpush1.msra.mxu0 0.0
    %3928 = vmatprep.subr.mxu0 0.0
    %3929 = vmatpush1.msra.mxu0 0.0
    %3930 = vmatprep.subr.mxu0 0.0
    %3931 = vmatpush1.msra.mxu0 0.0
    %3932 = vmatprep.subr.mxu0 0.0
    %3933 = vmatpush1.msra.mxu0 0.0
    %3934 = vmatprep.subr.mxu0 0.0
    %3935 = vmatpush1.msra.mxu0 0.0
    %3936 = vmatprep.subr.mxu0 0.0
    %3937 = vmatpush1.msra.mxu0 0.0
    %3938 = vmatprep.subr.mxu0 0.0
    %3939 = vmatpush1.msra.mxu0 0.0
    %3940 = vmatprep.subr.mxu0 0.0
    %3941 = vmatpush1.msra.mxu0 0.0
    %3942 = vmatprep.subr.mxu0 0.0
    %3943 = vmatpush1.msra.mxu0 0.0
    %3944 = vmatprep.subr.mxu0 0.0
    %3945 = vmatpush1.msra.mxu0 0.0
    %3946 = vmatprep.subr.mxu0 0.0
    %3947 = vmatpush1.msra.mxu0 0.0
    %3948 = vmatprep.subr.mxu0 0.0
    %3949 = vmatpush1.msra.mxu0 0.0
    %3950 = vmatprep.subr.mxu0 0.0
    %3951 = vmatpush1.msra.mxu0 0.0
    %3952 = vmatprep.subr.mxu0 0.0
    %3953 = vmatpush1.msra.mxu0 0.0
    %3954 = vmatprep.mubr.f32.mxu0 0.0
    %3955 = vmatmul.mubr.f32.gmra.mrb[0].mxu0 %v3748
    %v3956 = vpop.f32.mrb[0].mxu0
    %v3957 = vadd.f32 %v2001, %v3956
    %v3958 = vpop.f32.mrb[0].mxu0
    %3959 = vdwg.mxu0
    %v3960 = vadd.f32 %v1083, %v3817
    %v3961 = vxor.u32 %v3960, 2147483648
    %v3962 = vmul.f32 %v3961, 1.442695
    %v3963 = vpow.pop %v3962
    %v3964 = vadd.f32 %v3963, 1.0
    %v3965 = vrcp.pop %v3964
    %v3966 = vmul.f32 1.0, %v3965
    %v3967 = vadd.f32 %v1315, %v3887
    %v3968 = vxor.u32 %v3967, 2147483648
    %v3969 = vmul.f32 %v3968, 1.442695
    %v3970 = vpow.pop %v3969
    %v3971 = vadd.f32 %v3970, 1.0
    %v3972 = vrcp.pop %v3971
    %v3973 = vmul.f32 1.0, %v3972
    %v3974 = vmul.f32 %v3966, %v3957
    %v3975 = vadd.f32 %v1547, %v3974
    %v3976 = vtanh.pop %v3975
    %v3977 = vsub.f32 1.0, %v3973
    %v3978 = vmul.f32 %v3977, %v3976
    %v3979 = vmul.f32 %v3973, %v3508
    %v3980 = vadd.f32 %v3978, %v3979
    %s3981 = scalar_lea.vmem [#allocation11], 32
    %3982 = vst.msk [vmem:[%s3981] sm:$0xff] %vm1598, %v3746
    %s3983 = scalar_lea.vmem [#allocation12], 24
    %3984 = vst.msk [vmem:[%s3983] sm:$0xff] %vm1598, %v3980
    %v3986 = vsel %vm1598, %v3746, 0
    %3988 = vmatprep.subr.mxu0 0.0
    %3989 = vmatpush1.msra.mxu0 %v1552
    %3990 = vmatprep.subr.mxu0 0.0
    %3991 = vmatpush1.msra.mxu0 %v1553
    %3992 = vmatprep.subr.mxu0 0.0
    %3993 = vmatpush1.msra.mxu0 %v1554
    %3994 = vmatprep.subr.mxu0 0.0
    %3995 = vmatpush1.msra.mxu0 %v1555
    %3996 = vmatprep.subr.mxu0 0.0
    %3997 = vmatpush1.msra.mxu0 0.0
    %3998 = vmatprep.subr.mxu0 0.0
    %3999 = vmatpush1.msra.mxu0 0.0
    %4000 = vmatprep.subr.mxu0 0.0
    %4001 = vmatpush1.msra.mxu0 0.0
    %4002 = vmatprep.subr.mxu0 0.0
    %4003 = vmatpush1.msra.mxu0 0.0
    %4004 = vmatprep.subr.mxu0 0.0
    %4005 = vmatpush1.msra.mxu0 0.0
    %4006 = vmatprep.subr.mxu0 0.0
    %4007 = vmatpush1.msra.mxu0 0.0
    %4008 = vmatprep.subr.mxu0 0.0
    %4009 = vmatpush1.msra.mxu0 0.0
    %4010 = vmatprep.subr.mxu0 0.0
    %4011 = vmatpush1.msra.mxu0 0.0
    %4012 = vmatprep.subr.mxu0 0.0
    %4013 = vmatpush1.msra.mxu0 0.0
    %4014 = vmatprep.subr.mxu0 0.0
    %4015 = vmatpush1.msra.mxu0 0.0
    %4016 = vmatprep.subr.mxu0 0.0
    %4017 = vmatpush1.msra.mxu0 0.0
    %4018 = vmatprep.subr.mxu0 0.0
    %4019 = vmatpush1.msra.mxu0 0.0
    %4020 = vmatprep.subr.mxu0 0.0
    %4021 = vmatpush1.msra.mxu0 0.0
    %4022 = vmatprep.subr.mxu0 0.0
    %4023 = vmatpush1.msra.mxu0 0.0
    %4024 = vmatprep.subr.mxu0 0.0
    %4025 = vmatpush1.msra.mxu0 0.0
    %4026 = vmatprep.subr.mxu0 0.0
    %4027 = vmatpush1.msra.mxu0 0.0
    %4028 = vmatprep.subr.mxu0 0.0
    %4029 = vmatpush1.msra.mxu0 0.0
    %4030 = vmatprep.subr.mxu0 0.0
    %4031 = vmatpush1.msra.mxu0 0.0
    %4032 = vmatprep.subr.mxu0 0.0
    %4033 = vmatpush1.msra.mxu0 0.0
    %4034 = vmatprep.subr.mxu0 0.0
    %4035 = vmatpush1.msra.mxu0 0.0
    %4036 = vmatprep.subr.mxu0 0.0
    %4037 = vmatpush1.msra.mxu0 0.0
    %4038 = vmatprep.subr.mxu0 0.0
    %4039 = vmatpush1.msra.mxu0 0.0
    %4040 = vmatprep.subr.mxu0 0.0
    %4041 = vmatpush1.msra.mxu0 0.0
    %4042 = vmatprep.subr.mxu0 0.0
    %4043 = vmatpush1.msra.mxu0 0.0
    %4044 = vmatprep.subr.mxu0 0.0
    %4045 = vmatpush1.msra.mxu0 0.0
    %4046 = vmatprep.subr.mxu0 0.0
    %4047 = vmatpush1.msra.mxu0 0.0
    %4048 = vmatprep.subr.mxu0 0.0
    %4049 = vmatpush1.msra.mxu0 0.0
    %4050 = vmatprep.subr.mxu0 0.0
    %4051 = vmatpush1.msra.mxu0 0.0
    %4052 = vmatprep.mubr.f32.mxu0 0.0
    %4053 = vmatmul.mubr.f32.gmra.mrb[0].mxu0 %v3986
    %v4054 = vpop.f32.mrb[0].mxu0
    %v4055 = vadd.f32 %v1596, %v4054
    %v4056 = vpop.f32.mrb[0].mxu0
    %4057 = vdwg.mxu0
    %4058 = vmatprep.subr.mxu0 0.0
    %4059 = vmatpush1.msra.mxu0 %v1557
    %4060 = vmatprep.subr.mxu0 0.0
    %4061 = vmatpush1.msra.mxu0 %v1558
    %4062 = vmatprep.subr.mxu0 0.0
    %4063 = vmatpush1.msra.mxu0 %v1559
    %4064 = vmatprep.subr.mxu0 0.0
    %4065 = vmatpush1.msra.mxu0 %v1560
    %4066 = vmatprep.subr.mxu0 0.0
    %4067 = vmatpush1.msra.mxu0 0.0
    %4068 = vmatprep.subr.mxu0 0.0
    %4069 = vmatpush1.msra.mxu0 0.0
    %4070 = vmatprep.subr.mxu0 0.0
    %4071 = vmatpush1.msra.mxu0 0.0
    %4072 = vmatprep.subr.mxu0 0.0
    %4073 = vmatpush1.msra.mxu0 0.0
    %4074 = vmatprep.subr.mxu0 0.0
    %4075 = vmatpush1.msra.mxu0 0.0
    %4076 = vmatprep.subr.mxu0 0.0
    %4077 = vmatpush1.msra.mxu0 0.0
    %4078 = vmatprep.subr.mxu0 0.0
    %4079 = vmatpush1.msra.mxu0 0.0
    %4080 = vmatprep.subr.mxu0 0.0
    %4081 = vmatpush1.msra.mxu0 0.0
    %4082 = vmatprep.subr.mxu0 0.0
    %4083 = vmatpush1.msra.mxu0 0.0
    %4084 = vmatprep.subr.mxu0 0.0
    %4085 = vmatpush1.msra.mxu0 0.0
    %4086 = vmatprep.subr.mxu0 0.0
    %4087 = vmatpush1.msra.mxu0 0.0
    %4088 = vmatprep.subr.mxu0 0.0
    %4089 = vmatpush1.msra.mxu0 0.0
    %4090 = vmatprep.subr.mxu0 0.0
    %4091 = vmatpush1.msra.mxu0 0.0
    %4092 = vmatprep.subr.mxu0 0.0
    %4093 = vmatpush1.msra.mxu0 0.0
    %4094 = vmatprep.subr.mxu0 0.0
    %4095 = vmatpush1.msra.mxu0 0.0
    %4096 = vmatprep.subr.mxu0 0.0
    %4097 = vmatpush1.msra.mxu0 0.0
    %4098 = vmatprep.subr.mxu0 0.0
    %4099 = vmatpush1.msra.mxu0 0.0
    %4100 = vmatprep.subr.mxu0 0.0
    %4101 = vmatpush1.msra.mxu0 0.0
    %4102 = vmatprep.subr.mxu0 0.0
    %4103 = vmatpush1.msra.mxu0 0.0
    %4104 = vmatprep.subr.mxu0 0.0
    %4105 = vmatpush1.msra.mxu0 0.0
    %4106 = vmatprep.subr.mxu0 0.0
    %4107 = vmatpush1.msra.mxu0 0.0
    %4108 = vmatprep.subr.mxu0 0.0
    %4109 = vmatpush1.msra.mxu0 0.0
    %4110 = vmatprep.subr.mxu0 0.0
    %4111 = vmatpush1.msra.mxu0 0.0
    %4112 = vmatprep.subr.mxu0 0.0
    %4113 = vmatpush1.msra.mxu0 0.0
    %4114 = vmatprep.subr.mxu0 0.0
    %4115 = vmatpush1.msra.mxu0 0.0
    %4116 = vmatprep.subr.mxu0 0.0
    %4117 = vmatpush1.msra.mxu0 0.0
    %4118 = vmatprep.subr.mxu0 0.0
    %4119 = vmatpush1.msra.mxu0 0.0
    %4120 = vmatprep.subr.mxu0 0.0
    %4121 = vmatpush1.msra.mxu0 0.0
    %4122 = vmatprep.mubr.f32.mxu0 0.0
    %4123 = vmatmul.mubr.f32.gmra.mrb[0].mxu0 %v3986
    %v4124 = vpop.f32.mrb[0].mxu0
    %v4125 = vadd.f32 %v1676, %v4124
    %v4126 = vpop.f32.mrb[0].mxu0
    %4127 = vdwg.mxu0
    %4128 = vmatprep.subr.mxu0 0.0
    %4129 = vmatpush1.msra.mxu0 %v1562
    %4130 = vmatprep.subr.mxu0 0.0
    %4131 = vmatpush1.msra.mxu0 %v1563
    %4132 = vmatprep.subr.mxu0 0.0
    %4133 = vmatpush1.msra.mxu0 %v1564
    %4134 = vmatprep.subr.mxu0 0.0
    %4135 = vmatpush1.msra.mxu0 %v1565
    %4136 = vmatprep.subr.mxu0 0.0
    %4137 = vmatpush1.msra.mxu0 0.0
    %4138 = vmatprep.subr.mxu0 0.0
    %4139 = vmatpush1.msra.mxu0 0.0
    %4140 = vmatprep.subr.mxu0 0.0
    %4141 = vmatpush1.msra.mxu0 0.0
    %4142 = vmatprep.subr.mxu0 0.0
    %4143 = vmatpush1.msra.mxu0 0.0
    %4144 = vmatprep.subr.mxu0 0.0
    %4145 = vmatpush1.msra.mxu0 0.0
    %4146 = vmatprep.subr.mxu0 0.0
    %4147 = vmatpush1.msra.mxu0 0.0
    %4148 = vmatprep.subr.mxu0 0.0
    %4149 = vmatpush1.msra.mxu0 0.0
    %4150 = vmatprep.subr.mxu0 0.0
    %4151 = vmatpush1.msra.mxu0 0.0
    %4152 = vmatprep.subr.mxu0 0.0
    %4153 = vmatpush1.msra.mxu0 0.0
    %4154 = vmatprep.subr.mxu0 0.0
    %4155 = vmatpush1.msra.mxu0 0.0
    %4156 = vmatprep.subr.mxu0 0.0
    %4157 = vmatpush1.msra.mxu0 0.0
    %4158 = vmatprep.subr.mxu0 0.0
    %4159 = vmatpush1.msra.mxu0 0.0
    %4160 = vmatprep.subr.mxu0 0.0
    %4161 = vmatpush1.msra.mxu0 0.0
    %4162 = vmatprep.subr.mxu0 0.0
    %4163 = vmatpush1.msra.mxu0 0.0
    %4164 = vmatprep.subr.mxu0 0.0
    %4165 = vmatpush1.msra.mxu0 0.0
    %4166 = vmatprep.subr.mxu0 0.0
    %4167 = vmatpush1.msra.mxu0 0.0
    %4168 = vmatprep.subr.mxu0 0.0
    %4169 = vmatpush1.msra.mxu0 0.0
    %4170 = vmatprep.subr.mxu0 0.0
    %4171 = vmatpush1.msra.mxu0 0.0
    %4172 = vmatprep.subr.mxu0 0.0
    %4173 = vmatpush1.msra.mxu0 0.0
    %4174 = vmatprep.subr.mxu0 0.0
    %4175 = vmatpush1.msra.mxu0 0.0
    %4176 = vmatprep.subr.mxu0 0.0
    %4177 = vmatpush1.msra.mxu0 0.0
    %4178 = vmatprep.subr.mxu0 0.0
    %4179 = vmatpush1.msra.mxu0 0.0
    %4180 = vmatprep.subr.mxu0 0.0
    %4181 = vmatpush1.msra.mxu0 0.0
    %4182 = vmatprep.subr.mxu0 0.0
    %4183 = vmatpush1.msra.mxu0 0.0
    %4184 = vmatprep.subr.mxu0 0.0
    %4185 = vmatpush1.msra.mxu0 0.0
    %4186 = vmatprep.subr.mxu0 0.0
    %4187 = vmatpush1.msra.mxu0 0.0
    %4188 = vmatprep.subr.mxu0 0.0
    %4189 = vmatpush1.msra.mxu0 0.0
    %4190 = vmatprep.subr.mxu0 0.0
    %4191 = vmatpush1.msra.mxu0 0.0
    %4192 = vmatprep.mubr.f32.mxu0 0.0
    %4193 = vmatmul.mubr.f32.gmra.mrb[0].mxu0 %v3986
    %v4194 = vpop.f32.mrb[0].mxu0
    %v4195 = vadd.f32 %v1752, %v4194
    %v4196 = vpop.f32.mrb[0].mxu0
    %4197 = vdwg.mxu0
    %v4198 = vadd.f32 %v389, %v4055
    %v4199 = vxor.u32 %v4198, 2147483648
    %v4200 = vmul.f32 %v4199, 1.442695
    %v4201 = vpow.pop %v4200
    %v4202 = vadd.f32 %v4201, 1.0
    %v4203 = vrcp.pop %v4202
    %v4204 = vmul.f32 1.0, %v4203
    %v4205 = vadd.f32 %v621, %v4125
    %v4206 = vxor.u32 %v4205, 2147483648
    %v4207 = vmul.f32 %v4206, 1.442695
    %v4208 = vpow.pop %v4207
    %v4209 = vadd.f32 %v4208, 1.0
    %v4210 = vrcp.pop %v4209
    %v4211 = vmul.f32 1.0, %v4210
    %v4212 = vmul.f32 %v4204, %v4195
    %v4213 = vadd.f32 %v853, %v4212
    %v4214 = vtanh.pop %v4213
    %v4215 = vsub.f32 1.0, %v4211
    %v4216 = vmul.f32 %v4215, %v4214
    %v4217 = vmul.f32 %v4211, %v3746
    %v4218 = vadd.f32 %v4216, %v4217
    %v4220 = vsel %vm1598, %v3980, 0
    %4222 = vmatprep.subr.mxu0 0.0
    %4223 = vmatpush1.msra.mxu0 %v1567
    %4224 = vmatprep.subr.mxu0 0.0
    %4225 = vmatpush1.msra.mxu0 %v1568
    %4226 = vmatprep.subr.mxu0 0.0
    %4227 = vmatpush1.msra.mxu0 %v1569
    %4228 = vmatprep.subr.mxu0 0.0
    %4229 = vmatpush1.msra.mxu0 %v1570
    %4230 = vmatprep.subr.mxu0 0.0
    %4231 = vmatpush1.msra.mxu0 0.0
    %4232 = vmatprep.subr.mxu0 0.0
    %4233 = vmatpush1.msra.mxu0 0.0
    %4234 = vmatprep.subr.mxu0 0.0
    %4235 = vmatpush1.msra.mxu0 0.0
    %4236 = vmatprep.subr.mxu0 0.0
    %4237 = vmatpush1.msra.mxu0 0.0
    %4238 = vmatprep.subr.mxu0 0.0
    %4239 = vmatpush1.msra.mxu0 0.0
    %4240 = vmatprep.subr.mxu0 0.0
    %4241 = vmatpush1.msra.mxu0 0.0
    %4242 = vmatprep.subr.mxu0 0.0
    %4243 = vmatpush1.msra.mxu0 0.0
    %4244 = vmatprep.subr.mxu0 0.0
    %4245 = vmatpush1.msra.mxu0 0.0
    %4246 = vmatprep.subr.mxu0 0.0
    %4247 = vmatpush1.msra.mxu0 0.0
    %4248 = vmatprep.subr.mxu0 0.0
    %4249 = vmatpush1.msra.mxu0 0.0
    %4250 = vmatprep.subr.mxu0 0.0
    %4251 = vmatpush1.msra.mxu0 0.0
    %4252 = vmatprep.subr.mxu0 0.0
    %4253 = vmatpush1.msra.mxu0 0.0
    %4254 = vmatprep.subr.mxu0 0.0
    %4255 = vmatpush1.msra.mxu0 0.0
    %4256 = vmatprep.subr.mxu0 0.0
    %4257 = vmatpush1.msra.mxu0 0.0
    %4258 = vmatprep.subr.mxu0 0.0
    %4259 = vmatpush1.msra.mxu0 0.0
    %4260 = vmatprep.subr.mxu0 0.0
    %4261 = vmatpush1.msra.mxu0 0.0
    %4262 = vmatprep.subr.mxu0 0.0
    %4263 = vmatpush1.msra.mxu0 0.0
    %4264 = vmatprep.subr.mxu0 0.0
    %4265 = vmatpush1.msra.mxu0 0.0
    %4266 = vmatprep.subr.mxu0 0.0
    %4267 = vmatpush1.msra.mxu0 0.0
    %4268 = vmatprep.subr.mxu0 0.0
    %4269 = vmatpush1.msra.mxu0 0.0
    %4270 = vmatprep.subr.mxu0 0.0
    %4271 = vmatpush1.msra.mxu0 0.0
    %4272 = vmatprep.subr.mxu0 0.0
    %4273 = vmatpush1.msra.mxu0 0.0
    %4274 = vmatprep.subr.mxu0 0.0
    %4275 = vmatpush1.msra.mxu0 0.0
    %4276 = vmatprep.subr.mxu0 0.0
    %4277 = vmatpush1.msra.mxu0 0.0
    %4278 = vmatprep.subr.mxu0 0.0
    %4279 = vmatpush1.msra.mxu0 0.0
    %4280 = vmatprep.subr.mxu0 0.0
    %4281 = vmatpush1.msra.mxu0 0.0
    %4282 = vmatprep.subr.mxu0 0.0
    %4283 = vmatpush1.msra.mxu0 0.0
    %4284 = vmatprep.subr.mxu0 0.0
    %4285 = vmatpush1.msra.mxu0 0.0
    %4286 = vmatprep.mubr.f32.mxu0 0.0
    %4287 = vmatmul.mubr.f32.gmra.mrb[0].mxu0 %v4220
    %v4288 = vpop.f32.mrb[0].mxu0
    %v4289 = vadd.f32 %v1849, %v4288
    %v4290 = vpop.f32.mrb[0].mxu0
    %4291 = vdwg.mxu0
    %4292 = vmatprep.subr.mxu0 0.0
    %4293 = vmatpush1.msra.mxu0 %v1572
    %4294 = vmatprep.subr.mxu0 0.0
    %4295 = vmatpush1.msra.mxu0 %v1573
    %4296 = vmatprep.subr.mxu0 0.0
    %4297 = vmatpush1.msra.mxu0 %v1574
    %4298 = vmatprep.subr.mxu0 0.0
    %4299 = vmatpush1.msra.mxu0 %v1575
    %4300 = vmatprep.subr.mxu0 0.0
    %4301 = vmatpush1.msra.mxu0 0.0
    %4302 = vmatprep.subr.mxu0 0.0
    %4303 = vmatpush1.msra.mxu0 0.0
    %4304 = vmatprep.subr.mxu0 0.0
    %4305 = vmatpush1.msra.mxu0 0.0
    %4306 = vmatprep.subr.mxu0 0.0
    %4307 = vmatpush1.msra.mxu0 0.0
    %4308 = vmatprep.subr.mxu0 0.0
    %4309 = vmatpush1.msra.mxu0 0.0
    %4310 = vmatprep.subr.mxu0 0.0
    %4311 = vmatpush1.msra.mxu0 0.0
    %4312 = vmatprep.subr.mxu0 0.0
    %4313 = vmatpush1.msra.mxu0 0.0
    %4314 = vmatprep.subr.mxu0 0.0
    %4315 = vmatpush1.msra.mxu0 0.0
    %4316 = vmatprep.subr.mxu0 0.0
    %4317 = vmatpush1.msra.mxu0 0.0
    %4318 = vmatprep.subr.mxu0 0.0
    %4319 = vmatpush1.msra.mxu0 0.0
    %4320 = vmatprep.subr.mxu0 0.0
    %4321 = vmatpush1.msra.mxu0 0.0
    %4322 = vmatprep.subr.mxu0 0.0
    %4323 = vmatpush1.msra.mxu0 0.0
    %4324 = vmatprep.subr.mxu0 0.0
    %4325 = vmatpush1.msra.mxu0 0.0
    %4326 = vmatprep.subr.mxu0 0.0
    %4327 = vmatpush1.msra.mxu0 0.0
    %4328 = vmatprep.subr.mxu0 0.0
    %4329 = vmatpush1.msra.mxu0 0.0
    %4330 = vmatprep.subr.mxu0 0.0
    %4331 = vmatpush1.msra.mxu0 0.0
    %4332 = vmatprep.subr.mxu0 0.0
    %4333 = vmatpush1.msra.mxu0 0.0
    %4334 = vmatprep.subr.mxu0 0.0
    %4335 = vmatpush1.msra.mxu0 0.0
    %4336 = vmatprep.subr.mxu0 0.0
    %4337 = vmatpush1.msra.mxu0 0.0
    %4338 = vmatprep.subr.mxu0 0.0
    %4339 = vmatpush1.msra.mxu0 0.0
    %4340 = vmatprep.subr.mxu0 0.0
    %4341 = vmatpush1.msra.mxu0 0.0
    %4342 = vmatprep.subr.mxu0 0.0
    %4343 = vmatpush1.msra.mxu0 0.0
    %4344 = vmatprep.subr.mxu0 0.0
    %4345 = vmatpush1.msra.mxu0 0.0
    %4346 = vmatprep.subr.mxu0 0.0
    %4347 = vmatpush1.msra.mxu0 0.0
    %4348 = vmatprep.subr.mxu0 0.0
    %4349 = vmatpush1.msra.mxu0 0.0
    %4350 = vmatprep.subr.mxu0 0.0
    %4351 = vmatpush1.msra.mxu0 0.0
    %4352 = vmatprep.subr.mxu0 0.0
    %4353 = vmatpush1.msra.mxu0 0.0
    %4354 = vmatprep.subr.mxu0 0.0
    %4355 = vmatpush1.msra.mxu0 0.0
    %4356 = vmatprep.mubr.f32.mxu0 0.0
    %4357 = vmatmul.mubr.f32.gmra.mrb[0].mxu0 %v4220
    %v4358 = vpop.f32.mrb[0].mxu0
    %v4359 = vadd.f32 %v1925, %v4358
    %v4360 = vpop.f32.mrb[0].mxu0
    %4361 = vdwg.mxu0
    %4362 = vmatprep.subr.mxu0 0.0
    %4363 = vmatpush1.msra.mxu0 %v1577
    %4364 = vmatprep.subr.mxu0 0.0
    %4365 = vmatpush1.msra.mxu0 %v1578
    %4366 = vmatprep.subr.mxu0 0.0
    %4367 = vmatpush1.msra.mxu0 %v1579
    %4368 = vmatprep.subr.mxu0 0.0
    %4369 = vmatpush1.msra.mxu0 %v1580
    %4370 = vmatprep.subr.mxu0 0.0
    %4371 = vmatpush1.msra.mxu0 0.0
    %4372 = vmatprep.subr.mxu0 0.0
    %4373 = vmatpush1.msra.mxu0 0.0
    %4374 = vmatprep.subr.mxu0 0.0
    %4375 = vmatpush1.msra.mxu0 0.0
    %4376 = vmatprep.subr.mxu0 0.0
    %4377 = vmatpush1.msra.mxu0 0.0
    %4378 = vmatprep.subr.mxu0 0.0
    %4379 = vmatpush1.msra.mxu0 0.0
    %4380 = vmatprep.subr.mxu0 0.0
    %4381 = vmatpush1.msra.mxu0 0.0
    %4382 = vmatprep.subr.mxu0 0.0
    %4383 = vmatpush1.msra.mxu0 0.0
    %4384 = vmatprep.subr.mxu0 0.0
    %4385 = vmatpush1.msra.mxu0 0.0
    %4386 = vmatprep.subr.mxu0 0.0
    %4387 = vmatpush1.msra.mxu0 0.0
    %4388 = vmatprep.subr.mxu0 0.0
    %4389 = vmatpush1.msra.mxu0 0.0
    %4390 = vmatprep.subr.mxu0 0.0
    %4391 = vmatpush1.msra.mxu0 0.0
    %4392 = vmatprep.subr.mxu0 0.0
    %4393 = vmatpush1.msra.mxu0 0.0
    %4394 = vmatprep.subr.mxu0 0.0
    %4395 = vmatpush1.msra.mxu0 0.0
    %4396 = vmatprep.subr.mxu0 0.0
    %4397 = vmatpush1.msra.mxu0 0.0
    %4398 = vmatprep.subr.mxu0 0.0
    %4399 = vmatpush1.msra.mxu0 0.0
    %4400 = vmatprep.subr.mxu0 0.0
    %4401 = vmatpush1.msra.mxu0 0.0
    %4402 = vmatprep.subr.mxu0 0.0
    %4403 = vmatpush1.msra.mxu0 0.0
    %4404 = vmatprep.subr.mxu0 0.0
    %4405 = vmatpush1.msra.mxu0 0.0
    %4406 = vmatprep.subr.mxu0 0.0
    %4407 = vmatpush1.msra.mxu0 0.0
    %4408 = vmatprep.subr.mxu0 0.0
    %4409 = vmatpush1.msra.mxu0 0.0
    %4410 = vmatprep.subr.mxu0 0.0
    %4411 = vmatpush1.msra.mxu0 0.0
    %4412 = vmatprep.subr.mxu0 0.0
    %4413 = vmatpush1.msra.mxu0 0.0
    %4414 = vmatprep.subr.mxu0 0.0
    %4415 = vmatpush1.msra.mxu0 0.0
    %4416 = vmatprep.subr.mxu0 0.0
    %4417 = vmatpush1.msra.mxu0 0.0
    %4418 = vmatprep.subr.mxu0 0.0
    %4419 = vmatpush1.msra.mxu0 0.0
    %4420 = vmatprep.subr.mxu0 0.0
    %4421 = vmatpush1.msra.mxu0 0.0
    %4422 = vmatprep.subr.mxu0 0.0
    %4423 = vmatpush1.msra.mxu0 0.0
    %4424 = vmatprep.subr.mxu0 0.0
    %4425 = vmatpush1.msra.mxu0 0.0
    %4426 = vmatprep.mubr.f32.mxu0 0.0
    %4427 = vmatmul.mubr.f32.gmra.mrb[0].mxu0 %v4220
    %v4428 = vpop.f32.mrb[0].mxu0
    %v4429 = vadd.f32 %v2001, %v4428
    %v4430 = vpop.f32.mrb[0].mxu0
    %4431 = vdwg.mxu0
    %v4432 = vadd.f32 %v1082, %v4289
    %v4433 = vxor.u32 %v4432, 2147483648
    %v4434 = vmul.f32 %v4433, 1.442695
    %v4435 = vpow.pop %v4434
    %v4436 = vadd.f32 %v4435, 1.0
    %v4437 = vrcp.pop %v4436
    %v4438 = vmul.f32 1.0, %v4437
    %v4439 = vadd.f32 %v1314, %v4359
    %v4440 = vxor.u32 %v4439, 2147483648
    %v4441 = vmul.f32 %v4440, 1.442695
    %v4442 = vpow.pop %v4441
    %v4443 = vadd.f32 %v4442, 1.0
    %v4444 = vrcp.pop %v4443
    %v4445 = vmul.f32 1.0, %v4444
    %v4446 = vmul.f32 %v4438, %v4429
    %v4447 = vadd.f32 %v1546, %v4446
    %v4448 = vtanh.pop %v4447
    %v4449 = vsub.f32 1.0, %v4445
    %v4450 = vmul.f32 %v4449, %v4448
    %v4451 = vmul.f32 %v4445, %v3980
    %v4452 = vadd.f32 %v4450, %v4451
    %s4453 = scalar_lea.vmem [#allocation11], 40
    %4454 = vst.msk [vmem:[%s4453] sm:$0xff] %vm1598, %v4218
    %s4455 = scalar_lea.vmem [#allocation12], 16
    %4456 = vst.msk [vmem:[%s4455] sm:$0xff] %vm1598, %v4452
    %v4458 = vsel %vm1598, %v4218, 0
    %4460 = vmatprep.subr.mxu0 0.0
    %4461 = vmatpush1.msra.mxu0 %v1552
    %4462 = vmatprep.subr.mxu0 0.0
    %4463 = vmatpush1.msra.mxu0 %v1553
    %4464 = vmatprep.subr.mxu0 0.0
    %4465 = vmatpush1.msra.mxu0 %v1554
    %4466 = vmatprep.subr.mxu0 0.0
    %4467 = vmatpush1.msra.mxu0 %v1555
    %4468 = vmatprep.subr.mxu0 0.0
    %4469 = vmatpush1.msra.mxu0 0.0
    %4470 = vmatprep.subr.mxu0 0.0
    %4471 = vmatpush1.msra.mxu0 0.0
    %4472 = vmatprep.subr.mxu0 0.0
    %4473 = vmatpush1.msra.mxu0 0.0
    %4474 = vmatprep.subr.mxu0 0.0
    %4475 = vmatpush1.msra.mxu0 0.0
    %4476 = vmatprep.subr.mxu0 0.0
    %4477 = vmatpush1.msra.mxu0 0.0
    %4478 = vmatprep.subr.mxu0 0.0
    %4479 = vmatpush1.msra.mxu0 0.0
    %4480 = vmatprep.subr.mxu0 0.0
    %4481 = vmatpush1.msra.mxu0 0.0
    %4482 = vmatprep.subr.mxu0 0.0
    %4483 = vmatpush1.msra.mxu0 0.0
    %4484 = vmatprep.subr.mxu0 0.0
    %4485 = vmatpush1.msra.mxu0 0.0
    %4486 = vmatprep.subr.mxu0 0.0
    %4487 = vmatpush1.msra.mxu0 0.0
    %4488 = vmatprep.subr.mxu0 0.0
    %4489 = vmatpush1.msra.mxu0 0.0
    %4490 = vmatprep.subr.mxu0 0.0
    %4491 = vmatpush1.msra.mxu0 0.0
    %4492 = vmatprep.subr.mxu0 0.0
    %4493 = vmatpush1.msra.mxu0 0.0
    %4494 = vmatprep.subr.mxu0 0.0
    %4495 = vmatpush1.msra.mxu0 0.0
    %4496 = vmatprep.subr.mxu0 0.0
    %4497 = vmatpush1.msra.mxu0 0.0
    %4498 = vmatprep.subr.mxu0 0.0
    %4499 = vmatpush1.msra.mxu0 0.0
    %4500 = vmatprep.subr.mxu0 0.0
    %4501 = vmatpush1.msra.mxu0 0.0
    %4502 = vmatprep.subr.mxu0 0.0
    %4503 = vmatpush1.msra.mxu0 0.0
    %4504 = vmatprep.subr.mxu0 0.0
    %4505 = vmatpush1.msra.mxu0 0.0
    %4506 = vmatprep.subr.mxu0 0.0
    %4507 = vmatpush1.msra.mxu0 0.0
    %4508 = vmatprep.subr.mxu0 0.0
    %4509 = vmatpush1.msra.mxu0 0.0
    %4510 = vmatprep.subr.mxu0 0.0
    %4511 = vmatpush1.msra.mxu0 0.0
    %4512 = vmatprep.subr.mxu0 0.0
    %4513 = vmatpush1.msra.mxu0 0.0
    %4514 = vmatprep.subr.mxu0 0.0
    %4515 = vmatpush1.msra.mxu0 0.0
    %4516 = vmatprep.subr.mxu0 0.0
    %4517 = vmatpush1.msra.mxu0 0.0
    %4518 = vmatprep.subr.mxu0 0.0
    %4519 = vmatpush1.msra.mxu0 0.0
    %4520 = vmatprep.subr.mxu0 0.0
    %4521 = vmatpush1.msra.mxu0 0.0
    %4522 = vmatprep.subr.mxu0 0.0
    %4523 = vmatpush1.msra.mxu0 0.0
    %4524 = vmatprep.mubr.f32.mxu0 0.0
    %4525 = vmatmul.mubr.f32.gmra.mrb[0].mxu0 %v4458
    %v4526 = vpop.f32.mrb[0].mxu0
    %v4527 = vadd.f32 %v1596, %v4526
    %v4528 = vpop.f32.mrb[0].mxu0
    %4529 = vdwg.mxu0
    %4530 = vmatprep.subr.mxu0 0.0
    %4531 = vmatpush1.msra.mxu0 %v1557
    %4532 = vmatprep.subr.mxu0 0.0
    %4533 = vmatpush1.msra.mxu0 %v1558
    %4534 = vmatprep.subr.mxu0 0.0
    %4535 = vmatpush1.msra.mxu0 %v1559
    %4536 = vmatprep.subr.mxu0 0.0
    %4537 = vmatpush1.msra.mxu0 %v1560
    %4538 = vmatprep.subr.mxu0 0.0
    %4539 = vmatpush1.msra.mxu0 0.0
    %4540 = vmatprep.subr.mxu0 0.0
    %4541 = vmatpush1.msra.mxu0 0.0
    %4542 = vmatprep.subr.mxu0 0.0
    %4543 = vmatpush1.msra.mxu0 0.0
    %4544 = vmatprep.subr.mxu0 0.0
    %4545 = vmatpush1.msra.mxu0 0.0
    %4546 = vmatprep.subr.mxu0 0.0
    %4547 = vmatpush1.msra.mxu0 0.0
    %4548 = vmatprep.subr.mxu0 0.0
    %4549 = vmatpush1.msra.mxu0 0.0
    %4550 = vmatprep.subr.mxu0 0.0
    %4551 = vmatpush1.msra.mxu0 0.0
    %4552 = vmatprep.subr.mxu0 0.0
    %4553 = vmatpush1.msra.mxu0 0.0
    %4554 = vmatprep.subr.mxu0 0.0
    %4555 = vmatpush1.msra.mxu0 0.0
    %4556 = vmatprep.subr.mxu0 0.0
    %4557 = vmatpush1.msra.mxu0 0.0
    %4558 = vmatprep.subr.mxu0 0.0
    %4559 = vmatpush1.msra.mxu0 0.0
    %4560 = vmatprep.subr.mxu0 0.0
    %4561 = vmatpush1.msra.mxu0 0.0
    %4562 = vmatprep.subr.mxu0 0.0
    %4563 = vmatpush1.msra.mxu0 0.0
    %4564 = vmatprep.subr.mxu0 0.0
    %4565 = vmatpush1.msra.mxu0 0.0
    %4566 = vmatprep.subr.mxu0 0.0
    %4567 = vmatpush1.msra.mxu0 0.0
    %4568 = vmatprep.subr.mxu0 0.0
    %4569 = vmatpush1.msra.mxu0 0.0
    %4570 = vmatprep.subr.mxu0 0.0
    %4571 = vmatpush1.msra.mxu0 0.0
    %4572 = vmatprep.subr.mxu0 0.0
    %4573 = vmatpush1.msra.mxu0 0.0
    %4574 = vmatprep.subr.mxu0 0.0
    %4575 = vmatpush1.msra.mxu0 0.0
    %4576 = vmatprep.subr.mxu0 0.0
    %4577 = vmatpush1.msra.mxu0 0.0
    %4578 = vmatprep.subr.mxu0 0.0
    %4579 = vmatpush1.msra.mxu0 0.0
    %4580 = vmatprep.subr.mxu0 0.0
    %4581 = vmatpush1.msra.mxu0 0.0
    %4582 = vmatprep.subr.mxu0 0.0
    %4583 = vmatpush1.msra.mxu0 0.0
    %4584 = vmatprep.subr.mxu0 0.0
    %4585 = vmatpush1.msra.mxu0 0.0
    %4586 = vmatprep.subr.mxu0 0.0
    %4587 = vmatpush1.msra.mxu0 0.0
    %4588 = vmatprep.subr.mxu0 0.0
    %4589 = vmatpush1.msra.mxu0 0.0
    %4590 = vmatprep.subr.mxu0 0.0
    %4591 = vmatpush1.msra.mxu0 0.0
    %4592 = vmatprep.subr.mxu0 0.0
    %4593 = vmatpush1.msra.mxu0 0.0
    %4594 = vmatprep.mubr.f32.mxu0 0.0
    %4595 = vmatmul.mubr.f32.gmra.mrb[0].mxu0 %v4458
    %v4596 = vpop.f32.mrb[0].mxu0
    %v4597 = vadd.f32 %v1676, %v4596
    %v4598 = vpop.f32.mrb[0].mxu0
    %4599 = vdwg.mxu0
    %4600 = vmatprep.subr.mxu0 0.0
    %4601 = vmatpush1.msra.mxu0 %v1562
    %4602 = vmatprep.subr.mxu0 0.0
    %4603 = vmatpush1.msra.mxu0 %v1563
    %4604 = vmatprep.subr.mxu0 0.0
    %4605 = vmatpush1.msra.mxu0 %v1564
    %4606 = vmatprep.subr.mxu0 0.0
    %4607 = vmatpush1.msra.mxu0 %v1565
    %4608 = vmatprep.subr.mxu0 0.0
    %4609 = vmatpush1.msra.mxu0 0.0
    %4610 = vmatprep.subr.mxu0 0.0
    %4611 = vmatpush1.msra.mxu0 0.0
    %4612 = vmatprep.subr.mxu0 0.0
    %4613 = vmatpush1.msra.mxu0 0.0
    %4614 = vmatprep.subr.mxu0 0.0
    %4615 = vmatpush1.msra.mxu0 0.0
    %4616 = vmatprep.subr.mxu0 0.0
    %4617 = vmatpush1.msra.mxu0 0.0
    %4618 = vmatprep.subr.mxu0 0.0
    %4619 = vmatpush1.msra.mxu0 0.0
    %4620 = vmatprep.subr.mxu0 0.0
    %4621 = vmatpush1.msra.mxu0 0.0
    %4622 = vmatprep.subr.mxu0 0.0
    %4623 = vmatpush1.msra.mxu0 0.0
    %4624 = vmatprep.subr.mxu0 0.0
    %4625 = vmatpush1.msra.mxu0 0.0
    %4626 = vmatprep.subr.mxu0 0.0
    %4627 = vmatpush1.msra.mxu0 0.0
    %4628 = vmatprep.subr.mxu0 0.0
    %4629 = vmatpush1.msra.mxu0 0.0
    %4630 = vmatprep.subr.mxu0 0.0
    %4631 = vmatpush1.msra.mxu0 0.0
    %4632 = vmatprep.subr.mxu0 0.0
    %4633 = vmatpush1.msra.mxu0 0.0
    %4634 = vmatprep.subr.mxu0 0.0
    %4635 = vmatpush1.msra.mxu0 0.0
    %4636 = vmatprep.subr.mxu0 0.0
    %4637 = vmatpush1.msra.mxu0 0.0
    %4638 = vmatprep.subr.mxu0 0.0
    %4639 = vmatpush1.msra.mxu0 0.0
    %4640 = vmatprep.subr.mxu0 0.0
    %4641 = vmatpush1.msra.mxu0 0.0
    %4642 = vmatprep.subr.mxu0 0.0
    %4643 = vmatpush1.msra.mxu0 0.0
    %4644 = vmatprep.subr.mxu0 0.0
    %4645 = vmatpush1.msra.mxu0 0.0
    %4646 = vmatprep.subr.mxu0 0.0
    %4647 = vmatpush1.msra.mxu0 0.0
    %4648 = vmatprep.subr.mxu0 0.0
    %4649 = vmatpush1.msra.mxu0 0.0
    %4650 = vmatprep.subr.mxu0 0.0
    %4651 = vmatpush1.msra.mxu0 0.0
    %4652 = vmatprep.subr.mxu0 0.0
    %4653 = vmatpush1.msra.mxu0 0.0
    %4654 = vmatprep.subr.mxu0 0.0
    %4655 = vmatpush1.msra.mxu0 0.0
    %4656 = vmatprep.subr.mxu0 0.0
    %4657 = vmatpush1.msra.mxu0 0.0
    %4658 = vmatprep.subr.mxu0 0.0
    %4659 = vmatpush1.msra.mxu0 0.0
    %4660 = vmatprep.subr.mxu0 0.0
    %4661 = vmatpush1.msra.mxu0 0.0
    %4662 = vmatprep.subr.mxu0 0.0
    %4663 = vmatpush1.msra.mxu0 0.0
    %4664 = vmatprep.mubr.f32.mxu0 0.0
    %4665 = vmatmul.mubr.f32.gmra.mrb[0].mxu0 %v4458
    %v4666 = vpop.f32.mrb[0].mxu0
    %v4667 = vadd.f32 %v1752, %v4666
    %v4668 = vpop.f32.mrb[0].mxu0
    %4669 = vdwg.mxu0
    %v4670 = vadd.f32 %v390, %v4527
    %v4671 = vxor.u32 %v4670, 2147483648
    %v4672 = vmul.f32 %v4671, 1.442695
    %v4673 = vpow.pop %v4672
    %v4674 = vadd.f32 %v4673, 1.0
    %v4675 = vrcp.pop %v4674
    %v4676 = vmul.f32 1.0, %v4675
    %v4677 = vadd.f32 %v622, %v4597
    %v4678 = vxor.u32 %v4677, 2147483648
    %v4679 = vmul.f32 %v4678, 1.442695
    %v4680 = vpow.pop %v4679
    %v4681 = vadd.f32 %v4680, 1.0
    %v4682 = vrcp.pop %v4681
    %v4683 = vmul.f32 1.0, %v4682
    %v4684 = vmul.f32 %v4676, %v4667
    %v4685 = vadd.f32 %v854, %v4684
    %v4686 = vtanh.pop %v4685
    %v4687 = vsub.f32 1.0, %v4683
    %v4688 = vmul.f32 %v4687, %v4686
    %v4689 = vmul.f32 %v4683, %v4218
    %v4690 = vadd.f32 %v4688, %v4689
    %v4692 = vsel %vm1598, %v4452, 0
    %4694 = vmatprep.subr.mxu0 0.0
    %4695 = vmatpush1.msra.mxu0 %v1567
    %4696 = vmatprep.subr.mxu0 0.0
    %4697 = vmatpush1.msra.mxu0 %v1568
    %4698 = vmatprep.subr.mxu0 0.0
    %4699 = vmatpush1.msra.mxu0 %v1569
    %4700 = vmatprep.subr.mxu0 0.0
    %4701 = vmatpush1.msra.mxu0 %v1570
    %4702 = vmatprep.subr.mxu0 0.0
    %4703 = vmatpush1.msra.mxu0 0.0
    %4704 = vmatprep.subr.mxu0 0.0
    %4705 = vmatpush1.msra.mxu0 0.0
    %4706 = vmatprep.subr.mxu0 0.0
    %4707 = vmatpush1.msra.mxu0 0.0
    %4708 = vmatprep.subr.mxu0 0.0
    %4709 = vmatpush1.msra.mxu0 0.0
    %4710 = vmatprep.subr.mxu0 0.0
    %4711 = vmatpush1.msra.mxu0 0.0
    %4712 = vmatprep.subr.mxu0 0.0
    %4713 = vmatpush1.msra.mxu0 0.0
    %4714 = vmatprep.subr.mxu0 0.0
    %4715 = vmatpush1.msra.mxu0 0.0
    %4716 = vmatprep.subr.mxu0 0.0
    %4717 = vmatpush1.msra.mxu0 0.0
    %4718 = vmatprep.subr.mxu0 0.0
    %4719 = vmatpush1.msra.mxu0 0.0
    %4720 = vmatprep.subr.mxu0 0.0
    %4721 = vmatpush1.msra.mxu0 0.0
    %4722 = vmatprep.subr.mxu0 0.0
    %4723 = vmatpush1.msra.mxu0 0.0
    %4724 = vmatprep.subr.mxu0 0.0
    %4725 = vmatpush1.msra.mxu0 0.0
    %4726 = vmatprep.subr.mxu0 0.0
    %4727 = vmatpush1.msra.mxu0 0.0
    %4728 = vmatprep.subr.mxu0 0.0
    %4729 = vmatpush1.msra.mxu0 0.0
    %4730 = vmatprep.subr.mxu0 0.0
    %4731 = vmatpush1.msra.mxu0 0.0
    %4732 = vmatprep.subr.mxu0 0.0
    %4733 = vmatpush1.msra.mxu0 0.0
    %4734 = vmatprep.subr.mxu0 0.0
    %4735 = vmatpush1.msra.mxu0 0.0
    %4736 = vmatprep.subr.mxu0 0.0
    %4737 = vmatpush1.msra.mxu0 0.0
    %4738 = vmatprep.subr.mxu0 0.0
    %4739 = vmatpush1.msra.mxu0 0.0
    %4740 = vmatprep.subr.mxu0 0.0
    %4741 = vmatpush1.msra.mxu0 0.0
    %4742 = vmatprep.subr.mxu0 0.0
    %4743 = vmatpush1.msra.mxu0 0.0
    %4744 = vmatprep.subr.mxu0 0.0
    %4745 = vmatpush1.msra.mxu0 0.0
    %4746 = vmatprep.subr.mxu0 0.0
    %4747 = vmatpush1.msra.mxu0 0.0
    %4748 = vmatprep.subr.mxu0 0.0
    %4749 = vmatpush1.msra.mxu0 0.0
    %4750 = vmatprep.subr.mxu0 0.0
    %4751 = vmatpush1.msra.mxu0 0.0
    %4752 = vmatprep.subr.mxu0 0.0
    %4753 = vmatpush1.msra.mxu0 0.0
    %4754 = vmatprep.subr.mxu0 0.0
    %4755 = vmatpush1.msra.mxu0 0.0
    %4756 = vmatprep.subr.mxu0 0.0
    %4757 = vmatpush1.msra.mxu0 0.0
    %4758 = vmatprep.mubr.f32.mxu0 0.0
    %4759 = vmatmul.mubr.f32.gmra.mrb[0].mxu0 %v4692
    %v4760 = vpop.f32.mrb[0].mxu0
    %v4761 = vadd.f32 %v1849, %v4760
    %v4762 = vpop.f32.mrb[0].mxu0
    %4763 = vdwg.mxu0
    %4764 = vmatprep.subr.mxu0 0.0
    %4765 = vmatpush1.msra.mxu0 %v1572
    %4766 = vmatprep.subr.mxu0 0.0
    %4767 = vmatpush1.msra.mxu0 %v1573
    %4768 = vmatprep.subr.mxu0 0.0
    %4769 = vmatpush1.msra.mxu0 %v1574
    %4770 = vmatprep.subr.mxu0 0.0
    %4771 = vmatpush1.msra.mxu0 %v1575
    %4772 = vmatprep.subr.mxu0 0.0
    %4773 = vmatpush1.msra.mxu0 0.0
    %4774 = vmatprep.subr.mxu0 0.0
    %4775 = vmatpush1.msra.mxu0 0.0
    %4776 = vmatprep.subr.mxu0 0.0
    %4777 = vmatpush1.msra.mxu0 0.0
    %4778 = vmatprep.subr.mxu0 0.0
    %4779 = vmatpush1.msra.mxu0 0.0
    %4780 = vmatprep.subr.mxu0 0.0
    %4781 = vmatpush1.msra.mxu0 0.0
    %4782 = vmatprep.subr.mxu0 0.0
    %4783 = vmatpush1.msra.mxu0 0.0
    %4784 = vmatprep.subr.mxu0 0.0
    %4785 = vmatpush1.msra.mxu0 0.0
    %4786 = vmatprep.subr.mxu0 0.0
    %4787 = vmatpush1.msra.mxu0 0.0
    %4788 = vmatprep.subr.mxu0 0.0
    %4789 = vmatpush1.msra.mxu0 0.0
    %4790 = vmatprep.subr.mxu0 0.0
    %4791 = vmatpush1.msra.mxu0 0.0
    %4792 = vmatprep.subr.mxu0 0.0
    %4793 = vmatpush1.msra.mxu0 0.0
    %4794 = vmatprep.subr.mxu0 0.0
    %4795 = vmatpush1.msra.mxu0 0.0
    %4796 = vmatprep.subr.mxu0 0.0
    %4797 = vmatpush1.msra.mxu0 0.0
    %4798 = vmatprep.subr.mxu0 0.0
    %4799 = vmatpush1.msra.mxu0 0.0
    %4800 = vmatprep.subr.mxu0 0.0
    %4801 = vmatpush1.msra.mxu0 0.0
    %4802 = vmatprep.subr.mxu0 0.0
    %4803 = vmatpush1.msra.mxu0 0.0
    %4804 = vmatprep.subr.mxu0 0.0
    %4805 = vmatpush1.msra.mxu0 0.0
    %4806 = vmatprep.subr.mxu0 0.0
    %4807 = vmatpush1.msra.mxu0 0.0
    %4808 = vmatprep.subr.mxu0 0.0
    %4809 = vmatpush1.msra.mxu0 0.0
    %4810 = vmatprep.subr.mxu0 0.0
    %4811 = vmatpush1.msra.mxu0 0.0
    %4812 = vmatprep.subr.mxu0 0.0
    %4813 = vmatpush1.msra.mxu0 0.0
    %4814 = vmatprep.subr.mxu0 0.0
    %4815 = vmatpush1.msra.mxu0 0.0
    %4816 = vmatprep.subr.mxu0 0.0
    %4817 = vmatpush1.msra.mxu0 0.0
    %4818 = vmatprep.subr.mxu0 0.0
    %4819 = vmatpush1.msra.mxu0 0.0
    %4820 = vmatprep.subr.mxu0 0.0
    %4821 = vmatpush1.msra.mxu0 0.0
    %4822 = vmatprep.subr.mxu0 0.0
    %4823 = vmatpush1.msra.mxu0 0.0
    %4824 = vmatprep.subr.mxu0 0.0
    %4825 = vmatpush1.msra.mxu0 0.0
    %4826 = vmatprep.subr.mxu0 0.0
    %4827 = vmatpush1.msra.mxu0 0.0
    %4828 = vmatprep.mubr.f32.mxu0 0.0
    %4829 = vmatmul.mubr.f32.gmra.mrb[0].mxu0 %v4692
    %v4830 = vpop.f32.mrb[0].mxu0
    %v4831 = vadd.f32 %v1925, %v4830
    %v4832 = vpop.f32.mrb[0].mxu0
    %4833 = vdwg.mxu0
    %4834 = vmatprep.subr.mxu0 0.0
    %4835 = vmatpush1.msra.mxu0 %v1577
    %4836 = vmatprep.subr.mxu0 0.0
    %4837 = vmatpush1.msra.mxu0 %v1578
    %4838 = vmatprep.subr.mxu0 0.0
    %4839 = vmatpush1.msra.mxu0 %v1579
    %4840 = vmatprep.subr.mxu0 0.0
    %4841 = vmatpush1.msra.mxu0 %v1580
    %4842 = vmatprep.subr.mxu0 0.0
    %4843 = vmatpush1.msra.mxu0 0.0
    %4844 = vmatprep.subr.mxu0 0.0
    %4845 = vmatpush1.msra.mxu0 0.0
    %4846 = vmatprep.subr.mxu0 0.0
    %4847 = vmatpush1.msra.mxu0 0.0
    %4848 = vmatprep.subr.mxu0 0.0
    %4849 = vmatpush1.msra.mxu0 0.0
    %4850 = vmatprep.subr.mxu0 0.0
    %4851 = vmatpush1.msra.mxu0 0.0
    %4852 = vmatprep.subr.mxu0 0.0
    %4853 = vmatpush1.msra.mxu0 0.0
    %4854 = vmatprep.subr.mxu0 0.0
    %4855 = vmatpush1.msra.mxu0 0.0
    %4856 = vmatprep.subr.mxu0 0.0
    %4857 = vmatpush1.msra.mxu0 0.0
    %4858 = vmatprep.subr.mxu0 0.0
    %4859 = vmatpush1.msra.mxu0 0.0
    %4860 = vmatprep.subr.mxu0 0.0
    %4861 = vmatpush1.msra.mxu0 0.0
    %4862 = vmatprep.subr.mxu0 0.0
    %4863 = vmatpush1.msra.mxu0 0.0
    %4864 = vmatprep.subr.mxu0 0.0
    %4865 = vmatpush1.msra.mxu0 0.0
    %4866 = vmatprep.subr.mxu0 0.0
    %4867 = vmatpush1.msra.mxu0 0.0
    %4868 = vmatprep.subr.mxu0 0.0
    %4869 = vmatpush1.msra.mxu0 0.0
    %4870 = vmatprep.subr.mxu0 0.0
    %4871 = vmatpush1.msra.mxu0 0.0
    %4872 = vmatprep.subr.mxu0 0.0
    %4873 = vmatpush1.msra.mxu0 0.0
    %4874 = vmatprep.subr.mxu0 0.0
    %4875 = vmatpush1.msra.mxu0 0.0
    %4876 = vmatprep.subr.mxu0 0.0
    %4877 = vmatpush1.msra.mxu0 0.0
    %4878 = vmatprep.subr.mxu0 0.0
    %4879 = vmatpush1.msra.mxu0 0.0
    %4880 = vmatprep.subr.mxu0 0.0
    %4881 = vmatpush1.msra.mxu0 0.0
    %4882 = vmatprep.subr.mxu0 0.0
    %4883 = vmatpush1.msra.mxu0 0.0
    %4884 = vmatprep.subr.mxu0 0.0
    %4885 = vmatpush1.msra.mxu0 0.0
    %4886 = vmatprep.subr.mxu0 0.0
    %4887 = vmatpush1.msra.mxu0 0.0
    %4888 = vmatprep.subr.mxu0 0.0
    %4889 = vmatpush1.msra.mxu0 0.0
    %4890 = vmatprep.subr.mxu0 0.0
    %4891 = vmatpush1.msra.mxu0 0.0
    %4892 = vmatprep.subr.mxu0 0.0
    %4893 = vmatpush1.msra.mxu0 0.0
    %4894 = vmatprep.subr.mxu0 0.0
    %4895 = vmatpush1.msra.mxu0 0.0
    %4896 = vmatprep.subr.mxu0 0.0
    %4897 = vmatpush1.msra.mxu0 0.0
    %4898 = vmatprep.mubr.f32.mxu0 0.0
    %4899 = vmatmul.mubr.f32.gmra.mrb[0].mxu0 %v4692
    %v4900 = vpop.f32.mrb[0].mxu0
    %v4901 = vadd.f32 %v2001, %v4900
    %v4902 = vpop.f32.mrb[0].mxu0
    %4903 = vdwg.mxu0
    %v4904 = vadd.f32 %v1081, %v4761
    %v4905 = vxor.u32 %v4904, 2147483648
    %v4906 = vmul.f32 %v4905, 1.442695
    %v4907 = vpow.pop %v4906
    %v4908 = vadd.f32 %v4907, 1.0
    %v4909 = vrcp.pop %v4908
    %v4910 = vmul.f32 1.0, %v4909
    %v4911 = vadd.f32 %v1313, %v4831
    %v4912 = vxor.u32 %v4911, 2147483648
    %v4913 = vmul.f32 %v4912, 1.442695
    %v4914 = vpow.pop %v4913
    %v4915 = vadd.f32 %v4914, 1.0
    %v4916 = vrcp.pop %v4915
    %v4917 = vmul.f32 1.0, %v4916
    %v4918 = vmul.f32 %v4910, %v4901
    %v4919 = vadd.f32 %v1545, %v4918
    %v4920 = vtanh.pop %v4919
    %v4921 = vsub.f32 1.0, %v4917
    %v4922 = vmul.f32 %v4921, %v4920
    %v4923 = vmul.f32 %v4917, %v4452
    %v4924 = vadd.f32 %v4922, %v4923
    %s4925 = scalar_lea.vmem [#allocation11], 48
    %4926 = vst.msk [vmem:[%s4925] sm:$0xff] %vm1598, %v4690
    %s4927 = scalar_lea.vmem [#allocation12], 8
    %4928 = vst.msk [vmem:[%s4927] sm:$0xff] %vm1598, %v4924
    %v4930 = vsel %vm1598, %v4690, 0
    %4932 = vmatprep.subr.mxu0 0.0
    %4933 = vmatpush1.msra.mxu0 %v1552
    %4934 = vmatprep.subr.mxu0 0.0
    %4935 = vmatpush1.msra.mxu0 %v1553
    %4936 = vmatprep.subr.mxu0 0.0
    %4937 = vmatpush1.msra.mxu0 %v1554
    %4938 = vmatprep.subr.mxu0 0.0
    %4939 = vmatpush1.msra.mxu0 %v1555
    %4940 = vmatprep.subr.mxu0 0.0
    %4941 = vmatpush1.msra.mxu0 0.0
    %4942 = vmatprep.subr.mxu0 0.0
    %4943 = vmatpush1.msra.mxu0 0.0
    %4944 = vmatprep.subr.mxu0 0.0
    %4945 = vmatpush1.msra.mxu0 0.0
    %4946 = vmatprep.subr.mxu0 0.0
    %4947 = vmatpush1.msra.mxu0 0.0
    %4948 = vmatprep.subr.mxu0 0.0
    %4949 = vmatpush1.msra.mxu0 0.0
    %4950 = vmatprep.subr.mxu0 0.0
    %4951 = vmatpush1.msra.mxu0 0.0
    %4952 = vmatprep.subr.mxu0 0.0
    %4953 = vmatpush1.msra.mxu0 0.0
    %4954 = vmatprep.subr.mxu0 0.0
    %4955 = vmatpush1.msra.mxu0 0.0
    %4956 = vmatprep.subr.mxu0 0.0
    %4957 = vmatpush1.msra.mxu0 0.0
    %4958 = vmatprep.subr.mxu0 0.0
    %4959 = vmatpush1.msra.mxu0 0.0
    %4960 = vmatprep.subr.mxu0 0.0
    %4961 = vmatpush1.msra.mxu0 0.0
    %4962 = vmatprep.subr.mxu0 0.0
    %4963 = vmatpush1.msra.mxu0 0.0
    %4964 = vmatprep.subr.mxu0 0.0
    %4965 = vmatpush1.msra.mxu0 0.0
    %4966 = vmatprep.subr.mxu0 0.0
    %4967 = vmatpush1.msra.mxu0 0.0
    %4968 = vmatprep.subr.mxu0 0.0
    %4969 = vmatpush1.msra.mxu0 0.0
    %4970 = vmatprep.subr.mxu0 0.0
    %4971 = vmatpush1.msra.mxu0 0.0
    %4972 = vmatprep.subr.mxu0 0.0
    %4973 = vmatpush1.msra.mxu0 0.0
    %4974 = vmatprep.subr.mxu0 0.0
    %4975 = vmatpush1.msra.mxu0 0.0
    %4976 = vmatprep.subr.mxu0 0.0
    %4977 = vmatpush1.msra.mxu0 0.0
    %4978 = vmatprep.subr.mxu0 0.0
    %4979 = vmatpush1.msra.mxu0 0.0
    %4980 = vmatprep.subr.mxu0 0.0
    %4981 = vmatpush1.msra.mxu0 0.0
    %4982 = vmatprep.subr.mxu0 0.0
    %4983 = vmatpush1.msra.mxu0 0.0
    %4984 = vmatprep.subr.mxu0 0.0
    %4985 = vmatpush1.msra.mxu0 0.0
    %4986 = vmatprep.subr.mxu0 0.0
    %4987 = vmatpush1.msra.mxu0 0.0
    %4988 = vmatprep.subr.mxu0 0.0
    %4989 = vmatpush1.msra.mxu0 0.0
    %4990 = vmatprep.subr.mxu0 0.0
    %4991 = vmatpush1.msra.mxu0 0.0
    %4992 = vmatprep.subr.mxu0 0.0
    %4993 = vmatpush1.msra.mxu0 0.0
    %4994 = vmatprep.subr.mxu0 0.0
    %4995 = vmatpush1.msra.mxu0 0.0
    %4996 = vmatprep.mubr.f32.mxu0 0.0
    %4997 = vmatmul.mubr.f32.gmra.mrb[0].mxu0 %v4930
    %v4998 = vpop.f32.mrb[0].mxu0
    %v4999 = vadd.f32 %v1596, %v4998
    %v5000 = vpop.f32.mrb[0].mxu0
    %5001 = vdwg.mxu0
    %5002 = vmatprep.subr.mxu0 0.0
    %5003 = vmatpush1.msra.mxu0 %v1557
    %5004 = vmatprep.subr.mxu0 0.0
    %5005 = vmatpush1.msra.mxu0 %v1558
    %5006 = vmatprep.subr.mxu0 0.0
    %5007 = vmatpush1.msra.mxu0 %v1559
    %5008 = vmatprep.subr.mxu0 0.0
    %5009 = vmatpush1.msra.mxu0 %v1560
    %5010 = vmatprep.subr.mxu0 0.0
    %5011 = vmatpush1.msra.mxu0 0.0
    %5012 = vmatprep.subr.mxu0 0.0
    %5013 = vmatpush1.msra.mxu0 0.0
    %5014 = vmatprep.subr.mxu0 0.0
    %5015 = vmatpush1.msra.mxu0 0.0
    %5016 = vmatprep.subr.mxu0 0.0
    %5017 = vmatpush1.msra.mxu0 0.0
    %5018 = vmatprep.subr.mxu0 0.0
    %5019 = vmatpush1.msra.mxu0 0.0
    %5020 = vmatprep.subr.mxu0 0.0
    %5021 = vmatpush1.msra.mxu0 0.0
    %5022 = vmatprep.subr.mxu0 0.0
    %5023 = vmatpush1.msra.mxu0 0.0
    %5024 = vmatprep.subr.mxu0 0.0
    %5025 = vmatpush1.msra.mxu0 0.0
    %5026 = vmatprep.subr.mxu0 0.0
    %5027 = vmatpush1.msra.mxu0 0.0
    %5028 = vmatprep.subr.mxu0 0.0
    %5029 = vmatpush1.msra.mxu0 0.0
    %5030 = vmatprep.subr.mxu0 0.0
    %5031 = vmatpush1.msra.mxu0 0.0
    %5032 = vmatprep.subr.mxu0 0.0
    %5033 = vmatpush1.msra.mxu0 0.0
    %5034 = vmatprep.subr.mxu0 0.0
    %5035 = vmatpush1.msra.mxu0 0.0
    %5036 = vmatprep.subr.mxu0 0.0
    %5037 = vmatpush1.msra.mxu0 0.0
    %5038 = vmatprep.subr.mxu0 0.0
    %5039 = vmatpush1.msra.mxu0 0.0
    %5040 = vmatprep.subr.mxu0 0.0
    %5041 = vmatpush1.msra.mxu0 0.0
    %5042 = vmatprep.subr.mxu0 0.0
    %5043 = vmatpush1.msra.mxu0 0.0
    %5044 = vmatprep.subr.mxu0 0.0
    %5045 = vmatpush1.msra.mxu0 0.0
    %5046 = vmatprep.subr.mxu0 0.0
    %5047 = vmatpush1.msra.mxu0 0.0
    %5048 = vmatprep.subr.mxu0 0.0
    %5049 = vmatpush1.msra.mxu0 0.0
    %5050 = vmatprep.subr.mxu0 0.0
    %5051 = vmatpush1.msra.mxu0 0.0
    %5052 = vmatprep.subr.mxu0 0.0
    %5053 = vmatpush1.msra.mxu0 0.0
    %5054 = vmatprep.subr.mxu0 0.0
    %5055 = vmatpush1.msra.mxu0 0.0
    %5056 = vmatprep.subr.mxu0 0.0
    %5057 = vmatpush1.msra.mxu0 0.0
    %5058 = vmatprep.subr.mxu0 0.0
    %5059 = vmatpush1.msra.mxu0 0.0
    %5060 = vmatprep.subr.mxu0 0.0
    %5061 = vmatpush1.msra.mxu0 0.0
    %5062 = vmatprep.subr.mxu0 0.0
    %5063 = vmatpush1.msra.mxu0 0.0
    %5064 = vmatprep.subr.mxu0 0.0
    %5065 = vmatpush1.msra.mxu0 0.0
    %5066 = vmatprep.mubr.f32.mxu0 0.0
    %5067 = vmatmul.mubr.f32.gmra.mrb[0].mxu0 %v4930
    %v5068 = vpop.f32.mrb[0].mxu0
    %v5069 = vadd.f32 %v1676, %v5068
    %v5070 = vpop.f32.mrb[0].mxu0
    %5071 = vdwg.mxu0
    %5072 = vmatprep.subr.mxu0 0.0
    %5073 = vmatpush1.msra.mxu0 %v1562
    %5074 = vmatprep.subr.mxu0 0.0
    %5075 = vmatpush1.msra.mxu0 %v1563
    %5076 = vmatprep.subr.mxu0 0.0
    %5077 = vmatpush1.msra.mxu0 %v1564
    %5078 = vmatprep.subr.mxu0 0.0
    %5079 = vmatpush1.msra.mxu0 %v1565
    %5080 = vmatprep.subr.mxu0 0.0
    %5081 = vmatpush1.msra.mxu0 0.0
    %5082 = vmatprep.subr.mxu0 0.0
    %5083 = vmatpush1.msra.mxu0 0.0
    %5084 = vmatprep.subr.mxu0 0.0
    %5085 = vmatpush1.msra.mxu0 0.0
    %5086 = vmatprep.subr.mxu0 0.0
    %5087 = vmatpush1.msra.mxu0 0.0
    %5088 = vmatprep.subr.mxu0 0.0
    %5089 = vmatpush1.msra.mxu0 0.0
    %5090 = vmatprep.subr.mxu0 0.0
    %5091 = vmatpush1.msra.mxu0 0.0
    %5092 = vmatprep.subr.mxu0 0.0
    %5093 = vmatpush1.msra.mxu0 0.0
    %5094 = vmatprep.subr.mxu0 0.0
    %5095 = vmatpush1.msra.mxu0 0.0
    %5096 = vmatprep.subr.mxu0 0.0
    %5097 = vmatpush1.msra.mxu0 0.0
    %5098 = vmatprep.subr.mxu0 0.0
    %5099 = vmatpush1.msra.mxu0 0.0
    %5100 = vmatprep.subr.mxu0 0.0
    %5101 = vmatpush1.msra.mxu0 0.0
    %5102 = vmatprep.subr.mxu0 0.0
    %5103 = vmatpush1.msra.mxu0 0.0
    %5104 = vmatprep.subr.mxu0 0.0
    %5105 = vmatpush1.msra.mxu0 0.0
    %5106 = vmatprep.subr.mxu0 0.0
    %5107 = vmatpush1.msra.mxu0 0.0
    %5108 = vmatprep.subr.mxu0 0.0
    %5109 = vmatpush1.msra.mxu0 0.0
    %5110 = vmatprep.subr.mxu0 0.0
    %5111 = vmatpush1.msra.mxu0 0.0
    %5112 = vmatprep.subr.mxu0 0.0
    %5113 = vmatpush1.msra.mxu0 0.0
    %5114 = vmatprep.subr.mxu0 0.0
    %5115 = vmatpush1.msra.mxu0 0.0
    %5116 = vmatprep.subr.mxu0 0.0
    %5117 = vmatpush1.msra.mxu0 0.0
    %5118 = vmatprep.subr.mxu0 0.0
    %5119 = vmatpush1.msra.mxu0 0.0
    %5120 = vmatprep.subr.mxu0 0.0
    %5121 = vmatpush1.msra.mxu0 0.0
    %5122 = vmatprep.subr.mxu0 0.0
    %5123 = vmatpush1.msra.mxu0 0.0
    %5124 = vmatprep.subr.mxu0 0.0
    %5125 = vmatpush1.msra.mxu0 0.0
    %5126 = vmatprep.subr.mxu0 0.0
    %5127 = vmatpush1.msra.mxu0 0.0
    %5128 = vmatprep.subr.mxu0 0.0
    %5129 = vmatpush1.msra.mxu0 0.0
    %5130 = vmatprep.subr.mxu0 0.0
    %5131 = vmatpush1.msra.mxu0 0.0
    %5132 = vmatprep.subr.mxu0 0.0
    %5133 = vmatpush1.msra.mxu0 0.0
    %5134 = vmatprep.subr.mxu0 0.0
    %5135 = vmatpush1.msra.mxu0 0.0
    %5136 = vmatprep.mubr.f32.mxu0 0.0
    %5137 = vmatmul.mubr.f32.gmra.mrb[0].mxu0 %v4930
    %v5138 = vpop.f32.mrb[0].mxu0
    %v5139 = vadd.f32 %v1752, %v5138
    %v5140 = vpop.f32.mrb[0].mxu0
    %5141 = vdwg.mxu0
    %v5142 = vadd.f32 %v391, %v4999
    %v5143 = vxor.u32 %v5142, 2147483648
    %v5144 = vmul.f32 %v5143, 1.442695
    %v5145 = vpow.pop %v5144
    %v5146 = vadd.f32 %v5145, 1.0
    %v5147 = vrcp.pop %v5146
    %v5148 = vmul.f32 1.0, %v5147
    %v5149 = vadd.f32 %v623, %v5069
    %v5150 = vxor.u32 %v5149, 2147483648
    %v5151 = vmul.f32 %v5150, 1.442695
    %v5152 = vpow.pop %v5151
    %v5153 = vadd.f32 %v5152, 1.0
    %v5154 = vrcp.pop %v5153
    %v5155 = vmul.f32 1.0, %v5154
    %v5156 = vmul.f32 %v5148, %v5139
    %v5157 = vadd.f32 %v855, %v5156
    %v5158 = vtanh.pop %v5157
    %v5159 = vsub.f32 1.0, %v5155
    %v5160 = vmul.f32 %v5159, %v5158
    %v5161 = vmul.f32 %v5155, %v4690
    %v5162 = vadd.f32 %v5160, %v5161
    %v5164 = vsel %vm1598, %v4924, 0
    %5166 = vmatprep.subr.mxu0 0.0
    %5167 = vmatpush1.msra.mxu0 %v1567
    %5168 = vmatprep.subr.mxu0 0.0
    %5169 = vmatpush1.msra.mxu0 %v1568
    %5170 = vmatprep.subr.mxu0 0.0
    %5171 = vmatpush1.msra.mxu0 %v1569
    %5172 = vmatprep.subr.mxu0 0.0
    %5173 = vmatpush1.msra.mxu0 %v1570
    %5174 = vmatprep.subr.mxu0 0.0
    %5175 = vmatpush1.msra.mxu0 0.0
    %5176 = vmatprep.subr.mxu0 0.0
    %5177 = vmatpush1.msra.mxu0 0.0
    %5178 = vmatprep.subr.mxu0 0.0
    %5179 = vmatpush1.msra.mxu0 0.0
    %5180 = vmatprep.subr.mxu0 0.0
    %5181 = vmatpush1.msra.mxu0 0.0
    %5182 = vmatprep.subr.mxu0 0.0
    %5183 = vmatpush1.msra.mxu0 0.0
    %5184 = vmatprep.subr.mxu0 0.0
    %5185 = vmatpush1.msra.mxu0 0.0
    %5186 = vmatprep.subr.mxu0 0.0
    %5187 = vmatpush1.msra.mxu0 0.0
    %5188 = vmatprep.subr.mxu0 0.0
    %5189 = vmatpush1.msra.mxu0 0.0
    %5190 = vmatprep.subr.mxu0 0.0
    %5191 = vmatpush1.msra.mxu0 0.0
    %5192 = vmatprep.subr.mxu0 0.0
    %5193 = vmatpush1.msra.mxu0 0.0
    %5194 = vmatprep.subr.mxu0 0.0
    %5195 = vmatpush1.msra.mxu0 0.0
    %5196 = vmatprep.subr.mxu0 0.0
    %5197 = vmatpush1.msra.mxu0 0.0
    %5198 = vmatprep.subr.mxu0 0.0
    %5199 = vmatpush1.msra.mxu0 0.0
    %5200 = vmatprep.subr.mxu0 0.0
    %5201 = vmatpush1.msra.mxu0 0.0
    %5202 = vmatprep.subr.mxu0 0.0
    %5203 = vmatpush1.msra.mxu0 0.0
    %5204 = vmatprep.subr.mxu0 0.0
    %5205 = vmatpush1.msra.mxu0 0.0
    %5206 = vmatprep.subr.mxu0 0.0
    %5207 = vmatpush1.msra.mxu0 0.0
    %5208 = vmatprep.subr.mxu0 0.0
    %5209 = vmatpush1.msra.mxu0 0.0
    %5210 = vmatprep.subr.mxu0 0.0
    %5211 = vmatpush1.msra.mxu0 0.0
    %5212 = vmatprep.subr.mxu0 0.0
    %5213 = vmatpush1.msra.mxu0 0.0
    %5214 = vmatprep.subr.mxu0 0.0
    %5215 = vmatpush1.msra.mxu0 0.0
    %5216 = vmatprep.subr.mxu0 0.0
    %5217 = vmatpush1.msra.mxu0 0.0
    %5218 = vmatprep.subr.mxu0 0.0
    %5219 = vmatpush1.msra.mxu0 0.0
    %5220 = vmatprep.subr.mxu0 0.0
    %5221 = vmatpush1.msra.mxu0 0.0
    %5222 = vmatprep.subr.mxu0 0.0
    %5223 = vmatpush1.msra.mxu0 0.0
    %5224 = vmatprep.subr.mxu0 0.0
    %5225 = vmatpush1.msra.mxu0 0.0
    %5226 = vmatprep.subr.mxu0 0.0
    %5227 = vmatpush1.msra.mxu0 0.0
    %5228 = vmatprep.subr.mxu0 0.0
    %5229 = vmatpush1.msra.mxu0 0.0
    %5230 = vmatprep.mubr.f32.mxu0 0.0
    %5231 = vmatmul.mubr.f32.gmra.mrb[0].mxu0 %v5164
    %v5232 = vpop.f32.mrb[0].mxu0
    %v5233 = vadd.f32 %v1849, %v5232
    %v5234 = vpop.f32.mrb[0].mxu0
    %5235 = vdwg.mxu0
    %5236 = vmatprep.subr.mxu0 0.0
    %5237 = vmatpush1.msra.mxu0 %v1572
    %5238 = vmatprep.subr.mxu0 0.0
    %5239 = vmatpush1.msra.mxu0 %v1573
    %5240 = vmatprep.subr.mxu0 0.0
    %5241 = vmatpush1.msra.mxu0 %v1574
    %5242 = vmatprep.subr.mxu0 0.0
    %5243 = vmatpush1.msra.mxu0 %v1575
    %5244 = vmatprep.subr.mxu0 0.0
    %5245 = vmatpush1.msra.mxu0 0.0
    %5246 = vmatprep.subr.mxu0 0.0
    %5247 = vmatpush1.msra.mxu0 0.0
    %5248 = vmatprep.subr.mxu0 0.0
    %5249 = vmatpush1.msra.mxu0 0.0
    %5250 = vmatprep.subr.mxu0 0.0
    %5251 = vmatpush1.msra.mxu0 0.0
    %5252 = vmatprep.subr.mxu0 0.0
    %5253 = vmatpush1.msra.mxu0 0.0
    %5254 = vmatprep.subr.mxu0 0.0
    %5255 = vmatpush1.msra.mxu0 0.0
    %5256 = vmatprep.subr.mxu0 0.0
    %5257 = vmatpush1.msra.mxu0 0.0
    %5258 = vmatprep.subr.mxu0 0.0
    %5259 = vmatpush1.msra.mxu0 0.0
    %5260 = vmatprep.subr.mxu0 0.0
    %5261 = vmatpush1.msra.mxu0 0.0
    %5262 = vmatprep.subr.mxu0 0.0
    %5263 = vmatpush1.msra.mxu0 0.0
    %5264 = vmatprep.subr.mxu0 0.0
    %5265 = vmatpush1.msra.mxu0 0.0
    %5266 = vmatprep.subr.mxu0 0.0
    %5267 = vmatpush1.msra.mxu0 0.0
    %5268 = vmatprep.subr.mxu0 0.0
    %5269 = vmatpush1.msra.mxu0 0.0
    %5270 = vmatprep.subr.mxu0 0.0
    %5271 = vmatpush1.msra.mxu0 0.0
    %5272 = vmatprep.subr.mxu0 0.0
    %5273 = vmatpush1.msra.mxu0 0.0
    %5274 = vmatprep.subr.mxu0 0.0
    %5275 = vmatpush1.msra.mxu0 0.0
    %5276 = vmatprep.subr.mxu0 0.0
    %5277 = vmatpush1.msra.mxu0 0.0
    %5278 = vmatprep.subr.mxu0 0.0
    %5279 = vmatpush1.msra.mxu0 0.0
    %5280 = vmatprep.subr.mxu0 0.0
    %5281 = vmatpush1.msra.mxu0 0.0
    %5282 = vmatprep.subr.mxu0 0.0
    %5283 = vmatpush1.msra.mxu0 0.0
    %5284 = vmatprep.subr.mxu0 0.0
    %5285 = vmatpush1.msra.mxu0 0.0
    %5286 = vmatprep.subr.mxu0 0.0
    %5287 = vmatpush1.msra.mxu0 0.0
    %5288 = vmatprep.subr.mxu0 0.0
    %5289 = vmatpush1.msra.mxu0 0.0
    %5290 = vmatprep.subr.mxu0 0.0
    %5291 = vmatpush1.msra.mxu0 0.0
    %5292 = vmatprep.subr.mxu0 0.0
    %5293 = vmatpush1.msra.mxu0 0.0
    %5294 = vmatprep.subr.mxu0 0.0
    %5295 = vmatpush1.msra.mxu0 0.0
    %5296 = vmatprep.subr.mxu0 0.0
    %5297 = vmatpush1.msra.mxu0 0.0
    %5298 = vmatprep.subr.mxu0 0.0
    %5299 = vmatpush1.msra.mxu0 0.0
    %5300 = vmatprep.mubr.f32.mxu0 0.0
    %5301 = vmatmul.mubr.f32.gmra.mrb[0].mxu0 %v5164
    %v5302 = vpop.f32.mrb[0].mxu0
    %v5303 = vadd.f32 %v1925, %v5302
    %v5304 = vpop.f32.mrb[0].mxu0
    %5305 = vdwg.mxu0
    %5306 = vmatprep.subr.mxu0 0.0
    %5307 = vmatpush1.msra.mxu0 %v1577
    %5308 = vmatprep.subr.mxu0 0.0
    %5309 = vmatpush1.msra.mxu0 %v1578
    %5310 = vmatprep.subr.mxu0 0.0
    %5311 = vmatpush1.msra.mxu0 %v1579
    %5312 = vmatprep.subr.mxu0 0.0
    %5313 = vmatpush1.msra.mxu0 %v1580
    %5314 = vmatprep.subr.mxu0 0.0
    %5315 = vmatpush1.msra.mxu0 0.0
    %5316 = vmatprep.subr.mxu0 0.0
    %5317 = vmatpush1.msra.mxu0 0.0
    %5318 = vmatprep.subr.mxu0 0.0
    %5319 = vmatpush1.msra.mxu0 0.0
    %5320 = vmatprep.subr.mxu0 0.0
    %5321 = vmatpush1.msra.mxu0 0.0
    %5322 = vmatprep.subr.mxu0 0.0
    %5323 = vmatpush1.msra.mxu0 0.0
    %5324 = vmatprep.subr.mxu0 0.0
    %5325 = vmatpush1.msra.mxu0 0.0
    %5326 = vmatprep.subr.mxu0 0.0
    %5327 = vmatpush1.msra.mxu0 0.0
    %5328 = vmatprep.subr.mxu0 0.0
    %5329 = vmatpush1.msra.mxu0 0.0
    %5330 = vmatprep.subr.mxu0 0.0
    %5331 = vmatpush1.msra.mxu0 0.0
    %5332 = vmatprep.subr.mxu0 0.0
    %5333 = vmatpush1.msra.mxu0 0.0
    %5334 = vmatprep.subr.mxu0 0.0
    %5335 = vmatpush1.msra.mxu0 0.0
    %5336 = vmatprep.subr.mxu0 0.0
    %5337 = vmatpush1.msra.mxu0 0.0
    %5338 = vmatprep.subr.mxu0 0.0
    %5339 = vmatpush1.msra.mxu0 0.0
    %5340 = vmatprep.subr.mxu0 0.0
    %5341 = vmatpush1.msra.mxu0 0.0
    %5342 = vmatprep.subr.mxu0 0.0
    %5343 = vmatpush1.msra.mxu0 0.0
    %5344 = vmatprep.subr.mxu0 0.0
    %5345 = vmatpush1.msra.mxu0 0.0
    %5346 = vmatprep.subr.mxu0 0.0
    %5347 = vmatpush1.msra.mxu0 0.0
    %5348 = vmatprep.subr.mxu0 0.0
    %5349 = vmatpush1.msra.mxu0 0.0
    %5350 = vmatprep.subr.mxu0 0.0
    %5351 = vmatpush1.msra.mxu0 0.0
    %5352 = vmatprep.subr.mxu0 0.0
    %5353 = vmatpush1.msra.mxu0 0.0
    %5354 = vmatprep.subr.mxu0 0.0
    %5355 = vmatpush1.msra.mxu0 0.0
    %5356 = vmatprep.subr.mxu0 0.0
    %5357 = vmatpush1.msra.mxu0 0.0
    %5358 = vmatprep.subr.mxu0 0.0
    %5359 = vmatpush1.msra.mxu0 0.0
    %5360 = vmatprep.subr.mxu0 0.0
    %5361 = vmatpush1.msra.mxu0 0.0
    %5362 = vmatprep.subr.mxu0 0.0
    %5363 = vmatpush1.msra.mxu0 0.0
    %5364 = vmatprep.subr.mxu0 0.0
    %5365 = vmatpush1.msra.mxu0 0.0
    %5366 = vmatprep.subr.mxu0 0.0
    %5367 = vmatpush1.msra.mxu0 0.0
    %5368 = vmatprep.subr.mxu0 0.0
    %5369 = vmatpush1.msra.mxu0 0.0
    %5370 = vmatprep.mubr.f32.mxu0 0.0
    %5371 = vmatmul.mubr.f32.gmra.mrb[0].mxu0 %v5164
    %v5372 = vpop.f32.mrb[0].mxu0
    %v5373 = vadd.f32 %v2001, %v5372
    %v5374 = vpop.f32.mrb[0].mxu0
    %5375 = vdwg.mxu0
    %v5376 = vadd.f32 %v1080, %v5233
    %v5377 = vxor.u32 %v5376, 2147483648
    %v5378 = vmul.f32 %v5377, 1.442695
    %v5379 = vpow.pop %v5378
    %v5380 = vadd.f32 %v5379, 1.0
    %v5381 = vrcp.pop %v5380
    %v5382 = vmul.f32 1.0, %v5381
    %v5383 = vadd.f32 %v1312, %v5303
    %v5384 = vxor.u32 %v5383, 2147483648
    %v5385 = vmul.f32 %v5384, 1.442695
    %v5386 = vpow.pop %v5385
    %v5387 = vadd.f32 %v5386, 1.0
    %v5388 = vrcp.pop %v5387
    %v5389 = vmul.f32 1.0, %v5388
    %v5390 = vmul.f32 %v5382, %v5373
    %v5391 = vadd.f32 %v1544, %v5390
    %v5392 = vtanh.pop %v5391
    %v5393 = vsub.f32 1.0, %v5389
    %v5394 = vmul.f32 %v5393, %v5392
    %v5395 = vmul.f32 %v5389, %v4924
    %v5396 = vadd.f32 %v5394, %v5395
    %s5397 = scalar_lea.vmem [#allocation11], 56
    %5398 = vst.msk [vmem:[%s5397] sm:$0xff] %vm1598, %v5162
    %5399 = vst.msk [vmem:[#allocation12] sm:$0xff] %vm1598, %v5396
    // Predicated region
    $region50: #{tpu_custom_call.1} parent=1 // pred_check
      _
    $region51: #{tpu_custom_call.1} parent=1 // pred_check_branch
      %5401 = sbr.rel (0) target = $region53
    $region52: #{tpu_custom_call.1} parent=1 // pred_region
      %s5403 = ssub.s32 1024, 1024
      %5404 = vsyncadd [#allocation4], %s5403
      %s5405 = sshll.u32 [#allocation11], 4
      %s5406 = int_to_ptr.vmem [resolvable:$true] %s5405
      %5411 = dma.vmem_to_hbm [thread:$0]  %s5406, 1024, %s7, [#allocation4], 128, 128, 8
    $region53: #{tpu_custom_call.1} parent=1 // pred_fallthru
      _
    // Predicated region
    $region54: #{tpu_custom_call.1} parent=1 // pred_check
      _
    $region55: #{tpu_custom_call.1} parent=1 // pred_check_branch
      %5413 = sbr.rel (0) target = $region57
    $region56: #{tpu_custom_call.1} parent=1 // pred_region
      %s5415 = ssub.s32 1024, 1024
      %5416 = vsyncadd [#allocation13], %s5415
      %s5417 = sshll.u32 [#allocation12], 4
      %s5418 = int_to_ptr.vmem [resolvable:$true] %s5417
      %5423 = dma.vmem_to_hbm [thread:$0]  %s5418, 1024, %s8, [#allocation13], 128, 128, 8
    $region57: #{tpu_custom_call.1} parent=1 // pred_fallthru
      _
    // Predicated region
    $region58: #{tpu_custom_call.1} parent=1 // pred_check
      _
    $region59: #{tpu_custom_call.1} parent=1 // pred_check_branch
      %5425 = sbr.rel (0) target = $region61
    $region60: #{tpu_custom_call.1} parent=1 // pred_region
      %5426 = dma.done [#allocation4], 1024
    $region61: #{tpu_custom_call.1} parent=1 // pred_fallthru
      _
    // Predicated region
    $region62: #{tpu_custom_call.1} parent=1 // pred_check
      _
    $region63: #{tpu_custom_call.1} parent=1 // pred_check_branch
      %5428 = sbr.rel (0) target = $region65
    $region64: #{tpu_custom_call.1} parent=1 // pred_region
      %5429 = dma.done [#allocation13], 1024
    $region65: #{tpu_custom_call.1} parent=1 // pred_fallthru
      _
    %5430 = vsyncpa [#allocation3], 1
    %5431 = vsyncpa [#allocation6], 1
    %5432 = vsyncpa [#allocation9], 1
    %5433 = vsyncpa [#allocation4], 1
    %5434 = vsyncpa [#allocation13], 1

</llo_original>
